<compile_context>
chip_gen: v7x
topology: tpu7x:2x2x1
jax: 0.10.0
libtpu: 0.0.40
codegen_flags: <defaults>
</compile_context>

<pallas_src>
import functools

import jax
import jax.numpy as jnp
import numpy as np
from jax import lax
from jax.experimental import pallas as pl
from jax.experimental.pallas import tpu as pltpu


# ----------------------------------------------------------------------------
# Small helpers.
# ----------------------------------------------------------------------------
def _zero_oob_rows(t, lo_abs, n, Do):
    """Zero rows of t (R, Ho, Wo, C) whose absolute D index (lo_abs + r) falls
    outside [0, Do).  Only the first n / last n rows can ever be out of range,
    so only those 2n row-slabs are touched (cheap, per perf review)."""
    R = t.shape[0]
    head = t[:n]
    r_h = lax.broadcasted_iota(jnp.int32, (n, 1, 1, 1), 0) + lo_abs
    head = jnp.where(r_h >= 0, head, 0.0)
    tail = t[R - n:]
    r_t = lax.broadcasted_iota(jnp.int32, (n, 1, 1, 1), 0) + (lo_abs + R - n)
    tail = jnp.where(r_t < Do, tail, 0.0)
    return jnp.concatenate([head, t[n:R - n], tail], axis=0)


def _vmem_capacity_bytes():
    # Generation-aware capacity (128 MiB on v5e/v6e, 64 MiB on v7x); fall back
    # to the conservative 64 MiB if the query is unavailable.
    try:
        return int(pltpu.get_tpu_info().vmem_capacity_bytes)
    except Exception:
        return 64 * 2 ** 20


def _padded_bytes(shape, itemsize):
    """VMEM bytes for a buffer of `shape`, accounting for (sublane, lane) tiling."""
    s = list(shape)
    if len(s) < 2:
        s = [1] * (2 - len(s)) + s
    s[-1] = -(-s[-1] // 128) * 128
    sub = max(1, 32 // itemsize)
    s[-2] = -(-s[-2] // sub) * sub
    n = 1
    for v in s:
        n *= v
    return n * itemsize


def _tile_work_bytes(td, Ho, Wo, Cout):
    """Conservative per-tile working set: f32 activations + bf16 im2col buffers."""
    lane_c = -(-Cout // 128) * 128
    row = (Ho + 2) * Wo * lane_c
    return (td + 4) * row * (8 * 4 + 9 * 2 * 2)


def _pick_d_tile(Do, Ho, Wo, Cout, budget):
    best = 2
    for t in range(2, Do + 1, 2):
        if Do % t == 0 and _tile_work_bytes(t, Ho, Wo, Cout) <= budget:
            best = t
    return best


# ----------------------------------------------------------------------------
# Fused kernel: one (batch, D-tile) per grid step.
# ----------------------------------------------------------------------------
def _fused_upblock_kernel(x_ref, wup_ref, bup_ref, w1_ref, b1_ref,
                          w2_ref, b2_ref, w3_ref, b3_ref, o_ref, *,
                          Do, H, W, Cout, td):
    f32 = jnp.float32
    bf16 = jnp.bfloat16
    C = Cout
    Ho, Wo = 2 * H, 2 * W
    hd = td // 2

    j = pl.program_id(1)
    d0 = j * td                                     # first output D row of tile

    # ---- ConvTranspose3d (k=2, s=2): ONE dense matmul over all 8 taps -------
    start = j * hd
    if hd % 8 == 0:
        start = pl.multiple_of(start, 8)
    xs = x_ref[0, pl.ds(start, hd + 2)]             # (hd+2, H, W, Cin) bf16
    xm = xs.reshape((hd + 2) * H * W, xs.shape[3])
    r = jnp.dot(xm, wup_ref[...], preferred_element_type=f32) + bup_ref[...]
    r = r.reshape(hd + 2, H, W, 8 * C)              # lanes = (kd,kh,kw,co)

    # pixel shuffle in VMEM (linear-order preserving concat/reshape, no HBM trip)
    phases = [r[..., t * C:(t + 1) * C] for t in range(8)]      # (hd+2,H,W,C)
    qw = [jnp.concatenate([phases[t][:, :, :, None, :],
                           phases[t + 1][:, :, :, None, :]],
                          axis=3).reshape(hd + 2, H, Wo, C)
          for t in (0, 2, 4, 6)]                                 # kw -> Wo
    qh = [jnp.concatenate([qw[i][:, :, None], qw[i + 1][:, :, None]],
                          axis=2).reshape(hd + 2, Ho, Wo, C)
          for i in (0, 2)]                                       # kh -> Ho
    up = jnp.concatenate([qh[0][:, None], qh[1][:, None]],
                         axis=1).reshape(td + 4, Ho, Wo, C)      # kd -> D
    up = _zero_oob_rows(up, d0 - 2, 2, Do)          # halo rows outside [0,Do)=0

    # ---- (3,3,1) conv + ReLU as ONE long-K matmul (im2col over 9 taps) ------
    def conv33(src, w_ref, b_ref):
        nd = src.shape[0] - 2                       # D halo provided by caller
        sb = src.astype(bf16)
        zh = jnp.zeros((nd + 2, 1, Wo, C), bf16)
        sp = jnp.concatenate([zh, sb, zh], axis=1)  # zero-pad H (outer dim)
        taps = [sp[pd:pd + nd, ph:ph + Ho]          # free outer-dim slices
                for pd in range(3) for ph in range(3)]
        col = jnp.concatenate(taps, axis=-1)        # (nd, Ho, Wo, 9C) bf16
        y = jnp.dot(col.reshape(nd * Ho * Wo, 9 * C), w_ref[...],
                    preferred_element_type=f32)
        y = jnp.maximum(y + b_ref[...], 0.0)
        return y.reshape(nd, Ho, Wo, C)

    y1 = conv33(up, w1_ref, b1_ref)                 # rows: d0-1 .. d0+td
    y1 = _zero_oob_rows(y1, d0 - 1, 1, Do)
    y2 = conv33(y1, w2_ref, b2_ref)                 # rows: d0 .. d0+td-1

    # ---- (1,1,3) conv + ReLU: 3-tap im2col along W --------------------------
    y2b = y2.astype(bf16)
    zw = jnp.zeros((td, Ho, 1, C), bf16)
    left = jnp.concatenate([zw, y2b[:, :, :Wo - 1]], axis=2)     # in[w-1]
    right = jnp.concatenate([y2b[:, :, 1:], zw], axis=2)         # in[w+1]
    col3 = jnp.concatenate([left, y2b, right], axis=-1)          # (td,Ho,Wo,3C)
    y3 = jnp.dot(col3.reshape(td * Ho * Wo, 3 * C), w3_ref[...],
                 preferred_element_type=f32)
    y3 = jnp.maximum(y3 + b3_ref[...], 0.0)
    o_ref[0] = y3.reshape(td, Ho, Wo, C).astype(o_ref.dtype)


# ----------------------------------------------------------------------------
# Wrapper-side weight preparation: tiny dense matrices, done once.
# ----------------------------------------------------------------------------
def _prepare_weights(params):
    f32, bf16 = jnp.float32, jnp.bfloat16
    w_up = params["up_w"].astype(f32)               # (Cin, Cout, 2, 2, 2)
    Cin, Cout = w_up.shape[0], w_up.shape[1]

    # ConvTranspose: (Cin, 8*Cout), column = ((kd*2+kh)*2+kw)*Cout + co.
    wup = jnp.transpose(w_up, (0, 2, 3, 4, 1)).reshape(Cin, 8 * Cout).astype(bf16)
    bup = jnp.tile(params["up_b"].astype(f32), 8)[None]          # (1, 8*Cout)

    def conv33_w(w):                                 # torch (Cout, Cout, 3, 3, 1)
        # rows ordered ((pd*3+ph)*Cout + ci), cols = co
        return (jnp.transpose(w[:, :, :, :, 0], (2, 3, 1, 0))
                .reshape(9 * Cout, Cout).astype(bf16))

    w1 = conv33_w(params["c1_w"].astype(f32))
    w2 = conv33_w(params["c2_w"].astype(f32))
    b1 = params["c1_b"].astype(f32)[None]
    b2 = params["c2_b"].astype(f32)[None]

    # (1,1,3) conv: rows ordered (pw*Cout + ci), cols = co.
    w3 = (jnp.transpose(params["c3_w"].astype(f32)[:, :, 0, 0, :], (2, 1, 0))
          .reshape(3 * Cout, Cout).astype(bf16))
    b3 = params["c3_b"].astype(f32)[None]
    return wup, bup, w1, b1, w2, b2, w3, b3


# ----------------------------------------------------------------------------
# UpBlock forward (up_mode='transposed', normalization=None, activation='relu').
# ----------------------------------------------------------------------------
@functools.partial(jax.jit, static_argnames=("original_input_slices", "d_tile"))
def up_block_forward(x, params, original_input_slices, d_tile=None):
    """x: [N, D, H, W, Cin] (decoder_layer, NDHWC layout)."""
    N, D, H, W, Cin = x.shape
    Cout = params["up_w"].shape[1]
    Do, Ho, Wo = 2 * D, 2 * H, 2 * W

    # diff_slices = original_input_slices - Do
    # TODO(synk): trilinear F.interpolate branch (diff_slices != 0) not implemented.
    assert original_input_slices == Do, "trilinear resize branch not implemented"

    cap = _vmem_capacity_bytes()
    td = (_pick_d_tile(Do, Ho, Wo, Cout, budget=(2 * cap) // 5)
          if d_tile is None else int(d_tile))
    assert Do % td == 0 and td % 2 == 0, "d_tile must be an even divisor of 2*D"

    wup, bup, w1, b1, w2, b2, w3, b3 = _prepare_weights(params)

    # zero-pad D by 1 and stream the slab in bf16 (halved DMA bytes).
    xf = jnp.pad(x, ((0, 0), (1, 1), (0, 0), (0, 0), (0, 0))).astype(jnp.bfloat16)

    kernel = functools.partial(_fused_upblock_kernel,
                               Do=Do, H=H, W=W, Cout=Cout, td=td)

    # Explicit VMEM budget: true need (+50% margin), clamped per generation.
    weights_b = (sum(_padded_bytes(t.shape, 2) for t in (wup, w1, w2, w3))
                 + sum(_padded_bytes(t.shape, 4) for t in (bup, b1, b2, b3)))
    in_blk_b = _padded_bytes((D + 2, H, W, Cin), 2)
    out_blk_b = _padded_bytes((td, Ho, Wo, Cout), 4)
    need = 2 * (weights_b + in_blk_b + out_blk_b) + _tile_work_bytes(td, Ho, Wo, Cout)
    vmem_limit = int(min(max(need * 3 // 2, 32 * 2 ** 20), (7 * cap) // 8))

    # Megacore: split on batch when N >= 2 (keeps the input slab private per core).
    dim_sem = ("parallel", "parallel") if N == 1 else ("parallel", "arbitrary")

    out = pl.pallas_call(
        kernel,
        out_shape=jax.ShapeDtypeStruct((N, Do, Ho, Wo, Cout), jnp.float32),
        grid_spec=pltpu.PrefetchScalarGridSpec(
            num_scalar_prefetch=0,
            grid=(N, Do // td),
            in_specs=[
                # padded input slab: resident per batch element (index indep. of j)
                pl.BlockSpec((1, D + 2, H, W, Cin), lambda n, j: (n, 0, 0, 0, 0)),
                # dense weights / biases: tiny, VMEM-resident for the whole grid
                pl.BlockSpec(wup.shape, lambda n, j: (0, 0)),
                pl.BlockSpec(bup.shape, lambda n, j: (0, 0)),
                pl.BlockSpec(w1.shape, lambda n, j: (0, 0)),
                pl.BlockSpec(b1.shape, lambda n, j: (0, 0)),
                pl.BlockSpec(w2.shape, lambda n, j: (0, 0)),
                pl.BlockSpec(b2.shape, lambda n, j: (0, 0)),
                pl.BlockSpec(w3.shape, lambda n, j: (0, 0)),
                pl.BlockSpec(b3.shape, lambda n, j: (0, 0)),
            ],
            out_specs=pl.BlockSpec((1, td, Ho, Wo, Cout),
                                   lambda n, j: (n, j, 0, 0, 0)),
        ),
        compiler_params=pltpu.CompilerParams(
            dimension_semantics=dim_sem, vmem_limit_bytes=vmem_limit),
    )(xf, wup, bup, w1, b1, w2, b2, w3, b3)

    return out                                       # (N, Do, Ho, Wo, Cout)


# ----------------------------------------------------------------------------
# Pure-JAX (XLA) reference for correctness checking.
# ----------------------------------------------------------------------------
def reference_forward(x, params):
    dn = ("NDHWC", "DHWIO", "NDHWC")
    # ConvTranspose3d == lhs-dilated conv with spatially flipped weights.
    k_up = jnp.flip(jnp.transpose(params["up_w"], (2, 3, 4, 0, 1)),
                    axis=(0, 1, 2))
    up = jax.lax.conv_general_dilated(
        x, k_up, window_strides=(1, 1, 1),
        padding=((1, 1), (1, 1), (1, 1)), lhs_dilation=(2, 2, 2),
        dimension_numbers=dn) + params["up_b"]

    def conv_relu(u, w, b, pad):
        k = jnp.transpose(w, (2, 3, 4, 1, 0))
        y = jax.lax.conv_general_dilated(u, k, (1, 1, 1), pad,
                                         dimension_numbers=dn)
        return jnp.maximum(y + b, 0.0)

    y = conv_relu(up, params["c1_w"], params["c1_b"],
                  ((1, 1), (1, 1), (0, 0)))
    y = conv_relu(y, params["c2_w"], params["c2_b"],
                  ((1, 1), (1, 1), (0, 0)))
    y = conv_relu(y, params["c3_w"], params["c3_b"],
                  ((0, 0), (0, 0), (1, 1)))
    return y


if __name__ == "__main__":
    N, Cin, Cout, D, H, W = 2, 8, 4, 8, 4, 4
    key = jax.random.PRNGKey(0)
    ks = jax.random.split(key, 9)

    params = {
        "up_w": 0.1 * jax.random.normal(ks[0], (Cin, Cout, 2, 2, 2), jnp.float32),
        "up_b": 0.1 * jax.random.normal(ks[1], (Cout,), jnp.float32),
        "c1_w": 0.1 * jax.random.normal(ks[2], (Cout, Cout, 3, 3, 1), jnp.float32),
        "c1_b": 0.1 * jax.random.normal(ks[3], (Cout,), jnp.float32),
        "c2_w": 0.1 * jax.random.normal(ks[4], (Cout, Cout, 3, 3, 1), jnp.float32),
        "c2_b": 0.1 * jax.random.normal(ks[5], (Cout,), jnp.float32),
        "c3_w": 0.1 * jax.random.normal(ks[6], (Cout, Cout, 1, 1, 3), jnp.float32),
        "c3_b": 0.1 * jax.random.normal(ks[7], (Cout,), jnp.float32),
    }
    x = jax.random.normal(ks[8], (N, D, H, W, Cin), jnp.float32)
    original_input_slices = 2 * D

    # The kernel streams weights/input as bf16 (perf review); pre-quantize both
    # paths so the f32 XLA reference isolates kernel math from quantization.
    q = lambda t: t.astype(jnp.bfloat16).astype(jnp.float32)
    params_q = jax.tree_util.tree_map(q, params)
    x_q = q(x)

    ref = jax.block_until_ready(reference_forward(x_q, params_q))

    # d_tile=8 -> two D-tiles per batch (exercises halo recompute + boundary
    # masking); d_tile=None -> generation-aware auto tile.
    for dt in (8, None):
        out = jax.block_until_ready(
            up_block_forward(x_q, params_q, original_input_slices, d_tile=dt))
        np.testing.assert_allclose(np.asarray(out), np.asarray(ref),
                                   rtol=2e-2, atol=2e-2)
    print("KERNEL_OK")
</pallas_src>

<mosaic_0001>
module attributes {stable_mosaic.version = 11 : i64} {
  func.func @_fused_upblock_kernel(%arg0: i32, %arg1: i32, %arg2: memref<1x10x4x4x8xbf16, #tpu.memory_space<vmem>>, %arg3: memref<8x32xbf16, #tpu.memory_space<vmem>>, %arg4: memref<1x32xf32, #tpu.memory_space<vmem>>, %arg5: memref<36x4xbf16, #tpu.memory_space<vmem>>, %arg6: memref<1x4xf32, #tpu.memory_space<vmem>>, %arg7: memref<36x4xbf16, #tpu.memory_space<vmem>>, %arg8: memref<1x4xf32, #tpu.memory_space<vmem>>, %arg9: memref<12x4xbf16, #tpu.memory_space<vmem>>, %arg10: memref<1x4xf32, #tpu.memory_space<vmem>>, %arg11: memref<1x8x8x8x4xf32, #tpu.memory_space<vmem>>) attributes {dimension_semantics = [#tpu.dimension_semantics<parallel>, #tpu.dimension_semantics<arbitrary>], iteration_bounds = array<i64: 2, 2>, scalar_prefetch = 0 : i64, scratch_operands = 0 : i64, tpu.core_type = #tpu.core_type<tc>, window_params = [{transform_indices = @transform_0, window_bounds = array<i64: 1, 10, 4, 4, 8>}, {pipeline_mode = #tpu.pipeline_mode<synchronous>, transform_indices = @transform_1, window_bounds = array<i64: 8, 32>}, {pipeline_mode = #tpu.pipeline_mode<synchronous>, transform_indices = @transform_2, window_bounds = array<i64: 1, 32>}, {pipeline_mode = #tpu.pipeline_mode<synchronous>, transform_indices = @transform_3, window_bounds = array<i64: 36, 4>}, {pipeline_mode = #tpu.pipeline_mode<synchronous>, transform_indices = @transform_4, window_bounds = array<i64: 1, 4>}, {pipeline_mode = #tpu.pipeline_mode<synchronous>, transform_indices = @transform_5, window_bounds = array<i64: 36, 4>}, {pipeline_mode = #tpu.pipeline_mode<synchronous>, transform_indices = @transform_6, window_bounds = array<i64: 1, 4>}, {pipeline_mode = #tpu.pipeline_mode<synchronous>, transform_indices = @transform_7, window_bounds = array<i64: 12, 4>}, {pipeline_mode = #tpu.pipeline_mode<synchronous>, transform_indices = @transform_8, window_bounds = array<i64: 1, 4>}, {transform_indices = @transform_9, window_bounds = array<i64: 1, 8, 8, 8, 4>}]} {
    %c8_i32 = arith.constant 8 : i32
    %0 = arith.muli %arg1, %c8_i32 : i32
    %c4_i32 = arith.constant 4 : i32
    %1 = arith.muli %arg1, %c4_i32 : i32
    %c0 = arith.constant 0 : index
    %2 = arith.index_cast %1 : i32 to index
    %c0_0 = arith.constant 0 : index
    %c0_1 = arith.constant 0 : index
    %c0_2 = arith.constant 0 : index
    %3 = vector.load %arg2[%c0, %2, %c0_0, %c0_1, %c0_2] : memref<1x10x4x4x8xbf16, #tpu.memory_space<vmem>>, vector<1x6x4x4x8xbf16>
    %4 = vector.shape_cast %3 : vector<1x6x4x4x8xbf16> to vector<6x4x4x8xbf16>
    %5 = vector.shape_cast %4 : vector<6x4x4x8xbf16> to vector<96x8xbf16>
    %c0_3 = arith.constant 0 : index
    %c0_4 = arith.constant 0 : index
    %6 = vector.load %arg3[%c0_3, %c0_4] : memref<8x32xbf16, #tpu.memory_space<vmem>>, vector<8x32xbf16>
    %cst = arith.constant dense<0.000000e+00> : vector<96x32xf32>
    %7 = tpu.matmul %5, %6, %cst {dimension_numbers = #tpu.dot_dimension_numbers<[1], [0], [0], [1], [0, 0, 1, 1], [], []>} : vector<96x8xbf16>, vector<8x32xbf16>, vector<96x32xf32> -> vector<96x32xf32>
    %c0_5 = arith.constant 0 : index
    %c0_6 = arith.constant 0 : index
    %8 = vector.load %arg4[%c0_5, %c0_6] : memref<1x32xf32, #tpu.memory_space<vmem>>, vector<1x32xf32>
    %9 = vector.broadcast %8 : vector<1x32xf32> to vector<96x32xf32>
    %10 = arith.addf %7, %9 : vector<96x32xf32>
    %11 = vector.shape_cast %10 : vector<96x32xf32> to vector<6x4x4x32xf32>
    %12 = vector.extract_strided_slice %11 {offsets = [0, 0, 0, 0], sizes = [6, 4, 4, 4], strides = [1, 1, 1, 1]} : vector<6x4x4x32xf32> to vector<6x4x4x4xf32>
    %13 = vector.extract_strided_slice %11 {offsets = [0, 0, 0, 4], sizes = [6, 4, 4, 4], strides = [1, 1, 1, 1]} : vector<6x4x4x32xf32> to vector<6x4x4x4xf32>
    %14 = vector.extract_strided_slice %11 {offsets = [0, 0, 0, 8], sizes = [6, 4, 4, 4], strides = [1, 1, 1, 1]} : vector<6x4x4x32xf32> to vector<6x4x4x4xf32>
    %15 = vector.extract_strided_slice %11 {offsets = [0, 0, 0, 12], sizes = [6, 4, 4, 4], strides = [1, 1, 1, 1]} : vector<6x4x4x32xf32> to vector<6x4x4x4xf32>
    %16 = vector.extract_strided_slice %11 {offsets = [0, 0, 0, 16], sizes = [6, 4, 4, 4], strides = [1, 1, 1, 1]} : vector<6x4x4x32xf32> to vector<6x4x4x4xf32>
    %17 = vector.extract_strided_slice %11 {offsets = [0, 0, 0, 20], sizes = [6, 4, 4, 4], strides = [1, 1, 1, 1]} : vector<6x4x4x32xf32> to vector<6x4x4x4xf32>
    %18 = vector.extract_strided_slice %11 {offsets = [0, 0, 0, 24], sizes = [6, 4, 4, 4], strides = [1, 1, 1, 1]} : vector<6x4x4x32xf32> to vector<6x4x4x4xf32>
    %19 = vector.extract_strided_slice %11 {offsets = [0, 0, 0, 28], sizes = [6, 4, 4, 4], strides = [1, 1, 1, 1]} : vector<6x4x4x32xf32> to vector<6x4x4x4xf32>
    %20 = vector.shape_cast %12 : vector<6x4x4x4xf32> to vector<6x4x4x1x4xf32>
    %21 = vector.shape_cast %13 : vector<6x4x4x4xf32> to vector<6x4x4x1x4xf32>
    %22 = tpu.concatenate %20, %21 in 3 : vector<6x4x4x1x4xf32>, vector<6x4x4x1x4xf32> -> vector<6x4x4x2x4xf32>
    %23 = vector.shape_cast %22 : vector<6x4x4x2x4xf32> to vector<6x4x8x4xf32>
    %24 = vector.shape_cast %14 : vector<6x4x4x4xf32> to vector<6x4x4x1x4xf32>
    %25 = vector.shape_cast %15 : vector<6x4x4x4xf32> to vector<6x4x4x1x4xf32>
    %26 = tpu.concatenate %24, %25 in 3 : vector<6x4x4x1x4xf32>, vector<6x4x4x1x4xf32> -> vector<6x4x4x2x4xf32>
    %27 = vector.shape_cast %26 : vector<6x4x4x2x4xf32> to vector<6x4x8x4xf32>
    %28 = vector.shape_cast %16 : vector<6x4x4x4xf32> to vector<6x4x4x1x4xf32>
    %29 = vector.shape_cast %17 : vector<6x4x4x4xf32> to vector<6x4x4x1x4xf32>
    %30 = tpu.concatenate %28, %29 in 3 : vector<6x4x4x1x4xf32>, vector<6x4x4x1x4xf32> -> vector<6x4x4x2x4xf32>
    %31 = vector.shape_cast %30 : vector<6x4x4x2x4xf32> to vector<6x4x8x4xf32>
    %32 = vector.shape_cast %18 : vector<6x4x4x4xf32> to vector<6x4x4x1x4xf32>
    %33 = vector.shape_cast %19 : vector<6x4x4x4xf32> to vector<6x4x4x1x4xf32>
    %34 = tpu.concatenate %32, %33 in 3 : vector<6x4x4x1x4xf32>, vector<6x4x4x1x4xf32> -> vector<6x4x4x2x4xf32>
    %35 = vector.shape_cast %34 : vector<6x4x4x2x4xf32> to vector<6x4x8x4xf32>
    %36 = vector.shape_cast %23 : vector<6x4x8x4xf32> to vector<6x4x1x8x4xf32>
    %37 = vector.shape_cast %27 : vector<6x4x8x4xf32> to vector<6x4x1x8x4xf32>
    %38 = tpu.concatenate %36, %37 in 2 : vector<6x4x1x8x4xf32>, vector<6x4x1x8x4xf32> -> vector<6x4x2x8x4xf32>
    %39 = vector.shape_cast %38 : vector<6x4x2x8x4xf32> to vector<6x8x8x4xf32>
    %40 = vector.shape_cast %31 : vector<6x4x8x4xf32> to vector<6x4x1x8x4xf32>
    %41 = vector.shape_cast %35 : vector<6x4x8x4xf32> to vector<6x4x1x8x4xf32>
    %42 = tpu.concatenate %40, %41 in 2 : vector<6x4x1x8x4xf32>, vector<6x4x1x8x4xf32> -> vector<6x4x2x8x4xf32>
    %43 = vector.shape_cast %42 : vector<6x4x2x8x4xf32> to vector<6x8x8x4xf32>
    %44 = vector.shape_cast %39 : vector<6x8x8x4xf32> to vector<6x1x8x8x4xf32>
    %45 = vector.shape_cast %43 : vector<6x8x8x4xf32> to vector<6x1x8x8x4xf32>
    %46 = tpu.concatenate %44, %45 in 1 : vector<6x1x8x8x4xf32>, vector<6x1x8x8x4xf32> -> vector<6x2x8x8x4xf32>
    %47 = vector.shape_cast %46 : vector<6x2x8x8x4xf32> to vector<12x8x8x4xf32>
    %c2_i32 = arith.constant 2 : i32
    %48 = arith.subi %0, %c2_i32 : i32
    %49 = vector.extract_strided_slice %47 {offsets = [0, 0, 0, 0], sizes = [2, 8, 8, 4], strides = [1, 1, 1, 1]} : vector<12x8x8x4xf32> to vector<2x8x8x4xf32>
    %50 = tpu.iota {dimensions = array<i32: 0>} : vector<2x1x1x1xi32>
    %51 = vector.broadcast %48 : i32 to vector<2x1x1x1xi32>
    %52 = arith.addi %50, %51 : vector<2x1x1x1xi32>
    %c0_i32 = arith.constant 0 : i32
    %53 = vector.broadcast %c0_i32 : i32 to vector<2x1x1x1xi32>
    %54 = arith.cmpi sge, %52, %53 : vector<2x1x1x1xi32>
    %cst_7 = arith.constant 0.000000e+00 : f32
    %55 = vector.shape_cast %54 : vector<2x1x1x1xi1> to vector<2x1x1x1xi1>
    %56 = vector.broadcast %55 : vector<2x1x1x1xi1> to vector<2x8x8x4xi1>
    %57 = vector.broadcast %cst_7 : f32 to vector<2x8x8x4xf32>
    %58 = arith.select %56, %49, %57 : vector<2x8x8x4xi1>, vector<2x8x8x4xf32>
    %59 = vector.extract_strided_slice %47 {offsets = [10, 0, 0, 0], sizes = [2, 8, 8, 4], strides = [1, 1, 1, 1]} : vector<12x8x8x4xf32> to vector<2x8x8x4xf32>
    %60 = tpu.iota {dimensions = array<i32: 0>} : vector<2x1x1x1xi32>
    %c12_i32 = arith.constant 12 : i32
    %61 = arith.addi %48, %c12_i32 : i32
    %c2_i32_8 = arith.constant 2 : i32
    %62 = arith.subi %61, %c2_i32_8 : i32
    %63 = vector.broadcast %62 : i32 to vector<2x1x1x1xi32>
    %64 = arith.addi %60, %63 : vector<2x1x1x1xi32>
    %c16_i32 = arith.constant 16 : i32
    %65 = vector.broadcast %c16_i32 : i32 to vector<2x1x1x1xi32>
    %66 = arith.cmpi slt, %64, %65 : vector<2x1x1x1xi32>
    %cst_9 = arith.constant 0.000000e+00 : f32
    %67 = vector.shape_cast %66 : vector<2x1x1x1xi1> to vector<2x1x1x1xi1>
    %68 = vector.broadcast %67 : vector<2x1x1x1xi1> to vector<2x8x8x4xi1>
    %69 = vector.broadcast %cst_9 : f32 to vector<2x8x8x4xf32>
    %70 = arith.select %68, %59, %69 : vector<2x8x8x4xi1>, vector<2x8x8x4xf32>
    %71 = vector.extract_strided_slice %47 {offsets = [2, 0, 0, 0], sizes = [8, 8, 8, 4], strides = [1, 1, 1, 1]} : vector<12x8x8x4xf32> to vector<8x8x8x4xf32>
    %72 = tpu.concatenate %58, %71, %70 in 0 : vector<2x8x8x4xf32>, vector<8x8x8x4xf32>, vector<2x8x8x4xf32> -> vector<12x8x8x4xf32>
    %73 = arith.truncf %72 : vector<12x8x8x4xf32> to vector<12x8x8x4xbf16>
    %cst_10 = arith.constant 0.000000e+00 : bf16
    %74 = vector.broadcast %cst_10 : bf16 to vector<12x1x8x4xbf16>
    %75 = tpu.concatenate %74, %73, %74 in 1 : vector<12x1x8x4xbf16>, vector<12x8x8x4xbf16>, vector<12x1x8x4xbf16> -> vector<12x10x8x4xbf16>
    %76 = vector.extract_strided_slice %75 {offsets = [0, 0, 0, 0], sizes = [10, 8, 8, 4], strides = [1, 1, 1, 1]} : vector<12x10x8x4xbf16> to vector<10x8x8x4xbf16>
    %77 = vector.extract_strided_slice %75 {offsets = [0, 1, 0, 0], sizes = [10, 8, 8, 4], strides = [1, 1, 1, 1]} : vector<12x10x8x4xbf16> to vector<10x8x8x4xbf16>
    %78 = vector.extract_strided_slice %75 {offsets = [0, 2, 0, 0], sizes = [10, 8, 8, 4], strides = [1, 1, 1, 1]} : vector<12x10x8x4xbf16> to vector<10x8x8x4xbf16>
    %79 = vector.extract_strided_slice %75 {offsets = [1, 0, 0, 0], sizes = [10, 8, 8, 4], strides = [1, 1, 1, 1]} : vector<12x10x8x4xbf16> to vector<10x8x8x4xbf16>
    %80 = vector.extract_strided_slice %75 {offsets = [1, 1, 0, 0], sizes = [10, 8, 8, 4], strides = [1, 1, 1, 1]} : vector<12x10x8x4xbf16> to vector<10x8x8x4xbf16>
    %81 = vector.extract_strided_slice %75 {offsets = [1, 2, 0, 0], sizes = [10, 8, 8, 4], strides = [1, 1, 1, 1]} : vector<12x10x8x4xbf16> to vector<10x8x8x4xbf16>
    %82 = vector.extract_strided_slice %75 {offsets = [2, 0, 0, 0], sizes = [10, 8, 8, 4], strides = [1, 1, 1, 1]} : vector<12x10x8x4xbf16> to vector<10x8x8x4xbf16>
    %83 = vector.extract_strided_slice %75 {offsets = [2, 1, 0, 0], sizes = [10, 8, 8, 4], strides = [1, 1, 1, 1]} : vector<12x10x8x4xbf16> to vector<10x8x8x4xbf16>
    %84 = vector.extract_strided_slice %75 {offsets = [2, 2, 0, 0], sizes = [10, 8, 8, 4], strides = [1, 1, 1, 1]} : vector<12x10x8x4xbf16> to vector<10x8x8x4xbf16>
    %85 = tpu.concatenate %76, %77, %78, %79, %80, %81, %82, %83, %84 in 3 : vector<10x8x8x4xbf16>, vector<10x8x8x4xbf16>, vector<10x8x8x4xbf16>, vector<10x8x8x4xbf16>, vector<10x8x8x4xbf16>, vector<10x8x8x4xbf16>, vector<10x8x8x4xbf16>, vector<10x8x8x4xbf16>, vector<10x8x8x4xbf16> -> vector<10x8x8x36xbf16>
    %86 = vector.shape_cast %85 : vector<10x8x8x36xbf16> to vector<640x36xbf16>
    %c0_11 = arith.constant 0 : index
    %c0_12 = arith.constant 0 : index
    %87 = vector.load %arg5[%c0_11, %c0_12] : memref<36x4xbf16, #tpu.memory_space<vmem>>, vector<36x4xbf16>
    %cst_13 = arith.constant dense<0.000000e+00> : vector<640x4xf32>
    %88 = tpu.matmul %86, %87, %cst_13 {dimension_numbers = #tpu.dot_dimension_numbers<[1], [0], [0], [1], [0, 0, 1, 1], [], []>} : vector<640x36xbf16>, vector<36x4xbf16>, vector<640x4xf32> -> vector<640x4xf32>
    %c0_14 = arith.constant 0 : index
    %c0_15 = arith.constant 0 : index
    %89 = vector.load %arg6[%c0_14, %c0_15] : memref<1x4xf32, #tpu.memory_space<vmem>>, vector<1x4xf32>
    %90 = vector.broadcast %89 : vector<1x4xf32> to vector<640x4xf32>
    %91 = arith.addf %88, %90 : vector<640x4xf32>
    %cst_16 = arith.constant 0.000000e+00 : f32
    %92 = vector.broadcast %cst_16 : f32 to vector<640x4xf32>
    %93 = arith.maximumf %91, %92 : vector<640x4xf32>
    %94 = vector.shape_cast %93 : vector<640x4xf32> to vector<10x8x8x4xf32>
    %c1_i32 = arith.constant 1 : i32
    %95 = arith.subi %0, %c1_i32 : i32
    %96 = vector.extract_strided_slice %94 {offsets = [0, 0, 0, 0], sizes = [1, 8, 8, 4], strides = [1, 1, 1, 1]} : vector<10x8x8x4xf32> to vector<1x8x8x4xf32>
    %97 = tpu.iota {dimensions = array<i32: 0>} : vector<1x1x1x1xi32>
    %98 = vector.broadcast %95 : i32 to vector<1x1x1x1xi32>
    %99 = arith.addi %97, %98 : vector<1x1x1x1xi32>
    %c0_i32_17 = arith.constant 0 : i32
    %100 = vector.broadcast %c0_i32_17 : i32 to vector<1x1x1x1xi32>
    %101 = arith.cmpi sge, %99, %100 : vector<1x1x1x1xi32>
    %cst_18 = arith.constant 0.000000e+00 : f32
    %102 = vector.shape_cast %101 : vector<1x1x1x1xi1> to vector<1x1x1x1xi1>
    %103 = vector.broadcast %102 : vector<1x1x1x1xi1> to vector<1x8x8x4xi1>
    %104 = vector.broadcast %cst_18 : f32 to vector<1x8x8x4xf32>
    %105 = arith.select %103, %96, %104 : vector<1x8x8x4xi1>, vector<1x8x8x4xf32>
    %106 = vector.extract_strided_slice %94 {offsets = [9, 0, 0, 0], sizes = [1, 8, 8, 4], strides = [1, 1, 1, 1]} : vector<10x8x8x4xf32> to vector<1x8x8x4xf32>
    %107 = tpu.iota {dimensions = array<i32: 0>} : vector<1x1x1x1xi32>
    %c10_i32 = arith.constant 10 : i32
    %108 = arith.addi %95, %c10_i32 : i32
    %c1_i32_19 = arith.constant 1 : i32
    %109 = arith.subi %108, %c1_i32_19 : i32
    %110 = vector.broadcast %109 : i32 to vector<1x1x1x1xi32>
    %111 = arith.addi %107, %110 : vector<1x1x1x1xi32>
    %c16_i32_20 = arith.constant 16 : i32
    %112 = vector.broadcast %c16_i32_20 : i32 to vector<1x1x1x1xi32>
    %113 = arith.cmpi slt, %111, %112 : vector<1x1x1x1xi32>
    %cst_21 = arith.constant 0.000000e+00 : f32
    %114 = vector.shape_cast %113 : vector<1x1x1x1xi1> to vector<1x1x1x1xi1>
    %115 = vector.broadcast %114 : vector<1x1x1x1xi1> to vector<1x8x8x4xi1>
    %116 = vector.broadcast %cst_21 : f32 to vector<1x8x8x4xf32>
    %117 = arith.select %115, %106, %116 : vector<1x8x8x4xi1>, vector<1x8x8x4xf32>
    %118 = vector.extract_strided_slice %94 {offsets = [1, 0, 0, 0], sizes = [8, 8, 8, 4], strides = [1, 1, 1, 1]} : vector<10x8x8x4xf32> to vector<8x8x8x4xf32>
    %119 = tpu.concatenate %105, %118, %117 in 0 : vector<1x8x8x4xf32>, vector<8x8x8x4xf32>, vector<1x8x8x4xf32> -> vector<10x8x8x4xf32>
    %120 = arith.truncf %119 : vector<10x8x8x4xf32> to vector<10x8x8x4xbf16>
    %cst_22 = arith.constant 0.000000e+00 : bf16
    %121 = vector.broadcast %cst_22 : bf16 to vector<10x1x8x4xbf16>
    %122 = tpu.concatenate %121, %120, %121 in 1 : vector<10x1x8x4xbf16>, vector<10x8x8x4xbf16>, vector<10x1x8x4xbf16> -> vector<10x10x8x4xbf16>
    %123 = vector.extract_strided_slice %122 {offsets = [0, 0, 0, 0], sizes = [8, 8, 8, 4], strides = [1, 1, 1, 1]} : vector<10x10x8x4xbf16> to vector<8x8x8x4xbf16>
    %124 = vector.extract_strided_slice %122 {offsets = [0, 1, 0, 0], sizes = [8, 8, 8, 4], strides = [1, 1, 1, 1]} : vector<10x10x8x4xbf16> to vector<8x8x8x4xbf16>
    %125 = vector.extract_strided_slice %122 {offsets = [0, 2, 0, 0], sizes = [8, 8, 8, 4], strides = [1, 1, 1, 1]} : vector<10x10x8x4xbf16> to vector<8x8x8x4xbf16>
    %126 = vector.extract_strided_slice %122 {offsets = [1, 0, 0, 0], sizes = [8, 8, 8, 4], strides = [1, 1, 1, 1]} : vector<10x10x8x4xbf16> to vector<8x8x8x4xbf16>
    %127 = vector.extract_strided_slice %122 {offsets = [1, 1, 0, 0], sizes = [8, 8, 8, 4], strides = [1, 1, 1, 1]} : vector<10x10x8x4xbf16> to vector<8x8x8x4xbf16>
    %128 = vector.extract_strided_slice %122 {offsets = [1, 2, 0, 0], sizes = [8, 8, 8, 4], strides = [1, 1, 1, 1]} : vector<10x10x8x4xbf16> to vector<8x8x8x4xbf16>
    %129 = vector.extract_strided_slice %122 {offsets = [2, 0, 0, 0], sizes = [8, 8, 8, 4], strides = [1, 1, 1, 1]} : vector<10x10x8x4xbf16> to vector<8x8x8x4xbf16>
    %130 = vector.extract_strided_slice %122 {offsets = [2, 1, 0, 0], sizes = [8, 8, 8, 4], strides = [1, 1, 1, 1]} : vector<10x10x8x4xbf16> to vector<8x8x8x4xbf16>
    %131 = vector.extract_strided_slice %122 {offsets = [2, 2, 0, 0], sizes = [8, 8, 8, 4], strides = [1, 1, 1, 1]} : vector<10x10x8x4xbf16> to vector<8x8x8x4xbf16>
    %132 = tpu.concatenate %123, %124, %125, %126, %127, %128, %129, %130, %131 in 3 : vector<8x8x8x4xbf16>, vector<8x8x8x4xbf16>, vector<8x8x8x4xbf16>, vector<8x8x8x4xbf16>, vector<8x8x8x4xbf16>, vector<8x8x8x4xbf16>, vector<8x8x8x4xbf16>, vector<8x8x8x4xbf16>, vector<8x8x8x4xbf16> -> vector<8x8x8x36xbf16>
    %133 = vector.shape_cast %132 : vector<8x8x8x36xbf16> to vector<512x36xbf16>
    %c0_23 = arith.constant 0 : index
    %c0_24 = arith.constant 0 : index
    %134 = vector.load %arg7[%c0_23, %c0_24] : memref<36x4xbf16, #tpu.memory_space<vmem>>, vector<36x4xbf16>
    %cst_25 = arith.constant dense<0.000000e+00> : vector<512x4xf32>
    %135 = tpu.matmul %133, %134, %cst_25 {dimension_numbers = #tpu.dot_dimension_numbers<[1], [0], [0], [1], [0, 0, 1, 1], [], []>} : vector<512x36xbf16>, vector<36x4xbf16>, vector<512x4xf32> -> vector<512x4xf32>
    %c0_26 = arith.constant 0 : index
    %c0_27 = arith.constant 0 : index
    %136 = vector.load %arg8[%c0_26, %c0_27] : memref<1x4xf32, #tpu.memory_space<vmem>>, vector<1x4xf32>
    %137 = vector.broadcast %136 : vector<1x4xf32> to vector<512x4xf32>
    %138 = arith.addf %135, %137 : vector<512x4xf32>
    %cst_28 = arith.constant 0.000000e+00 : f32
    %139 = vector.broadcast %cst_28 : f32 to vector<512x4xf32>
    %140 = arith.maximumf %138, %139 : vector<512x4xf32>
    %141 = vector.shape_cast %140 : vector<512x4xf32> to vector<8x8x8x4xf32>
    %142 = arith.truncf %141 : vector<8x8x8x4xf32> to vector<8x8x8x4xbf16>
    %cst_29 = arith.constant 0.000000e+00 : bf16
    %143 = vector.broadcast %cst_29 : bf16 to vector<8x8x1x4xbf16>
    %144 = vector.extract_strided_slice %142 {offsets = [0, 0, 0, 0], sizes = [8, 8, 7, 4], strides = [1, 1, 1, 1]} : vector<8x8x8x4xbf16> to vector<8x8x7x4xbf16>
    %145 = tpu.concatenate %143, %144 in 2 : vector<8x8x1x4xbf16>, vector<8x8x7x4xbf16> -> vector<8x8x8x4xbf16>
    %146 = vector.extract_strided_slice %142 {offsets = [0, 0, 1, 0], sizes = [8, 8, 7, 4], strides = [1, 1, 1, 1]} : vector<8x8x8x4xbf16> to vector<8x8x7x4xbf16>
    %147 = tpu.concatenate %146, %143 in 2 : vector<8x8x7x4xbf16>, vector<8x8x1x4xbf16> -> vector<8x8x8x4xbf16>
    %148 = tpu.concatenate %145, %142, %147 in 3 : vector<8x8x8x4xbf16>, vector<8x8x8x4xbf16>, vector<8x8x8x4xbf16> -> vector<8x8x8x12xbf16>
    %149 = vector.shape_cast %148 : vector<8x8x8x12xbf16> to vector<512x12xbf16>
    %c0_30 = arith.constant 0 : index
    %c0_31 = arith.constant 0 : index
    %150 = vector.load %arg9[%c0_30, %c0_31] : memref<12x4xbf16, #tpu.memory_space<vmem>>, vector<12x4xbf16>
    %cst_32 = arith.constant dense<0.000000e+00> : vector<512x4xf32>
    %151 = tpu.matmul %149, %150, %cst_32 {dimension_numbers = #tpu.dot_dimension_numbers<[1], [0], [0], [1], [0, 0, 1, 1], [], []>} : vector<512x12xbf16>, vector<12x4xbf16>, vector<512x4xf32> -> vector<512x4xf32>
    %c0_33 = arith.constant 0 : index
    %c0_34 = arith.constant 0 : index
    %152 = vector.load %arg10[%c0_33, %c0_34] : memref<1x4xf32, #tpu.memory_space<vmem>>, vector<1x4xf32>
    %153 = vector.broadcast %152 : vector<1x4xf32> to vector<512x4xf32>
    %154 = arith.addf %151, %153 : vector<512x4xf32>
    %cst_35 = arith.constant 0.000000e+00 : f32
    %155 = vector.broadcast %cst_35 : f32 to vector<512x4xf32>
    %156 = arith.maximumf %154, %155 : vector<512x4xf32>
    %157 = vector.shape_cast %156 : vector<512x4xf32> to vector<8x8x8x4xf32>
    %c0_36 = arith.constant 0 : index
    %c0_37 = arith.constant 0 : index
    %c0_38 = arith.constant 0 : index
    %c0_39 = arith.constant 0 : index
    %c0_40 = arith.constant 0 : index
    %158 = vector.load %arg11[%c0_36, %c0_37, %c0_38, %c0_39, %c0_40] : memref<1x8x8x8x4xf32, #tpu.memory_space<vmem>>, vector<1x8x8x8x4xf32>
    %159 = vector.shape_cast %158 : vector<1x8x8x8x4xf32> to vector<8x8x8x4xf32>
    %160 = vector.shape_cast %157 : vector<8x8x8x4xf32> to vector<1x8x8x8x4xf32>
    tpu.vector_store %arg11[%c0_36, %c0_37, %c0_38, %c0_39, %c0_40], %160 {strides = array<i32>} : memref<1x8x8x8x4xf32, #tpu.memory_space<vmem>>, vector<1x8x8x8x4xf32>,
    return
  }
  func.func @transform_0(%arg0: i32, %arg1: i32) -> (i32, i32, i32, i32, i32) {
    %c0_i32 = arith.constant 0 : i32
    %c0_i32_0 = arith.constant 0 : i32
    %c0_i32_1 = arith.constant 0 : i32
    %c0_i32_2 = arith.constant 0 : i32
    %c0_i32_3 = arith.constant 0 : i32
    return %arg0, %c0_i32, %c0_i32_0, %c0_i32_1, %c0_i32_2 : i32, i32, i32, i32, i32
  }
  func.func @transform_1(%arg0: i32, %arg1: i32) -> (i32, i32) {
    %c0_i32 = arith.constant 0 : i32
    %c0_i32_0 = arith.constant 0 : i32
    %c0_i32_1 = arith.constant 0 : i32
    return %c0_i32, %c0_i32_0 : i32, i32
  }
  func.func @transform_2(%arg0: i32, %arg1: i32) -> (i32, i32) {
    %c0_i32 = arith.constant 0 : i32
    %c0_i32_0 = arith.constant 0 : i32
    %c0_i32_1 = arith.constant 0 : i32
    return %c0_i32, %c0_i32_0 : i32, i32
  }
  func.func @transform_3(%arg0: i32, %arg1: i32) -> (i32, i32) {
    %c0_i32 = arith.constant 0 : i32
    %c0_i32_0 = arith.constant 0 : i32
    %c0_i32_1 = arith.constant 0 : i32
    return %c0_i32, %c0_i32_0 : i32, i32
  }
  func.func @transform_4(%arg0: i32, %arg1: i32) -> (i32, i32) {
    %c0_i32 = arith.constant 0 : i32
    %c0_i32_0 = arith.constant 0 : i32
    %c0_i32_1 = arith.constant 0 : i32
    return %c0_i32, %c0_i32_0 : i32, i32
  }
  func.func @transform_5(%arg0: i32, %arg1: i32) -> (i32, i32) {
    %c0_i32 = arith.constant 0 : i32
    %c0_i32_0 = arith.constant 0 : i32
    %c0_i32_1 = arith.constant 0 : i32
    return %c0_i32, %c0_i32_0 : i32, i32
  }
  func.func @transform_6(%arg0: i32, %arg1: i32) -> (i32, i32) {
    %c0_i32 = arith.constant 0 : i32
    %c0_i32_0 = arith.constant 0 : i32
    %c0_i32_1 = arith.constant 0 : i32
    return %c0_i32, %c0_i32_0 : i32, i32
  }
  func.func @transform_7(%arg0: i32, %arg1: i32) -> (i32, i32) {
    %c0_i32 = arith.constant 0 : i32
    %c0_i32_0 = arith.constant 0 : i32
    %c0_i32_1 = arith.constant 0 : i32
    return %c0_i32, %c0_i32_0 : i32, i32
  }
  func.func @transform_8(%arg0: i32, %arg1: i32) -> (i32, i32) {
    %c0_i32 = arith.constant 0 : i32
    %c0_i32_0 = arith.constant 0 : i32
    %c0_i32_1 = arith.constant 0 : i32
    return %c0_i32, %c0_i32_0 : i32, i32
  }
  func.func @transform_9(%arg0: i32, %arg1: i32) -> (i32, i32, i32, i32, i32) {
    %c0_i32 = arith.constant 0 : i32
    %c0_i32_0 = arith.constant 0 : i32
    %c0_i32_1 = arith.constant 0 : i32
    %c0_i32_2 = arith.constant 0 : i32
    return %arg0, %arg1, %c0_i32, %c0_i32_0, %c0_i32_1 : i32, i32, i32, i32, i32
  }
}

</mosaic_0001>

<llo_original>
// kernel: tile.9
$region0: #{tile.9}
  %s0 = inlined_call_operand.vmem [shape: f32[8,4], index: 0, kind: input, shape index: {}]
  %s1 = inlined_call_operand.vmem [shape: f32[1,32], index: 1, kind: output, shape index: {}]
  $region1: #{tile.9} parent=0
    #allocation0 [shape = 'u8[4096]{0}', space=vmem, size = 0x1000, scoped, tag = 'scoped mem for output reshape']
    %v2 = vld [vmem:[%s0] sm:$0x1]
    %vm3 = vcmask 31744
    %4 = vst.msk [vmem:[#allocation0] sm:$0x1] %vm3, %v2
    %s5 = scalar_lea.vmem %s0, 7
    %v6 = vld [vmem:[%s5] sm:$0x1]
    %7 = vrot.lane.b32.xlu0 %v6, 28
    %v8 = vpop.permute.xlu0 %7
    %vm9 = vcmask 261344
    %10 = vst.msk [vmem:[#allocation0] sm:$0x1] %vm9, %v8
    %s11 = scalar_lea.vmem %s0, 6
    %v12 = vld [vmem:[%s11] sm:$0x1]
    %13 = vrot.lane.b32.xlu0 %v12, 24
    %v14 = vpop.permute.xlu0 %13
    %vm15 = vcmask 228544
    %16 = vst.msk [vmem:[#allocation0] sm:$0x1] %vm15, %v14
    %s17 = scalar_lea.vmem %s0, 5
    %v18 = vld [vmem:[%s17] sm:$0x1]
    %19 = vrot.lane.b32.xlu0 %v18, 20
    %v20 = vpop.permute.xlu0 %19
    %vm21 = vcmask 195744
    %22 = vst.msk [vmem:[#allocation0] sm:$0x1] %vm21, %v20
    %s23 = scalar_lea.vmem %s0, 4
    %v24 = vld [vmem:[%s23] sm:$0x1]
    %25 = vrot.lane.b32.xlu0 %v24, 16
    %v26 = vpop.permute.xlu0 %25
    %vm27 = vcmask 162944
    %28 = vst.msk [vmem:[#allocation0] sm:$0x1] %vm27, %v26
    %s29 = scalar_lea.vmem %s0, 3
    %v30 = vld [vmem:[%s29] sm:$0x1]
    %31 = vrot.lane.b32.xlu0 %v30, 12
    %v32 = vpop.permute.xlu0 %31
    %vm33 = vcmask 130144
    %34 = vst.msk [vmem:[#allocation0] sm:$0x1] %vm33, %v32
    %s35 = scalar_lea.vmem %s0, 2
    %v36 = vld [vmem:[%s35] sm:$0x1]
    %37 = vrot.lane.b32.xlu0 %v36, 8
    %v38 = vpop.permute.xlu0 %37
    %vm39 = vcmask 97344
    %40 = vst.msk [vmem:[#allocation0] sm:$0x1] %vm39, %v38
    %s41 = scalar_lea.vmem %s0, 1
    %v42 = vld [vmem:[%s41] sm:$0x1]
    %43 = vrot.lane.b32.xlu0 %v42, 4
    %v44 = vpop.permute.xlu0 %43
    %vm45 = vcmask 64544
    %46 = vst.msk [vmem:[#allocation0] sm:$0x1] %vm45, %v44
    %s48 = sshllo.u32 0, 1
    %v50 = vld [vmem:[#allocation0] sm:%s48]
    %s51 = sshllo.u32 0, 1
    %52 = vst [vmem:[%s1] sm:%s51] %v50

// kernel: tile.8
$region0: #{tile.8}
  #allocation0 [shape = 's32[1]{0}', space=sflag, size = 0x4, scoped, tag = 'scoped memory for tile.8']
  %s0 = inlined_call_operand.vmem [shape: f32[4], index: 0, kind: input, shape index: {}]
  %s1 = inlined_call_operand.vmem [shape: f32[8,4], index: 1, kind: output, shape index: {}]
  // Predicated region
  $region2: #{tile.8} parent=0 // pred_check
    _
  $region3: #{tile.8} parent=0 // pred_check_branch
    %3 = sbr.rel (0) target = $region5
  $region4: #{tile.8} parent=0 // pred_region
    _
  $region5: #{tile.8} parent=0 // pred_fallthru
    _
  %v4 = vld [vmem:[%s0] ss:$0 sm:$0xff]
  %5 = vst [vmem:[%s1] sm:$0xff] %v4

// kernel: up_block_forward.1
$region0: #{up_block_forward.1}
  #allocation0 [shape = 'u32[]', space=smem, size = 0x4, offset = 0x4, fixed_abs, tag = 'smem constant byte address 0x4 - core index']
  #allocation1 [shape = 'u32[144,128]{1,0:T(1,128)}', space=vmem, size = 0x12000, scoped, tag = 'internal scratch']
  %s0 = inlined_call_operand.vmem [shape: bf16[2,10,4,4,8], index: 0, kind: input, shape index: {}]
  %s1 = inlined_call_operand.vmem [shape: bf16[8,32], index: 1, kind: input, shape index: {}]
  %s2 = inlined_call_operand.vmem [shape: f32[1,32], index: 2, kind: input, shape index: {}]
  %s3 = inlined_call_operand.vmem [shape: bf16[36,4], index: 3, kind: input, shape index: {}]
  %s4 = inlined_call_operand.vmem [shape: f32[1,4], index: 4, kind: input, shape index: {}]
  %s5 = inlined_call_operand.vmem [shape: bf16[36,4], index: 5, kind: input, shape index: {}]
  %s6 = inlined_call_operand.vmem [shape: f32[1,4], index: 6, kind: input, shape index: {}]
  %s7 = inlined_call_operand.vmem [shape: bf16[12,4], index: 7, kind: input, shape index: {}]
  %s8 = inlined_call_operand.vmem [shape: f32[1,4], index: 8, kind: input, shape index: {}]
  %s9 = inlined_call_operand.vmem [shape: f32[2,16,8,8,4], index: 9, kind: output, shape index: {}]
  %s10 = sld [smem:[#allocation0]]
  $region69: #{up_block_forward.1} parent=0
    _
  %s12 = ssub.s32 1, %s10
  %s13 = scalar_select 0, %s12, %s10
  loop: start=0, step=1, limit=6
  $region2: #{up_block_forward.1} parent=0 // loop_pre_header
    _
  $region3: #{up_block_forward.1} parent=0 // loop_header
    %s15 = sphi 0, %s19
    %p16 = scmp.ge.s32.totalorder %s15, 6
    %s22 = sphi 0, %s34
    %s23 = sphi 0, %s30
    %s24 = sphi 0, %s22
    %s25 = sphi 0, %s23
    %s26 = sphi 0, %s24
    %s27 = sphi 0, %s25
    %s37 = sphi 0, %s39
    %s40 = sphi 0, %s37
    %s41 = sphi 0, %s40
    %s57 = sphi 0, %s41
    %s61 = sphi 0, %s61
    %s63 = sphi 0, %s61
    %s64 = sphi 0, %s63
    %s78 = sphi 0, %s64
    %s82 = sphi 0, %s82
    %s84 = sphi 0, %s82
    %s85 = sphi 0, %s84
    %s99 = sphi 0, %s85
    %s103 = sphi 0, %s103
    %s105 = sphi 0, %s103
    %s106 = sphi 0, %s105
    %s120 = sphi 0, %s106
    %s124 = sphi 0, %s124
    %s126 = sphi 0, %s124
    %s127 = sphi 0, %s126
    %s141 = sphi 0, %s127
    %s145 = sphi 0, %s145
    %s147 = sphi 0, %s145
    %s148 = sphi 0, %s147
    %s162 = sphi 0, %s148
    %s166 = sphi 0, %s166
    %s168 = sphi 0, %s166
    %s169 = sphi 0, %s168
    %s183 = sphi 0, %s169
    %s187 = sphi 0, %s187
    %s189 = sphi 0, %s187
    %s190 = sphi 0, %s189
    %s204 = sphi 0, %s190
    %s208 = sphi 0, %s208
    %s210 = sphi 0, %s208
    %s211 = sphi 0, %s210
    %s225 = sphi 0, %s211
    %s233 = sphi 0, %s235
    %s236 = sphi 0, %s233
    %s237 = sphi 0, %s236
    %s253 = sphi 0, %s237
  $region4: #{up_block_forward.1} parent=0 // loop_header_branch
    %18 = sbr.rel (%p16) target = $region8
  $region5: #{up_block_forward.1} parent=0 // loop_body
    %s20 = ssub.s32 %s15, 1
    %s21 = ssub.s32 %s15, 2
    %s28 = sadd.s32 1, %s23
    %p29 = scmp.ge.s32.totalorder %s28, 2
    %s30 = scalar_select %p29, 0, %s28
    %s31 = sadd.s32 1, %s22
    %s32 = scalar_select %p29, %s31, %s22
    %p33 = scmp.ge.s32.totalorder %s32, 2
    %s34 = scalar_select %p33, 0, %s32
    %s35 = ssub.s32 %s22, %s34
    %p36 = scmp.eq.s32.totalorder %s35, 0
    %s38 = sadd.s32 %s37, 1
    %s39 = scalar_select %p36, %s37, %s38
    %p42 = pneg %p36
    %p43 = scmp.eq.s32.totalorder %s15, 3
    %p44 = por %p42, %p43
    %p45 = scmp.ne.s32.totalorder %s37, %s40
    %p46 = scmp.eq.s32.totalorder %s15, 0
    %p47 = por %p45, %p46
    %p48 = scmp.ne.s32.totalorder %s37, %s40
    %p49 = scmp.eq.s32.totalorder %s20, 3
    %p50 = por %p48, %p49
    %p51 = scmp.ne.s32.totalorder %s40, %s41
    %p52 = scmp.eq.s32.totalorder %s20, 0
    %p53 = por %p51, %p52
    %p54 = scmp.ne.s32.totalorder %s40, %s41
    %p55 = scmp.eq.s32.totalorder %s21, 3
    %p56 = por %p54, %p55
    %p58 = scmp.ne.s32.totalorder %s41, %s57
    %p59 = scmp.eq.s32.totalorder %s21, 0
    %p60 = por %p58, %p59
    %s62 = sadd.s32 %s61, 1
    %p65 = scmp.eq.s32.totalorder %s15, 3
    %p66 = scmp.ne.s32.totalorder %s61, %s63
    %p67 = scmp.eq.s32.totalorder %s15, 0
    %p68 = por %p66, %p67
    %p69 = scmp.ne.s32.totalorder %s61, %s63
    %p70 = scmp.eq.s32.totalorder %s20, 3
    %p71 = por %p69, %p70
    %p72 = scmp.ne.s32.totalorder %s63, %s64
    %p73 = scmp.eq.s32.totalorder %s20, 0
    %p74 = por %p72, %p73
    %p75 = scmp.ne.s32.totalorder %s63, %s64
    %p76 = scmp.eq.s32.totalorder %s21, 3
    %p77 = por %p75, %p76
    %p79 = scmp.ne.s32.totalorder %s64, %s78
    %p80 = scmp.eq.s32.totalorder %s21, 0
    %p81 = por %p79, %p80
    %s83 = sadd.s32 %s82, 1
    %p86 = scmp.eq.s32.totalorder %s15, 3
    %p87 = scmp.ne.s32.totalorder %s82, %s84
    %p88 = scmp.eq.s32.totalorder %s15, 0
    %p89 = por %p87, %p88
    %p90 = scmp.ne.s32.totalorder %s82, %s84
    %p91 = scmp.eq.s32.totalorder %s20, 3
    %p92 = por %p90, %p91
    %p93 = scmp.ne.s32.totalorder %s84, %s85
    %p94 = scmp.eq.s32.totalorder %s20, 0
    %p95 = por %p93, %p94
    %p96 = scmp.ne.s32.totalorder %s84, %s85
    %p97 = scmp.eq.s32.totalorder %s21, 3
    %p98 = por %p96, %p97
    %p100 = scmp.ne.s32.totalorder %s85, %s99
    %p101 = scmp.eq.s32.totalorder %s21, 0
    %p102 = por %p100, %p101
    %s104 = sadd.s32 %s103, 1
    %p107 = scmp.eq.s32.totalorder %s15, 3
    %p108 = scmp.ne.s32.totalorder %s103, %s105
    %p109 = scmp.eq.s32.totalorder %s15, 0
    %p110 = por %p108, %p109
    %p111 = scmp.ne.s32.totalorder %s103, %s105
    %p112 = scmp.eq.s32.totalorder %s20, 3
    %p113 = por %p111, %p112
    %p114 = scmp.ne.s32.totalorder %s105, %s106
    %p115 = scmp.eq.s32.totalorder %s20, 0
    %p116 = por %p114, %p115
    %p117 = scmp.ne.s32.totalorder %s105, %s106
    %p118 = scmp.eq.s32.totalorder %s21, 3
    %p119 = por %p117, %p118
    %p121 = scmp.ne.s32.totalorder %s106, %s120
    %p122 = scmp.eq.s32.totalorder %s21, 0
    %p123 = por %p121, %p122
    %s125 = sadd.s32 %s124, 1
    %p128 = scmp.eq.s32.totalorder %s15, 3
    %p129 = scmp.ne.s32.totalorder %s124, %s126
    %p130 = scmp.eq.s32.totalorder %s15, 0
    %p131 = por %p129, %p130
    %p132 = scmp.ne.s32.totalorder %s124, %s126
    %p133 = scmp.eq.s32.totalorder %s20, 3
    %p134 = por %p132, %p133
    %p135 = scmp.ne.s32.totalorder %s126, %s127
    %p136 = scmp.eq.s32.totalorder %s20, 0
    %p137 = por %p135, %p136
    %p138 = scmp.ne.s32.totalorder %s126, %s127
    %p139 = scmp.eq.s32.totalorder %s21, 3
    %p140 = por %p138, %p139
    %p142 = scmp.ne.s32.totalorder %s127, %s141
    %p143 = scmp.eq.s32.totalorder %s21, 0
    %p144 = por %p142, %p143
    %s146 = sadd.s32 %s145, 1
    %p149 = scmp.eq.s32.totalorder %s15, 3
    %p150 = scmp.ne.s32.totalorder %s145, %s147
    %p151 = scmp.eq.s32.totalorder %s15, 0
    %p152 = por %p150, %p151
    %p153 = scmp.ne.s32.totalorder %s145, %s147
    %p154 = scmp.eq.s32.totalorder %s20, 3
    %p155 = por %p153, %p154
    %p156 = scmp.ne.s32.totalorder %s147, %s148
    %p157 = scmp.eq.s32.totalorder %s20, 0
    %p158 = por %p156, %p157
    %p159 = scmp.ne.s32.totalorder %s147, %s148
    %p160 = scmp.eq.s32.totalorder %s21, 3
    %p161 = por %p159, %p160
    %p163 = scmp.ne.s32.totalorder %s148, %s162
    %p164 = scmp.eq.s32.totalorder %s21, 0
    %p165 = por %p163, %p164
    %s167 = sadd.s32 %s166, 1
    %p170 = scmp.eq.s32.totalorder %s15, 3
    %p171 = scmp.ne.s32.totalorder %s166, %s168
    %p172 = scmp.eq.s32.totalorder %s15, 0
    %p173 = por %p171, %p172
    %p174 = scmp.ne.s32.totalorder %s166, %s168
    %p175 = scmp.eq.s32.totalorder %s20, 3
    %p176 = por %p174, %p175
    %p177 = scmp.ne.s32.totalorder %s168, %s169
    %p178 = scmp.eq.s32.totalorder %s20, 0
    %p179 = por %p177, %p178
    %p180 = scmp.ne.s32.totalorder %s168, %s169
    %p181 = scmp.eq.s32.totalorder %s21, 3
    %p182 = por %p180, %p181
    %p184 = scmp.ne.s32.totalorder %s169, %s183
    %p185 = scmp.eq.s32.totalorder %s21, 0
    %p186 = por %p184, %p185
    %s188 = sadd.s32 %s187, 1
    %p191 = scmp.eq.s32.totalorder %s15, 3
    %p192 = scmp.ne.s32.totalorder %s187, %s189
    %p193 = scmp.eq.s32.totalorder %s15, 0
    %p194 = por %p192, %p193
    %p195 = scmp.ne.s32.totalorder %s187, %s189
    %p196 = scmp.eq.s32.totalorder %s20, 3
    %p197 = por %p195, %p196
    %p198 = scmp.ne.s32.totalorder %s189, %s190
    %p199 = scmp.eq.s32.totalorder %s20, 0
    %p200 = por %p198, %p199
    %p201 = scmp.ne.s32.totalorder %s189, %s190
    %p202 = scmp.eq.s32.totalorder %s21, 3
    %p203 = por %p201, %p202
    %p205 = scmp.ne.s32.totalorder %s190, %s204
    %p206 = scmp.eq.s32.totalorder %s21, 0
    %p207 = por %p205, %p206
    %s209 = sadd.s32 %s208, 1
    %p212 = scmp.eq.s32.totalorder %s15, 3
    %p213 = scmp.ne.s32.totalorder %s208, %s210
    %p214 = scmp.eq.s32.totalorder %s15, 0
    %p215 = por %p213, %p214
    %p216 = scmp.ne.s32.totalorder %s208, %s210
    %p217 = scmp.eq.s32.totalorder %s20, 3
    %p218 = por %p216, %p217
    %p219 = scmp.ne.s32.totalorder %s210, %s211
    %p220 = scmp.eq.s32.totalorder %s20, 0
    %p221 = por %p219, %p220
    %p222 = scmp.ne.s32.totalorder %s210, %s211
    %p223 = scmp.eq.s32.totalorder %s21, 3
    %p224 = por %p222, %p223
    %p226 = scmp.ne.s32.totalorder %s211, %s225
    %p227 = scmp.eq.s32.totalorder %s21, 0
    %p228 = por %p226, %p227
    %s229 = ssub.s32 %s22, %s34
    %s230 = ssub.s32 %s23, %s30
    %s231 = sor.u32 %s229, %s230
    %p232 = scmp.eq.s32.totalorder %s231, 0
    %s234 = sadd.s32 %s233, 1
    %s235 = scalar_select %p232, %s233, %s234
    %p238 = pneg %p232
    %p239 = scmp.eq.s32.totalorder %s15, 3
    %p240 = por %p238, %p239
    %p241 = scmp.ne.s32.totalorder %s233, %s236
    %p242 = scmp.eq.s32.totalorder %s15, 0
    %p243 = por %p241, %p242
    %p244 = scmp.ne.s32.totalorder %s233, %s236
    %p245 = scmp.eq.s32.totalorder %s20, 3
    %p246 = por %p244, %p245
    %p247 = scmp.ne.s32.totalorder %s236, %s237
    %p248 = scmp.eq.s32.totalorder %s20, 0
    %p249 = por %p247, %p248
    %p250 = scmp.ne.s32.totalorder %s236, %s237
    %p251 = scmp.eq.s32.totalorder %s21, 3
    %p252 = por %p250, %p251
    %p254 = scmp.ne.s32.totalorder %s237, %s253
    %p255 = scmp.eq.s32.totalorder %s21, 0
    %p256 = por %p254, %p255
    %p257 = scmp.le.s32.totalorder 1, %s15
    %p258 = scmp.lt.s32.totalorder %s15, 5
    %p259 = pnand %p257, %p258
    %p260 = pneg %p259
    // Predicated region
    $region9: #{up_block_forward.1} parent=5 // pred_check
      _
    $region10: #{up_block_forward.1} parent=5 // pred_check_branch
      %262 = sbr.rel (%p259) target = $region12
    $region11: #{up_block_forward.1} parent=5 // pred_region
      %s263 = ssub.s32 %s15, 1
      // Predicated region
      $region13: #{up_block_forward.1} parent=11 // pred_check
        %p264 = pneg %p74
      $region14: #{up_block_forward.1} parent=11 // pred_check_branch
        %266 = sbr.rel (%p264) target = $region16
      $region15: #{up_block_forward.1} parent=11 // pred_region
        _
      $region16: #{up_block_forward.1} parent=11 // pred_fallthru
        _
      // Predicated region
      $region17: #{up_block_forward.1} parent=11 // pred_check
        %p267 = pneg %p95
      $region18: #{up_block_forward.1} parent=11 // pred_check_branch
        %269 = sbr.rel (%p267) target = $region20
      $region19: #{up_block_forward.1} parent=11 // pred_region
        _
      $region20: #{up_block_forward.1} parent=11 // pred_fallthru
        _
      // Predicated region
      $region21: #{up_block_forward.1} parent=11 // pred_check
        %p270 = pneg %p116
      $region22: #{up_block_forward.1} parent=11 // pred_check_branch
        %272 = sbr.rel (%p270) target = $region24
      $region23: #{up_block_forward.1} parent=11 // pred_region
        _
      $region24: #{up_block_forward.1} parent=11 // pred_fallthru
        _
      // Predicated region
      $region25: #{up_block_forward.1} parent=11 // pred_check
        %p273 = pneg %p137
      $region26: #{up_block_forward.1} parent=11 // pred_check_branch
        %275 = sbr.rel (%p273) target = $region28
      $region27: #{up_block_forward.1} parent=11 // pred_region
        _
      $region28: #{up_block_forward.1} parent=11 // pred_fallthru
        _
      // Predicated region
      $region29: #{up_block_forward.1} parent=11 // pred_check
        %p276 = pneg %p158
      $region30: #{up_block_forward.1} parent=11 // pred_check_branch
        %278 = sbr.rel (%p276) target = $region32
      $region31: #{up_block_forward.1} parent=11 // pred_region
        _
      $region32: #{up_block_forward.1} parent=11 // pred_fallthru
        _
      // Predicated region
      $region33: #{up_block_forward.1} parent=11 // pred_check
        %p279 = pneg %p179
      $region34: #{up_block_forward.1} parent=11 // pred_check_branch
        %281 = sbr.rel (%p279) target = $region36
      $region35: #{up_block_forward.1} parent=11 // pred_region
        _
      $region36: #{up_block_forward.1} parent=11 // pred_fallthru
        _
      // Predicated region
      $region37: #{up_block_forward.1} parent=11 // pred_check
        %p282 = pneg %p200
      $region38: #{up_block_forward.1} parent=11 // pred_check_branch
        %284 = sbr.rel (%p282) target = $region40
      $region39: #{up_block_forward.1} parent=11 // pred_region
        _
      $region40: #{up_block_forward.1} parent=11 // pred_fallthru
        _
      // Predicated region
      $region41: #{up_block_forward.1} parent=11 // pred_check
        %p285 = pneg %p221
      $region42: #{up_block_forward.1} parent=11 // pred_check_branch
        %287 = sbr.rel (%p285) target = $region44
      $region43: #{up_block_forward.1} parent=11 // pred_region
        _
      $region44: #{up_block_forward.1} parent=11 // pred_fallthru
        _
    $region12: #{up_block_forward.1} parent=5 // pred_fallthru
      _
    %p288 = scmp.lt.s32.totalorder %s15, 4
    // Predicated region
    $region45: #{up_block_forward.1} parent=5 // pred_check
      %p289 = pneg %p288
    $region46: #{up_block_forward.1} parent=5 // pred_check_branch
      %291 = sbr.rel (%p289) target = $region48
    $region47: #{up_block_forward.1} parent=5 // pred_region
      // Predicated region
      $region49: #{up_block_forward.1} parent=47 // pred_check
        %p292 = pneg %p47
      $region50: #{up_block_forward.1} parent=47 // pred_check_branch
        %294 = sbr.rel (%p292) target = $region52
      $region51: #{up_block_forward.1} parent=47 // pred_region
        %p295 = scmp.lt.s32.totalorder %s22, 1
        %s296 = scalar_select %p295, %s22, 1
        %s297 = smul.addr %s296, 40
        %s298 = smul.addr %s297, 2
        %s299 = scalar_lea.vmem %s0, %s298
      $region52: #{up_block_forward.1} parent=47 // pred_fallthru
        _
    $region48: #{up_block_forward.1} parent=5 // pred_fallthru
      _
    %p300 = scmp.le.s32.totalorder 1, %s15
    %p301 = scmp.lt.s32.totalorder %s15, 5
    %p302 = pnand %p300, %p301
    %p303 = pneg %p302
    // Predicated region
    $region53: #{up_block_forward.1} parent=5 // pred_check
      _
    $region54: #{up_block_forward.1} parent=5 // pred_check_branch
      %305 = sbr.rel (%p302) target = $region56
    $region55: #{up_block_forward.1} parent=5 // pred_region
      %s306 = ssub.s32 %s15, 1
      %p307 = scmp.lt.s32.totalorder %s24, 1
      %s308 = scalar_select %p307, %s24, 1
      %s309 = smul.addr %s308, 40
      %s310 = smul.addr %s309, 2
      %s311 = scalar_lea.vmem %s0, %s310
      %p312 = pneg %p53
      %p313 = pneg %p50
      %p314 = pneg %p74
      %p315 = pneg %p71
      %p316 = pneg %p95
      %p317 = pneg %p92
      %p318 = pneg %p116
      %p319 = pneg %p113
      %p320 = pneg %p137
      %p321 = pneg %p134
      %p322 = pneg %p158
      %p323 = pneg %p155
      %p324 = pneg %p179
      %p325 = pneg %p176
      %p326 = pneg %p200
      %p327 = pneg %p197
      %p328 = pneg %p221
      %p329 = pneg %p218
      %p330 = pneg %p249
      %p331 = pneg %p246
      %s332 = smul.u32 8, %s25
      %p333 = scmp.lt.s32.totalorder %s24, 1
      %s334 = scalar_select %p333, %s24, 1
      %p335 = scmp.lt.s32.totalorder %s332, 15
      %s336 = scalar_select %p335, %s332, 15
      %s337 = smul.addr %s336, 8
      %s338 = smul.addr %s334, 128
      %s339 = sadd.s32 %s337, %s338
      %s340 = smul.addr %s339, 8
      %s341 = scalar_lea.vmem %s9, %s340
      %p342 = scmp.lt.s32.totalorder %s24, 1
      %s343 = scalar_select %p342, %s24, 1
      %s344 = smul.addr %s343, 40
      %s345 = smul.addr %s344, 2
      %s346 = scalar_lea.vmem %s0, %s345
      %s347 = smul.u32 8, %s25
      %p348 = scmp.lt.s32.totalorder %s24, 1
      %s349 = scalar_select %p348, %s24, 1
      %p350 = scmp.lt.s32.totalorder %s347, 15
      %s351 = scalar_select %p350, %s347, 15
      %s352 = smul.addr %s351, 8
      %s353 = smul.addr %s349, 128
      %s354 = sadd.s32 %s352, %s353
      %s355 = smul.addr %s354, 8
      %s356 = scalar_lea.vmem %s9, %s355
      %s357 = smul.u32 8, %s25
      %s359 = smul.u32 %s25, 8
      %s360 = smul.u32 %s25, 4
      %s361 = smul.u32 %s360, 4
      %s362 = smul.addr %s361, 2
      %s363 = scalar_lea.vmem %s346, %s362
      %v364 = vld [vmem:[%s363] sm:$0x3]
      %v365 = vld [vmem:[%s363 + $0x2] sm:$0x3]
      %v366 = vld [vmem:[%s363 + $0x4] sm:$0x3]
      %v367 = vld [vmem:[%s363 + $0x6] sm:$0x3]
      %v368 = vld [vmem:[%s363 + $0x8] sm:$0x3]
      %v369 = vld [vmem:[%s363 + $0xa] sm:$0x3]
      %v370 = vld [vmem:[%s363 + $0xc] sm:$0x3]
      %v371 = vld [vmem:[%s363 + $0xe] sm:$0x3]
      %v372 = vld [vmem:[%s363 + $0x10] sm:$0x3]
      %v373 = vld [vmem:[%s363 + $0x12] sm:$0x3]
      %v374 = vld [vmem:[%s363 + $0x14] sm:$0x3]
      %v375 = vld [vmem:[%s363 + $0x16] sm:$0x3]
      %v376 = vld [vmem:[%s363 + $0x18] sm:$0x3]
      %v377 = vld [vmem:[%s363 + $0x1a] sm:$0x3]
      %v378 = vld [vmem:[%s363 + $0x1c] sm:$0x3]
      %v379 = vld [vmem:[%s363 + $0x1e] sm:$0x3]
      %v380 = vld [vmem:[%s363 + $0x20] sm:$0x3]
      %v381 = vld [vmem:[%s363 + $0x22] sm:$0x3]
      %v382 = vld [vmem:[%s363 + $0x24] sm:$0x3]
      %v383 = vld [vmem:[%s363 + $0x26] sm:$0x3]
      %v384 = vld [vmem:[%s363 + $0x28] sm:$0x3]
      %v385 = vld [vmem:[%s363 + $0x2a] sm:$0x3]
      %v386 = vld [vmem:[%s363 + $0x2c] sm:$0x3]
      %v387 = vld [vmem:[%s363 + $0x2e] sm:$0x3]
      %v388 = vld [vmem:[%s1] sm:$0xf]
      %v389 = vld [vmem:[%s2] sm:$0x1]
      %v391 = vlaneseq
      %v392 = vshrl.u32 %v391, 7
      %v393 = vsub.s32 0, %v392
      %v394 = vrot.slane %v389, %v393
      %v420 = vcombine.low %v364, %v365
      %v421 = vcombine.low %v366, %v367
      %v423 = vunpack.c.l.s4 1983009808
      %v424 = vunpack.c.0.s8 %v423
      %v425 = vlaneseq
      %v426 = vshrl.u32 %v425, 7
      %v427 = vsub.s32 %v424, %v426
      %v428 = vrot.slane %v420, %v427
      %v430 = vunpack.c.l.s4 1983009808
      %v431 = vunpack.c.0.s8 %v430
      %v432 = vlaneseq
      %v433 = vshrl.u32 %v432, 7
      %v434 = vsub.s32 %v431, %v433
      %v435 = vrot.slane %v421, %v434
      %v436 = vcombine.low %v428, %v435
      %v437 = vcombine.low %v368, %v369
      %v438 = vcombine.low %v370, %v371
      %v440 = vunpack.c.l.s4 1983009808
      %v441 = vunpack.c.0.s8 %v440
      %v442 = vlaneseq
      %v443 = vshrl.u32 %v442, 7
      %v444 = vsub.s32 %v441, %v443
      %v445 = vrot.slane %v437, %v444
      %v447 = vunpack.c.l.s4 1983009808
      %v448 = vunpack.c.0.s8 %v447
      %v449 = vlaneseq
      %v450 = vshrl.u32 %v449, 7
      %v451 = vsub.s32 %v448, %v450
      %v452 = vrot.slane %v438, %v451
      %v453 = vcombine.low %v445, %v452
      %v454 = vcombine.low %v372, %v373
      %v455 = vcombine.low %v374, %v375
      %v457 = vunpack.c.l.s4 1983009808
      %v458 = vunpack.c.0.s8 %v457
      %v459 = vlaneseq
      %v460 = vshrl.u32 %v459, 7
      %v461 = vsub.s32 %v458, %v460
      %v462 = vrot.slane %v454, %v461
      %v464 = vunpack.c.l.s4 1983009808
      %v465 = vunpack.c.0.s8 %v464
      %v466 = vlaneseq
      %v467 = vshrl.u32 %v466, 7
      %v468 = vsub.s32 %v465, %v467
      %v469 = vrot.slane %v455, %v468
      %v470 = vcombine.low %v462, %v469
      %v471 = vcombine.low %v376, %v377
      %v472 = vcombine.low %v378, %v379
      %v474 = vunpack.c.l.s4 1983009808
      %v475 = vunpack.c.0.s8 %v474
      %v476 = vlaneseq
      %v477 = vshrl.u32 %v476, 7
      %v478 = vsub.s32 %v475, %v477
      %v479 = vrot.slane %v471, %v478
      %v481 = vunpack.c.l.s4 1983009808
      %v482 = vunpack.c.0.s8 %v481
      %v483 = vlaneseq
      %v484 = vshrl.u32 %v483, 7
      %v485 = vsub.s32 %v482, %v484
      %v486 = vrot.slane %v472, %v485
      %v487 = vcombine.low %v479, %v486
      %v488 = vcombine.low %v380, %v381
      %v489 = vcombine.low %v382, %v383
      %v491 = vunpack.c.l.s4 1983009808
      %v492 = vunpack.c.0.s8 %v491
      %v493 = vlaneseq
      %v494 = vshrl.u32 %v493, 7
      %v495 = vsub.s32 %v492, %v494
      %v496 = vrot.slane %v488, %v495
      %v498 = vunpack.c.l.s4 1983009808
      %v499 = vunpack.c.0.s8 %v498
      %v500 = vlaneseq
      %v501 = vshrl.u32 %v500, 7
      %v502 = vsub.s32 %v499, %v501
      %v503 = vrot.slane %v489, %v502
      %v504 = vcombine.low %v496, %v503
      %v505 = vcombine.low %v384, %v385
      %v506 = vcombine.low %v386, %v387
      %v508 = vunpack.c.l.s4 1983009808
      %v509 = vunpack.c.0.s8 %v508
      %v510 = vlaneseq
      %v511 = vshrl.u32 %v510, 7
      %v512 = vsub.s32 %v509, %v511
      %v513 = vrot.slane %v505, %v512
      %v515 = vunpack.c.l.s4 1983009808
      %v516 = vunpack.c.0.s8 %v515
      %v517 = vlaneseq
      %v518 = vshrl.u32 %v517, 7
      %v519 = vsub.s32 %v516, %v518
      %v520 = vrot.slane %v506, %v519
      %v521 = vcombine.low %v513, %v520
      %vm522 = vcmask 64512
      %v524 = vsel %vm522, %v436, 0
      %v527 = vsel %vm522, %v453, 0
      %v530 = vsel %vm522, %v470, 0
      %v533 = vsel %vm522, %v487, 0
      %v536 = vsel %vm522, %v504, 0
      %v539 = vsel %vm522, %v521, 0
      %vm541 = vcmask 1043456
      %v543 = vsel %vm541, %v388, 0
      %545 = vmatprep.subr.bf16.mxu0 0
      %546 = vmatpush1.bf16.msra.mxu0 %v543
      %547 = vmatprep.subr.bf16.mxu0 0
      %548 = vmatpush1.bf16.msra.mxu0 0
      %549 = vmatprep.subr.bf16.mxu0 0
      %550 = vmatpush1.bf16.msra.mxu0 0
      %551 = vmatprep.subr.bf16.mxu0 0
      %552 = vmatpush1.bf16.msra.mxu0 0
      %553 = vmatprep.subr.bf16.mxu0 0
      %554 = vmatpush1.bf16.msra.mxu0 0
      %555 = vmatprep.subr.bf16.mxu0 0
      %556 = vmatpush1.bf16.msra.mxu0 0
      %557 = vmatprep.subr.bf16.mxu0 0
      %558 = vmatpush1.bf16.msra.mxu0 0
      %559 = vmatprep.subr.bf16.mxu0 0
      %560 = vmatpush1.bf16.msra.mxu0 0
      %561 = vmatprep.subr.bf16.mxu0 0
      %562 = vmatpush1.bf16.msra.mxu0 0
      %563 = vmatprep.subr.bf16.mxu0 0
      %564 = vmatpush1.bf16.msra.mxu0 0
      %565 = vmatprep.subr.bf16.mxu0 0
      %566 = vmatpush1.bf16.msra.mxu0 0
      %567 = vmatprep.subr.bf16.mxu0 0
      %568 = vmatpush1.bf16.msra.mxu0 0
      %569 = vmatprep.subr.bf16.mxu0 0
      %570 = vmatpush1.bf16.msra.mxu0 0
      %571 = vmatprep.subr.bf16.mxu0 0
      %572 = vmatpush1.bf16.msra.mxu0 0
      %573 = vmatprep.subr.bf16.mxu0 0
      %574 = vmatpush1.bf16.msra.mxu0 0
      %575 = vmatprep.subr.bf16.mxu0 0
      %576 = vmatpush1.bf16.msra.mxu0 0
      %577 = vmatprep.mubr.bf16.mxu0 0
      %578 = vmatmul.mubr.bf16.gmra.mrb[0].mxu0 %v524
      %v579 = vpop.f32.mrb[0].mxu0
      %v580 = vadd.f32 %v394, %v579
      %v581 = vpop.f32.mrb[0].mxu0
      %v582 = vpop.f32.mrb[0].mxu0
      %v583 = vadd.f32 %v394, %v582
      %v584 = vpop.f32.mrb[0].mxu0
      %585 = vmatprep.mubr.bf16.mxu0 0
      %586 = vmatmul.mubr.bf16.gmra.mrb[0].mxu0 %v527
      %v587 = vpop.f32.mrb[0].mxu0
      %v588 = vadd.f32 %v394, %v587
      %v589 = vpop.f32.mrb[0].mxu0
      %v590 = vpop.f32.mrb[0].mxu0
      %v591 = vadd.f32 %v394, %v590
      %v592 = vpop.f32.mrb[0].mxu0
      %593 = vmatprep.mubr.bf16.mxu0 0
      %594 = vmatmul.mubr.bf16.gmra.mrb[0].mxu0 %v530
      %v595 = vpop.f32.mrb[0].mxu0
      %v596 = vadd.f32 %v394, %v595
      %v597 = vpop.f32.mrb[0].mxu0
      %v598 = vpop.f32.mrb[0].mxu0
      %v599 = vadd.f32 %v394, %v598
      %v600 = vpop.f32.mrb[0].mxu0
      %601 = vmatprep.mubr.bf16.mxu0 0
      %602 = vmatmul.mubr.bf16.gmra.mrb[0].mxu0 %v533
      %v603 = vpop.f32.mrb[0].mxu0
      %v604 = vadd.f32 %v394, %v603
      %v605 = vpop.f32.mrb[0].mxu0
      %v606 = vpop.f32.mrb[0].mxu0
      %v607 = vadd.f32 %v394, %v606
      %v608 = vpop.f32.mrb[0].mxu0
      %609 = vmatprep.mubr.bf16.mxu0 0
      %610 = vmatmul.mubr.bf16.gmra.mrb[0].mxu0 %v536
      %v611 = vpop.f32.mrb[0].mxu0
      %v612 = vadd.f32 %v394, %v611
      %v613 = vpop.f32.mrb[0].mxu0
      %v614 = vpop.f32.mrb[0].mxu0
      %v615 = vadd.f32 %v394, %v614
      %v616 = vpop.f32.mrb[0].mxu0
      %617 = vmatprep.mubr.bf16.mxu0 0
      %618 = vmatmul.mubr.bf16.gmra.mrb[0].mxu0 %v539
      %v619 = vpop.f32.mrb[0].mxu0
      %v620 = vadd.f32 %v394, %v619
      %v621 = vpop.f32.mrb[0].mxu0
      %v622 = vpop.f32.mrb[0].mxu0
      %v623 = vadd.f32 %v394, %v622
      %v624 = vpop.f32.mrb[0].mxu0
      %625 = vdwg.mxu0
      %v638 = vcombine.high %v580, %v580
      %v639 = vcombine.high %v583, %v583
      %v640 = vcombine.high %v588, %v588
      %v641 = vcombine.high %v591, %v591
      %v642 = vcombine.high %v596, %v596
      %v643 = vcombine.high %v599, %v599
      %v644 = vcombine.high %v604, %v604
      %v645 = vcombine.high %v607, %v607
      %v646 = vcombine.high %v612, %v612
      %v647 = vcombine.high %v615, %v615
      %v648 = vcombine.high %v620, %v620
      %v649 = vcombine.high %v623, %v623
      %v651 = vunpack.c.l.s4 1966171168
      %v652 = vunpack.c.0.s8 %v651
      %v653 = vlaneseq
      %v654 = vshrl.u32 %v653, 7
      %v655 = vsub.s32 %v652, %v654
      %v656 = vrot.slane %v580, %v655
      %v657 = vcombine.high %v656, %v656
      %v659 = vunpack.c.l.s4 1966171168
      %v660 = vunpack.c.0.s8 %v659
      %v661 = vlaneseq
      %v662 = vshrl.u32 %v661, 7
      %v663 = vsub.s32 %v660, %v662
      %v664 = vrot.slane %v656, %v663
      %v666 = vunpack.c.l.s4 1966171168
      %v667 = vunpack.c.0.s8 %v666
      %v668 = vlaneseq
      %v669 = vshrl.u32 %v668, 7
      %v670 = vsub.s32 %v667, %v669
      %v671 = vrot.slane %v657, %v670
      %v672 = vcombine.high %v664, %v664
      %v673 = vcombine.high %v671, %v671
      %v675 = vunpack.c.l.s4 1966171168
      %v676 = vunpack.c.0.s8 %v675
      %v677 = vlaneseq
      %v678 = vshrl.u32 %v677, 7
      %v679 = vsub.s32 %v676, %v678
      %v680 = vrot.slane %v638, %v679
      %v681 = vcombine.high %v680, %v680
      %v683 = vunpack.c.l.s4 1966171168
      %v684 = vunpack.c.0.s8 %v683
      %v685 = vlaneseq
      %v686 = vshrl.u32 %v685, 7
      %v687 = vsub.s32 %v684, %v686
      %v688 = vrot.slane %v680, %v687
      %v690 = vunpack.c.l.s4 1966171168
      %v691 = vunpack.c.0.s8 %v690
      %v692 = vlaneseq
      %v693 = vshrl.u32 %v692, 7
      %v694 = vsub.s32 %v691, %v693
      %v695 = vrot.slane %v681, %v694
      %v696 = vcombine.high %v688, %v688
      %v697 = vcombine.high %v695, %v695
      %v699 = vunpack.c.l.s4 1966171168
      %v700 = vunpack.c.0.s8 %v699
      %v701 = vlaneseq
      %v702 = vshrl.u32 %v701, 7
      %v703 = vsub.s32 %v700, %v702
      %v704 = vrot.slane %v583, %v703
      %v705 = vcombine.high %v704, %v704
      %v707 = vunpack.c.l.s4 1966171168
      %v708 = vunpack.c.0.s8 %v707
      %v709 = vlaneseq
      %v710 = vshrl.u32 %v709, 7
      %v711 = vsub.s32 %v708, %v710
      %v712 = vrot.slane %v704, %v711
      %v714 = vunpack.c.l.s4 1966171168
      %v715 = vunpack.c.0.s8 %v714
      %v716 = vlaneseq
      %v717 = vshrl.u32 %v716, 7
      %v718 = vsub.s32 %v715, %v717
      %v719 = vrot.slane %v705, %v718
      %v720 = vcombine.high %v712, %v712
      %v721 = vcombine.high %v719, %v719
      %v723 = vunpack.c.l.s4 1966171168
      %v724 = vunpack.c.0.s8 %v723
      %v725 = vlaneseq
      %v726 = vshrl.u32 %v725, 7
      %v727 = vsub.s32 %v724, %v726
      %v728 = vrot.slane %v639, %v727
      %v729 = vcombine.high %v728, %v728
      %v731 = vunpack.c.l.s4 1966171168
      %v732 = vunpack.c.0.s8 %v731
      %v733 = vlaneseq
      %v734 = vshrl.u32 %v733, 7
      %v735 = vsub.s32 %v732, %v734
      %v736 = vrot.slane %v728, %v735
      %v738 = vunpack.c.l.s4 1966171168
      %v739 = vunpack.c.0.s8 %v738
      %v740 = vlaneseq
      %v741 = vshrl.u32 %v740, 7
      %v742 = vsub.s32 %v739, %v741
      %v743 = vrot.slane %v729, %v742
      %v744 = vcombine.high %v736, %v736
      %v745 = vcombine.high %v743, %v743
      %v747 = vunpack.c.l.s4 1966171168
      %v748 = vunpack.c.0.s8 %v747
      %v749 = vlaneseq
      %v750 = vshrl.u32 %v749, 7
      %v751 = vsub.s32 %v748, %v750
      %v752 = vrot.slane %v588, %v751
      %v753 = vcombine.high %v752, %v752
      %v755 = vunpack.c.l.s4 1966171168
      %v756 = vunpack.c.0.s8 %v755
      %v757 = vlaneseq
      %v758 = vshrl.u32 %v757, 7
      %v759 = vsub.s32 %v756, %v758
      %v760 = vrot.slane %v752, %v759
      %v762 = vunpack.c.l.s4 1966171168
      %v763 = vunpack.c.0.s8 %v762
      %v764 = vlaneseq
      %v765 = vshrl.u32 %v764, 7
      %v766 = vsub.s32 %v763, %v765
      %v767 = vrot.slane %v753, %v766
      %v768 = vcombine.high %v760, %v760
      %v769 = vcombine.high %v767, %v767
      %v771 = vunpack.c.l.s4 1966171168
      %v772 = vunpack.c.0.s8 %v771
      %v773 = vlaneseq
      %v774 = vshrl.u32 %v773, 7
      %v775 = vsub.s32 %v772, %v774
      %v776 = vrot.slane %v640, %v775
      %v777 = vcombine.high %v776, %v776
      %v779 = vunpack.c.l.s4 1966171168
      %v780 = vunpack.c.0.s8 %v779
      %v781 = vlaneseq
      %v782 = vshrl.u32 %v781, 7
      %v783 = vsub.s32 %v780, %v782
      %v784 = vrot.slane %v776, %v783
      %v786 = vunpack.c.l.s4 1966171168
      %v787 = vunpack.c.0.s8 %v786
      %v788 = vlaneseq
      %v789 = vshrl.u32 %v788, 7
      %v790 = vsub.s32 %v787, %v789
      %v791 = vrot.slane %v777, %v790
      %v792 = vcombine.high %v784, %v784
      %v793 = vcombine.high %v791, %v791
      %v795 = vunpack.c.l.s4 1966171168
      %v796 = vunpack.c.0.s8 %v795
      %v797 = vlaneseq
      %v798 = vshrl.u32 %v797, 7
      %v799 = vsub.s32 %v796, %v798
      %v800 = vrot.slane %v591, %v799
      %v801 = vcombine.high %v800, %v800
      %v803 = vunpack.c.l.s4 1966171168
      %v804 = vunpack.c.0.s8 %v803
      %v805 = vlaneseq
      %v806 = vshrl.u32 %v805, 7
      %v807 = vsub.s32 %v804, %v806
      %v808 = vrot.slane %v800, %v807
      %v810 = vunpack.c.l.s4 1966171168
      %v811 = vunpack.c.0.s8 %v810
      %v812 = vlaneseq
      %v813 = vshrl.u32 %v812, 7
      %v814 = vsub.s32 %v811, %v813
      %v815 = vrot.slane %v801, %v814
      %v816 = vcombine.high %v808, %v808
      %v817 = vcombine.high %v815, %v815
      %v819 = vunpack.c.l.s4 1966171168
      %v820 = vunpack.c.0.s8 %v819
      %v821 = vlaneseq
      %v822 = vshrl.u32 %v821, 7
      %v823 = vsub.s32 %v820, %v822
      %v824 = vrot.slane %v641, %v823
      %v825 = vcombine.high %v824, %v824
      %v827 = vunpack.c.l.s4 1966171168
      %v828 = vunpack.c.0.s8 %v827
      %v829 = vlaneseq
      %v830 = vshrl.u32 %v829, 7
      %v831 = vsub.s32 %v828, %v830
      %v832 = vrot.slane %v824, %v831
      %v834 = vunpack.c.l.s4 1966171168
      %v835 = vunpack.c.0.s8 %v834
      %v836 = vlaneseq
      %v837 = vshrl.u32 %v836, 7
      %v838 = vsub.s32 %v835, %v837
      %v839 = vrot.slane %v825, %v838
      %v840 = vcombine.high %v832, %v832
      %v841 = vcombine.high %v839, %v839
      %v843 = vunpack.c.l.s4 1966171168
      %v844 = vunpack.c.0.s8 %v843
      %v845 = vlaneseq
      %v846 = vshrl.u32 %v845, 7
      %v847 = vsub.s32 %v844, %v846
      %v848 = vrot.slane %v596, %v847
      %v849 = vcombine.high %v848, %v848
      %v851 = vunpack.c.l.s4 1966171168
      %v852 = vunpack.c.0.s8 %v851
      %v853 = vlaneseq
      %v854 = vshrl.u32 %v853, 7
      %v855 = vsub.s32 %v852, %v854
      %v856 = vrot.slane %v848, %v855
      %v858 = vunpack.c.l.s4 1966171168
      %v859 = vunpack.c.0.s8 %v858
      %v860 = vlaneseq
      %v861 = vshrl.u32 %v860, 7
      %v862 = vsub.s32 %v859, %v861
      %v863 = vrot.slane %v849, %v862
      %v864 = vcombine.high %v856, %v856
      %v865 = vcombine.high %v863, %v863
      %v867 = vunpack.c.l.s4 1966171168
      %v868 = vunpack.c.0.s8 %v867
      %v869 = vlaneseq
      %v870 = vshrl.u32 %v869, 7
      %v871 = vsub.s32 %v868, %v870
      %v872 = vrot.slane %v642, %v871
      %v873 = vcombine.high %v872, %v872
      %v875 = vunpack.c.l.s4 1966171168
      %v876 = vunpack.c.0.s8 %v875
      %v877 = vlaneseq
      %v878 = vshrl.u32 %v877, 7
      %v879 = vsub.s32 %v876, %v878
      %v880 = vrot.slane %v872, %v879
      %v882 = vunpack.c.l.s4 1966171168
      %v883 = vunpack.c.0.s8 %v882
      %v884 = vlaneseq
      %v885 = vshrl.u32 %v884, 7
      %v886 = vsub.s32 %v883, %v885
      %v887 = vrot.slane %v873, %v886
      %v888 = vcombine.high %v880, %v880
      %v889 = vcombine.high %v887, %v887
      %v891 = vunpack.c.l.s4 1966171168
      %v892 = vunpack.c.0.s8 %v891
      %v893 = vlaneseq
      %v894 = vshrl.u32 %v893, 7
      %v895 = vsub.s32 %v892, %v894
      %v896 = vrot.slane %v599, %v895
      %v897 = vcombine.high %v896, %v896
      %v899 = vunpack.c.l.s4 1966171168
      %v900 = vunpack.c.0.s8 %v899
      %v901 = vlaneseq
      %v902 = vshrl.u32 %v901, 7
      %v903 = vsub.s32 %v900, %v902
      %v904 = vrot.slane %v896, %v903
      %v906 = vunpack.c.l.s4 1966171168
      %v907 = vunpack.c.0.s8 %v906
      %v908 = vlaneseq
      %v909 = vshrl.u32 %v908, 7
      %v910 = vsub.s32 %v907, %v909
      %v911 = vrot.slane %v897, %v910
      %v912 = vcombine.high %v904, %v904
      %v913 = vcombine.high %v911, %v911
      %v915 = vunpack.c.l.s4 1966171168
      %v916 = vunpack.c.0.s8 %v915
      %v917 = vlaneseq
      %v918 = vshrl.u32 %v917, 7
      %v919 = vsub.s32 %v916, %v918
      %v920 = vrot.slane %v643, %v919
      %v921 = vcombine.high %v920, %v920
      %v923 = vunpack.c.l.s4 1966171168
      %v924 = vunpack.c.0.s8 %v923
      %v925 = vlaneseq
      %v926 = vshrl.u32 %v925, 7
      %v927 = vsub.s32 %v924, %v926
      %v928 = vrot.slane %v920, %v927
      %v930 = vunpack.c.l.s4 1966171168
      %v931 = vunpack.c.0.s8 %v930
      %v932 = vlaneseq
      %v933 = vshrl.u32 %v932, 7
      %v934 = vsub.s32 %v931, %v933
      %v935 = vrot.slane %v921, %v934
      %v936 = vcombine.high %v928, %v928
      %v937 = vcombine.high %v935, %v935
      %v939 = vunpack.c.l.s4 1966171168
      %v940 = vunpack.c.0.s8 %v939
      %v941 = vlaneseq
      %v942 = vshrl.u32 %v941, 7
      %v943 = vsub.s32 %v940, %v942
      %v944 = vrot.slane %v604, %v943
      %v945 = vcombine.high %v944, %v944
      %v947 = vunpack.c.l.s4 1966171168
      %v948 = vunpack.c.0.s8 %v947
      %v949 = vlaneseq
      %v950 = vshrl.u32 %v949, 7
      %v951 = vsub.s32 %v948, %v950
      %v952 = vrot.slane %v944, %v951
      %v954 = vunpack.c.l.s4 1966171168
      %v955 = vunpack.c.0.s8 %v954
      %v956 = vlaneseq
      %v957 = vshrl.u32 %v956, 7
      %v958 = vsub.s32 %v955, %v957
      %v959 = vrot.slane %v945, %v958
      %v960 = vcombine.high %v952, %v952
      %v961 = vcombine.high %v959, %v959
      %v963 = vunpack.c.l.s4 1966171168
      %v964 = vunpack.c.0.s8 %v963
      %v965 = vlaneseq
      %v966 = vshrl.u32 %v965, 7
      %v967 = vsub.s32 %v964, %v966
      %v968 = vrot.slane %v644, %v967
      %v969 = vcombine.high %v968, %v968
      %v971 = vunpack.c.l.s4 1966171168
      %v972 = vunpack.c.0.s8 %v971
      %v973 = vlaneseq
      %v974 = vshrl.u32 %v973, 7
      %v975 = vsub.s32 %v972, %v974
      %v976 = vrot.slane %v968, %v975
      %v978 = vunpack.c.l.s4 1966171168
      %v979 = vunpack.c.0.s8 %v978
      %v980 = vlaneseq
      %v981 = vshrl.u32 %v980, 7
      %v982 = vsub.s32 %v979, %v981
      %v983 = vrot.slane %v969, %v982
      %v984 = vcombine.high %v976, %v976
      %v985 = vcombine.high %v983, %v983
      %v987 = vunpack.c.l.s4 1966171168
      %v988 = vunpack.c.0.s8 %v987
      %v989 = vlaneseq
      %v990 = vshrl.u32 %v989, 7
      %v991 = vsub.s32 %v988, %v990
      %v992 = vrot.slane %v607, %v991
      %v993 = vcombine.high %v992, %v992
      %v995 = vunpack.c.l.s4 1966171168
      %v996 = vunpack.c.0.s8 %v995
      %v997 = vlaneseq
      %v998 = vshrl.u32 %v997, 7
      %v999 = vsub.s32 %v996, %v998
      %v1000 = vrot.slane %v992, %v999
      %v1002 = vunpack.c.l.s4 1966171168
      %v1003 = vunpack.c.0.s8 %v1002
      %v1004 = vlaneseq
      %v1005 = vshrl.u32 %v1004, 7
      %v1006 = vsub.s32 %v1003, %v1005
      %v1007 = vrot.slane %v993, %v1006
      %v1008 = vcombine.high %v1000, %v1000
      %v1009 = vcombine.high %v1007, %v1007
      %v1011 = vunpack.c.l.s4 1966171168
      %v1012 = vunpack.c.0.s8 %v1011
      %v1013 = vlaneseq
      %v1014 = vshrl.u32 %v1013, 7
      %v1015 = vsub.s32 %v1012, %v1014
      %v1016 = vrot.slane %v645, %v1015
      %v1017 = vcombine.high %v1016, %v1016
      %v1019 = vunpack.c.l.s4 1966171168
      %v1020 = vunpack.c.0.s8 %v1019
      %v1021 = vlaneseq
      %v1022 = vshrl.u32 %v1021, 7
      %v1023 = vsub.s32 %v1020, %v1022
      %v1024 = vrot.slane %v1016, %v1023
      %v1026 = vunpack.c.l.s4 1966171168
      %v1027 = vunpack.c.0.s8 %v1026
      %v1028 = vlaneseq
      %v1029 = vshrl.u32 %v1028, 7
      %v1030 = vsub.s32 %v1027, %v1029
      %v1031 = vrot.slane %v1017, %v1030
      %v1032 = vcombine.high %v1024, %v1024
      %v1033 = vcombine.high %v1031, %v1031
      %v1035 = vunpack.c.l.s4 1966171168
      %v1036 = vunpack.c.0.s8 %v1035
      %v1037 = vlaneseq
      %v1038 = vshrl.u32 %v1037, 7
      %v1039 = vsub.s32 %v1036, %v1038
      %v1040 = vrot.slane %v612, %v1039
      %v1041 = vcombine.high %v1040, %v1040
      %v1043 = vunpack.c.l.s4 1966171168
      %v1044 = vunpack.c.0.s8 %v1043
      %v1045 = vlaneseq
      %v1046 = vshrl.u32 %v1045, 7
      %v1047 = vsub.s32 %v1044, %v1046
      %v1048 = vrot.slane %v1040, %v1047
      %v1050 = vunpack.c.l.s4 1966171168
      %v1051 = vunpack.c.0.s8 %v1050
      %v1052 = vlaneseq
      %v1053 = vshrl.u32 %v1052, 7
      %v1054 = vsub.s32 %v1051, %v1053
      %v1055 = vrot.slane %v1041, %v1054
      %v1056 = vcombine.high %v1048, %v1048
      %v1057 = vcombine.high %v1055, %v1055
      %v1059 = vunpack.c.l.s4 1966171168
      %v1060 = vunpack.c.0.s8 %v1059
      %v1061 = vlaneseq
      %v1062 = vshrl.u32 %v1061, 7
      %v1063 = vsub.s32 %v1060, %v1062
      %v1064 = vrot.slane %v646, %v1063
      %v1065 = vcombine.high %v1064, %v1064
      %v1067 = vunpack.c.l.s4 1966171168
      %v1068 = vunpack.c.0.s8 %v1067
      %v1069 = vlaneseq
      %v1070 = vshrl.u32 %v1069, 7
      %v1071 = vsub.s32 %v1068, %v1070
      %v1072 = vrot.slane %v1064, %v1071
      %v1074 = vunpack.c.l.s4 1966171168
      %v1075 = vunpack.c.0.s8 %v1074
      %v1076 = vlaneseq
      %v1077 = vshrl.u32 %v1076, 7
      %v1078 = vsub.s32 %v1075, %v1077
      %v1079 = vrot.slane %v1065, %v1078
      %v1080 = vcombine.high %v1072, %v1072
      %v1081 = vcombine.high %v1079, %v1079
      %v1083 = vunpack.c.l.s4 1966171168
      %v1084 = vunpack.c.0.s8 %v1083
      %v1085 = vlaneseq
      %v1086 = vshrl.u32 %v1085, 7
      %v1087 = vsub.s32 %v1084, %v1086
      %v1088 = vrot.slane %v615, %v1087
      %v1089 = vcombine.high %v1088, %v1088
      %v1091 = vunpack.c.l.s4 1966171168
      %v1092 = vunpack.c.0.s8 %v1091
      %v1093 = vlaneseq
      %v1094 = vshrl.u32 %v1093, 7
      %v1095 = vsub.s32 %v1092, %v1094
      %v1096 = vrot.slane %v1088, %v1095
      %v1098 = vunpack.c.l.s4 1966171168
      %v1099 = vunpack.c.0.s8 %v1098
      %v1100 = vlaneseq
      %v1101 = vshrl.u32 %v1100, 7
      %v1102 = vsub.s32 %v1099, %v1101
      %v1103 = vrot.slane %v1089, %v1102
      %v1104 = vcombine.high %v1096, %v1096
      %v1105 = vcombine.high %v1103, %v1103
      %v1107 = vunpack.c.l.s4 1966171168
      %v1108 = vunpack.c.0.s8 %v1107
      %v1109 = vlaneseq
      %v1110 = vshrl.u32 %v1109, 7
      %v1111 = vsub.s32 %v1108, %v1110
      %v1112 = vrot.slane %v647, %v1111
      %v1113 = vcombine.high %v1112, %v1112
      %v1115 = vunpack.c.l.s4 1966171168
      %v1116 = vunpack.c.0.s8 %v1115
      %v1117 = vlaneseq
      %v1118 = vshrl.u32 %v1117, 7
      %v1119 = vsub.s32 %v1116, %v1118
      %v1120 = vrot.slane %v1112, %v1119
      %v1122 = vunpack.c.l.s4 1966171168
      %v1123 = vunpack.c.0.s8 %v1122
      %v1124 = vlaneseq
      %v1125 = vshrl.u32 %v1124, 7
      %v1126 = vsub.s32 %v1123, %v1125
      %v1127 = vrot.slane %v1113, %v1126
      %v1128 = vcombine.high %v1120, %v1120
      %v1129 = vcombine.high %v1127, %v1127
      %v1131 = vunpack.c.l.s4 1966171168
      %v1132 = vunpack.c.0.s8 %v1131
      %v1133 = vlaneseq
      %v1134 = vshrl.u32 %v1133, 7
      %v1135 = vsub.s32 %v1132, %v1134
      %v1136 = vrot.slane %v620, %v1135
      %v1137 = vcombine.high %v1136, %v1136
      %v1139 = vunpack.c.l.s4 1966171168
      %v1140 = vunpack.c.0.s8 %v1139
      %v1141 = vlaneseq
      %v1142 = vshrl.u32 %v1141, 7
      %v1143 = vsub.s32 %v1140, %v1142
      %v1144 = vrot.slane %v1136, %v1143
      %v1146 = vunpack.c.l.s4 1966171168
      %v1147 = vunpack.c.0.s8 %v1146
      %v1148 = vlaneseq
      %v1149 = vshrl.u32 %v1148, 7
      %v1150 = vsub.s32 %v1147, %v1149
      %v1151 = vrot.slane %v1137, %v1150
      %v1152 = vcombine.high %v1144, %v1144
      %v1153 = vcombine.high %v1151, %v1151
      %v1155 = vunpack.c.l.s4 1966171168
      %v1156 = vunpack.c.0.s8 %v1155
      %v1157 = vlaneseq
      %v1158 = vshrl.u32 %v1157, 7
      %v1159 = vsub.s32 %v1156, %v1158
      %v1160 = vrot.slane %v648, %v1159
      %v1161 = vcombine.high %v1160, %v1160
      %v1163 = vunpack.c.l.s4 1966171168
      %v1164 = vunpack.c.0.s8 %v1163
      %v1165 = vlaneseq
      %v1166 = vshrl.u32 %v1165, 7
      %v1167 = vsub.s32 %v1164, %v1166
      %v1168 = vrot.slane %v1160, %v1167
      %v1170 = vunpack.c.l.s4 1966171168
      %v1171 = vunpack.c.0.s8 %v1170
      %v1172 = vlaneseq
      %v1173 = vshrl.u32 %v1172, 7
      %v1174 = vsub.s32 %v1171, %v1173
      %v1175 = vrot.slane %v1161, %v1174
      %v1176 = vcombine.high %v1168, %v1168
      %v1177 = vcombine.high %v1175, %v1175
      %v1179 = vunpack.c.l.s4 1966171168
      %v1180 = vunpack.c.0.s8 %v1179
      %v1181 = vlaneseq
      %v1182 = vshrl.u32 %v1181, 7
      %v1183 = vsub.s32 %v1180, %v1182
      %v1184 = vrot.slane %v623, %v1183
      %v1185 = vcombine.high %v1184, %v1184
      %v1187 = vunpack.c.l.s4 1966171168
      %v1188 = vunpack.c.0.s8 %v1187
      %v1189 = vlaneseq
      %v1190 = vshrl.u32 %v1189, 7
      %v1191 = vsub.s32 %v1188, %v1190
      %v1192 = vrot.slane %v1184, %v1191
      %v1194 = vunpack.c.l.s4 1966171168
      %v1195 = vunpack.c.0.s8 %v1194
      %v1196 = vlaneseq
      %v1197 = vshrl.u32 %v1196, 7
      %v1198 = vsub.s32 %v1195, %v1197
      %v1199 = vrot.slane %v1185, %v1198
      %v1200 = vcombine.high %v1192, %v1192
      %v1201 = vcombine.high %v1199, %v1199
      %v1203 = vunpack.c.l.s4 1966171168
      %v1204 = vunpack.c.0.s8 %v1203
      %v1205 = vlaneseq
      %v1206 = vshrl.u32 %v1205, 7
      %v1207 = vsub.s32 %v1204, %v1206
      %v1208 = vrot.slane %v649, %v1207
      %v1209 = vcombine.high %v1208, %v1208
      %v1211 = vunpack.c.l.s4 1966171168
      %v1212 = vunpack.c.0.s8 %v1211
      %v1213 = vlaneseq
      %v1214 = vshrl.u32 %v1213, 7
      %v1215 = vsub.s32 %v1212, %v1214
      %v1216 = vrot.slane %v1208, %v1215
      %v1218 = vunpack.c.l.s4 1966171168
      %v1219 = vunpack.c.0.s8 %v1218
      %v1220 = vlaneseq
      %v1221 = vshrl.u32 %v1220, 7
      %v1222 = vsub.s32 %v1219, %v1221
      %v1223 = vrot.slane %v1209, %v1222
      %v1224 = vcombine.high %v1216, %v1216
      %v1225 = vcombine.high %v1223, %v1223
      %v1322 = vlaneseq
      %v1323 = vshrl.u32 %v1322, 7
      %v1324 = vsub.s32 0, %v1323
      %v1325 = vrot.slane %v664, %v1324
      %v1326 = vlaneseq
      %v1327 = vshrl.u32 %v1326, 7
      %v1328 = vsub.s32 0, %v1327
      %v1329 = vrot.slane %v671, %v1328
      %v1330 = vlaneseq
      %v1331 = vshrl.u32 %v1330, 7
      %v1332 = vsub.s32 0, %v1331
      %v1333 = vrot.slane %v672, %v1332
      %v1334 = vlaneseq
      %v1335 = vshrl.u32 %v1334, 7
      %v1336 = vsub.s32 0, %v1335
      %v1337 = vrot.slane %v673, %v1336
      %v1338 = vlaneseq
      %v1339 = vshrl.u32 %v1338, 7
      %v1340 = vsub.s32 0, %v1339
      %v1341 = vrot.slane %v688, %v1340
      %v1342 = vlaneseq
      %v1343 = vshrl.u32 %v1342, 7
      %v1344 = vsub.s32 0, %v1343
      %v1345 = vrot.slane %v695, %v1344
      %v1346 = vlaneseq
      %v1347 = vshrl.u32 %v1346, 7
      %v1348 = vsub.s32 0, %v1347
      %v1349 = vrot.slane %v696, %v1348
      %v1350 = vlaneseq
      %v1351 = vshrl.u32 %v1350, 7
      %v1352 = vsub.s32 0, %v1351
      %v1353 = vrot.slane %v697, %v1352
      %v1354 = vlaneseq
      %v1355 = vshrl.u32 %v1354, 7
      %v1356 = vsub.s32 0, %v1355
      %v1357 = vrot.slane %v712, %v1356
      %v1358 = vlaneseq
      %v1359 = vshrl.u32 %v1358, 7
      %v1360 = vsub.s32 0, %v1359
      %v1361 = vrot.slane %v719, %v1360
      %v1362 = vlaneseq
      %v1363 = vshrl.u32 %v1362, 7
      %v1364 = vsub.s32 0, %v1363
      %v1365 = vrot.slane %v720, %v1364
      %v1366 = vlaneseq
      %v1367 = vshrl.u32 %v1366, 7
      %v1368 = vsub.s32 0, %v1367
      %v1369 = vrot.slane %v721, %v1368
      %v1370 = vlaneseq
      %v1371 = vshrl.u32 %v1370, 7
      %v1372 = vsub.s32 0, %v1371
      %v1373 = vrot.slane %v736, %v1372
      %v1374 = vlaneseq
      %v1375 = vshrl.u32 %v1374, 7
      %v1376 = vsub.s32 0, %v1375
      %v1377 = vrot.slane %v743, %v1376
      %v1378 = vlaneseq
      %v1379 = vshrl.u32 %v1378, 7
      %v1380 = vsub.s32 0, %v1379
      %v1381 = vrot.slane %v744, %v1380
      %v1382 = vlaneseq
      %v1383 = vshrl.u32 %v1382, 7
      %v1384 = vsub.s32 0, %v1383
      %v1385 = vrot.slane %v745, %v1384
      %v1386 = vlaneseq
      %v1387 = vshrl.u32 %v1386, 7
      %v1388 = vsub.s32 0, %v1387
      %v1389 = vrot.slane %v760, %v1388
      %v1390 = vlaneseq
      %v1391 = vshrl.u32 %v1390, 7
      %v1392 = vsub.s32 0, %v1391
      %v1393 = vrot.slane %v767, %v1392
      %v1394 = vlaneseq
      %v1395 = vshrl.u32 %v1394, 7
      %v1396 = vsub.s32 0, %v1395
      %v1397 = vrot.slane %v768, %v1396
      %v1398 = vlaneseq
      %v1399 = vshrl.u32 %v1398, 7
      %v1400 = vsub.s32 0, %v1399
      %v1401 = vrot.slane %v769, %v1400
      %v1402 = vlaneseq
      %v1403 = vshrl.u32 %v1402, 7
      %v1404 = vsub.s32 0, %v1403
      %v1405 = vrot.slane %v784, %v1404
      %v1406 = vlaneseq
      %v1407 = vshrl.u32 %v1406, 7
      %v1408 = vsub.s32 0, %v1407
      %v1409 = vrot.slane %v791, %v1408
      %v1410 = vlaneseq
      %v1411 = vshrl.u32 %v1410, 7
      %v1412 = vsub.s32 0, %v1411
      %v1413 = vrot.slane %v792, %v1412
      %v1414 = vlaneseq
      %v1415 = vshrl.u32 %v1414, 7
      %v1416 = vsub.s32 0, %v1415
      %v1417 = vrot.slane %v793, %v1416
      %v1418 = vlaneseq
      %v1419 = vshrl.u32 %v1418, 7
      %v1420 = vsub.s32 0, %v1419
      %v1421 = vrot.slane %v808, %v1420
      %v1422 = vlaneseq
      %v1423 = vshrl.u32 %v1422, 7
      %v1424 = vsub.s32 0, %v1423
      %v1425 = vrot.slane %v815, %v1424
      %v1426 = vlaneseq
      %v1427 = vshrl.u32 %v1426, 7
      %v1428 = vsub.s32 0, %v1427
      %v1429 = vrot.slane %v816, %v1428
      %v1430 = vlaneseq
      %v1431 = vshrl.u32 %v1430, 7
      %v1432 = vsub.s32 0, %v1431
      %v1433 = vrot.slane %v817, %v1432
      %v1434 = vlaneseq
      %v1435 = vshrl.u32 %v1434, 7
      %v1436 = vsub.s32 0, %v1435
      %v1437 = vrot.slane %v832, %v1436
      %v1438 = vlaneseq
      %v1439 = vshrl.u32 %v1438, 7
      %v1440 = vsub.s32 0, %v1439
      %v1441 = vrot.slane %v839, %v1440
      %v1442 = vlaneseq
      %v1443 = vshrl.u32 %v1442, 7
      %v1444 = vsub.s32 0, %v1443
      %v1445 = vrot.slane %v840, %v1444
      %v1446 = vlaneseq
      %v1447 = vshrl.u32 %v1446, 7
      %v1448 = vsub.s32 0, %v1447
      %v1449 = vrot.slane %v841, %v1448
      %v1450 = vlaneseq
      %v1451 = vshrl.u32 %v1450, 7
      %v1452 = vsub.s32 0, %v1451
      %v1453 = vrot.slane %v856, %v1452
      %v1454 = vlaneseq
      %v1455 = vshrl.u32 %v1454, 7
      %v1456 = vsub.s32 0, %v1455
      %v1457 = vrot.slane %v863, %v1456
      %v1458 = vlaneseq
      %v1459 = vshrl.u32 %v1458, 7
      %v1460 = vsub.s32 0, %v1459
      %v1461 = vrot.slane %v864, %v1460
      %v1462 = vlaneseq
      %v1463 = vshrl.u32 %v1462, 7
      %v1464 = vsub.s32 0, %v1463
      %v1465 = vrot.slane %v865, %v1464
      %v1466 = vlaneseq
      %v1467 = vshrl.u32 %v1466, 7
      %v1468 = vsub.s32 0, %v1467
      %v1469 = vrot.slane %v880, %v1468
      %v1470 = vlaneseq
      %v1471 = vshrl.u32 %v1470, 7
      %v1472 = vsub.s32 0, %v1471
      %v1473 = vrot.slane %v887, %v1472
      %v1474 = vlaneseq
      %v1475 = vshrl.u32 %v1474, 7
      %v1476 = vsub.s32 0, %v1475
      %v1477 = vrot.slane %v888, %v1476
      %v1478 = vlaneseq
      %v1479 = vshrl.u32 %v1478, 7
      %v1480 = vsub.s32 0, %v1479
      %v1481 = vrot.slane %v889, %v1480
      %v1482 = vlaneseq
      %v1483 = vshrl.u32 %v1482, 7
      %v1484 = vsub.s32 0, %v1483
      %v1485 = vrot.slane %v904, %v1484
      %v1486 = vlaneseq
      %v1487 = vshrl.u32 %v1486, 7
      %v1488 = vsub.s32 0, %v1487
      %v1489 = vrot.slane %v911, %v1488
      %v1490 = vlaneseq
      %v1491 = vshrl.u32 %v1490, 7
      %v1492 = vsub.s32 0, %v1491
      %v1493 = vrot.slane %v912, %v1492
      %v1494 = vlaneseq
      %v1495 = vshrl.u32 %v1494, 7
      %v1496 = vsub.s32 0, %v1495
      %v1497 = vrot.slane %v913, %v1496
      %v1498 = vlaneseq
      %v1499 = vshrl.u32 %v1498, 7
      %v1500 = vsub.s32 0, %v1499
      %v1501 = vrot.slane %v928, %v1500
      %v1502 = vlaneseq
      %v1503 = vshrl.u32 %v1502, 7
      %v1504 = vsub.s32 0, %v1503
      %v1505 = vrot.slane %v935, %v1504
      %v1506 = vlaneseq
      %v1507 = vshrl.u32 %v1506, 7
      %v1508 = vsub.s32 0, %v1507
      %v1509 = vrot.slane %v936, %v1508
      %v1510 = vlaneseq
      %v1511 = vshrl.u32 %v1510, 7
      %v1512 = vsub.s32 0, %v1511
      %v1513 = vrot.slane %v937, %v1512
      %v1514 = vlaneseq
      %v1515 = vshrl.u32 %v1514, 7
      %v1516 = vsub.s32 0, %v1515
      %v1517 = vrot.slane %v952, %v1516
      %v1518 = vlaneseq
      %v1519 = vshrl.u32 %v1518, 7
      %v1520 = vsub.s32 0, %v1519
      %v1521 = vrot.slane %v959, %v1520
      %v1522 = vlaneseq
      %v1523 = vshrl.u32 %v1522, 7
      %v1524 = vsub.s32 0, %v1523
      %v1525 = vrot.slane %v960, %v1524
      %v1526 = vlaneseq
      %v1527 = vshrl.u32 %v1526, 7
      %v1528 = vsub.s32 0, %v1527
      %v1529 = vrot.slane %v961, %v1528
      %v1530 = vlaneseq
      %v1531 = vshrl.u32 %v1530, 7
      %v1532 = vsub.s32 0, %v1531
      %v1533 = vrot.slane %v976, %v1532
      %v1534 = vlaneseq
      %v1535 = vshrl.u32 %v1534, 7
      %v1536 = vsub.s32 0, %v1535
      %v1537 = vrot.slane %v983, %v1536
      %v1538 = vlaneseq
      %v1539 = vshrl.u32 %v1538, 7
      %v1540 = vsub.s32 0, %v1539
      %v1541 = vrot.slane %v984, %v1540
      %v1542 = vlaneseq
      %v1543 = vshrl.u32 %v1542, 7
      %v1544 = vsub.s32 0, %v1543
      %v1545 = vrot.slane %v985, %v1544
      %v1546 = vlaneseq
      %v1547 = vshrl.u32 %v1546, 7
      %v1548 = vsub.s32 0, %v1547
      %v1549 = vrot.slane %v1000, %v1548
      %v1550 = vlaneseq
      %v1551 = vshrl.u32 %v1550, 7
      %v1552 = vsub.s32 0, %v1551
      %v1553 = vrot.slane %v1007, %v1552
      %v1554 = vlaneseq
      %v1555 = vshrl.u32 %v1554, 7
      %v1556 = vsub.s32 0, %v1555
      %v1557 = vrot.slane %v1008, %v1556
      %v1558 = vlaneseq
      %v1559 = vshrl.u32 %v1558, 7
      %v1560 = vsub.s32 0, %v1559
      %v1561 = vrot.slane %v1009, %v1560
      %v1562 = vlaneseq
      %v1563 = vshrl.u32 %v1562, 7
      %v1564 = vsub.s32 0, %v1563
      %v1565 = vrot.slane %v1024, %v1564
      %v1566 = vlaneseq
      %v1567 = vshrl.u32 %v1566, 7
      %v1568 = vsub.s32 0, %v1567
      %v1569 = vrot.slane %v1031, %v1568
      %v1570 = vlaneseq
      %v1571 = vshrl.u32 %v1570, 7
      %v1572 = vsub.s32 0, %v1571
      %v1573 = vrot.slane %v1032, %v1572
      %v1574 = vlaneseq
      %v1575 = vshrl.u32 %v1574, 7
      %v1576 = vsub.s32 0, %v1575
      %v1577 = vrot.slane %v1033, %v1576
      %v1578 = vlaneseq
      %v1579 = vshrl.u32 %v1578, 7
      %v1580 = vsub.s32 0, %v1579
      %v1581 = vrot.slane %v1048, %v1580
      %v1582 = vlaneseq
      %v1583 = vshrl.u32 %v1582, 7
      %v1584 = vsub.s32 0, %v1583
      %v1585 = vrot.slane %v1055, %v1584
      %v1586 = vlaneseq
      %v1587 = vshrl.u32 %v1586, 7
      %v1588 = vsub.s32 0, %v1587
      %v1589 = vrot.slane %v1056, %v1588
      %v1590 = vlaneseq
      %v1591 = vshrl.u32 %v1590, 7
      %v1592 = vsub.s32 0, %v1591
      %v1593 = vrot.slane %v1057, %v1592
      %v1594 = vlaneseq
      %v1595 = vshrl.u32 %v1594, 7
      %v1596 = vsub.s32 0, %v1595
      %v1597 = vrot.slane %v1072, %v1596
      %v1598 = vlaneseq
      %v1599 = vshrl.u32 %v1598, 7
      %v1600 = vsub.s32 0, %v1599
      %v1601 = vrot.slane %v1079, %v1600
      %v1602 = vlaneseq
      %v1603 = vshrl.u32 %v1602, 7
      %v1604 = vsub.s32 0, %v1603
      %v1605 = vrot.slane %v1080, %v1604
      %v1606 = vlaneseq
      %v1607 = vshrl.u32 %v1606, 7
      %v1608 = vsub.s32 0, %v1607
      %v1609 = vrot.slane %v1081, %v1608
      %v1610 = vlaneseq
      %v1611 = vshrl.u32 %v1610, 7
      %v1612 = vsub.s32 0, %v1611
      %v1613 = vrot.slane %v1096, %v1612
      %v1614 = vlaneseq
      %v1615 = vshrl.u32 %v1614, 7
      %v1616 = vsub.s32 0, %v1615
      %v1617 = vrot.slane %v1103, %v1616
      %v1618 = vlaneseq
      %v1619 = vshrl.u32 %v1618, 7
      %v1620 = vsub.s32 0, %v1619
      %v1621 = vrot.slane %v1104, %v1620
      %v1622 = vlaneseq
      %v1623 = vshrl.u32 %v1622, 7
      %v1624 = vsub.s32 0, %v1623
      %v1625 = vrot.slane %v1105, %v1624
      %v1626 = vlaneseq
      %v1627 = vshrl.u32 %v1626, 7
      %v1628 = vsub.s32 0, %v1627
      %v1629 = vrot.slane %v1120, %v1628
      %v1630 = vlaneseq
      %v1631 = vshrl.u32 %v1630, 7
      %v1632 = vsub.s32 0, %v1631
      %v1633 = vrot.slane %v1127, %v1632
      %v1634 = vlaneseq
      %v1635 = vshrl.u32 %v1634, 7
      %v1636 = vsub.s32 0, %v1635
      %v1637 = vrot.slane %v1128, %v1636
      %v1638 = vlaneseq
      %v1639 = vshrl.u32 %v1638, 7
      %v1640 = vsub.s32 0, %v1639
      %v1641 = vrot.slane %v1129, %v1640
      %v1642 = vlaneseq
      %v1643 = vshrl.u32 %v1642, 7
      %v1644 = vsub.s32 0, %v1643
      %v1645 = vrot.slane %v1144, %v1644
      %v1646 = vlaneseq
      %v1647 = vshrl.u32 %v1646, 7
      %v1648 = vsub.s32 0, %v1647
      %v1649 = vrot.slane %v1151, %v1648
      %v1650 = vlaneseq
      %v1651 = vshrl.u32 %v1650, 7
      %v1652 = vsub.s32 0, %v1651
      %v1653 = vrot.slane %v1152, %v1652
      %v1654 = vlaneseq
      %v1655 = vshrl.u32 %v1654, 7
      %v1656 = vsub.s32 0, %v1655
      %v1657 = vrot.slane %v1153, %v1656
      %v1658 = vlaneseq
      %v1659 = vshrl.u32 %v1658, 7
      %v1660 = vsub.s32 0, %v1659
      %v1661 = vrot.slane %v1168, %v1660
      %v1662 = vlaneseq
      %v1663 = vshrl.u32 %v1662, 7
      %v1664 = vsub.s32 0, %v1663
      %v1665 = vrot.slane %v1175, %v1664
      %v1666 = vlaneseq
      %v1667 = vshrl.u32 %v1666, 7
      %v1668 = vsub.s32 0, %v1667
      %v1669 = vrot.slane %v1176, %v1668
      %v1670 = vlaneseq
      %v1671 = vshrl.u32 %v1670, 7
      %v1672 = vsub.s32 0, %v1671
      %v1673 = vrot.slane %v1177, %v1672
      %v1674 = vlaneseq
      %v1675 = vshrl.u32 %v1674, 7
      %v1676 = vsub.s32 0, %v1675
      %v1677 = vrot.slane %v1192, %v1676
      %v1678 = vlaneseq
      %v1679 = vshrl.u32 %v1678, 7
      %v1680 = vsub.s32 0, %v1679
      %v1681 = vrot.slane %v1199, %v1680
      %v1682 = vlaneseq
      %v1683 = vshrl.u32 %v1682, 7
      %v1684 = vsub.s32 0, %v1683
      %v1685 = vrot.slane %v1200, %v1684
      %v1686 = vlaneseq
      %v1687 = vshrl.u32 %v1686, 7
      %v1688 = vsub.s32 0, %v1687
      %v1689 = vrot.slane %v1201, %v1688
      %v1690 = vlaneseq
      %v1691 = vshrl.u32 %v1690, 7
      %v1692 = vsub.s32 0, %v1691
      %v1693 = vrot.slane %v1216, %v1692
      %v1694 = vlaneseq
      %v1695 = vshrl.u32 %v1694, 7
      %v1696 = vsub.s32 0, %v1695
      %v1697 = vrot.slane %v1223, %v1696
      %v1698 = vlaneseq
      %v1699 = vshrl.u32 %v1698, 7
      %v1700 = vsub.s32 0, %v1699
      %v1701 = vrot.slane %v1224, %v1700
      %v1702 = vlaneseq
      %v1703 = vshrl.u32 %v1702, 7
      %v1704 = vsub.s32 0, %v1703
      %v1705 = vrot.slane %v1225, %v1704
      %1706 = vrot.lane.b32.xlu0 %v1325, 124
      %v1707 = vpop.permute.xlu0 %1706
      %1708 = vrot.lane.b32.xlu0 %v1329, 124
      %v1709 = vpop.permute.xlu0 %1708
      %1710 = vrot.lane.b32.xlu0 %v1333, 124
      %v1711 = vpop.permute.xlu0 %1710
      %1712 = vrot.lane.b32.xlu0 %v1337, 124
      %v1713 = vpop.permute.xlu0 %1712
      %1714 = vrot.lane.b32.xlu0 %v1341, 124
      %v1715 = vpop.permute.xlu0 %1714
      %1716 = vrot.lane.b32.xlu0 %v1345, 124
      %v1717 = vpop.permute.xlu0 %1716
      %1718 = vrot.lane.b32.xlu0 %v1349, 124
      %v1719 = vpop.permute.xlu0 %1718
      %1720 = vrot.lane.b32.xlu0 %v1353, 124
      %v1721 = vpop.permute.xlu0 %1720
      %1722 = vrot.lane.b32.xlu0 %v1357, 124
      %v1723 = vpop.permute.xlu0 %1722
      %1724 = vrot.lane.b32.xlu0 %v1361, 124
      %v1725 = vpop.permute.xlu0 %1724
      %1726 = vrot.lane.b32.xlu0 %v1365, 124
      %v1727 = vpop.permute.xlu0 %1726
      %1728 = vrot.lane.b32.xlu0 %v1369, 124
      %v1729 = vpop.permute.xlu0 %1728
      %1730 = vrot.lane.b32.xlu0 %v1373, 124
      %v1731 = vpop.permute.xlu0 %1730
      %1732 = vrot.lane.b32.xlu0 %v1377, 124
      %v1733 = vpop.permute.xlu0 %1732
      %1734 = vrot.lane.b32.xlu0 %v1381, 124
      %v1735 = vpop.permute.xlu0 %1734
      %1736 = vrot.lane.b32.xlu0 %v1385, 124
      %v1737 = vpop.permute.xlu0 %1736
      %1738 = vrot.lane.b32.xlu0 %v1389, 124
      %v1739 = vpop.permute.xlu0 %1738
      %1740 = vrot.lane.b32.xlu0 %v1393, 124
      %v1741 = vpop.permute.xlu0 %1740
      %1742 = vrot.lane.b32.xlu0 %v1397, 124
      %v1743 = vpop.permute.xlu0 %1742
      %1744 = vrot.lane.b32.xlu0 %v1401, 124
      %v1745 = vpop.permute.xlu0 %1744
      %1746 = vrot.lane.b32.xlu0 %v1405, 124
      %v1747 = vpop.permute.xlu0 %1746
      %1748 = vrot.lane.b32.xlu0 %v1409, 124
      %v1749 = vpop.permute.xlu0 %1748
      %1750 = vrot.lane.b32.xlu0 %v1413, 124
      %v1751 = vpop.permute.xlu0 %1750
      %1752 = vrot.lane.b32.xlu0 %v1417, 124
      %v1753 = vpop.permute.xlu0 %1752
      %1754 = vrot.lane.b32.xlu0 %v1421, 124
      %v1755 = vpop.permute.xlu0 %1754
      %1756 = vrot.lane.b32.xlu0 %v1425, 124
      %v1757 = vpop.permute.xlu0 %1756
      %1758 = vrot.lane.b32.xlu0 %v1429, 124
      %v1759 = vpop.permute.xlu0 %1758
      %1760 = vrot.lane.b32.xlu0 %v1433, 124
      %v1761 = vpop.permute.xlu0 %1760
      %1762 = vrot.lane.b32.xlu0 %v1437, 124
      %v1763 = vpop.permute.xlu0 %1762
      %1764 = vrot.lane.b32.xlu0 %v1441, 124
      %v1765 = vpop.permute.xlu0 %1764
      %1766 = vrot.lane.b32.xlu0 %v1445, 124
      %v1767 = vpop.permute.xlu0 %1766
      %1768 = vrot.lane.b32.xlu0 %v1449, 124
      %v1769 = vpop.permute.xlu0 %1768
      %1770 = vrot.lane.b32.xlu0 %v1453, 124
      %v1771 = vpop.permute.xlu0 %1770
      %1772 = vrot.lane.b32.xlu0 %v1457, 124
      %v1773 = vpop.permute.xlu0 %1772
      %1774 = vrot.lane.b32.xlu0 %v1461, 124
      %v1775 = vpop.permute.xlu0 %1774
      %1776 = vrot.lane.b32.xlu0 %v1465, 124
      %v1777 = vpop.permute.xlu0 %1776
      %1778 = vrot.lane.b32.xlu0 %v1469, 124
      %v1779 = vpop.permute.xlu0 %1778
      %1780 = vrot.lane.b32.xlu0 %v1473, 124
      %v1781 = vpop.permute.xlu0 %1780
      %1782 = vrot.lane.b32.xlu0 %v1477, 124
      %v1783 = vpop.permute.xlu0 %1782
      %1784 = vrot.lane.b32.xlu0 %v1481, 124
      %v1785 = vpop.permute.xlu0 %1784
      %1786 = vrot.lane.b32.xlu0 %v1485, 124
      %v1787 = vpop.permute.xlu0 %1786
      %1788 = vrot.lane.b32.xlu0 %v1489, 124
      %v1789 = vpop.permute.xlu0 %1788
      %1790 = vrot.lane.b32.xlu0 %v1493, 124
      %v1791 = vpop.permute.xlu0 %1790
      %1792 = vrot.lane.b32.xlu0 %v1497, 124
      %v1793 = vpop.permute.xlu0 %1792
      %1794 = vrot.lane.b32.xlu0 %v1501, 124
      %v1795 = vpop.permute.xlu0 %1794
      %1796 = vrot.lane.b32.xlu0 %v1505, 124
      %v1797 = vpop.permute.xlu0 %1796
      %1798 = vrot.lane.b32.xlu0 %v1509, 124
      %v1799 = vpop.permute.xlu0 %1798
      %1800 = vrot.lane.b32.xlu0 %v1513, 124
      %v1801 = vpop.permute.xlu0 %1800
      %1802 = vrot.lane.b32.xlu0 %v1517, 124
      %v1803 = vpop.permute.xlu0 %1802
      %1804 = vrot.lane.b32.xlu0 %v1521, 124
      %v1805 = vpop.permute.xlu0 %1804
      %1806 = vrot.lane.b32.xlu0 %v1525, 124
      %v1807 = vpop.permute.xlu0 %1806
      %1808 = vrot.lane.b32.xlu0 %v1529, 124
      %v1809 = vpop.permute.xlu0 %1808
      %1810 = vrot.lane.b32.xlu0 %v1533, 124
      %v1811 = vpop.permute.xlu0 %1810
      %1812 = vrot.lane.b32.xlu0 %v1537, 124
      %v1813 = vpop.permute.xlu0 %1812
      %1814 = vrot.lane.b32.xlu0 %v1541, 124
      %v1815 = vpop.permute.xlu0 %1814
      %1816 = vrot.lane.b32.xlu0 %v1545, 124
      %v1817 = vpop.permute.xlu0 %1816
      %1818 = vrot.lane.b32.xlu0 %v1549, 124
      %v1819 = vpop.permute.xlu0 %1818
      %1820 = vrot.lane.b32.xlu0 %v1553, 124
      %v1821 = vpop.permute.xlu0 %1820
      %1822 = vrot.lane.b32.xlu0 %v1557, 124
      %v1823 = vpop.permute.xlu0 %1822
      %1824 = vrot.lane.b32.xlu0 %v1561, 124
      %v1825 = vpop.permute.xlu0 %1824
      %1826 = vrot.lane.b32.xlu0 %v1565, 124
      %v1827 = vpop.permute.xlu0 %1826
      %1828 = vrot.lane.b32.xlu0 %v1569, 124
      %v1829 = vpop.permute.xlu0 %1828
      %1830 = vrot.lane.b32.xlu0 %v1573, 124
      %v1831 = vpop.permute.xlu0 %1830
      %1832 = vrot.lane.b32.xlu0 %v1577, 124
      %v1833 = vpop.permute.xlu0 %1832
      %1834 = vrot.lane.b32.xlu0 %v1581, 124
      %v1835 = vpop.permute.xlu0 %1834
      %1836 = vrot.lane.b32.xlu0 %v1585, 124
      %v1837 = vpop.permute.xlu0 %1836
      %1838 = vrot.lane.b32.xlu0 %v1589, 124
      %v1839 = vpop.permute.xlu0 %1838
      %1840 = vrot.lane.b32.xlu0 %v1593, 124
      %v1841 = vpop.permute.xlu0 %1840
      %1842 = vrot.lane.b32.xlu0 %v1597, 124
      %v1843 = vpop.permute.xlu0 %1842
      %1844 = vrot.lane.b32.xlu0 %v1601, 124
      %v1845 = vpop.permute.xlu0 %1844
      %1846 = vrot.lane.b32.xlu0 %v1605, 124
      %v1847 = vpop.permute.xlu0 %1846
      %1848 = vrot.lane.b32.xlu0 %v1609, 124
      %v1849 = vpop.permute.xlu0 %1848
      %1850 = vrot.lane.b32.xlu0 %v1613, 124
      %v1851 = vpop.permute.xlu0 %1850
      %1852 = vrot.lane.b32.xlu0 %v1617, 124
      %v1853 = vpop.permute.xlu0 %1852
      %1854 = vrot.lane.b32.xlu0 %v1621, 124
      %v1855 = vpop.permute.xlu0 %1854
      %1856 = vrot.lane.b32.xlu0 %v1625, 124
      %v1857 = vpop.permute.xlu0 %1856
      %1858 = vrot.lane.b32.xlu0 %v1629, 124
      %v1859 = vpop.permute.xlu0 %1858
      %1860 = vrot.lane.b32.xlu0 %v1633, 124
      %v1861 = vpop.permute.xlu0 %1860
      %1862 = vrot.lane.b32.xlu0 %v1637, 124
      %v1863 = vpop.permute.xlu0 %1862
      %1864 = vrot.lane.b32.xlu0 %v1641, 124
      %v1865 = vpop.permute.xlu0 %1864
      %1866 = vrot.lane.b32.xlu0 %v1645, 124
      %v1867 = vpop.permute.xlu0 %1866
      %1868 = vrot.lane.b32.xlu0 %v1649, 124
      %v1869 = vpop.permute.xlu0 %1868
      %1870 = vrot.lane.b32.xlu0 %v1653, 124
      %v1871 = vpop.permute.xlu0 %1870
      %1872 = vrot.lane.b32.xlu0 %v1657, 124
      %v1873 = vpop.permute.xlu0 %1872
      %1874 = vrot.lane.b32.xlu0 %v1661, 124
      %v1875 = vpop.permute.xlu0 %1874
      %1876 = vrot.lane.b32.xlu0 %v1665, 124
      %v1877 = vpop.permute.xlu0 %1876
      %1878 = vrot.lane.b32.xlu0 %v1669, 124
      %v1879 = vpop.permute.xlu0 %1878
      %1880 = vrot.lane.b32.xlu0 %v1673, 124
      %v1881 = vpop.permute.xlu0 %1880
      %1882 = vrot.lane.b32.xlu0 %v1677, 124
      %v1883 = vpop.permute.xlu0 %1882
      %1884 = vrot.lane.b32.xlu0 %v1681, 124
      %v1885 = vpop.permute.xlu0 %1884
      %1886 = vrot.lane.b32.xlu0 %v1685, 124
      %v1887 = vpop.permute.xlu0 %1886
      %1888 = vrot.lane.b32.xlu0 %v1689, 124
      %v1889 = vpop.permute.xlu0 %1888
      %1890 = vrot.lane.b32.xlu0 %v1693, 124
      %v1891 = vpop.permute.xlu0 %1890
      %1892 = vrot.lane.b32.xlu0 %v1697, 124
      %v1893 = vpop.permute.xlu0 %1892
      %1894 = vrot.lane.b32.xlu0 %v1701, 124
      %v1895 = vpop.permute.xlu0 %1894
      %1896 = vrot.lane.b32.xlu0 %v1705, 124
      %v1897 = vpop.permute.xlu0 %1896
      %vm1994 = vcmask 1040384
      %v1995 = vsel %vm1994, %v664, %v1707
      %v1996 = vsel %vm1994, %v671, %v1709
      %v1997 = vsel %vm1994, %v672, %v1711
      %v1998 = vsel %vm1994, %v673, %v1713
      %v1999 = vsel %vm1994, %v688, %v1715
      %v2000 = vsel %vm1994, %v695, %v1717
      %v2001 = vsel %vm1994, %v696, %v1719
      %v2002 = vsel %vm1994, %v697, %v1721
      %v2003 = vsel %vm1994, %v712, %v1723
      %v2004 = vsel %vm1994, %v719, %v1725
      %v2005 = vsel %vm1994, %v720, %v1727
      %v2006 = vsel %vm1994, %v721, %v1729
      %v2007 = vsel %vm1994, %v736, %v1731
      %v2008 = vsel %vm1994, %v743, %v1733
      %v2009 = vsel %vm1994, %v744, %v1735
      %v2010 = vsel %vm1994, %v745, %v1737
      %v2011 = vsel %vm1994, %v760, %v1739
      %v2012 = vsel %vm1994, %v767, %v1741
      %v2013 = vsel %vm1994, %v768, %v1743
      %v2014 = vsel %vm1994, %v769, %v1745
      %v2015 = vsel %vm1994, %v784, %v1747
      %v2016 = vsel %vm1994, %v791, %v1749
      %v2017 = vsel %vm1994, %v792, %v1751
      %v2018 = vsel %vm1994, %v793, %v1753
      %v2019 = vsel %vm1994, %v808, %v1755
      %v2020 = vsel %vm1994, %v815, %v1757
      %v2021 = vsel %vm1994, %v816, %v1759
      %v2022 = vsel %vm1994, %v817, %v1761
      %v2023 = vsel %vm1994, %v832, %v1763
      %v2024 = vsel %vm1994, %v839, %v1765
      %v2025 = vsel %vm1994, %v840, %v1767
      %v2026 = vsel %vm1994, %v841, %v1769
      %v2027 = vsel %vm1994, %v856, %v1771
      %v2028 = vsel %vm1994, %v863, %v1773
      %v2029 = vsel %vm1994, %v864, %v1775
      %v2030 = vsel %vm1994, %v865, %v1777
      %v2031 = vsel %vm1994, %v880, %v1779
      %v2032 = vsel %vm1994, %v887, %v1781
      %v2033 = vsel %vm1994, %v888, %v1783
      %v2034 = vsel %vm1994, %v889, %v1785
      %v2035 = vsel %vm1994, %v904, %v1787
      %v2036 = vsel %vm1994, %v911, %v1789
      %v2037 = vsel %vm1994, %v912, %v1791
      %v2038 = vsel %vm1994, %v913, %v1793
      %v2039 = vsel %vm1994, %v928, %v1795
      %v2040 = vsel %vm1994, %v935, %v1797
      %v2041 = vsel %vm1994, %v936, %v1799
      %v2042 = vsel %vm1994, %v937, %v1801
      %v2043 = vsel %vm1994, %v952, %v1803
      %v2044 = vsel %vm1994, %v959, %v1805
      %v2045 = vsel %vm1994, %v960, %v1807
      %v2046 = vsel %vm1994, %v961, %v1809
      %v2047 = vsel %vm1994, %v976, %v1811
      %v2048 = vsel %vm1994, %v983, %v1813
      %v2049 = vsel %vm1994, %v984, %v1815
      %v2050 = vsel %vm1994, %v985, %v1817
      %v2051 = vsel %vm1994, %v1000, %v1819
      %v2052 = vsel %vm1994, %v1007, %v1821
      %v2053 = vsel %vm1994, %v1008, %v1823
      %v2054 = vsel %vm1994, %v1009, %v1825
      %v2055 = vsel %vm1994, %v1024, %v1827
      %v2056 = vsel %vm1994, %v1031, %v1829
      %v2057 = vsel %vm1994, %v1032, %v1831
      %v2058 = vsel %vm1994, %v1033, %v1833
      %v2059 = vsel %vm1994, %v1048, %v1835
      %v2060 = vsel %vm1994, %v1055, %v1837
      %v2061 = vsel %vm1994, %v1056, %v1839
      %v2062 = vsel %vm1994, %v1057, %v1841
      %v2063 = vsel %vm1994, %v1072, %v1843
      %v2064 = vsel %vm1994, %v1079, %v1845
      %v2065 = vsel %vm1994, %v1080, %v1847
      %v2066 = vsel %vm1994, %v1081, %v1849
      %v2067 = vsel %vm1994, %v1096, %v1851
      %v2068 = vsel %vm1994, %v1103, %v1853
      %v2069 = vsel %vm1994, %v1104, %v1855
      %v2070 = vsel %vm1994, %v1105, %v1857
      %v2071 = vsel %vm1994, %v1120, %v1859
      %v2072 = vsel %vm1994, %v1127, %v1861
      %v2073 = vsel %vm1994, %v1128, %v1863
      %v2074 = vsel %vm1994, %v1129, %v1865
      %v2075 = vsel %vm1994, %v1144, %v1867
      %v2076 = vsel %vm1994, %v1151, %v1869
      %v2077 = vsel %vm1994, %v1152, %v1871
      %v2078 = vsel %vm1994, %v1153, %v1873
      %v2079 = vsel %vm1994, %v1168, %v1875
      %v2080 = vsel %vm1994, %v1175, %v1877
      %v2081 = vsel %vm1994, %v1176, %v1879
      %v2082 = vsel %vm1994, %v1177, %v1881
      %v2083 = vsel %vm1994, %v1192, %v1883
      %v2084 = vsel %vm1994, %v1199, %v1885
      %v2085 = vsel %vm1994, %v1200, %v1887
      %v2086 = vsel %vm1994, %v1201, %v1889
      %v2087 = vsel %vm1994, %v1216, %v1891
      %v2088 = vsel %vm1994, %v1223, %v1893
      %v2089 = vsel %vm1994, %v1224, %v1895
      %v2090 = vsel %vm1994, %v1225, %v1897
      %2187 = vrot.lane.b32.xlu0 %v1995, 120
      %v2188 = vpop.permute.xlu0 %2187
      %2189 = vrot.lane.b32.xlu0 %v1996, 120
      %v2190 = vpop.permute.xlu0 %2189
      %2191 = vrot.lane.b32.xlu0 %v1997, 120
      %v2192 = vpop.permute.xlu0 %2191
      %2193 = vrot.lane.b32.xlu0 %v1998, 120
      %v2194 = vpop.permute.xlu0 %2193
      %2195 = vrot.lane.b32.xlu0 %v1999, 120
      %v2196 = vpop.permute.xlu0 %2195
      %2197 = vrot.lane.b32.xlu0 %v2000, 120
      %v2198 = vpop.permute.xlu0 %2197
      %2199 = vrot.lane.b32.xlu0 %v2001, 120
      %v2200 = vpop.permute.xlu0 %2199
      %2201 = vrot.lane.b32.xlu0 %v2002, 120
      %v2202 = vpop.permute.xlu0 %2201
      %2203 = vrot.lane.b32.xlu0 %v2003, 120
      %v2204 = vpop.permute.xlu0 %2203
      %2205 = vrot.lane.b32.xlu0 %v2004, 120
      %v2206 = vpop.permute.xlu0 %2205
      %2207 = vrot.lane.b32.xlu0 %v2005, 120
      %v2208 = vpop.permute.xlu0 %2207
      %2209 = vrot.lane.b32.xlu0 %v2006, 120
      %v2210 = vpop.permute.xlu0 %2209
      %2211 = vrot.lane.b32.xlu0 %v2007, 120
      %v2212 = vpop.permute.xlu0 %2211
      %2213 = vrot.lane.b32.xlu0 %v2008, 120
      %v2214 = vpop.permute.xlu0 %2213
      %2215 = vrot.lane.b32.xlu0 %v2009, 120
      %v2216 = vpop.permute.xlu0 %2215
      %2217 = vrot.lane.b32.xlu0 %v2010, 120
      %v2218 = vpop.permute.xlu0 %2217
      %2219 = vrot.lane.b32.xlu0 %v2011, 120
      %v2220 = vpop.permute.xlu0 %2219
      %2221 = vrot.lane.b32.xlu0 %v2012, 120
      %v2222 = vpop.permute.xlu0 %2221
      %2223 = vrot.lane.b32.xlu0 %v2013, 120
      %v2224 = vpop.permute.xlu0 %2223
      %2225 = vrot.lane.b32.xlu0 %v2014, 120
      %v2226 = vpop.permute.xlu0 %2225
      %2227 = vrot.lane.b32.xlu0 %v2015, 120
      %v2228 = vpop.permute.xlu0 %2227
      %2229 = vrot.lane.b32.xlu0 %v2016, 120
      %v2230 = vpop.permute.xlu0 %2229
      %2231 = vrot.lane.b32.xlu0 %v2017, 120
      %v2232 = vpop.permute.xlu0 %2231
      %2233 = vrot.lane.b32.xlu0 %v2018, 120
      %v2234 = vpop.permute.xlu0 %2233
      %2235 = vrot.lane.b32.xlu0 %v2019, 120
      %v2236 = vpop.permute.xlu0 %2235
      %2237 = vrot.lane.b32.xlu0 %v2020, 120
      %v2238 = vpop.permute.xlu0 %2237
      %2239 = vrot.lane.b32.xlu0 %v2021, 120
      %v2240 = vpop.permute.xlu0 %2239
      %2241 = vrot.lane.b32.xlu0 %v2022, 120
      %v2242 = vpop.permute.xlu0 %2241
      %2243 = vrot.lane.b32.xlu0 %v2023, 120
      %v2244 = vpop.permute.xlu0 %2243
      %2245 = vrot.lane.b32.xlu0 %v2024, 120
      %v2246 = vpop.permute.xlu0 %2245
      %2247 = vrot.lane.b32.xlu0 %v2025, 120
      %v2248 = vpop.permute.xlu0 %2247
      %2249 = vrot.lane.b32.xlu0 %v2026, 120
      %v2250 = vpop.permute.xlu0 %2249
      %2251 = vrot.lane.b32.xlu0 %v2027, 120
      %v2252 = vpop.permute.xlu0 %2251
      %2253 = vrot.lane.b32.xlu0 %v2028, 120
      %v2254 = vpop.permute.xlu0 %2253
      %2255 = vrot.lane.b32.xlu0 %v2029, 120
      %v2256 = vpop.permute.xlu0 %2255
      %2257 = vrot.lane.b32.xlu0 %v2030, 120
      %v2258 = vpop.permute.xlu0 %2257
      %2259 = vrot.lane.b32.xlu0 %v2031, 120
      %v2260 = vpop.permute.xlu0 %2259
      %2261 = vrot.lane.b32.xlu0 %v2032, 120
      %v2262 = vpop.permute.xlu0 %2261
      %2263 = vrot.lane.b32.xlu0 %v2033, 120
      %v2264 = vpop.permute.xlu0 %2263
      %2265 = vrot.lane.b32.xlu0 %v2034, 120
      %v2266 = vpop.permute.xlu0 %2265
      %2267 = vrot.lane.b32.xlu0 %v2035, 120
      %v2268 = vpop.permute.xlu0 %2267
      %2269 = vrot.lane.b32.xlu0 %v2036, 120
      %v2270 = vpop.permute.xlu0 %2269
      %2271 = vrot.lane.b32.xlu0 %v2037, 120
      %v2272 = vpop.permute.xlu0 %2271
      %2273 = vrot.lane.b32.xlu0 %v2038, 120
      %v2274 = vpop.permute.xlu0 %2273
      %2275 = vrot.lane.b32.xlu0 %v2039, 120
      %v2276 = vpop.permute.xlu0 %2275
      %2277 = vrot.lane.b32.xlu0 %v2040, 120
      %v2278 = vpop.permute.xlu0 %2277
      %2279 = vrot.lane.b32.xlu0 %v2041, 120
      %v2280 = vpop.permute.xlu0 %2279
      %2281 = vrot.lane.b32.xlu0 %v2042, 120
      %v2282 = vpop.permute.xlu0 %2281
      %2283 = vrot.lane.b32.xlu0 %v2043, 120
      %v2284 = vpop.permute.xlu0 %2283
      %2285 = vrot.lane.b32.xlu0 %v2044, 120
      %v2286 = vpop.permute.xlu0 %2285
      %2287 = vrot.lane.b32.xlu0 %v2045, 120
      %v2288 = vpop.permute.xlu0 %2287
      %2289 = vrot.lane.b32.xlu0 %v2046, 120
      %v2290 = vpop.permute.xlu0 %2289
      %2291 = vrot.lane.b32.xlu0 %v2047, 120
      %v2292 = vpop.permute.xlu0 %2291
      %2293 = vrot.lane.b32.xlu0 %v2048, 120
      %v2294 = vpop.permute.xlu0 %2293
      %2295 = vrot.lane.b32.xlu0 %v2049, 120
      %v2296 = vpop.permute.xlu0 %2295
      %2297 = vrot.lane.b32.xlu0 %v2050, 120
      %v2298 = vpop.permute.xlu0 %2297
      %2299 = vrot.lane.b32.xlu0 %v2051, 120
      %v2300 = vpop.permute.xlu0 %2299
      %2301 = vrot.lane.b32.xlu0 %v2052, 120
      %v2302 = vpop.permute.xlu0 %2301
      %2303 = vrot.lane.b32.xlu0 %v2053, 120
      %v2304 = vpop.permute.xlu0 %2303
      %2305 = vrot.lane.b32.xlu0 %v2054, 120
      %v2306 = vpop.permute.xlu0 %2305
      %2307 = vrot.lane.b32.xlu0 %v2055, 120
      %v2308 = vpop.permute.xlu0 %2307
      %2309 = vrot.lane.b32.xlu0 %v2056, 120
      %v2310 = vpop.permute.xlu0 %2309
      %2311 = vrot.lane.b32.xlu0 %v2057, 120
      %v2312 = vpop.permute.xlu0 %2311
      %2313 = vrot.lane.b32.xlu0 %v2058, 120
      %v2314 = vpop.permute.xlu0 %2313
      %2315 = vrot.lane.b32.xlu0 %v2059, 120
      %v2316 = vpop.permute.xlu0 %2315
      %2317 = vrot.lane.b32.xlu0 %v2060, 120
      %v2318 = vpop.permute.xlu0 %2317
      %2319 = vrot.lane.b32.xlu0 %v2061, 120
      %v2320 = vpop.permute.xlu0 %2319
      %2321 = vrot.lane.b32.xlu0 %v2062, 120
      %v2322 = vpop.permute.xlu0 %2321
      %2323 = vrot.lane.b32.xlu0 %v2063, 120
      %v2324 = vpop.permute.xlu0 %2323
      %2325 = vrot.lane.b32.xlu0 %v2064, 120
      %v2326 = vpop.permute.xlu0 %2325
      %2327 = vrot.lane.b32.xlu0 %v2065, 120
      %v2328 = vpop.permute.xlu0 %2327
      %2329 = vrot.lane.b32.xlu0 %v2066, 120
      %v2330 = vpop.permute.xlu0 %2329
      %2331 = vrot.lane.b32.xlu0 %v2067, 120
      %v2332 = vpop.permute.xlu0 %2331
      %2333 = vrot.lane.b32.xlu0 %v2068, 120
      %v2334 = vpop.permute.xlu0 %2333
      %2335 = vrot.lane.b32.xlu0 %v2069, 120
      %v2336 = vpop.permute.xlu0 %2335
      %2337 = vrot.lane.b32.xlu0 %v2070, 120
      %v2338 = vpop.permute.xlu0 %2337
      %2339 = vrot.lane.b32.xlu0 %v2071, 120
      %v2340 = vpop.permute.xlu0 %2339
      %2341 = vrot.lane.b32.xlu0 %v2072, 120
      %v2342 = vpop.permute.xlu0 %2341
      %2343 = vrot.lane.b32.xlu0 %v2073, 120
      %v2344 = vpop.permute.xlu0 %2343
      %2345 = vrot.lane.b32.xlu0 %v2074, 120
      %v2346 = vpop.permute.xlu0 %2345
      %2347 = vrot.lane.b32.xlu0 %v2075, 120
      %v2348 = vpop.permute.xlu0 %2347
      %2349 = vrot.lane.b32.xlu0 %v2076, 120
      %v2350 = vpop.permute.xlu0 %2349
      %2351 = vrot.lane.b32.xlu0 %v2077, 120
      %v2352 = vpop.permute.xlu0 %2351
      %2353 = vrot.lane.b32.xlu0 %v2078, 120
      %v2354 = vpop.permute.xlu0 %2353
      %2355 = vrot.lane.b32.xlu0 %v2079, 120
      %v2356 = vpop.permute.xlu0 %2355
      %2357 = vrot.lane.b32.xlu0 %v2080, 120
      %v2358 = vpop.permute.xlu0 %2357
      %2359 = vrot.lane.b32.xlu0 %v2081, 120
      %v2360 = vpop.permute.xlu0 %2359
      %2361 = vrot.lane.b32.xlu0 %v2082, 120
      %v2362 = vpop.permute.xlu0 %2361
      %2363 = vrot.lane.b32.xlu0 %v2083, 120
      %v2364 = vpop.permute.xlu0 %2363
      %2365 = vrot.lane.b32.xlu0 %v2084, 120
      %v2366 = vpop.permute.xlu0 %2365
      %2367 = vrot.lane.b32.xlu0 %v2085, 120
      %v2368 = vpop.permute.xlu0 %2367
      %2369 = vrot.lane.b32.xlu0 %v2086, 120
      %v2370 = vpop.permute.xlu0 %2369
      %2371 = vrot.lane.b32.xlu0 %v2087, 120
      %v2372 = vpop.permute.xlu0 %2371
      %2373 = vrot.lane.b32.xlu0 %v2088, 120
      %v2374 = vpop.permute.xlu0 %2373
      %2375 = vrot.lane.b32.xlu0 %v2089, 120
      %v2376 = vpop.permute.xlu0 %2375
      %2377 = vrot.lane.b32.xlu0 %v2090, 120
      %v2378 = vpop.permute.xlu0 %2377
      %2411 = vrot.lane.b32.xlu0 %v1995, 112
      %v2412 = vpop.permute.xlu0 %2411
      %2413 = vrot.lane.b32.xlu0 %v1996, 112
      %v2414 = vpop.permute.xlu0 %2413
      %2415 = vrot.lane.b32.xlu0 %v1997, 112
      %v2416 = vpop.permute.xlu0 %2415
      %2417 = vrot.lane.b32.xlu0 %v1998, 112
      %v2418 = vpop.permute.xlu0 %2417
      %2419 = vrot.lane.b32.xlu0 %v2188, 112
      %v2420 = vpop.permute.xlu0 %2419
      %2421 = vrot.lane.b32.xlu0 %v2190, 112
      %v2422 = vpop.permute.xlu0 %2421
      %2423 = vrot.lane.b32.xlu0 %v2192, 112
      %v2424 = vpop.permute.xlu0 %2423
      %2425 = vrot.lane.b32.xlu0 %v2194, 112
      %v2426 = vpop.permute.xlu0 %2425
      %2427 = vrot.lane.b32.xlu0 %v1999, 112
      %v2428 = vpop.permute.xlu0 %2427
      %2429 = vrot.lane.b32.xlu0 %v2000, 112
      %v2430 = vpop.permute.xlu0 %2429
      %2431 = vrot.lane.b32.xlu0 %v2001, 112
      %v2432 = vpop.permute.xlu0 %2431
      %2433 = vrot.lane.b32.xlu0 %v2002, 112
      %v2434 = vpop.permute.xlu0 %2433
      %2435 = vrot.lane.b32.xlu0 %v2196, 112
      %v2436 = vpop.permute.xlu0 %2435
      %2437 = vrot.lane.b32.xlu0 %v2198, 112
      %v2438 = vpop.permute.xlu0 %2437
      %2439 = vrot.lane.b32.xlu0 %v2200, 112
      %v2440 = vpop.permute.xlu0 %2439
      %2441 = vrot.lane.b32.xlu0 %v2202, 112
      %v2442 = vpop.permute.xlu0 %2441
      %2443 = vrot.lane.b32.xlu0 %v2003, 112
      %v2444 = vpop.permute.xlu0 %2443
      %2445 = vrot.lane.b32.xlu0 %v2004, 112
      %v2446 = vpop.permute.xlu0 %2445
      %2447 = vrot.lane.b32.xlu0 %v2005, 112
      %v2448 = vpop.permute.xlu0 %2447
      %2449 = vrot.lane.b32.xlu0 %v2006, 112
      %v2450 = vpop.permute.xlu0 %2449
      %2451 = vrot.lane.b32.xlu0 %v2204, 112
      %v2452 = vpop.permute.xlu0 %2451
      %2453 = vrot.lane.b32.xlu0 %v2206, 112
      %v2454 = vpop.permute.xlu0 %2453
      %2455 = vrot.lane.b32.xlu0 %v2208, 112
      %v2456 = vpop.permute.xlu0 %2455
      %2457 = vrot.lane.b32.xlu0 %v2210, 112
      %v2458 = vpop.permute.xlu0 %2457
      %2459 = vrot.lane.b32.xlu0 %v2007, 112
      %v2460 = vpop.permute.xlu0 %2459
      %2461 = vrot.lane.b32.xlu0 %v2008, 112
      %v2462 = vpop.permute.xlu0 %2461
      %2463 = vrot.lane.b32.xlu0 %v2009, 112
      %v2464 = vpop.permute.xlu0 %2463
      %2465 = vrot.lane.b32.xlu0 %v2010, 112
      %v2466 = vpop.permute.xlu0 %2465
      %2467 = vrot.lane.b32.xlu0 %v2212, 112
      %v2468 = vpop.permute.xlu0 %2467
      %2469 = vrot.lane.b32.xlu0 %v2214, 112
      %v2470 = vpop.permute.xlu0 %2469
      %2471 = vrot.lane.b32.xlu0 %v2216, 112
      %v2472 = vpop.permute.xlu0 %2471
      %2473 = vrot.lane.b32.xlu0 %v2218, 112
      %v2474 = vpop.permute.xlu0 %2473
      %2475 = vrot.lane.b32.xlu0 %v2011, 112
      %v2476 = vpop.permute.xlu0 %2475
      %2477 = vrot.lane.b32.xlu0 %v2012, 112
      %v2478 = vpop.permute.xlu0 %2477
      %2479 = vrot.lane.b32.xlu0 %v2013, 112
      %v2480 = vpop.permute.xlu0 %2479
      %2481 = vrot.lane.b32.xlu0 %v2014, 112
      %v2482 = vpop.permute.xlu0 %2481
      %2483 = vrot.lane.b32.xlu0 %v2220, 112
      %v2484 = vpop.permute.xlu0 %2483
      %2485 = vrot.lane.b32.xlu0 %v2222, 112
      %v2486 = vpop.permute.xlu0 %2485
      %2487 = vrot.lane.b32.xlu0 %v2224, 112
      %v2488 = vpop.permute.xlu0 %2487
      %2489 = vrot.lane.b32.xlu0 %v2226, 112
      %v2490 = vpop.permute.xlu0 %2489
      %2491 = vrot.lane.b32.xlu0 %v2015, 112
      %v2492 = vpop.permute.xlu0 %2491
      %2493 = vrot.lane.b32.xlu0 %v2016, 112
      %v2494 = vpop.permute.xlu0 %2493
      %2495 = vrot.lane.b32.xlu0 %v2017, 112
      %v2496 = vpop.permute.xlu0 %2495
      %2497 = vrot.lane.b32.xlu0 %v2018, 112
      %v2498 = vpop.permute.xlu0 %2497
      %2499 = vrot.lane.b32.xlu0 %v2228, 112
      %v2500 = vpop.permute.xlu0 %2499
      %2501 = vrot.lane.b32.xlu0 %v2230, 112
      %v2502 = vpop.permute.xlu0 %2501
      %2503 = vrot.lane.b32.xlu0 %v2232, 112
      %v2504 = vpop.permute.xlu0 %2503
      %2505 = vrot.lane.b32.xlu0 %v2234, 112
      %v2506 = vpop.permute.xlu0 %2505
      %2507 = vrot.lane.b32.xlu0 %v2019, 112
      %v2508 = vpop.permute.xlu0 %2507
      %2509 = vrot.lane.b32.xlu0 %v2020, 112
      %v2510 = vpop.permute.xlu0 %2509
      %2511 = vrot.lane.b32.xlu0 %v2021, 112
      %v2512 = vpop.permute.xlu0 %2511
      %2513 = vrot.lane.b32.xlu0 %v2022, 112
      %v2514 = vpop.permute.xlu0 %2513
      %2515 = vrot.lane.b32.xlu0 %v2236, 112
      %v2516 = vpop.permute.xlu0 %2515
      %2517 = vrot.lane.b32.xlu0 %v2238, 112
      %v2518 = vpop.permute.xlu0 %2517
      %2519 = vrot.lane.b32.xlu0 %v2240, 112
      %v2520 = vpop.permute.xlu0 %2519
      %2521 = vrot.lane.b32.xlu0 %v2242, 112
      %v2522 = vpop.permute.xlu0 %2521
      %2523 = vrot.lane.b32.xlu0 %v2023, 112
      %v2524 = vpop.permute.xlu0 %2523
      %2525 = vrot.lane.b32.xlu0 %v2024, 112
      %v2526 = vpop.permute.xlu0 %2525
      %2527 = vrot.lane.b32.xlu0 %v2025, 112
      %v2528 = vpop.permute.xlu0 %2527
      %2529 = vrot.lane.b32.xlu0 %v2026, 112
      %v2530 = vpop.permute.xlu0 %2529
      %2531 = vrot.lane.b32.xlu0 %v2244, 112
      %v2532 = vpop.permute.xlu0 %2531
      %2533 = vrot.lane.b32.xlu0 %v2246, 112
      %v2534 = vpop.permute.xlu0 %2533
      %2535 = vrot.lane.b32.xlu0 %v2248, 112
      %v2536 = vpop.permute.xlu0 %2535
      %2537 = vrot.lane.b32.xlu0 %v2250, 112
      %v2538 = vpop.permute.xlu0 %2537
      %2539 = vrot.lane.b32.xlu0 %v2027, 112
      %v2540 = vpop.permute.xlu0 %2539
      %2541 = vrot.lane.b32.xlu0 %v2028, 112
      %v2542 = vpop.permute.xlu0 %2541
      %2543 = vrot.lane.b32.xlu0 %v2029, 112
      %v2544 = vpop.permute.xlu0 %2543
      %2545 = vrot.lane.b32.xlu0 %v2030, 112
      %v2546 = vpop.permute.xlu0 %2545
      %2547 = vrot.lane.b32.xlu0 %v2252, 112
      %v2548 = vpop.permute.xlu0 %2547
      %2549 = vrot.lane.b32.xlu0 %v2254, 112
      %v2550 = vpop.permute.xlu0 %2549
      %2551 = vrot.lane.b32.xlu0 %v2256, 112
      %v2552 = vpop.permute.xlu0 %2551
      %2553 = vrot.lane.b32.xlu0 %v2258, 112
      %v2554 = vpop.permute.xlu0 %2553
      %2555 = vrot.lane.b32.xlu0 %v2031, 112
      %v2556 = vpop.permute.xlu0 %2555
      %2557 = vrot.lane.b32.xlu0 %v2032, 112
      %v2558 = vpop.permute.xlu0 %2557
      %2559 = vrot.lane.b32.xlu0 %v2033, 112
      %v2560 = vpop.permute.xlu0 %2559
      %2561 = vrot.lane.b32.xlu0 %v2034, 112
      %v2562 = vpop.permute.xlu0 %2561
      %2563 = vrot.lane.b32.xlu0 %v2260, 112
      %v2564 = vpop.permute.xlu0 %2563
      %2565 = vrot.lane.b32.xlu0 %v2262, 112
      %v2566 = vpop.permute.xlu0 %2565
      %2567 = vrot.lane.b32.xlu0 %v2264, 112
      %v2568 = vpop.permute.xlu0 %2567
      %2569 = vrot.lane.b32.xlu0 %v2266, 112
      %v2570 = vpop.permute.xlu0 %2569
      %2571 = vrot.lane.b32.xlu0 %v2035, 112
      %v2572 = vpop.permute.xlu0 %2571
      %2573 = vrot.lane.b32.xlu0 %v2036, 112
      %v2574 = vpop.permute.xlu0 %2573
      %2575 = vrot.lane.b32.xlu0 %v2037, 112
      %v2576 = vpop.permute.xlu0 %2575
      %2577 = vrot.lane.b32.xlu0 %v2038, 112
      %v2578 = vpop.permute.xlu0 %2577
      %2579 = vrot.lane.b32.xlu0 %v2268, 112
      %v2580 = vpop.permute.xlu0 %2579
      %2581 = vrot.lane.b32.xlu0 %v2270, 112
      %v2582 = vpop.permute.xlu0 %2581
      %2583 = vrot.lane.b32.xlu0 %v2272, 112
      %v2584 = vpop.permute.xlu0 %2583
      %2585 = vrot.lane.b32.xlu0 %v2274, 112
      %v2586 = vpop.permute.xlu0 %2585
      %2587 = vrot.lane.b32.xlu0 %v2039, 112
      %v2588 = vpop.permute.xlu0 %2587
      %2589 = vrot.lane.b32.xlu0 %v2040, 112
      %v2590 = vpop.permute.xlu0 %2589
      %2591 = vrot.lane.b32.xlu0 %v2041, 112
      %v2592 = vpop.permute.xlu0 %2591
      %2593 = vrot.lane.b32.xlu0 %v2042, 112
      %v2594 = vpop.permute.xlu0 %2593
      %2595 = vrot.lane.b32.xlu0 %v2276, 112
      %v2596 = vpop.permute.xlu0 %2595
      %2597 = vrot.lane.b32.xlu0 %v2278, 112
      %v2598 = vpop.permute.xlu0 %2597
      %2599 = vrot.lane.b32.xlu0 %v2280, 112
      %v2600 = vpop.permute.xlu0 %2599
      %2601 = vrot.lane.b32.xlu0 %v2282, 112
      %v2602 = vpop.permute.xlu0 %2601
      %2603 = vrot.lane.b32.xlu0 %v2043, 112
      %v2604 = vpop.permute.xlu0 %2603
      %2605 = vrot.lane.b32.xlu0 %v2044, 112
      %v2606 = vpop.permute.xlu0 %2605
      %2607 = vrot.lane.b32.xlu0 %v2045, 112
      %v2608 = vpop.permute.xlu0 %2607
      %2609 = vrot.lane.b32.xlu0 %v2046, 112
      %v2610 = vpop.permute.xlu0 %2609
      %2611 = vrot.lane.b32.xlu0 %v2284, 112
      %v2612 = vpop.permute.xlu0 %2611
      %2613 = vrot.lane.b32.xlu0 %v2286, 112
      %v2614 = vpop.permute.xlu0 %2613
      %2615 = vrot.lane.b32.xlu0 %v2288, 112
      %v2616 = vpop.permute.xlu0 %2615
      %2617 = vrot.lane.b32.xlu0 %v2290, 112
      %v2618 = vpop.permute.xlu0 %2617
      %2619 = vrot.lane.b32.xlu0 %v2047, 112
      %v2620 = vpop.permute.xlu0 %2619
      %2621 = vrot.lane.b32.xlu0 %v2048, 112
      %v2622 = vpop.permute.xlu0 %2621
      %2623 = vrot.lane.b32.xlu0 %v2049, 112
      %v2624 = vpop.permute.xlu0 %2623
      %2625 = vrot.lane.b32.xlu0 %v2050, 112
      %v2626 = vpop.permute.xlu0 %2625
      %2627 = vrot.lane.b32.xlu0 %v2292, 112
      %v2628 = vpop.permute.xlu0 %2627
      %2629 = vrot.lane.b32.xlu0 %v2294, 112
      %v2630 = vpop.permute.xlu0 %2629
      %2631 = vrot.lane.b32.xlu0 %v2296, 112
      %v2632 = vpop.permute.xlu0 %2631
      %2633 = vrot.lane.b32.xlu0 %v2298, 112
      %v2634 = vpop.permute.xlu0 %2633
      %2635 = vrot.lane.b32.xlu0 %v2051, 112
      %v2636 = vpop.permute.xlu0 %2635
      %2637 = vrot.lane.b32.xlu0 %v2052, 112
      %v2638 = vpop.permute.xlu0 %2637
      %2639 = vrot.lane.b32.xlu0 %v2053, 112
      %v2640 = vpop.permute.xlu0 %2639
      %2641 = vrot.lane.b32.xlu0 %v2054, 112
      %v2642 = vpop.permute.xlu0 %2641
      %2643 = vrot.lane.b32.xlu0 %v2300, 112
      %v2644 = vpop.permute.xlu0 %2643
      %2645 = vrot.lane.b32.xlu0 %v2302, 112
      %v2646 = vpop.permute.xlu0 %2645
      %2647 = vrot.lane.b32.xlu0 %v2304, 112
      %v2648 = vpop.permute.xlu0 %2647
      %2649 = vrot.lane.b32.xlu0 %v2306, 112
      %v2650 = vpop.permute.xlu0 %2649
      %2651 = vrot.lane.b32.xlu0 %v2055, 112
      %v2652 = vpop.permute.xlu0 %2651
      %2653 = vrot.lane.b32.xlu0 %v2056, 112
      %v2654 = vpop.permute.xlu0 %2653
      %2655 = vrot.lane.b32.xlu0 %v2057, 112
      %v2656 = vpop.permute.xlu0 %2655
      %2657 = vrot.lane.b32.xlu0 %v2058, 112
      %v2658 = vpop.permute.xlu0 %2657
      %2659 = vrot.lane.b32.xlu0 %v2308, 112
      %v2660 = vpop.permute.xlu0 %2659
      %2661 = vrot.lane.b32.xlu0 %v2310, 112
      %v2662 = vpop.permute.xlu0 %2661
      %2663 = vrot.lane.b32.xlu0 %v2312, 112
      %v2664 = vpop.permute.xlu0 %2663
      %2665 = vrot.lane.b32.xlu0 %v2314, 112
      %v2666 = vpop.permute.xlu0 %2665
      %2667 = vrot.lane.b32.xlu0 %v2059, 112
      %v2668 = vpop.permute.xlu0 %2667
      %2669 = vrot.lane.b32.xlu0 %v2060, 112
      %v2670 = vpop.permute.xlu0 %2669
      %2671 = vrot.lane.b32.xlu0 %v2061, 112
      %v2672 = vpop.permute.xlu0 %2671
      %2673 = vrot.lane.b32.xlu0 %v2062, 112
      %v2674 = vpop.permute.xlu0 %2673
      %2675 = vrot.lane.b32.xlu0 %v2316, 112
      %v2676 = vpop.permute.xlu0 %2675
      %2677 = vrot.lane.b32.xlu0 %v2318, 112
      %v2678 = vpop.permute.xlu0 %2677
      %2679 = vrot.lane.b32.xlu0 %v2320, 112
      %v2680 = vpop.permute.xlu0 %2679
      %2681 = vrot.lane.b32.xlu0 %v2322, 112
      %v2682 = vpop.permute.xlu0 %2681
      %2683 = vrot.lane.b32.xlu0 %v2063, 112
      %v2684 = vpop.permute.xlu0 %2683
      %2685 = vrot.lane.b32.xlu0 %v2064, 112
      %v2686 = vpop.permute.xlu0 %2685
      %2687 = vrot.lane.b32.xlu0 %v2065, 112
      %v2688 = vpop.permute.xlu0 %2687
      %2689 = vrot.lane.b32.xlu0 %v2066, 112
      %v2690 = vpop.permute.xlu0 %2689
      %2691 = vrot.lane.b32.xlu0 %v2324, 112
      %v2692 = vpop.permute.xlu0 %2691
      %2693 = vrot.lane.b32.xlu0 %v2326, 112
      %v2694 = vpop.permute.xlu0 %2693
      %2695 = vrot.lane.b32.xlu0 %v2328, 112
      %v2696 = vpop.permute.xlu0 %2695
      %2697 = vrot.lane.b32.xlu0 %v2330, 112
      %v2698 = vpop.permute.xlu0 %2697
      %2699 = vrot.lane.b32.xlu0 %v2067, 112
      %v2700 = vpop.permute.xlu0 %2699
      %2701 = vrot.lane.b32.xlu0 %v2068, 112
      %v2702 = vpop.permute.xlu0 %2701
      %2703 = vrot.lane.b32.xlu0 %v2069, 112
      %v2704 = vpop.permute.xlu0 %2703
      %2705 = vrot.lane.b32.xlu0 %v2070, 112
      %v2706 = vpop.permute.xlu0 %2705
      %2707 = vrot.lane.b32.xlu0 %v2332, 112
      %v2708 = vpop.permute.xlu0 %2707
      %2709 = vrot.lane.b32.xlu0 %v2334, 112
      %v2710 = vpop.permute.xlu0 %2709
      %2711 = vrot.lane.b32.xlu0 %v2336, 112
      %v2712 = vpop.permute.xlu0 %2711
      %2713 = vrot.lane.b32.xlu0 %v2338, 112
      %v2714 = vpop.permute.xlu0 %2713
      %2715 = vrot.lane.b32.xlu0 %v2071, 112
      %v2716 = vpop.permute.xlu0 %2715
      %2717 = vrot.lane.b32.xlu0 %v2072, 112
      %v2718 = vpop.permute.xlu0 %2717
      %2719 = vrot.lane.b32.xlu0 %v2073, 112
      %v2720 = vpop.permute.xlu0 %2719
      %2721 = vrot.lane.b32.xlu0 %v2074, 112
      %v2722 = vpop.permute.xlu0 %2721
      %2723 = vrot.lane.b32.xlu0 %v2340, 112
      %v2724 = vpop.permute.xlu0 %2723
      %2725 = vrot.lane.b32.xlu0 %v2342, 112
      %v2726 = vpop.permute.xlu0 %2725
      %2727 = vrot.lane.b32.xlu0 %v2344, 112
      %v2728 = vpop.permute.xlu0 %2727
      %2729 = vrot.lane.b32.xlu0 %v2346, 112
      %v2730 = vpop.permute.xlu0 %2729
      %2731 = vrot.lane.b32.xlu0 %v2075, 112
      %v2732 = vpop.permute.xlu0 %2731
      %2733 = vrot.lane.b32.xlu0 %v2076, 112
      %v2734 = vpop.permute.xlu0 %2733
      %2735 = vrot.lane.b32.xlu0 %v2077, 112
      %v2736 = vpop.permute.xlu0 %2735
      %2737 = vrot.lane.b32.xlu0 %v2078, 112
      %v2738 = vpop.permute.xlu0 %2737
      %2739 = vrot.lane.b32.xlu0 %v2348, 112
      %v2740 = vpop.permute.xlu0 %2739
      %2741 = vrot.lane.b32.xlu0 %v2350, 112
      %v2742 = vpop.permute.xlu0 %2741
      %2743 = vrot.lane.b32.xlu0 %v2352, 112
      %v2744 = vpop.permute.xlu0 %2743
      %2745 = vrot.lane.b32.xlu0 %v2354, 112
      %v2746 = vpop.permute.xlu0 %2745
      %2747 = vrot.lane.b32.xlu0 %v2079, 112
      %v2748 = vpop.permute.xlu0 %2747
      %2749 = vrot.lane.b32.xlu0 %v2080, 112
      %v2750 = vpop.permute.xlu0 %2749
      %2751 = vrot.lane.b32.xlu0 %v2081, 112
      %v2752 = vpop.permute.xlu0 %2751
      %2753 = vrot.lane.b32.xlu0 %v2082, 112
      %v2754 = vpop.permute.xlu0 %2753
      %2755 = vrot.lane.b32.xlu0 %v2356, 112
      %v2756 = vpop.permute.xlu0 %2755
      %2757 = vrot.lane.b32.xlu0 %v2358, 112
      %v2758 = vpop.permute.xlu0 %2757
      %2759 = vrot.lane.b32.xlu0 %v2360, 112
      %v2760 = vpop.permute.xlu0 %2759
      %2761 = vrot.lane.b32.xlu0 %v2362, 112
      %v2762 = vpop.permute.xlu0 %2761
      %2763 = vrot.lane.b32.xlu0 %v2083, 112
      %v2764 = vpop.permute.xlu0 %2763
      %2765 = vrot.lane.b32.xlu0 %v2084, 112
      %v2766 = vpop.permute.xlu0 %2765
      %2767 = vrot.lane.b32.xlu0 %v2085, 112
      %v2768 = vpop.permute.xlu0 %2767
      %2769 = vrot.lane.b32.xlu0 %v2086, 112
      %v2770 = vpop.permute.xlu0 %2769
      %2771 = vrot.lane.b32.xlu0 %v2364, 112
      %v2772 = vpop.permute.xlu0 %2771
      %2773 = vrot.lane.b32.xlu0 %v2366, 112
      %v2774 = vpop.permute.xlu0 %2773
      %2775 = vrot.lane.b32.xlu0 %v2368, 112
      %v2776 = vpop.permute.xlu0 %2775
      %2777 = vrot.lane.b32.xlu0 %v2370, 112
      %v2778 = vpop.permute.xlu0 %2777
      %2779 = vrot.lane.b32.xlu0 %v2087, 112
      %v2780 = vpop.permute.xlu0 %2779
      %2781 = vrot.lane.b32.xlu0 %v2088, 112
      %v2782 = vpop.permute.xlu0 %2781
      %2783 = vrot.lane.b32.xlu0 %v2089, 112
      %v2784 = vpop.permute.xlu0 %2783
      %2785 = vrot.lane.b32.xlu0 %v2090, 112
      %v2786 = vpop.permute.xlu0 %2785
      %2787 = vrot.lane.b32.xlu0 %v2372, 112
      %v2788 = vpop.permute.xlu0 %2787
      %2789 = vrot.lane.b32.xlu0 %v2374, 112
      %v2790 = vpop.permute.xlu0 %2789
      %2791 = vrot.lane.b32.xlu0 %v2376, 112
      %v2792 = vpop.permute.xlu0 %2791
      %2793 = vrot.lane.b32.xlu0 %v2378, 112
      %v2794 = vpop.permute.xlu0 %2793
      %s2859 = ssub.s32 %s359, 2
      %v2860 = vstv %s2859
      %v2861 = vadd.s32 %v2860, 1
      %vm2862 = vcmp.ge.s32.totalorder %v2860, 0
      %vm2863 = vcmp.ge.s32.totalorder %v2861, 0
      %v2864 = vsel %vm2862, 1, 0
      %v2865 = vsel %vm2863, 1, 0
      %vm2866 = vcmp.eq.s32.totalorder %v2864, 1
      %vm2867 = vcmp.eq.s32.totalorder %v2865, 1
      %v2868 = vsel %vm2866, %v1995, 0.0
      %v2869 = vsel %vm2866, %v1996, 0.0
      %v2870 = vsel %vm2866, %v1997, 0.0
      %v2871 = vsel %vm2866, %v1998, 0.0
      %v2872 = vsel %vm2866, %v2188, 0.0
      %v2873 = vsel %vm2866, %v2190, 0.0
      %v2874 = vsel %vm2866, %v2192, 0.0
      %v2875 = vsel %vm2866, %v2194, 0.0
      %v2876 = vsel %vm2866, %v1999, 0.0
      %v2877 = vsel %vm2866, %v2000, 0.0
      %v2878 = vsel %vm2866, %v2001, 0.0
      %v2879 = vsel %vm2866, %v2002, 0.0
      %v2880 = vsel %vm2866, %v2196, 0.0
      %v2881 = vsel %vm2866, %v2198, 0.0
      %v2882 = vsel %vm2866, %v2200, 0.0
      %v2883 = vsel %vm2866, %v2202, 0.0
      %v2884 = vsel %vm2866, %v2003, 0.0
      %v2885 = vsel %vm2866, %v2004, 0.0
      %v2886 = vsel %vm2866, %v2005, 0.0
      %v2887 = vsel %vm2866, %v2006, 0.0
      %v2888 = vsel %vm2866, %v2204, 0.0
      %v2889 = vsel %vm2866, %v2206, 0.0
      %v2890 = vsel %vm2866, %v2208, 0.0
      %v2891 = vsel %vm2866, %v2210, 0.0
      %v2892 = vsel %vm2866, %v2007, 0.0
      %v2893 = vsel %vm2866, %v2008, 0.0
      %v2894 = vsel %vm2866, %v2009, 0.0
      %v2895 = vsel %vm2866, %v2010, 0.0
      %v2896 = vsel %vm2866, %v2212, 0.0
      %v2897 = vsel %vm2866, %v2214, 0.0
      %v2898 = vsel %vm2866, %v2216, 0.0
      %v2899 = vsel %vm2866, %v2218, 0.0
      %v2900 = vsel %vm2867, %v2412, 0.0
      %v2901 = vsel %vm2867, %v2414, 0.0
      %v2902 = vsel %vm2867, %v2416, 0.0
      %v2903 = vsel %vm2867, %v2418, 0.0
      %v2904 = vsel %vm2867, %v2420, 0.0
      %v2905 = vsel %vm2867, %v2422, 0.0
      %v2906 = vsel %vm2867, %v2424, 0.0
      %v2907 = vsel %vm2867, %v2426, 0.0
      %v2908 = vsel %vm2867, %v2428, 0.0
      %v2909 = vsel %vm2867, %v2430, 0.0
      %v2910 = vsel %vm2867, %v2432, 0.0
      %v2911 = vsel %vm2867, %v2434, 0.0
      %v2912 = vsel %vm2867, %v2436, 0.0
      %v2913 = vsel %vm2867, %v2438, 0.0
      %v2914 = vsel %vm2867, %v2440, 0.0
      %v2915 = vsel %vm2867, %v2442, 0.0
      %v2916 = vsel %vm2867, %v2444, 0.0
      %v2917 = vsel %vm2867, %v2446, 0.0
      %v2918 = vsel %vm2867, %v2448, 0.0
      %v2919 = vsel %vm2867, %v2450, 0.0
      %v2920 = vsel %vm2867, %v2452, 0.0
      %v2921 = vsel %vm2867, %v2454, 0.0
      %v2922 = vsel %vm2867, %v2456, 0.0
      %v2923 = vsel %vm2867, %v2458, 0.0
      %v2924 = vsel %vm2867, %v2460, 0.0
      %v2925 = vsel %vm2867, %v2462, 0.0
      %v2926 = vsel %vm2867, %v2464, 0.0
      %v2927 = vsel %vm2867, %v2466, 0.0
      %v2928 = vsel %vm2867, %v2468, 0.0
      %v2929 = vsel %vm2867, %v2470, 0.0
      %v2930 = vsel %vm2867, %v2472, 0.0
      %v2931 = vsel %vm2867, %v2474, 0.0
      %s2932 = sadd.s32 %s359, 8
      %v2933 = vstv %s2932
      %v2934 = vadd.s32 %v2933, 1
      %vm2935 = vcmp.lt.s32.totalorder %v2933, 16
      %vm2936 = vcmp.lt.s32.totalorder %v2934, 16
      %v2937 = vsel %vm2935, 1, 0
      %v2938 = vsel %vm2936, 1, 0
      %vm2939 = vcmp.eq.s32.totalorder %v2937, 1
      %vm2940 = vcmp.eq.s32.totalorder %v2938, 1
      %v2941 = vsel %vm2939, %v2075, 0.0
      %v2942 = vsel %vm2939, %v2076, 0.0
      %v2943 = vsel %vm2939, %v2077, 0.0
      %v2944 = vsel %vm2939, %v2078, 0.0
      %v2945 = vsel %vm2939, %v2348, 0.0
      %v2946 = vsel %vm2939, %v2350, 0.0
      %v2947 = vsel %vm2939, %v2352, 0.0
      %v2948 = vsel %vm2939, %v2354, 0.0
      %v2949 = vsel %vm2939, %v2079, 0.0
      %v2950 = vsel %vm2939, %v2080, 0.0
      %v2951 = vsel %vm2939, %v2081, 0.0
      %v2952 = vsel %vm2939, %v2082, 0.0
      %v2953 = vsel %vm2939, %v2356, 0.0
      %v2954 = vsel %vm2939, %v2358, 0.0
      %v2955 = vsel %vm2939, %v2360, 0.0
      %v2956 = vsel %vm2939, %v2362, 0.0
      %v2957 = vsel %vm2939, %v2083, 0.0
      %v2958 = vsel %vm2939, %v2084, 0.0
      %v2959 = vsel %vm2939, %v2085, 0.0
      %v2960 = vsel %vm2939, %v2086, 0.0
      %v2961 = vsel %vm2939, %v2364, 0.0
      %v2962 = vsel %vm2939, %v2366, 0.0
      %v2963 = vsel %vm2939, %v2368, 0.0
      %v2964 = vsel %vm2939, %v2370, 0.0
      %v2965 = vsel %vm2939, %v2087, 0.0
      %v2966 = vsel %vm2939, %v2088, 0.0
      %v2967 = vsel %vm2939, %v2089, 0.0
      %v2968 = vsel %vm2939, %v2090, 0.0
      %v2969 = vsel %vm2939, %v2372, 0.0
      %v2970 = vsel %vm2939, %v2374, 0.0
      %v2971 = vsel %vm2939, %v2376, 0.0
      %v2972 = vsel %vm2939, %v2378, 0.0
      %v2973 = vsel %vm2940, %v2732, 0.0
      %v2974 = vsel %vm2940, %v2734, 0.0
      %v2975 = vsel %vm2940, %v2736, 0.0
      %v2976 = vsel %vm2940, %v2738, 0.0
      %v2977 = vsel %vm2940, %v2740, 0.0
      %v2978 = vsel %vm2940, %v2742, 0.0
      %v2979 = vsel %vm2940, %v2744, 0.0
      %v2980 = vsel %vm2940, %v2746, 0.0
      %v2981 = vsel %vm2940, %v2748, 0.0
      %v2982 = vsel %vm2940, %v2750, 0.0
      %v2983 = vsel %vm2940, %v2752, 0.0
      %v2984 = vsel %vm2940, %v2754, 0.0
      %v2985 = vsel %vm2940, %v2756, 0.0
      %v2986 = vsel %vm2940, %v2758, 0.0
      %v2987 = vsel %vm2940, %v2760, 0.0
      %v2988 = vsel %vm2940, %v2762, 0.0
      %v2989 = vsel %vm2940, %v2764, 0.0
      %v2990 = vsel %vm2940, %v2766, 0.0
      %v2991 = vsel %vm2940, %v2768, 0.0
      %v2992 = vsel %vm2940, %v2770, 0.0
      %v2993 = vsel %vm2940, %v2772, 0.0
      %v2994 = vsel %vm2940, %v2774, 0.0
      %v2995 = vsel %vm2940, %v2776, 0.0
      %v2996 = vsel %vm2940, %v2778, 0.0
      %v2997 = vsel %vm2940, %v2780, 0.0
      %v2998 = vsel %vm2940, %v2782, 0.0
      %v2999 = vsel %vm2940, %v2784, 0.0
      %v3000 = vsel %vm2940, %v2786, 0.0
      %v3001 = vsel %vm2940, %v2788, 0.0
      %v3002 = vsel %vm2940, %v2790, 0.0
      %v3003 = vsel %vm2940, %v2792, 0.0
      %v3004 = vsel %vm2940, %v2794, 0.0
      %v3133 = vcombine.low %v2868, %v2869
      %v3134 = vcombine.low %v2870, %v2871
      %v3136 = vunpack.c.l.s4 1983009808
      %v3137 = vunpack.c.0.s8 %v3136
      %v3138 = vlaneseq
      %v3139 = vshrl.u32 %v3138, 7
      %v3140 = vsub.s32 %v3137, %v3139
      %v3141 = vrot.slane %v3133, %v3140
      %v3143 = vunpack.c.l.s4 1983009808
      %v3144 = vunpack.c.0.s8 %v3143
      %v3145 = vlaneseq
      %v3146 = vshrl.u32 %v3145, 7
      %v3147 = vsub.s32 %v3144, %v3146
      %v3148 = vrot.slane %v3134, %v3147
      %v3149 = vcombine.low %v3141, %v3148
      %v3150 = vcombine.low %v2872, %v2873
      %v3151 = vcombine.low %v2874, %v2875
      %v3153 = vunpack.c.l.s4 1983009808
      %v3154 = vunpack.c.0.s8 %v3153
      %v3155 = vlaneseq
      %v3156 = vshrl.u32 %v3155, 7
      %v3157 = vsub.s32 %v3154, %v3156
      %v3158 = vrot.slane %v3150, %v3157
      %v3160 = vunpack.c.l.s4 1983009808
      %v3161 = vunpack.c.0.s8 %v3160
      %v3162 = vlaneseq
      %v3163 = vshrl.u32 %v3162, 7
      %v3164 = vsub.s32 %v3161, %v3163
      %v3165 = vrot.slane %v3151, %v3164
      %v3166 = vcombine.low %v3158, %v3165
      %v3167 = vcombine.low %v2876, %v2877
      %v3168 = vcombine.low %v2878, %v2879
      %v3170 = vunpack.c.l.s4 1983009808
      %v3171 = vunpack.c.0.s8 %v3170
      %v3172 = vlaneseq
      %v3173 = vshrl.u32 %v3172, 7
      %v3174 = vsub.s32 %v3171, %v3173
      %v3175 = vrot.slane %v3167, %v3174
      %v3177 = vunpack.c.l.s4 1983009808
      %v3178 = vunpack.c.0.s8 %v3177
      %v3179 = vlaneseq
      %v3180 = vshrl.u32 %v3179, 7
      %v3181 = vsub.s32 %v3178, %v3180
      %v3182 = vrot.slane %v3168, %v3181
      %v3183 = vcombine.low %v3175, %v3182
      %v3184 = vcombine.low %v2880, %v2881
      %v3185 = vcombine.low %v2882, %v2883
      %v3187 = vunpack.c.l.s4 1983009808
      %v3188 = vunpack.c.0.s8 %v3187
      %v3189 = vlaneseq
      %v3190 = vshrl.u32 %v3189, 7
      %v3191 = vsub.s32 %v3188, %v3190
      %v3192 = vrot.slane %v3184, %v3191
      %v3194 = vunpack.c.l.s4 1983009808
      %v3195 = vunpack.c.0.s8 %v3194
      %v3196 = vlaneseq
      %v3197 = vshrl.u32 %v3196, 7
      %v3198 = vsub.s32 %v3195, %v3197
      %v3199 = vrot.slane %v3185, %v3198
      %v3200 = vcombine.low %v3192, %v3199
      %v3201 = vcombine.low %v2884, %v2885
      %v3202 = vcombine.low %v2886, %v2887
      %v3204 = vunpack.c.l.s4 1983009808
      %v3205 = vunpack.c.0.s8 %v3204
      %v3206 = vlaneseq
      %v3207 = vshrl.u32 %v3206, 7
      %v3208 = vsub.s32 %v3205, %v3207
      %v3209 = vrot.slane %v3201, %v3208
      %v3211 = vunpack.c.l.s4 1983009808
      %v3212 = vunpack.c.0.s8 %v3211
      %v3213 = vlaneseq
      %v3214 = vshrl.u32 %v3213, 7
      %v3215 = vsub.s32 %v3212, %v3214
      %v3216 = vrot.slane %v3202, %v3215
      %v3217 = vcombine.low %v3209, %v3216
      %v3218 = vcombine.low %v2888, %v2889
      %v3219 = vcombine.low %v2890, %v2891
      %v3221 = vunpack.c.l.s4 1983009808
      %v3222 = vunpack.c.0.s8 %v3221
      %v3223 = vlaneseq
      %v3224 = vshrl.u32 %v3223, 7
      %v3225 = vsub.s32 %v3222, %v3224
      %v3226 = vrot.slane %v3218, %v3225
      %v3228 = vunpack.c.l.s4 1983009808
      %v3229 = vunpack.c.0.s8 %v3228
      %v3230 = vlaneseq
      %v3231 = vshrl.u32 %v3230, 7
      %v3232 = vsub.s32 %v3229, %v3231
      %v3233 = vrot.slane %v3219, %v3232
      %v3234 = vcombine.low %v3226, %v3233
      %v3235 = vcombine.low %v2892, %v2893
      %v3236 = vcombine.low %v2894, %v2895
      %v3238 = vunpack.c.l.s4 1983009808
      %v3239 = vunpack.c.0.s8 %v3238
      %v3240 = vlaneseq
      %v3241 = vshrl.u32 %v3240, 7
      %v3242 = vsub.s32 %v3239, %v3241
      %v3243 = vrot.slane %v3235, %v3242
      %v3245 = vunpack.c.l.s4 1983009808
      %v3246 = vunpack.c.0.s8 %v3245
      %v3247 = vlaneseq
      %v3248 = vshrl.u32 %v3247, 7
      %v3249 = vsub.s32 %v3246, %v3248
      %v3250 = vrot.slane %v3236, %v3249
      %v3251 = vcombine.low %v3243, %v3250
      %v3252 = vcombine.low %v2896, %v2897
      %v3253 = vcombine.low %v2898, %v2899
      %v3255 = vunpack.c.l.s4 1983009808
      %v3256 = vunpack.c.0.s8 %v3255
      %v3257 = vlaneseq
      %v3258 = vshrl.u32 %v3257, 7
      %v3259 = vsub.s32 %v3256, %v3258
      %v3260 = vrot.slane %v3252, %v3259
      %v3262 = vunpack.c.l.s4 1983009808
      %v3263 = vunpack.c.0.s8 %v3262
      %v3264 = vlaneseq
      %v3265 = vshrl.u32 %v3264, 7
      %v3266 = vsub.s32 %v3263, %v3265
      %v3267 = vrot.slane %v3253, %v3266
      %v3268 = vcombine.low %v3260, %v3267
      %v3269 = vcombine.low %v2900, %v2901
      %v3270 = vcombine.low %v2902, %v2903
      %v3272 = vunpack.c.l.s4 1983009808
      %v3273 = vunpack.c.0.s8 %v3272
      %v3274 = vlaneseq
      %v3275 = vshrl.u32 %v3274, 7
      %v3276 = vsub.s32 %v3273, %v3275
      %v3277 = vrot.slane %v3269, %v3276
      %v3279 = vunpack.c.l.s4 1983009808
      %v3280 = vunpack.c.0.s8 %v3279
      %v3281 = vlaneseq
      %v3282 = vshrl.u32 %v3281, 7
      %v3283 = vsub.s32 %v3280, %v3282
      %v3284 = vrot.slane %v3270, %v3283
      %v3285 = vcombine.low %v3277, %v3284
      %v3286 = vcombine.low %v2904, %v2905
      %v3287 = vcombine.low %v2906, %v2907
      %v3289 = vunpack.c.l.s4 1983009808
      %v3290 = vunpack.c.0.s8 %v3289
      %v3291 = vlaneseq
      %v3292 = vshrl.u32 %v3291, 7
      %v3293 = vsub.s32 %v3290, %v3292
      %v3294 = vrot.slane %v3286, %v3293
      %v3296 = vunpack.c.l.s4 1983009808
      %v3297 = vunpack.c.0.s8 %v3296
      %v3298 = vlaneseq
      %v3299 = vshrl.u32 %v3298, 7
      %v3300 = vsub.s32 %v3297, %v3299
      %v3301 = vrot.slane %v3287, %v3300
      %v3302 = vcombine.low %v3294, %v3301
      %v3303 = vcombine.low %v2908, %v2909
      %v3304 = vcombine.low %v2910, %v2911
      %v3306 = vunpack.c.l.s4 1983009808
      %v3307 = vunpack.c.0.s8 %v3306
      %v3308 = vlaneseq
      %v3309 = vshrl.u32 %v3308, 7
      %v3310 = vsub.s32 %v3307, %v3309
      %v3311 = vrot.slane %v3303, %v3310
      %v3313 = vunpack.c.l.s4 1983009808
      %v3314 = vunpack.c.0.s8 %v3313
      %v3315 = vlaneseq
      %v3316 = vshrl.u32 %v3315, 7
      %v3317 = vsub.s32 %v3314, %v3316
      %v3318 = vrot.slane %v3304, %v3317
      %v3319 = vcombine.low %v3311, %v3318
      %v3320 = vcombine.low %v2912, %v2913
      %v3321 = vcombine.low %v2914, %v2915
      %v3323 = vunpack.c.l.s4 1983009808
      %v3324 = vunpack.c.0.s8 %v3323
      %v3325 = vlaneseq
      %v3326 = vshrl.u32 %v3325, 7
      %v3327 = vsub.s32 %v3324, %v3326
      %v3328 = vrot.slane %v3320, %v3327
      %v3330 = vunpack.c.l.s4 1983009808
      %v3331 = vunpack.c.0.s8 %v3330
      %v3332 = vlaneseq
      %v3333 = vshrl.u32 %v3332, 7
      %v3334 = vsub.s32 %v3331, %v3333
      %v3335 = vrot.slane %v3321, %v3334
      %v3336 = vcombine.low %v3328, %v3335
      %v3337 = vcombine.low %v2916, %v2917
      %v3338 = vcombine.low %v2918, %v2919
      %v3340 = vunpack.c.l.s4 1983009808
      %v3341 = vunpack.c.0.s8 %v3340
      %v3342 = vlaneseq
      %v3343 = vshrl.u32 %v3342, 7
      %v3344 = vsub.s32 %v3341, %v3343
      %v3345 = vrot.slane %v3337, %v3344
      %v3347 = vunpack.c.l.s4 1983009808
      %v3348 = vunpack.c.0.s8 %v3347
      %v3349 = vlaneseq
      %v3350 = vshrl.u32 %v3349, 7
      %v3351 = vsub.s32 %v3348, %v3350
      %v3352 = vrot.slane %v3338, %v3351
      %v3353 = vcombine.low %v3345, %v3352
      %v3354 = vcombine.low %v2920, %v2921
      %v3355 = vcombine.low %v2922, %v2923
      %v3357 = vunpack.c.l.s4 1983009808
      %v3358 = vunpack.c.0.s8 %v3357
      %v3359 = vlaneseq
      %v3360 = vshrl.u32 %v3359, 7
      %v3361 = vsub.s32 %v3358, %v3360
      %v3362 = vrot.slane %v3354, %v3361
      %v3364 = vunpack.c.l.s4 1983009808
      %v3365 = vunpack.c.0.s8 %v3364
      %v3366 = vlaneseq
      %v3367 = vshrl.u32 %v3366, 7
      %v3368 = vsub.s32 %v3365, %v3367
      %v3369 = vrot.slane %v3355, %v3368
      %v3370 = vcombine.low %v3362, %v3369
      %v3371 = vcombine.low %v2924, %v2925
      %v3372 = vcombine.low %v2926, %v2927
      %v3374 = vunpack.c.l.s4 1983009808
      %v3375 = vunpack.c.0.s8 %v3374
      %v3376 = vlaneseq
      %v3377 = vshrl.u32 %v3376, 7
      %v3378 = vsub.s32 %v3375, %v3377
      %v3379 = vrot.slane %v3371, %v3378
      %v3381 = vunpack.c.l.s4 1983009808
      %v3382 = vunpack.c.0.s8 %v3381
      %v3383 = vlaneseq
      %v3384 = vshrl.u32 %v3383, 7
      %v3385 = vsub.s32 %v3382, %v3384
      %v3386 = vrot.slane %v3372, %v3385
      %v3387 = vcombine.low %v3379, %v3386
      %v3388 = vcombine.low %v2928, %v2929
      %v3389 = vcombine.low %v2930, %v2931
      %v3391 = vunpack.c.l.s4 1983009808
      %v3392 = vunpack.c.0.s8 %v3391
      %v3393 = vlaneseq
      %v3394 = vshrl.u32 %v3393, 7
      %v3395 = vsub.s32 %v3392, %v3394
      %v3396 = vrot.slane %v3388, %v3395
      %v3398 = vunpack.c.l.s4 1983009808
      %v3399 = vunpack.c.0.s8 %v3398
      %v3400 = vlaneseq
      %v3401 = vshrl.u32 %v3400, 7
      %v3402 = vsub.s32 %v3399, %v3401
      %v3403 = vrot.slane %v3389, %v3402
      %v3404 = vcombine.low %v3396, %v3403
      %v3405 = vcombine.low %v2011, %v2012
      %v3406 = vcombine.low %v2013, %v2014
      %v3408 = vunpack.c.l.s4 1983009808
      %v3409 = vunpack.c.0.s8 %v3408
      %v3410 = vlaneseq
      %v3411 = vshrl.u32 %v3410, 7
      %v3412 = vsub.s32 %v3409, %v3411
      %v3413 = vrot.slane %v3405, %v3412
      %v3415 = vunpack.c.l.s4 1983009808
      %v3416 = vunpack.c.0.s8 %v3415
      %v3417 = vlaneseq
      %v3418 = vshrl.u32 %v3417, 7
      %v3419 = vsub.s32 %v3416, %v3418
      %v3420 = vrot.slane %v3406, %v3419
      %v3421 = vcombine.low %v3413, %v3420
      %v3422 = vcombine.low %v2220, %v2222
      %v3423 = vcombine.low %v2224, %v2226
      %v3425 = vunpack.c.l.s4 1983009808
      %v3426 = vunpack.c.0.s8 %v3425
      %v3427 = vlaneseq
      %v3428 = vshrl.u32 %v3427, 7
      %v3429 = vsub.s32 %v3426, %v3428
      %v3430 = vrot.slane %v3422, %v3429
      %v3432 = vunpack.c.l.s4 1983009808
      %v3433 = vunpack.c.0.s8 %v3432
      %v3434 = vlaneseq
      %v3435 = vshrl.u32 %v3434, 7
      %v3436 = vsub.s32 %v3433, %v3435
      %v3437 = vrot.slane %v3423, %v3436
      %v3438 = vcombine.low %v3430, %v3437
      %v3439 = vcombine.low %v2015, %v2016
      %v3440 = vcombine.low %v2017, %v2018
      %v3442 = vunpack.c.l.s4 1983009808
      %v3443 = vunpack.c.0.s8 %v3442
      %v3444 = vlaneseq
      %v3445 = vshrl.u32 %v3444, 7
      %v3446 = vsub.s32 %v3443, %v3445
      %v3447 = vrot.slane %v3439, %v3446
      %v3449 = vunpack.c.l.s4 1983009808
      %v3450 = vunpack.c.0.s8 %v3449
      %v3451 = vlaneseq
      %v3452 = vshrl.u32 %v3451, 7
      %v3453 = vsub.s32 %v3450, %v3452
      %v3454 = vrot.slane %v3440, %v3453
      %v3455 = vcombine.low %v3447, %v3454
      %v3456 = vcombine.low %v2228, %v2230
      %v3457 = vcombine.low %v2232, %v2234
      %v3459 = vunpack.c.l.s4 1983009808
      %v3460 = vunpack.c.0.s8 %v3459
      %v3461 = vlaneseq
      %v3462 = vshrl.u32 %v3461, 7
      %v3463 = vsub.s32 %v3460, %v3462
      %v3464 = vrot.slane %v3456, %v3463
      %v3466 = vunpack.c.l.s4 1983009808
      %v3467 = vunpack.c.0.s8 %v3466
      %v3468 = vlaneseq
      %v3469 = vshrl.u32 %v3468, 7
      %v3470 = vsub.s32 %v3467, %v3469
      %v3471 = vrot.slane %v3457, %v3470
      %v3472 = vcombine.low %v3464, %v3471
      %v3473 = vcombine.low %v2019, %v2020
      %v3474 = vcombine.low %v2021, %v2022
      %v3476 = vunpack.c.l.s4 1983009808
      %v3477 = vunpack.c.0.s8 %v3476
      %v3478 = vlaneseq
      %v3479 = vshrl.u32 %v3478, 7
      %v3480 = vsub.s32 %v3477, %v3479
      %v3481 = vrot.slane %v3473, %v3480
      %v3483 = vunpack.c.l.s4 1983009808
      %v3484 = vunpack.c.0.s8 %v3483
      %v3485 = vlaneseq
      %v3486 = vshrl.u32 %v3485, 7
      %v3487 = vsub.s32 %v3484, %v3486
      %v3488 = vrot.slane %v3474, %v3487
      %v3489 = vcombine.low %v3481, %v3488
      %v3490 = vcombine.low %v2236, %v2238
      %v3491 = vcombine.low %v2240, %v2242
      %v3493 = vunpack.c.l.s4 1983009808
      %v3494 = vunpack.c.0.s8 %v3493
      %v3495 = vlaneseq
      %v3496 = vshrl.u32 %v3495, 7
      %v3497 = vsub.s32 %v3494, %v3496
      %v3498 = vrot.slane %v3490, %v3497
      %v3500 = vunpack.c.l.s4 1983009808
      %v3501 = vunpack.c.0.s8 %v3500
      %v3502 = vlaneseq
      %v3503 = vshrl.u32 %v3502, 7
      %v3504 = vsub.s32 %v3501, %v3503
      %v3505 = vrot.slane %v3491, %v3504
      %v3506 = vcombine.low %v3498, %v3505
      %v3507 = vcombine.low %v2023, %v2024
      %v3508 = vcombine.low %v2025, %v2026
      %v3510 = vunpack.c.l.s4 1983009808
      %v3511 = vunpack.c.0.s8 %v3510
      %v3512 = vlaneseq
      %v3513 = vshrl.u32 %v3512, 7
      %v3514 = vsub.s32 %v3511, %v3513
      %v3515 = vrot.slane %v3507, %v3514
      %v3517 = vunpack.c.l.s4 1983009808
      %v3518 = vunpack.c.0.s8 %v3517
      %v3519 = vlaneseq
      %v3520 = vshrl.u32 %v3519, 7
      %v3521 = vsub.s32 %v3518, %v3520
      %v3522 = vrot.slane %v3508, %v3521
      %v3523 = vcombine.low %v3515, %v3522
      %v3524 = vcombine.low %v2244, %v2246
      %v3525 = vcombine.low %v2248, %v2250
      %v3527 = vunpack.c.l.s4 1983009808
      %v3528 = vunpack.c.0.s8 %v3527
      %v3529 = vlaneseq
      %v3530 = vshrl.u32 %v3529, 7
      %v3531 = vsub.s32 %v3528, %v3530
      %v3532 = vrot.slane %v3524, %v3531
      %v3534 = vunpack.c.l.s4 1983009808
      %v3535 = vunpack.c.0.s8 %v3534
      %v3536 = vlaneseq
      %v3537 = vshrl.u32 %v3536, 7
      %v3538 = vsub.s32 %v3535, %v3537
      %v3539 = vrot.slane %v3525, %v3538
      %v3540 = vcombine.low %v3532, %v3539
      %v3541 = vcombine.low %v2476, %v2478
      %v3542 = vcombine.low %v2480, %v2482
      %v3544 = vunpack.c.l.s4 1983009808
      %v3545 = vunpack.c.0.s8 %v3544
      %v3546 = vlaneseq
      %v3547 = vshrl.u32 %v3546, 7
      %v3548 = vsub.s32 %v3545, %v3547
      %v3549 = vrot.slane %v3541, %v3548
      %v3551 = vunpack.c.l.s4 1983009808
      %v3552 = vunpack.c.0.s8 %v3551
      %v3553 = vlaneseq
      %v3554 = vshrl.u32 %v3553, 7
      %v3555 = vsub.s32 %v3552, %v3554
      %v3556 = vrot.slane %v3542, %v3555
      %v3557 = vcombine.low %v3549, %v3556
      %v3558 = vcombine.low %v2484, %v2486
      %v3559 = vcombine.low %v2488, %v2490
      %v3561 = vunpack.c.l.s4 1983009808
      %v3562 = vunpack.c.0.s8 %v3561
      %v3563 = vlaneseq
      %v3564 = vshrl.u32 %v3563, 7
      %v3565 = vsub.s32 %v3562, %v3564
      %v3566 = vrot.slane %v3558, %v3565
      %v3568 = vunpack.c.l.s4 1983009808
      %v3569 = vunpack.c.0.s8 %v3568
      %v3570 = vlaneseq
      %v3571 = vshrl.u32 %v3570, 7
      %v3572 = vsub.s32 %v3569, %v3571
      %v3573 = vrot.slane %v3559, %v3572
      %v3574 = vcombine.low %v3566, %v3573
      %v3575 = vcombine.low %v2492, %v2494
      %v3576 = vcombine.low %v2496, %v2498
      %v3578 = vunpack.c.l.s4 1983009808
      %v3579 = vunpack.c.0.s8 %v3578
      %v3580 = vlaneseq
      %v3581 = vshrl.u32 %v3580, 7
      %v3582 = vsub.s32 %v3579, %v3581
      %v3583 = vrot.slane %v3575, %v3582
      %v3585 = vunpack.c.l.s4 1983009808
      %v3586 = vunpack.c.0.s8 %v3585
      %v3587 = vlaneseq
      %v3588 = vshrl.u32 %v3587, 7
      %v3589 = vsub.s32 %v3586, %v3588
      %v3590 = vrot.slane %v3576, %v3589
      %v3591 = vcombine.low %v3583, %v3590
      %v3592 = vcombine.low %v2500, %v2502
      %v3593 = vcombine.low %v2504, %v2506
      %v3595 = vunpack.c.l.s4 1983009808
      %v3596 = vunpack.c.0.s8 %v3595
      %v3597 = vlaneseq
      %v3598 = vshrl.u32 %v3597, 7
      %v3599 = vsub.s32 %v3596, %v3598
      %v3600 = vrot.slane %v3592, %v3599
      %v3602 = vunpack.c.l.s4 1983009808
      %v3603 = vunpack.c.0.s8 %v3602
      %v3604 = vlaneseq
      %v3605 = vshrl.u32 %v3604, 7
      %v3606 = vsub.s32 %v3603, %v3605
      %v3607 = vrot.slane %v3593, %v3606
      %v3608 = vcombine.low %v3600, %v3607
      %v3609 = vcombine.low %v2508, %v2510
      %v3610 = vcombine.low %v2512, %v2514
      %v3612 = vunpack.c.l.s4 1983009808
      %v3613 = vunpack.c.0.s8 %v3612
      %v3614 = vlaneseq
      %v3615 = vshrl.u32 %v3614, 7
      %v3616 = vsub.s32 %v3613, %v3615
      %v3617 = vrot.slane %v3609, %v3616
      %v3619 = vunpack.c.l.s4 1983009808
      %v3620 = vunpack.c.0.s8 %v3619
      %v3621 = vlaneseq
      %v3622 = vshrl.u32 %v3621, 7
      %v3623 = vsub.s32 %v3620, %v3622
      %v3624 = vrot.slane %v3610, %v3623
      %v3625 = vcombine.low %v3617, %v3624
      %v3626 = vcombine.low %v2516, %v2518
      %v3627 = vcombine.low %v2520, %v2522
      %v3629 = vunpack.c.l.s4 1983009808
      %v3630 = vunpack.c.0.s8 %v3629
      %v3631 = vlaneseq
      %v3632 = vshrl.u32 %v3631, 7
      %v3633 = vsub.s32 %v3630, %v3632
      %v3634 = vrot.slane %v3626, %v3633
      %v3636 = vunpack.c.l.s4 1983009808
      %v3637 = vunpack.c.0.s8 %v3636
      %v3638 = vlaneseq
      %v3639 = vshrl.u32 %v3638, 7
      %v3640 = vsub.s32 %v3637, %v3639
      %v3641 = vrot.slane %v3627, %v3640
      %v3642 = vcombine.low %v3634, %v3641
      %v3643 = vcombine.low %v2524, %v2526
      %v3644 = vcombine.low %v2528, %v2530
      %v3646 = vunpack.c.l.s4 1983009808
      %v3647 = vunpack.c.0.s8 %v3646
      %v3648 = vlaneseq
      %v3649 = vshrl.u32 %v3648, 7
      %v3650 = vsub.s32 %v3647, %v3649
      %v3651 = vrot.slane %v3643, %v3650
      %v3653 = vunpack.c.l.s4 1983009808
      %v3654 = vunpack.c.0.s8 %v3653
      %v3655 = vlaneseq
      %v3656 = vshrl.u32 %v3655, 7
      %v3657 = vsub.s32 %v3654, %v3656
      %v3658 = vrot.slane %v3644, %v3657
      %v3659 = vcombine.low %v3651, %v3658
      %v3660 = vcombine.low %v2532, %v2534
      %v3661 = vcombine.low %v2536, %v2538
      %v3663 = vunpack.c.l.s4 1983009808
      %v3664 = vunpack.c.0.s8 %v3663
      %v3665 = vlaneseq
      %v3666 = vshrl.u32 %v3665, 7
      %v3667 = vsub.s32 %v3664, %v3666
      %v3668 = vrot.slane %v3660, %v3667
      %v3670 = vunpack.c.l.s4 1983009808
      %v3671 = vunpack.c.0.s8 %v3670
      %v3672 = vlaneseq
      %v3673 = vshrl.u32 %v3672, 7
      %v3674 = vsub.s32 %v3671, %v3673
      %v3675 = vrot.slane %v3661, %v3674
      %v3676 = vcombine.low %v3668, %v3675
      %v3677 = vcombine.low %v2027, %v2028
      %v3678 = vcombine.low %v2029, %v2030
      %v3680 = vunpack.c.l.s4 1983009808
      %v3681 = vunpack.c.0.s8 %v3680
      %v3682 = vlaneseq
      %v3683 = vshrl.u32 %v3682, 7
      %v3684 = vsub.s32 %v3681, %v3683
      %v3685 = vrot.slane %v3677, %v3684
      %v3687 = vunpack.c.l.s4 1983009808
      %v3688 = vunpack.c.0.s8 %v3687
      %v3689 = vlaneseq
      %v3690 = vshrl.u32 %v3689, 7
      %v3691 = vsub.s32 %v3688, %v3690
      %v3692 = vrot.slane %v3678, %v3691
      %v3693 = vcombine.low %v3685, %v3692
      %v3694 = vcombine.low %v2252, %v2254
      %v3695 = vcombine.low %v2256, %v2258
      %v3697 = vunpack.c.l.s4 1983009808
      %v3698 = vunpack.c.0.s8 %v3697
      %v3699 = vlaneseq
      %v3700 = vshrl.u32 %v3699, 7
      %v3701 = vsub.s32 %v3698, %v3700
      %v3702 = vrot.slane %v3694, %v3701
      %v3704 = vunpack.c.l.s4 1983009808
      %v3705 = vunpack.c.0.s8 %v3704
      %v3706 = vlaneseq
      %v3707 = vshrl.u32 %v3706, 7
      %v3708 = vsub.s32 %v3705, %v3707
      %v3709 = vrot.slane %v3695, %v3708
      %v3710 = vcombine.low %v3702, %v3709
      %v3711 = vcombine.low %v2031, %v2032
      %v3712 = vcombine.low %v2033, %v2034
      %v3714 = vunpack.c.l.s4 1983009808
      %v3715 = vunpack.c.0.s8 %v3714
      %v3716 = vlaneseq
      %v3717 = vshrl.u32 %v3716, 7
      %v3718 = vsub.s32 %v3715, %v3717
      %v3719 = vrot.slane %v3711, %v3718
      %v3721 = vunpack.c.l.s4 1983009808
      %v3722 = vunpack.c.0.s8 %v3721
      %v3723 = vlaneseq
      %v3724 = vshrl.u32 %v3723, 7
      %v3725 = vsub.s32 %v3722, %v3724
      %v3726 = vrot.slane %v3712, %v3725
      %v3727 = vcombine.low %v3719, %v3726
      %v3728 = vcombine.low %v2260, %v2262
      %v3729 = vcombine.low %v2264, %v2266
      %v3731 = vunpack.c.l.s4 1983009808
      %v3732 = vunpack.c.0.s8 %v3731
      %v3733 = vlaneseq
      %v3734 = vshrl.u32 %v3733, 7
      %v3735 = vsub.s32 %v3732, %v3734
      %v3736 = vrot.slane %v3728, %v3735
      %v3738 = vunpack.c.l.s4 1983009808
      %v3739 = vunpack.c.0.s8 %v3738
      %v3740 = vlaneseq
      %v3741 = vshrl.u32 %v3740, 7
      %v3742 = vsub.s32 %v3739, %v3741
      %v3743 = vrot.slane %v3729, %v3742
      %v3744 = vcombine.low %v3736, %v3743
      %v3745 = vcombine.low %v2035, %v2036
      %v3746 = vcombine.low %v2037, %v2038
      %v3748 = vunpack.c.l.s4 1983009808
      %v3749 = vunpack.c.0.s8 %v3748
      %v3750 = vlaneseq
      %v3751 = vshrl.u32 %v3750, 7
      %v3752 = vsub.s32 %v3749, %v3751
      %v3753 = vrot.slane %v3745, %v3752
      %v3755 = vunpack.c.l.s4 1983009808
      %v3756 = vunpack.c.0.s8 %v3755
      %v3757 = vlaneseq
      %v3758 = vshrl.u32 %v3757, 7
      %v3759 = vsub.s32 %v3756, %v3758
      %v3760 = vrot.slane %v3746, %v3759
      %v3761 = vcombine.low %v3753, %v3760
      %v3762 = vcombine.low %v2268, %v2270
      %v3763 = vcombine.low %v2272, %v2274
      %v3765 = vunpack.c.l.s4 1983009808
      %v3766 = vunpack.c.0.s8 %v3765
      %v3767 = vlaneseq
      %v3768 = vshrl.u32 %v3767, 7
      %v3769 = vsub.s32 %v3766, %v3768
      %v3770 = vrot.slane %v3762, %v3769
      %v3772 = vunpack.c.l.s4 1983009808
      %v3773 = vunpack.c.0.s8 %v3772
      %v3774 = vlaneseq
      %v3775 = vshrl.u32 %v3774, 7
      %v3776 = vsub.s32 %v3773, %v3775
      %v3777 = vrot.slane %v3763, %v3776
      %v3778 = vcombine.low %v3770, %v3777
      %v3779 = vcombine.low %v2039, %v2040
      %v3780 = vcombine.low %v2041, %v2042
      %v3782 = vunpack.c.l.s4 1983009808
      %v3783 = vunpack.c.0.s8 %v3782
      %v3784 = vlaneseq
      %v3785 = vshrl.u32 %v3784, 7
      %v3786 = vsub.s32 %v3783, %v3785
      %v3787 = vrot.slane %v3779, %v3786
      %v3789 = vunpack.c.l.s4 1983009808
      %v3790 = vunpack.c.0.s8 %v3789
      %v3791 = vlaneseq
      %v3792 = vshrl.u32 %v3791, 7
      %v3793 = vsub.s32 %v3790, %v3792
      %v3794 = vrot.slane %v3780, %v3793
      %v3795 = vcombine.low %v3787, %v3794
      %v3796 = vcombine.low %v2276, %v2278
      %v3797 = vcombine.low %v2280, %v2282
      %v3799 = vunpack.c.l.s4 1983009808
      %v3800 = vunpack.c.0.s8 %v3799
      %v3801 = vlaneseq
      %v3802 = vshrl.u32 %v3801, 7
      %v3803 = vsub.s32 %v3800, %v3802
      %v3804 = vrot.slane %v3796, %v3803
      %v3806 = vunpack.c.l.s4 1983009808
      %v3807 = vunpack.c.0.s8 %v3806
      %v3808 = vlaneseq
      %v3809 = vshrl.u32 %v3808, 7
      %v3810 = vsub.s32 %v3807, %v3809
      %v3811 = vrot.slane %v3797, %v3810
      %v3812 = vcombine.low %v3804, %v3811
      %v3813 = vcombine.low %v2540, %v2542
      %v3814 = vcombine.low %v2544, %v2546
      %v3816 = vunpack.c.l.s4 1983009808
      %v3817 = vunpack.c.0.s8 %v3816
      %v3818 = vlaneseq
      %v3819 = vshrl.u32 %v3818, 7
      %v3820 = vsub.s32 %v3817, %v3819
      %v3821 = vrot.slane %v3813, %v3820
      %v3823 = vunpack.c.l.s4 1983009808
      %v3824 = vunpack.c.0.s8 %v3823
      %v3825 = vlaneseq
      %v3826 = vshrl.u32 %v3825, 7
      %v3827 = vsub.s32 %v3824, %v3826
      %v3828 = vrot.slane %v3814, %v3827
      %v3829 = vcombine.low %v3821, %v3828
      %v3830 = vcombine.low %v2548, %v2550
      %v3831 = vcombine.low %v2552, %v2554
      %v3833 = vunpack.c.l.s4 1983009808
      %v3834 = vunpack.c.0.s8 %v3833
      %v3835 = vlaneseq
      %v3836 = vshrl.u32 %v3835, 7
      %v3837 = vsub.s32 %v3834, %v3836
      %v3838 = vrot.slane %v3830, %v3837
      %v3840 = vunpack.c.l.s4 1983009808
      %v3841 = vunpack.c.0.s8 %v3840
      %v3842 = vlaneseq
      %v3843 = vshrl.u32 %v3842, 7
      %v3844 = vsub.s32 %v3841, %v3843
      %v3845 = vrot.slane %v3831, %v3844
      %v3846 = vcombine.low %v3838, %v3845
      %v3847 = vcombine.low %v2556, %v2558
      %v3848 = vcombine.low %v2560, %v2562
      %v3850 = vunpack.c.l.s4 1983009808
      %v3851 = vunpack.c.0.s8 %v3850
      %v3852 = vlaneseq
      %v3853 = vshrl.u32 %v3852, 7
      %v3854 = vsub.s32 %v3851, %v3853
      %v3855 = vrot.slane %v3847, %v3854
      %v3857 = vunpack.c.l.s4 1983009808
      %v3858 = vunpack.c.0.s8 %v3857
      %v3859 = vlaneseq
      %v3860 = vshrl.u32 %v3859, 7
      %v3861 = vsub.s32 %v3858, %v3860
      %v3862 = vrot.slane %v3848, %v3861
      %v3863 = vcombine.low %v3855, %v3862
      %v3864 = vcombine.low %v2564, %v2566
      %v3865 = vcombine.low %v2568, %v2570
      %v3867 = vunpack.c.l.s4 1983009808
      %v3868 = vunpack.c.0.s8 %v3867
      %v3869 = vlaneseq
      %v3870 = vshrl.u32 %v3869, 7
      %v3871 = vsub.s32 %v3868, %v3870
      %v3872 = vrot.slane %v3864, %v3871
      %v3874 = vunpack.c.l.s4 1983009808
      %v3875 = vunpack.c.0.s8 %v3874
      %v3876 = vlaneseq
      %v3877 = vshrl.u32 %v3876, 7
      %v3878 = vsub.s32 %v3875, %v3877
      %v3879 = vrot.slane %v3865, %v3878
      %v3880 = vcombine.low %v3872, %v3879
      %v3881 = vcombine.low %v2572, %v2574
      %v3882 = vcombine.low %v2576, %v2578
      %v3884 = vunpack.c.l.s4 1983009808
      %v3885 = vunpack.c.0.s8 %v3884
      %v3886 = vlaneseq
      %v3887 = vshrl.u32 %v3886, 7
      %v3888 = vsub.s32 %v3885, %v3887
      %v3889 = vrot.slane %v3881, %v3888
      %v3891 = vunpack.c.l.s4 1983009808
      %v3892 = vunpack.c.0.s8 %v3891
      %v3893 = vlaneseq
      %v3894 = vshrl.u32 %v3893, 7
      %v3895 = vsub.s32 %v3892, %v3894
      %v3896 = vrot.slane %v3882, %v3895
      %v3897 = vcombine.low %v3889, %v3896
      %v3898 = vcombine.low %v2580, %v2582
      %v3899 = vcombine.low %v2584, %v2586
      %v3901 = vunpack.c.l.s4 1983009808
      %v3902 = vunpack.c.0.s8 %v3901
      %v3903 = vlaneseq
      %v3904 = vshrl.u32 %v3903, 7
      %v3905 = vsub.s32 %v3902, %v3904
      %v3906 = vrot.slane %v3898, %v3905
      %v3908 = vunpack.c.l.s4 1983009808
      %v3909 = vunpack.c.0.s8 %v3908
      %v3910 = vlaneseq
      %v3911 = vshrl.u32 %v3910, 7
      %v3912 = vsub.s32 %v3909, %v3911
      %v3913 = vrot.slane %v3899, %v3912
      %v3914 = vcombine.low %v3906, %v3913
      %v3915 = vcombine.low %v2588, %v2590
      %v3916 = vcombine.low %v2592, %v2594
      %v3918 = vunpack.c.l.s4 1983009808
      %v3919 = vunpack.c.0.s8 %v3918
      %v3920 = vlaneseq
      %v3921 = vshrl.u32 %v3920, 7
      %v3922 = vsub.s32 %v3919, %v3921
      %v3923 = vrot.slane %v3915, %v3922
      %v3925 = vunpack.c.l.s4 1983009808
      %v3926 = vunpack.c.0.s8 %v3925
      %v3927 = vlaneseq
      %v3928 = vshrl.u32 %v3927, 7
      %v3929 = vsub.s32 %v3926, %v3928
      %v3930 = vrot.slane %v3916, %v3929
      %v3931 = vcombine.low %v3923, %v3930
      %v3932 = vcombine.low %v2596, %v2598
      %v3933 = vcombine.low %v2600, %v2602
      %v3935 = vunpack.c.l.s4 1983009808
      %v3936 = vunpack.c.0.s8 %v3935
      %v3937 = vlaneseq
      %v3938 = vshrl.u32 %v3937, 7
      %v3939 = vsub.s32 %v3936, %v3938
      %v3940 = vrot.slane %v3932, %v3939
      %v3942 = vunpack.c.l.s4 1983009808
      %v3943 = vunpack.c.0.s8 %v3942
      %v3944 = vlaneseq
      %v3945 = vshrl.u32 %v3944, 7
      %v3946 = vsub.s32 %v3943, %v3945
      %v3947 = vrot.slane %v3933, %v3946
      %v3948 = vcombine.low %v3940, %v3947
      %v3949 = vcombine.low %v2043, %v2044
      %v3950 = vcombine.low %v2045, %v2046
      %v3952 = vunpack.c.l.s4 1983009808
      %v3953 = vunpack.c.0.s8 %v3952
      %v3954 = vlaneseq
      %v3955 = vshrl.u32 %v3954, 7
      %v3956 = vsub.s32 %v3953, %v3955
      %v3957 = vrot.slane %v3949, %v3956
      %v3959 = vunpack.c.l.s4 1983009808
      %v3960 = vunpack.c.0.s8 %v3959
      %v3961 = vlaneseq
      %v3962 = vshrl.u32 %v3961, 7
      %v3963 = vsub.s32 %v3960, %v3962
      %v3964 = vrot.slane %v3950, %v3963
      %v3965 = vcombine.low %v3957, %v3964
      %v3966 = vcombine.low %v2284, %v2286
      %v3967 = vcombine.low %v2288, %v2290
      %v3969 = vunpack.c.l.s4 1983009808
      %v3970 = vunpack.c.0.s8 %v3969
      %v3971 = vlaneseq
      %v3972 = vshrl.u32 %v3971, 7
      %v3973 = vsub.s32 %v3970, %v3972
      %v3974 = vrot.slane %v3966, %v3973
      %v3976 = vunpack.c.l.s4 1983009808
      %v3977 = vunpack.c.0.s8 %v3976
      %v3978 = vlaneseq
      %v3979 = vshrl.u32 %v3978, 7
      %v3980 = vsub.s32 %v3977, %v3979
      %v3981 = vrot.slane %v3967, %v3980
      %v3982 = vcombine.low %v3974, %v3981
      %v3983 = vcombine.low %v2047, %v2048
      %v3984 = vcombine.low %v2049, %v2050
      %v3986 = vunpack.c.l.s4 1983009808
      %v3987 = vunpack.c.0.s8 %v3986
      %v3988 = vlaneseq
      %v3989 = vshrl.u32 %v3988, 7
      %v3990 = vsub.s32 %v3987, %v3989
      %v3991 = vrot.slane %v3983, %v3990
      %v3993 = vunpack.c.l.s4 1983009808
      %v3994 = vunpack.c.0.s8 %v3993
      %v3995 = vlaneseq
      %v3996 = vshrl.u32 %v3995, 7
      %v3997 = vsub.s32 %v3994, %v3996
      %v3998 = vrot.slane %v3984, %v3997
      %v3999 = vcombine.low %v3991, %v3998
      %v4000 = vcombine.low %v2292, %v2294
      %v4001 = vcombine.low %v2296, %v2298
      %v4003 = vunpack.c.l.s4 1983009808
      %v4004 = vunpack.c.0.s8 %v4003
      %v4005 = vlaneseq
      %v4006 = vshrl.u32 %v4005, 7
      %v4007 = vsub.s32 %v4004, %v4006
      %v4008 = vrot.slane %v4000, %v4007
      %v4010 = vunpack.c.l.s4 1983009808
      %v4011 = vunpack.c.0.s8 %v4010
      %v4012 = vlaneseq
      %v4013 = vshrl.u32 %v4012, 7
      %v4014 = vsub.s32 %v4011, %v4013
      %v4015 = vrot.slane %v4001, %v4014
      %v4016 = vcombine.low %v4008, %v4015
      %v4017 = vcombine.low %v2051, %v2052
      %v4018 = vcombine.low %v2053, %v2054
      %v4020 = vunpack.c.l.s4 1983009808
      %v4021 = vunpack.c.0.s8 %v4020
      %v4022 = vlaneseq
      %v4023 = vshrl.u32 %v4022, 7
      %v4024 = vsub.s32 %v4021, %v4023
      %v4025 = vrot.slane %v4017, %v4024
      %v4027 = vunpack.c.l.s4 1983009808
      %v4028 = vunpack.c.0.s8 %v4027
      %v4029 = vlaneseq
      %v4030 = vshrl.u32 %v4029, 7
      %v4031 = vsub.s32 %v4028, %v4030
      %v4032 = vrot.slane %v4018, %v4031
      %v4033 = vcombine.low %v4025, %v4032
      %v4034 = vcombine.low %v2300, %v2302
      %v4035 = vcombine.low %v2304, %v2306
      %v4037 = vunpack.c.l.s4 1983009808
      %v4038 = vunpack.c.0.s8 %v4037
      %v4039 = vlaneseq
      %v4040 = vshrl.u32 %v4039, 7
      %v4041 = vsub.s32 %v4038, %v4040
      %v4042 = vrot.slane %v4034, %v4041
      %v4044 = vunpack.c.l.s4 1983009808
      %v4045 = vunpack.c.0.s8 %v4044
      %v4046 = vlaneseq
      %v4047 = vshrl.u32 %v4046, 7
      %v4048 = vsub.s32 %v4045, %v4047
      %v4049 = vrot.slane %v4035, %v4048
      %v4050 = vcombine.low %v4042, %v4049
      %v4051 = vcombine.low %v2055, %v2056
      %v4052 = vcombine.low %v2057, %v2058
      %v4054 = vunpack.c.l.s4 1983009808
      %v4055 = vunpack.c.0.s8 %v4054
      %v4056 = vlaneseq
      %v4057 = vshrl.u32 %v4056, 7
      %v4058 = vsub.s32 %v4055, %v4057
      %v4059 = vrot.slane %v4051, %v4058
      %v4061 = vunpack.c.l.s4 1983009808
      %v4062 = vunpack.c.0.s8 %v4061
      %v4063 = vlaneseq
      %v4064 = vshrl.u32 %v4063, 7
      %v4065 = vsub.s32 %v4062, %v4064
      %v4066 = vrot.slane %v4052, %v4065
      %v4067 = vcombine.low %v4059, %v4066
      %v4068 = vcombine.low %v2308, %v2310
      %v4069 = vcombine.low %v2312, %v2314
      %v4071 = vunpack.c.l.s4 1983009808
      %v4072 = vunpack.c.0.s8 %v4071
      %v4073 = vlaneseq
      %v4074 = vshrl.u32 %v4073, 7
      %v4075 = vsub.s32 %v4072, %v4074
      %v4076 = vrot.slane %v4068, %v4075
      %v4078 = vunpack.c.l.s4 1983009808
      %v4079 = vunpack.c.0.s8 %v4078
      %v4080 = vlaneseq
      %v4081 = vshrl.u32 %v4080, 7
      %v4082 = vsub.s32 %v4079, %v4081
      %v4083 = vrot.slane %v4069, %v4082
      %v4084 = vcombine.low %v4076, %v4083
      %v4085 = vcombine.low %v2604, %v2606
      %v4086 = vcombine.low %v2608, %v2610
      %v4088 = vunpack.c.l.s4 1983009808
      %v4089 = vunpack.c.0.s8 %v4088
      %v4090 = vlaneseq
      %v4091 = vshrl.u32 %v4090, 7
      %v4092 = vsub.s32 %v4089, %v4091
      %v4093 = vrot.slane %v4085, %v4092
      %v4095 = vunpack.c.l.s4 1983009808
      %v4096 = vunpack.c.0.s8 %v4095
      %v4097 = vlaneseq
      %v4098 = vshrl.u32 %v4097, 7
      %v4099 = vsub.s32 %v4096, %v4098
      %v4100 = vrot.slane %v4086, %v4099
      %v4101 = vcombine.low %v4093, %v4100
      %v4102 = vcombine.low %v2612, %v2614
      %v4103 = vcombine.low %v2616, %v2618
      %v4105 = vunpack.c.l.s4 1983009808
      %v4106 = vunpack.c.0.s8 %v4105
      %v4107 = vlaneseq
      %v4108 = vshrl.u32 %v4107, 7
      %v4109 = vsub.s32 %v4106, %v4108
      %v4110 = vrot.slane %v4102, %v4109
      %v4112 = vunpack.c.l.s4 1983009808
      %v4113 = vunpack.c.0.s8 %v4112
      %v4114 = vlaneseq
      %v4115 = vshrl.u32 %v4114, 7
      %v4116 = vsub.s32 %v4113, %v4115
      %v4117 = vrot.slane %v4103, %v4116
      %v4118 = vcombine.low %v4110, %v4117
      %v4119 = vcombine.low %v2620, %v2622
      %v4120 = vcombine.low %v2624, %v2626
      %v4122 = vunpack.c.l.s4 1983009808
      %v4123 = vunpack.c.0.s8 %v4122
      %v4124 = vlaneseq
      %v4125 = vshrl.u32 %v4124, 7
      %v4126 = vsub.s32 %v4123, %v4125
      %v4127 = vrot.slane %v4119, %v4126
      %v4129 = vunpack.c.l.s4 1983009808
      %v4130 = vunpack.c.0.s8 %v4129
      %v4131 = vlaneseq
      %v4132 = vshrl.u32 %v4131, 7
      %v4133 = vsub.s32 %v4130, %v4132
      %v4134 = vrot.slane %v4120, %v4133
      %v4135 = vcombine.low %v4127, %v4134
      %v4136 = vcombine.low %v2628, %v2630
      %v4137 = vcombine.low %v2632, %v2634
      %v4139 = vunpack.c.l.s4 1983009808
      %v4140 = vunpack.c.0.s8 %v4139
      %v4141 = vlaneseq
      %v4142 = vshrl.u32 %v4141, 7
      %v4143 = vsub.s32 %v4140, %v4142
      %v4144 = vrot.slane %v4136, %v4143
      %v4146 = vunpack.c.l.s4 1983009808
      %v4147 = vunpack.c.0.s8 %v4146
      %v4148 = vlaneseq
      %v4149 = vshrl.u32 %v4148, 7
      %v4150 = vsub.s32 %v4147, %v4149
      %v4151 = vrot.slane %v4137, %v4150
      %v4152 = vcombine.low %v4144, %v4151
      %v4153 = vcombine.low %v2636, %v2638
      %v4154 = vcombine.low %v2640, %v2642
      %v4156 = vunpack.c.l.s4 1983009808
      %v4157 = vunpack.c.0.s8 %v4156
      %v4158 = vlaneseq
      %v4159 = vshrl.u32 %v4158, 7
      %v4160 = vsub.s32 %v4157, %v4159
      %v4161 = vrot.slane %v4153, %v4160
      %v4163 = vunpack.c.l.s4 1983009808
      %v4164 = vunpack.c.0.s8 %v4163
      %v4165 = vlaneseq
      %v4166 = vshrl.u32 %v4165, 7
      %v4167 = vsub.s32 %v4164, %v4166
      %v4168 = vrot.slane %v4154, %v4167
      %v4169 = vcombine.low %v4161, %v4168
      %v4170 = vcombine.low %v2644, %v2646
      %v4171 = vcombine.low %v2648, %v2650
      %v4173 = vunpack.c.l.s4 1983009808
      %v4174 = vunpack.c.0.s8 %v4173
      %v4175 = vlaneseq
      %v4176 = vshrl.u32 %v4175, 7
      %v4177 = vsub.s32 %v4174, %v4176
      %v4178 = vrot.slane %v4170, %v4177
      %v4180 = vunpack.c.l.s4 1983009808
      %v4181 = vunpack.c.0.s8 %v4180
      %v4182 = vlaneseq
      %v4183 = vshrl.u32 %v4182, 7
      %v4184 = vsub.s32 %v4181, %v4183
      %v4185 = vrot.slane %v4171, %v4184
      %v4186 = vcombine.low %v4178, %v4185
      %v4187 = vcombine.low %v2652, %v2654
      %v4188 = vcombine.low %v2656, %v2658
      %v4190 = vunpack.c.l.s4 1983009808
      %v4191 = vunpack.c.0.s8 %v4190
      %v4192 = vlaneseq
      %v4193 = vshrl.u32 %v4192, 7
      %v4194 = vsub.s32 %v4191, %v4193
      %v4195 = vrot.slane %v4187, %v4194
      %v4197 = vunpack.c.l.s4 1983009808
      %v4198 = vunpack.c.0.s8 %v4197
      %v4199 = vlaneseq
      %v4200 = vshrl.u32 %v4199, 7
      %v4201 = vsub.s32 %v4198, %v4200
      %v4202 = vrot.slane %v4188, %v4201
      %v4203 = vcombine.low %v4195, %v4202
      %v4204 = vcombine.low %v2660, %v2662
      %v4205 = vcombine.low %v2664, %v2666
      %v4207 = vunpack.c.l.s4 1983009808
      %v4208 = vunpack.c.0.s8 %v4207
      %v4209 = vlaneseq
      %v4210 = vshrl.u32 %v4209, 7
      %v4211 = vsub.s32 %v4208, %v4210
      %v4212 = vrot.slane %v4204, %v4211
      %v4214 = vunpack.c.l.s4 1983009808
      %v4215 = vunpack.c.0.s8 %v4214
      %v4216 = vlaneseq
      %v4217 = vshrl.u32 %v4216, 7
      %v4218 = vsub.s32 %v4215, %v4217
      %v4219 = vrot.slane %v4205, %v4218
      %v4220 = vcombine.low %v4212, %v4219
      %v4221 = vcombine.low %v2059, %v2060
      %v4222 = vcombine.low %v2061, %v2062
      %v4224 = vunpack.c.l.s4 1983009808
      %v4225 = vunpack.c.0.s8 %v4224
      %v4226 = vlaneseq
      %v4227 = vshrl.u32 %v4226, 7
      %v4228 = vsub.s32 %v4225, %v4227
      %v4229 = vrot.slane %v4221, %v4228
      %v4231 = vunpack.c.l.s4 1983009808
      %v4232 = vunpack.c.0.s8 %v4231
      %v4233 = vlaneseq
      %v4234 = vshrl.u32 %v4233, 7
      %v4235 = vsub.s32 %v4232, %v4234
      %v4236 = vrot.slane %v4222, %v4235
      %v4237 = vcombine.low %v4229, %v4236
      %v4238 = vcombine.low %v2316, %v2318
      %v4239 = vcombine.low %v2320, %v2322
      %v4241 = vunpack.c.l.s4 1983009808
      %v4242 = vunpack.c.0.s8 %v4241
      %v4243 = vlaneseq
      %v4244 = vshrl.u32 %v4243, 7
      %v4245 = vsub.s32 %v4242, %v4244
      %v4246 = vrot.slane %v4238, %v4245
      %v4248 = vunpack.c.l.s4 1983009808
      %v4249 = vunpack.c.0.s8 %v4248
      %v4250 = vlaneseq
      %v4251 = vshrl.u32 %v4250, 7
      %v4252 = vsub.s32 %v4249, %v4251
      %v4253 = vrot.slane %v4239, %v4252
      %v4254 = vcombine.low %v4246, %v4253
      %v4255 = vcombine.low %v2063, %v2064
      %v4256 = vcombine.low %v2065, %v2066
      %v4258 = vunpack.c.l.s4 1983009808
      %v4259 = vunpack.c.0.s8 %v4258
      %v4260 = vlaneseq
      %v4261 = vshrl.u32 %v4260, 7
      %v4262 = vsub.s32 %v4259, %v4261
      %v4263 = vrot.slane %v4255, %v4262
      %v4265 = vunpack.c.l.s4 1983009808
      %v4266 = vunpack.c.0.s8 %v4265
      %v4267 = vlaneseq
      %v4268 = vshrl.u32 %v4267, 7
      %v4269 = vsub.s32 %v4266, %v4268
      %v4270 = vrot.slane %v4256, %v4269
      %v4271 = vcombine.low %v4263, %v4270
      %v4272 = vcombine.low %v2324, %v2326
      %v4273 = vcombine.low %v2328, %v2330
      %v4275 = vunpack.c.l.s4 1983009808
      %v4276 = vunpack.c.0.s8 %v4275
      %v4277 = vlaneseq
      %v4278 = vshrl.u32 %v4277, 7
      %v4279 = vsub.s32 %v4276, %v4278
      %v4280 = vrot.slane %v4272, %v4279
      %v4282 = vunpack.c.l.s4 1983009808
      %v4283 = vunpack.c.0.s8 %v4282
      %v4284 = vlaneseq
      %v4285 = vshrl.u32 %v4284, 7
      %v4286 = vsub.s32 %v4283, %v4285
      %v4287 = vrot.slane %v4273, %v4286
      %v4288 = vcombine.low %v4280, %v4287
      %v4289 = vcombine.low %v2067, %v2068
      %v4290 = vcombine.low %v2069, %v2070
      %v4292 = vunpack.c.l.s4 1983009808
      %v4293 = vunpack.c.0.s8 %v4292
      %v4294 = vlaneseq
      %v4295 = vshrl.u32 %v4294, 7
      %v4296 = vsub.s32 %v4293, %v4295
      %v4297 = vrot.slane %v4289, %v4296
      %v4299 = vunpack.c.l.s4 1983009808
      %v4300 = vunpack.c.0.s8 %v4299
      %v4301 = vlaneseq
      %v4302 = vshrl.u32 %v4301, 7
      %v4303 = vsub.s32 %v4300, %v4302
      %v4304 = vrot.slane %v4290, %v4303
      %v4305 = vcombine.low %v4297, %v4304
      %v4306 = vcombine.low %v2332, %v2334
      %v4307 = vcombine.low %v2336, %v2338
      %v4309 = vunpack.c.l.s4 1983009808
      %v4310 = vunpack.c.0.s8 %v4309
      %v4311 = vlaneseq
      %v4312 = vshrl.u32 %v4311, 7
      %v4313 = vsub.s32 %v4310, %v4312
      %v4314 = vrot.slane %v4306, %v4313
      %v4316 = vunpack.c.l.s4 1983009808
      %v4317 = vunpack.c.0.s8 %v4316
      %v4318 = vlaneseq
      %v4319 = vshrl.u32 %v4318, 7
      %v4320 = vsub.s32 %v4317, %v4319
      %v4321 = vrot.slane %v4307, %v4320
      %v4322 = vcombine.low %v4314, %v4321
      %v4323 = vcombine.low %v2071, %v2072
      %v4324 = vcombine.low %v2073, %v2074
      %v4326 = vunpack.c.l.s4 1983009808
      %v4327 = vunpack.c.0.s8 %v4326
      %v4328 = vlaneseq
      %v4329 = vshrl.u32 %v4328, 7
      %v4330 = vsub.s32 %v4327, %v4329
      %v4331 = vrot.slane %v4323, %v4330
      %v4333 = vunpack.c.l.s4 1983009808
      %v4334 = vunpack.c.0.s8 %v4333
      %v4335 = vlaneseq
      %v4336 = vshrl.u32 %v4335, 7
      %v4337 = vsub.s32 %v4334, %v4336
      %v4338 = vrot.slane %v4324, %v4337
      %v4339 = vcombine.low %v4331, %v4338
      %v4340 = vcombine.low %v2340, %v2342
      %v4341 = vcombine.low %v2344, %v2346
      %v4343 = vunpack.c.l.s4 1983009808
      %v4344 = vunpack.c.0.s8 %v4343
      %v4345 = vlaneseq
      %v4346 = vshrl.u32 %v4345, 7
      %v4347 = vsub.s32 %v4344, %v4346
      %v4348 = vrot.slane %v4340, %v4347
      %v4350 = vunpack.c.l.s4 1983009808
      %v4351 = vunpack.c.0.s8 %v4350
      %v4352 = vlaneseq
      %v4353 = vshrl.u32 %v4352, 7
      %v4354 = vsub.s32 %v4351, %v4353
      %v4355 = vrot.slane %v4341, %v4354
      %v4356 = vcombine.low %v4348, %v4355
      %v4357 = vcombine.low %v2668, %v2670
      %v4358 = vcombine.low %v2672, %v2674
      %v4360 = vunpack.c.l.s4 1983009808
      %v4361 = vunpack.c.0.s8 %v4360
      %v4362 = vlaneseq
      %v4363 = vshrl.u32 %v4362, 7
      %v4364 = vsub.s32 %v4361, %v4363
      %v4365 = vrot.slane %v4357, %v4364
      %v4367 = vunpack.c.l.s4 1983009808
      %v4368 = vunpack.c.0.s8 %v4367
      %v4369 = vlaneseq
      %v4370 = vshrl.u32 %v4369, 7
      %v4371 = vsub.s32 %v4368, %v4370
      %v4372 = vrot.slane %v4358, %v4371
      %v4373 = vcombine.low %v4365, %v4372
      %v4374 = vcombine.low %v2676, %v2678
      %v4375 = vcombine.low %v2680, %v2682
      %v4377 = vunpack.c.l.s4 1983009808
      %v4378 = vunpack.c.0.s8 %v4377
      %v4379 = vlaneseq
      %v4380 = vshrl.u32 %v4379, 7
      %v4381 = vsub.s32 %v4378, %v4380
      %v4382 = vrot.slane %v4374, %v4381
      %v4384 = vunpack.c.l.s4 1983009808
      %v4385 = vunpack.c.0.s8 %v4384
      %v4386 = vlaneseq
      %v4387 = vshrl.u32 %v4386, 7
      %v4388 = vsub.s32 %v4385, %v4387
      %v4389 = vrot.slane %v4375, %v4388
      %v4390 = vcombine.low %v4382, %v4389
      %v4391 = vcombine.low %v2684, %v2686
      %v4392 = vcombine.low %v2688, %v2690
      %v4394 = vunpack.c.l.s4 1983009808
      %v4395 = vunpack.c.0.s8 %v4394
      %v4396 = vlaneseq
      %v4397 = vshrl.u32 %v4396, 7
      %v4398 = vsub.s32 %v4395, %v4397
      %v4399 = vrot.slane %v4391, %v4398
      %v4401 = vunpack.c.l.s4 1983009808
      %v4402 = vunpack.c.0.s8 %v4401
      %v4403 = vlaneseq
      %v4404 = vshrl.u32 %v4403, 7
      %v4405 = vsub.s32 %v4402, %v4404
      %v4406 = vrot.slane %v4392, %v4405
      %v4407 = vcombine.low %v4399, %v4406
      %v4408 = vcombine.low %v2692, %v2694
      %v4409 = vcombine.low %v2696, %v2698
      %v4411 = vunpack.c.l.s4 1983009808
      %v4412 = vunpack.c.0.s8 %v4411
      %v4413 = vlaneseq
      %v4414 = vshrl.u32 %v4413, 7
      %v4415 = vsub.s32 %v4412, %v4414
      %v4416 = vrot.slane %v4408, %v4415
      %v4418 = vunpack.c.l.s4 1983009808
      %v4419 = vunpack.c.0.s8 %v4418
      %v4420 = vlaneseq
      %v4421 = vshrl.u32 %v4420, 7
      %v4422 = vsub.s32 %v4419, %v4421
      %v4423 = vrot.slane %v4409, %v4422
      %v4424 = vcombine.low %v4416, %v4423
      %v4425 = vcombine.low %v2700, %v2702
      %v4426 = vcombine.low %v2704, %v2706
      %v4428 = vunpack.c.l.s4 1983009808
      %v4429 = vunpack.c.0.s8 %v4428
      %v4430 = vlaneseq
      %v4431 = vshrl.u32 %v4430, 7
      %v4432 = vsub.s32 %v4429, %v4431
      %v4433 = vrot.slane %v4425, %v4432
      %v4435 = vunpack.c.l.s4 1983009808
      %v4436 = vunpack.c.0.s8 %v4435
      %v4437 = vlaneseq
      %v4438 = vshrl.u32 %v4437, 7
      %v4439 = vsub.s32 %v4436, %v4438
      %v4440 = vrot.slane %v4426, %v4439
      %v4441 = vcombine.low %v4433, %v4440
      %v4442 = vcombine.low %v2708, %v2710
      %v4443 = vcombine.low %v2712, %v2714
      %v4445 = vunpack.c.l.s4 1983009808
      %v4446 = vunpack.c.0.s8 %v4445
      %v4447 = vlaneseq
      %v4448 = vshrl.u32 %v4447, 7
      %v4449 = vsub.s32 %v4446, %v4448
      %v4450 = vrot.slane %v4442, %v4449
      %v4452 = vunpack.c.l.s4 1983009808
      %v4453 = vunpack.c.0.s8 %v4452
      %v4454 = vlaneseq
      %v4455 = vshrl.u32 %v4454, 7
      %v4456 = vsub.s32 %v4453, %v4455
      %v4457 = vrot.slane %v4443, %v4456
      %v4458 = vcombine.low %v4450, %v4457
      %v4459 = vcombine.low %v2716, %v2718
      %v4460 = vcombine.low %v2720, %v2722
      %v4462 = vunpack.c.l.s4 1983009808
      %v4463 = vunpack.c.0.s8 %v4462
      %v4464 = vlaneseq
      %v4465 = vshrl.u32 %v4464, 7
      %v4466 = vsub.s32 %v4463, %v4465
      %v4467 = vrot.slane %v4459, %v4466
      %v4469 = vunpack.c.l.s4 1983009808
      %v4470 = vunpack.c.0.s8 %v4469
      %v4471 = vlaneseq
      %v4472 = vshrl.u32 %v4471, 7
      %v4473 = vsub.s32 %v4470, %v4472
      %v4474 = vrot.slane %v4460, %v4473
      %v4475 = vcombine.low %v4467, %v4474
      %v4476 = vcombine.low %v2724, %v2726
      %v4477 = vcombine.low %v2728, %v2730
      %v4479 = vunpack.c.l.s4 1983009808
      %v4480 = vunpack.c.0.s8 %v4479
      %v4481 = vlaneseq
      %v4482 = vshrl.u32 %v4481, 7
      %v4483 = vsub.s32 %v4480, %v4482
      %v4484 = vrot.slane %v4476, %v4483
      %v4486 = vunpack.c.l.s4 1983009808
      %v4487 = vunpack.c.0.s8 %v4486
      %v4488 = vlaneseq
      %v4489 = vshrl.u32 %v4488, 7
      %v4490 = vsub.s32 %v4487, %v4489
      %v4491 = vrot.slane %v4477, %v4490
      %v4492 = vcombine.low %v4484, %v4491
      %v4493 = vcombine.low %v2941, %v2942
      %v4494 = vcombine.low %v2943, %v2944
      %v4496 = vunpack.c.l.s4 1983009808
      %v4497 = vunpack.c.0.s8 %v4496
      %v4498 = vlaneseq
      %v4499 = vshrl.u32 %v4498, 7
      %v4500 = vsub.s32 %v4497, %v4499
      %v4501 = vrot.slane %v4493, %v4500
      %v4503 = vunpack.c.l.s4 1983009808
      %v4504 = vunpack.c.0.s8 %v4503
      %v4505 = vlaneseq
      %v4506 = vshrl.u32 %v4505, 7
      %v4507 = vsub.s32 %v4504, %v4506
      %v4508 = vrot.slane %v4494, %v4507
      %v4509 = vcombine.low %v4501, %v4508
      %v4510 = vcombine.low %v2945, %v2946
      %v4511 = vcombine.low %v2947, %v2948
      %v4513 = vunpack.c.l.s4 1983009808
      %v4514 = vunpack.c.0.s8 %v4513
      %v4515 = vlaneseq
      %v4516 = vshrl.u32 %v4515, 7
      %v4517 = vsub.s32 %v4514, %v4516
      %v4518 = vrot.slane %v4510, %v4517
      %v4520 = vunpack.c.l.s4 1983009808
      %v4521 = vunpack.c.0.s8 %v4520
      %v4522 = vlaneseq
      %v4523 = vshrl.u32 %v4522, 7
      %v4524 = vsub.s32 %v4521, %v4523
      %v4525 = vrot.slane %v4511, %v4524
      %v4526 = vcombine.low %v4518, %v4525
      %v4527 = vcombine.low %v2949, %v2950
      %v4528 = vcombine.low %v2951, %v2952
      %v4530 = vunpack.c.l.s4 1983009808
      %v4531 = vunpack.c.0.s8 %v4530
      %v4532 = vlaneseq
      %v4533 = vshrl.u32 %v4532, 7
      %v4534 = vsub.s32 %v4531, %v4533
      %v4535 = vrot.slane %v4527, %v4534
      %v4537 = vunpack.c.l.s4 1983009808
      %v4538 = vunpack.c.0.s8 %v4537
      %v4539 = vlaneseq
      %v4540 = vshrl.u32 %v4539, 7
      %v4541 = vsub.s32 %v4538, %v4540
      %v4542 = vrot.slane %v4528, %v4541
      %v4543 = vcombine.low %v4535, %v4542
      %v4544 = vcombine.low %v2953, %v2954
      %v4545 = vcombine.low %v2955, %v2956
      %v4547 = vunpack.c.l.s4 1983009808
      %v4548 = vunpack.c.0.s8 %v4547
      %v4549 = vlaneseq
      %v4550 = vshrl.u32 %v4549, 7
      %v4551 = vsub.s32 %v4548, %v4550
      %v4552 = vrot.slane %v4544, %v4551
      %v4554 = vunpack.c.l.s4 1983009808
      %v4555 = vunpack.c.0.s8 %v4554
      %v4556 = vlaneseq
      %v4557 = vshrl.u32 %v4556, 7
      %v4558 = vsub.s32 %v4555, %v4557
      %v4559 = vrot.slane %v4545, %v4558
      %v4560 = vcombine.low %v4552, %v4559
      %v4561 = vcombine.low %v2957, %v2958
      %v4562 = vcombine.low %v2959, %v2960
      %v4564 = vunpack.c.l.s4 1983009808
      %v4565 = vunpack.c.0.s8 %v4564
      %v4566 = vlaneseq
      %v4567 = vshrl.u32 %v4566, 7
      %v4568 = vsub.s32 %v4565, %v4567
      %v4569 = vrot.slane %v4561, %v4568
      %v4571 = vunpack.c.l.s4 1983009808
      %v4572 = vunpack.c.0.s8 %v4571
      %v4573 = vlaneseq
      %v4574 = vshrl.u32 %v4573, 7
      %v4575 = vsub.s32 %v4572, %v4574
      %v4576 = vrot.slane %v4562, %v4575
      %v4577 = vcombine.low %v4569, %v4576
      %v4578 = vcombine.low %v2961, %v2962
      %v4579 = vcombine.low %v2963, %v2964
      %v4581 = vunpack.c.l.s4 1983009808
      %v4582 = vunpack.c.0.s8 %v4581
      %v4583 = vlaneseq
      %v4584 = vshrl.u32 %v4583, 7
      %v4585 = vsub.s32 %v4582, %v4584
      %v4586 = vrot.slane %v4578, %v4585
      %v4588 = vunpack.c.l.s4 1983009808
      %v4589 = vunpack.c.0.s8 %v4588
      %v4590 = vlaneseq
      %v4591 = vshrl.u32 %v4590, 7
      %v4592 = vsub.s32 %v4589, %v4591
      %v4593 = vrot.slane %v4579, %v4592
      %v4594 = vcombine.low %v4586, %v4593
      %v4595 = vcombine.low %v2965, %v2966
      %v4596 = vcombine.low %v2967, %v2968
      %v4598 = vunpack.c.l.s4 1983009808
      %v4599 = vunpack.c.0.s8 %v4598
      %v4600 = vlaneseq
      %v4601 = vshrl.u32 %v4600, 7
      %v4602 = vsub.s32 %v4599, %v4601
      %v4603 = vrot.slane %v4595, %v4602
      %v4605 = vunpack.c.l.s4 1983009808
      %v4606 = vunpack.c.0.s8 %v4605
      %v4607 = vlaneseq
      %v4608 = vshrl.u32 %v4607, 7
      %v4609 = vsub.s32 %v4606, %v4608
      %v4610 = vrot.slane %v4596, %v4609
      %v4611 = vcombine.low %v4603, %v4610
      %v4612 = vcombine.low %v2969, %v2970
      %v4613 = vcombine.low %v2971, %v2972
      %v4615 = vunpack.c.l.s4 1983009808
      %v4616 = vunpack.c.0.s8 %v4615
      %v4617 = vlaneseq
      %v4618 = vshrl.u32 %v4617, 7
      %v4619 = vsub.s32 %v4616, %v4618
      %v4620 = vrot.slane %v4612, %v4619
      %v4622 = vunpack.c.l.s4 1983009808
      %v4623 = vunpack.c.0.s8 %v4622
      %v4624 = vlaneseq
      %v4625 = vshrl.u32 %v4624, 7
      %v4626 = vsub.s32 %v4623, %v4625
      %v4627 = vrot.slane %v4613, %v4626
      %v4628 = vcombine.low %v4620, %v4627
      %v4629 = vcombine.low %v2973, %v2974
      %v4630 = vcombine.low %v2975, %v2976
      %v4632 = vunpack.c.l.s4 1983009808
      %v4633 = vunpack.c.0.s8 %v4632
      %v4634 = vlaneseq
      %v4635 = vshrl.u32 %v4634, 7
      %v4636 = vsub.s32 %v4633, %v4635
      %v4637 = vrot.slane %v4629, %v4636
      %v4639 = vunpack.c.l.s4 1983009808
      %v4640 = vunpack.c.0.s8 %v4639
      %v4641 = vlaneseq
      %v4642 = vshrl.u32 %v4641, 7
      %v4643 = vsub.s32 %v4640, %v4642
      %v4644 = vrot.slane %v4630, %v4643
      %v4645 = vcombine.low %v4637, %v4644
      %v4646 = vcombine.low %v2977, %v2978
      %v4647 = vcombine.low %v2979, %v2980
      %v4649 = vunpack.c.l.s4 1983009808
      %v4650 = vunpack.c.0.s8 %v4649
      %v4651 = vlaneseq
      %v4652 = vshrl.u32 %v4651, 7
      %v4653 = vsub.s32 %v4650, %v4652
      %v4654 = vrot.slane %v4646, %v4653
      %v4656 = vunpack.c.l.s4 1983009808
      %v4657 = vunpack.c.0.s8 %v4656
      %v4658 = vlaneseq
      %v4659 = vshrl.u32 %v4658, 7
      %v4660 = vsub.s32 %v4657, %v4659
      %v4661 = vrot.slane %v4647, %v4660
      %v4662 = vcombine.low %v4654, %v4661
      %v4663 = vcombine.low %v2981, %v2982
      %v4664 = vcombine.low %v2983, %v2984
      %v4666 = vunpack.c.l.s4 1983009808
      %v4667 = vunpack.c.0.s8 %v4666
      %v4668 = vlaneseq
      %v4669 = vshrl.u32 %v4668, 7
      %v4670 = vsub.s32 %v4667, %v4669
      %v4671 = vrot.slane %v4663, %v4670
      %v4673 = vunpack.c.l.s4 1983009808
      %v4674 = vunpack.c.0.s8 %v4673
      %v4675 = vlaneseq
      %v4676 = vshrl.u32 %v4675, 7
      %v4677 = vsub.s32 %v4674, %v4676
      %v4678 = vrot.slane %v4664, %v4677
      %v4679 = vcombine.low %v4671, %v4678
      %v4680 = vcombine.low %v2985, %v2986
      %v4681 = vcombine.low %v2987, %v2988
      %v4683 = vunpack.c.l.s4 1983009808
      %v4684 = vunpack.c.0.s8 %v4683
      %v4685 = vlaneseq
      %v4686 = vshrl.u32 %v4685, 7
      %v4687 = vsub.s32 %v4684, %v4686
      %v4688 = vrot.slane %v4680, %v4687
      %v4690 = vunpack.c.l.s4 1983009808
      %v4691 = vunpack.c.0.s8 %v4690
      %v4692 = vlaneseq
      %v4693 = vshrl.u32 %v4692, 7
      %v4694 = vsub.s32 %v4691, %v4693
      %v4695 = vrot.slane %v4681, %v4694
      %v4696 = vcombine.low %v4688, %v4695
      %v4697 = vcombine.low %v2989, %v2990
      %v4698 = vcombine.low %v2991, %v2992
      %v4700 = vunpack.c.l.s4 1983009808
      %v4701 = vunpack.c.0.s8 %v4700
      %v4702 = vlaneseq
      %v4703 = vshrl.u32 %v4702, 7
      %v4704 = vsub.s32 %v4701, %v4703
      %v4705 = vrot.slane %v4697, %v4704
      %v4707 = vunpack.c.l.s4 1983009808
      %v4708 = vunpack.c.0.s8 %v4707
      %v4709 = vlaneseq
      %v4710 = vshrl.u32 %v4709, 7
      %v4711 = vsub.s32 %v4708, %v4710
      %v4712 = vrot.slane %v4698, %v4711
      %v4713 = vcombine.low %v4705, %v4712
      %v4714 = vcombine.low %v2993, %v2994
      %v4715 = vcombine.low %v2995, %v2996
      %v4717 = vunpack.c.l.s4 1983009808
      %v4718 = vunpack.c.0.s8 %v4717
      %v4719 = vlaneseq
      %v4720 = vshrl.u32 %v4719, 7
      %v4721 = vsub.s32 %v4718, %v4720
      %v4722 = vrot.slane %v4714, %v4721
      %v4724 = vunpack.c.l.s4 1983009808
      %v4725 = vunpack.c.0.s8 %v4724
      %v4726 = vlaneseq
      %v4727 = vshrl.u32 %v4726, 7
      %v4728 = vsub.s32 %v4725, %v4727
      %v4729 = vrot.slane %v4715, %v4728
      %v4730 = vcombine.low %v4722, %v4729
      %v4731 = vcombine.low %v2997, %v2998
      %v4732 = vcombine.low %v2999, %v3000
      %v4734 = vunpack.c.l.s4 1983009808
      %v4735 = vunpack.c.0.s8 %v4734
      %v4736 = vlaneseq
      %v4737 = vshrl.u32 %v4736, 7
      %v4738 = vsub.s32 %v4735, %v4737
      %v4739 = vrot.slane %v4731, %v4738
      %v4741 = vunpack.c.l.s4 1983009808
      %v4742 = vunpack.c.0.s8 %v4741
      %v4743 = vlaneseq
      %v4744 = vshrl.u32 %v4743, 7
      %v4745 = vsub.s32 %v4742, %v4744
      %v4746 = vrot.slane %v4732, %v4745
      %v4747 = vcombine.low %v4739, %v4746
      %v4748 = vcombine.low %v3001, %v3002
      %v4749 = vcombine.low %v3003, %v3004
      %v4751 = vunpack.c.l.s4 1983009808
      %v4752 = vunpack.c.0.s8 %v4751
      %v4753 = vlaneseq
      %v4754 = vshrl.u32 %v4753, 7
      %v4755 = vsub.s32 %v4752, %v4754
      %v4756 = vrot.slane %v4748, %v4755
      %v4758 = vunpack.c.l.s4 1983009808
      %v4759 = vunpack.c.0.s8 %v4758
      %v4760 = vlaneseq
      %v4761 = vshrl.u32 %v4760, 7
      %v4762 = vsub.s32 %v4759, %v4761
      %v4763 = vrot.slane %v4749, %v4762
      %v4764 = vcombine.low %v4756, %v4763
      %v4861 = vpack.c.bf16 %v3149, %v3149
      %v4862 = vpack.c.bf16 %v3166, %v3166
      %v4863 = vpack.c.bf16 %v3183, %v3183
      %v4864 = vpack.c.bf16 %v3200, %v3200
      %v4865 = vpack.c.bf16 %v3217, %v3217
      %v4866 = vpack.c.bf16 %v3234, %v3234
      %v4867 = vpack.c.bf16 %v3251, %v3251
      %v4868 = vpack.c.bf16 %v3268, %v3268
      %v4869 = vpack.c.bf16 %v3285, %v3285
      %v4870 = vpack.c.bf16 %v3302, %v3302
      %v4871 = vpack.c.bf16 %v3319, %v3319
      %v4872 = vpack.c.bf16 %v3336, %v3336
      %v4873 = vpack.c.bf16 %v3353, %v3353
      %v4874 = vpack.c.bf16 %v3370, %v3370
      %v4875 = vpack.c.bf16 %v3387, %v3387
      %v4876 = vpack.c.bf16 %v3404, %v3404
      %v4877 = vpack.c.bf16 %v3421, %v3421
      %v4878 = vpack.c.bf16 %v3438, %v3438
      %v4879 = vpack.c.bf16 %v3455, %v3455
      %v4880 = vpack.c.bf16 %v3472, %v3472
      %v4881 = vpack.c.bf16 %v3489, %v3489
      %v4882 = vpack.c.bf16 %v3506, %v3506
      %v4883 = vpack.c.bf16 %v3523, %v3523
      %v4884 = vpack.c.bf16 %v3540, %v3540
      %v4885 = vpack.c.bf16 %v3557, %v3557
      %v4886 = vpack.c.bf16 %v3574, %v3574
      %v4887 = vpack.c.bf16 %v3591, %v3591
      %v4888 = vpack.c.bf16 %v3608, %v3608
      %v4889 = vpack.c.bf16 %v3625, %v3625
      %v4890 = vpack.c.bf16 %v3642, %v3642
      %v4891 = vpack.c.bf16 %v3659, %v3659
      %v4892 = vpack.c.bf16 %v3676, %v3676
      %v4893 = vpack.c.bf16 %v3693, %v3693
      %v4894 = vpack.c.bf16 %v3710, %v3710
      %v4895 = vpack.c.bf16 %v3727, %v3727
      %v4896 = vpack.c.bf16 %v3744, %v3744
      %v4897 = vpack.c.bf16 %v3761, %v3761
      %v4898 = vpack.c.bf16 %v3778, %v3778
      %v4899 = vpack.c.bf16 %v3795, %v3795
      %v4900 = vpack.c.bf16 %v3812, %v3812
      %v4901 = vpack.c.bf16 %v3829, %v3829
      %v4902 = vpack.c.bf16 %v3846, %v3846
      %v4903 = vpack.c.bf16 %v3863, %v3863
      %v4904 = vpack.c.bf16 %v3880, %v3880
      %v4905 = vpack.c.bf16 %v3897, %v3897
      %v4906 = vpack.c.bf16 %v3914, %v3914
      %v4907 = vpack.c.bf16 %v3931, %v3931
      %v4908 = vpack.c.bf16 %v3948, %v3948
      %v4909 = vpack.c.bf16 %v3965, %v3965
      %v4910 = vpack.c.bf16 %v3982, %v3982
      %v4911 = vpack.c.bf16 %v3999, %v3999
      %v4912 = vpack.c.bf16 %v4016, %v4016
      %v4913 = vpack.c.bf16 %v4033, %v4033
      %v4914 = vpack.c.bf16 %v4050, %v4050
      %v4915 = vpack.c.bf16 %v4067, %v4067
      %v4916 = vpack.c.bf16 %v4084, %v4084
      %v4917 = vpack.c.bf16 %v4101, %v4101
      %v4918 = vpack.c.bf16 %v4118, %v4118
      %v4919 = vpack.c.bf16 %v4135, %v4135
      %v4920 = vpack.c.bf16 %v4152, %v4152
      %v4921 = vpack.c.bf16 %v4169, %v4169
      %v4922 = vpack.c.bf16 %v4186, %v4186
      %v4923 = vpack.c.bf16 %v4203, %v4203
      %v4924 = vpack.c.bf16 %v4220, %v4220
      %v4925 = vpack.c.bf16 %v4237, %v4237
      %v4926 = vpack.c.bf16 %v4254, %v4254
      %v4927 = vpack.c.bf16 %v4271, %v4271
      %v4928 = vpack.c.bf16 %v4288, %v4288
      %v4929 = vpack.c.bf16 %v4305, %v4305
      %v4930 = vpack.c.bf16 %v4322, %v4322
      %v4931 = vpack.c.bf16 %v4339, %v4339
      %v4932 = vpack.c.bf16 %v4356, %v4356
      %v4933 = vpack.c.bf16 %v4373, %v4373
      %v4934 = vpack.c.bf16 %v4390, %v4390
      %v4935 = vpack.c.bf16 %v4407, %v4407
      %v4936 = vpack.c.bf16 %v4424, %v4424
      %v4937 = vpack.c.bf16 %v4441, %v4441
      %v4938 = vpack.c.bf16 %v4458, %v4458
      %v4939 = vpack.c.bf16 %v4475, %v4475
      %v4940 = vpack.c.bf16 %v4492, %v4492
      %v4941 = vpack.c.bf16 %v4509, %v4509
      %v4942 = vpack.c.bf16 %v4526, %v4526
      %v4943 = vpack.c.bf16 %v4543, %v4543
      %v4944 = vpack.c.bf16 %v4560, %v4560
      %v4945 = vpack.c.bf16 %v4577, %v4577
      %v4946 = vpack.c.bf16 %v4594, %v4594
      %v4947 = vpack.c.bf16 %v4611, %v4611
      %v4948 = vpack.c.bf16 %v4628, %v4628
      %v4949 = vpack.c.bf16 %v4645, %v4645
      %v4950 = vpack.c.bf16 %v4662, %v4662
      %v4951 = vpack.c.bf16 %v4679, %v4679
      %v4952 = vpack.c.bf16 %v4696, %v4696
      %v4953 = vpack.c.bf16 %v4713, %v4713
      %v4954 = vpack.c.bf16 %v4730, %v4730
      %v4955 = vpack.c.bf16 %v4747, %v4747
      %v4956 = vpack.c.bf16 %v4764, %v4764
      %5037 = vrot.lane.b32.xlu0 %v4861, 4
      %v5038 = vpop.permute.xlu0 %5037
      %5039 = vrot.lane.b32.xlu0 %v4862, 4
      %v5040 = vpop.permute.xlu0 %5039
      %5041 = vrot.lane.b32.xlu0 %v4863, 4
      %v5042 = vpop.permute.xlu0 %5041
      %5043 = vrot.lane.b32.xlu0 %v4864, 4
      %v5044 = vpop.permute.xlu0 %5043
      %5045 = vrot.lane.b32.xlu0 %v4865, 4
      %v5046 = vpop.permute.xlu0 %5045
      %5047 = vrot.lane.b32.xlu0 %v4866, 4
      %v5048 = vpop.permute.xlu0 %5047
      %5049 = vrot.lane.b32.xlu0 %v4867, 4
      %v5050 = vpop.permute.xlu0 %5049
      %5051 = vrot.lane.b32.xlu0 %v4868, 4
      %v5052 = vpop.permute.xlu0 %5051
      %5053 = vrot.lane.b32.xlu0 %v4869, 4
      %v5054 = vpop.permute.xlu0 %5053
      %5055 = vrot.lane.b32.xlu0 %v4870, 4
      %v5056 = vpop.permute.xlu0 %5055
      %5057 = vrot.lane.b32.xlu0 %v4871, 4
      %v5058 = vpop.permute.xlu0 %5057
      %5059 = vrot.lane.b32.xlu0 %v4872, 4
      %v5060 = vpop.permute.xlu0 %5059
      %5061 = vrot.lane.b32.xlu0 %v4873, 4
      %v5062 = vpop.permute.xlu0 %5061
      %5063 = vrot.lane.b32.xlu0 %v4874, 4
      %v5064 = vpop.permute.xlu0 %5063
      %5065 = vrot.lane.b32.xlu0 %v4875, 4
      %v5066 = vpop.permute.xlu0 %5065
      %5067 = vrot.lane.b32.xlu0 %v4876, 4
      %v5068 = vpop.permute.xlu0 %5067
      %5069 = vrot.lane.b32.xlu0 %v4877, 4
      %v5070 = vpop.permute.xlu0 %5069
      %5071 = vrot.lane.b32.xlu0 %v4878, 4
      %v5072 = vpop.permute.xlu0 %5071
      %5073 = vrot.lane.b32.xlu0 %v4879, 4
      %v5074 = vpop.permute.xlu0 %5073
      %5075 = vrot.lane.b32.xlu0 %v4880, 4
      %v5076 = vpop.permute.xlu0 %5075
      %5077 = vrot.lane.b32.xlu0 %v4881, 4
      %v5078 = vpop.permute.xlu0 %5077
      %5079 = vrot.lane.b32.xlu0 %v4882, 4
      %v5080 = vpop.permute.xlu0 %5079
      %5081 = vrot.lane.b32.xlu0 %v4883, 4
      %v5082 = vpop.permute.xlu0 %5081
      %5083 = vrot.lane.b32.xlu0 %v4884, 4
      %v5084 = vpop.permute.xlu0 %5083
      %5085 = vrot.lane.b32.xlu0 %v4885, 4
      %v5086 = vpop.permute.xlu0 %5085
      %5087 = vrot.lane.b32.xlu0 %v4886, 4
      %v5088 = vpop.permute.xlu0 %5087
      %5089 = vrot.lane.b32.xlu0 %v4887, 4
      %v5090 = vpop.permute.xlu0 %5089
      %5091 = vrot.lane.b32.xlu0 %v4888, 4
      %v5092 = vpop.permute.xlu0 %5091
      %5093 = vrot.lane.b32.xlu0 %v4889, 4
      %v5094 = vpop.permute.xlu0 %5093
      %5095 = vrot.lane.b32.xlu0 %v4890, 4
      %v5096 = vpop.permute.xlu0 %5095
      %5097 = vrot.lane.b32.xlu0 %v4891, 4
      %v5098 = vpop.permute.xlu0 %5097
      %5099 = vrot.lane.b32.xlu0 %v4892, 4
      %v5100 = vpop.permute.xlu0 %5099
      %5101 = vrot.lane.b32.xlu0 %v4893, 4
      %v5102 = vpop.permute.xlu0 %5101
      %5103 = vrot.lane.b32.xlu0 %v4894, 4
      %v5104 = vpop.permute.xlu0 %5103
      %5105 = vrot.lane.b32.xlu0 %v4895, 4
      %v5106 = vpop.permute.xlu0 %5105
      %5107 = vrot.lane.b32.xlu0 %v4896, 4
      %v5108 = vpop.permute.xlu0 %5107
      %5109 = vrot.lane.b32.xlu0 %v4897, 4
      %v5110 = vpop.permute.xlu0 %5109
      %5111 = vrot.lane.b32.xlu0 %v4898, 4
      %v5112 = vpop.permute.xlu0 %5111
      %5113 = vrot.lane.b32.xlu0 %v4899, 4
      %v5114 = vpop.permute.xlu0 %5113
      %5115 = vrot.lane.b32.xlu0 %v4900, 4
      %v5116 = vpop.permute.xlu0 %5115
      %5117 = vrot.lane.b32.xlu0 %v4901, 4
      %v5118 = vpop.permute.xlu0 %5117
      %5119 = vrot.lane.b32.xlu0 %v4902, 4
      %v5120 = vpop.permute.xlu0 %5119
      %5121 = vrot.lane.b32.xlu0 %v4903, 4
      %v5122 = vpop.permute.xlu0 %5121
      %5123 = vrot.lane.b32.xlu0 %v4904, 4
      %v5124 = vpop.permute.xlu0 %5123
      %5125 = vrot.lane.b32.xlu0 %v4905, 4
      %v5126 = vpop.permute.xlu0 %5125
      %5127 = vrot.lane.b32.xlu0 %v4906, 4
      %v5128 = vpop.permute.xlu0 %5127
      %5129 = vrot.lane.b32.xlu0 %v4907, 4
      %v5130 = vpop.permute.xlu0 %5129
      %5131 = vrot.lane.b32.xlu0 %v4908, 4
      %v5132 = vpop.permute.xlu0 %5131
      %5133 = vrot.lane.b32.xlu0 %v4909, 4
      %v5134 = vpop.permute.xlu0 %5133
      %5135 = vrot.lane.b32.xlu0 %v4910, 4
      %v5136 = vpop.permute.xlu0 %5135
      %5137 = vrot.lane.b32.xlu0 %v4911, 4
      %v5138 = vpop.permute.xlu0 %5137
      %5139 = vrot.lane.b32.xlu0 %v4912, 4
      %v5140 = vpop.permute.xlu0 %5139
      %5141 = vrot.lane.b32.xlu0 %v4913, 4
      %v5142 = vpop.permute.xlu0 %5141
      %5143 = vrot.lane.b32.xlu0 %v4914, 4
      %v5144 = vpop.permute.xlu0 %5143
      %5145 = vrot.lane.b32.xlu0 %v4915, 4
      %v5146 = vpop.permute.xlu0 %5145
      %5147 = vrot.lane.b32.xlu0 %v4916, 4
      %v5148 = vpop.permute.xlu0 %5147
      %5149 = vrot.lane.b32.xlu0 %v4917, 4
      %v5150 = vpop.permute.xlu0 %5149
      %5151 = vrot.lane.b32.xlu0 %v4918, 4
      %v5152 = vpop.permute.xlu0 %5151
      %5153 = vrot.lane.b32.xlu0 %v4919, 4
      %v5154 = vpop.permute.xlu0 %5153
      %5155 = vrot.lane.b32.xlu0 %v4920, 4
      %v5156 = vpop.permute.xlu0 %5155
      %5157 = vrot.lane.b32.xlu0 %v4921, 4
      %v5158 = vpop.permute.xlu0 %5157
      %5159 = vrot.lane.b32.xlu0 %v4922, 4
      %v5160 = vpop.permute.xlu0 %5159
      %5161 = vrot.lane.b32.xlu0 %v4923, 4
      %v5162 = vpop.permute.xlu0 %5161
      %5163 = vrot.lane.b32.xlu0 %v4924, 4
      %v5164 = vpop.permute.xlu0 %5163
      %5165 = vrot.lane.b32.xlu0 %v4925, 4
      %v5166 = vpop.permute.xlu0 %5165
      %5167 = vrot.lane.b32.xlu0 %v4926, 4
      %v5168 = vpop.permute.xlu0 %5167
      %5169 = vrot.lane.b32.xlu0 %v4927, 4
      %v5170 = vpop.permute.xlu0 %5169
      %5171 = vrot.lane.b32.xlu0 %v4928, 4
      %v5172 = vpop.permute.xlu0 %5171
      %5173 = vrot.lane.b32.xlu0 %v4929, 4
      %v5174 = vpop.permute.xlu0 %5173
      %5175 = vrot.lane.b32.xlu0 %v4930, 4
      %v5176 = vpop.permute.xlu0 %5175
      %5177 = vrot.lane.b32.xlu0 %v4931, 4
      %v5178 = vpop.permute.xlu0 %5177
      %5179 = vrot.lane.b32.xlu0 %v4932, 4
      %v5180 = vpop.permute.xlu0 %5179
      %5181 = vrot.lane.b32.xlu0 %v4933, 4
      %v5182 = vpop.permute.xlu0 %5181
      %5183 = vrot.lane.b32.xlu0 %v4934, 4
      %v5184 = vpop.permute.xlu0 %5183
      %5185 = vrot.lane.b32.xlu0 %v4935, 4
      %v5186 = vpop.permute.xlu0 %5185
      %5187 = vrot.lane.b32.xlu0 %v4936, 4
      %v5188 = vpop.permute.xlu0 %5187
      %5189 = vrot.lane.b32.xlu0 %v4937, 4
      %v5190 = vpop.permute.xlu0 %5189
      %5191 = vrot.lane.b32.xlu0 %v4938, 4
      %v5192 = vpop.permute.xlu0 %5191
      %5193 = vrot.lane.b32.xlu0 %v4939, 4
      %v5194 = vpop.permute.xlu0 %5193
      %5195 = vrot.lane.b32.xlu0 %v4940, 4
      %v5196 = vpop.permute.xlu0 %5195
      %5198 = vrot.lane.b32.xlu0 %v4862, 8
      %v5199 = vpop.permute.xlu0 %5198
      %5200 = vrot.lane.b32.xlu0 %v4863, 8
      %v5201 = vpop.permute.xlu0 %5200
      %5202 = vrot.lane.b32.xlu0 %v4864, 8
      %v5203 = vpop.permute.xlu0 %5202
      %5204 = vrot.lane.b32.xlu0 %v4865, 8
      %v5205 = vpop.permute.xlu0 %5204
      %5206 = vrot.lane.b32.xlu0 %v4866, 8
      %v5207 = vpop.permute.xlu0 %5206
      %5208 = vrot.lane.b32.xlu0 %v4867, 8
      %v5209 = vpop.permute.xlu0 %5208
      %5210 = vrot.lane.b32.xlu0 %v4868, 8
      %v5211 = vpop.permute.xlu0 %5210
      %5212 = vrot.lane.b32.xlu0 0, 8
      %v5213 = vpop.permute.xlu0 %5212
      %5214 = vrot.lane.b32.xlu0 %v4870, 8
      %v5215 = vpop.permute.xlu0 %5214
      %5216 = vrot.lane.b32.xlu0 %v4871, 8
      %v5217 = vpop.permute.xlu0 %5216
      %5218 = vrot.lane.b32.xlu0 %v4872, 8
      %v5219 = vpop.permute.xlu0 %5218
      %5220 = vrot.lane.b32.xlu0 %v4873, 8
      %v5221 = vpop.permute.xlu0 %5220
      %5222 = vrot.lane.b32.xlu0 %v4874, 8
      %v5223 = vpop.permute.xlu0 %5222
      %5224 = vrot.lane.b32.xlu0 %v4875, 8
      %v5225 = vpop.permute.xlu0 %5224
      %5226 = vrot.lane.b32.xlu0 %v4876, 8
      %v5227 = vpop.permute.xlu0 %5226
      %5228 = vrot.lane.b32.xlu0 %v4878, 8
      %v5229 = vpop.permute.xlu0 %5228
      %5230 = vrot.lane.b32.xlu0 %v4879, 8
      %v5231 = vpop.permute.xlu0 %5230
      %5232 = vrot.lane.b32.xlu0 %v4880, 8
      %v5233 = vpop.permute.xlu0 %5232
      %5234 = vrot.lane.b32.xlu0 %v4881, 8
      %v5235 = vpop.permute.xlu0 %5234
      %5236 = vrot.lane.b32.xlu0 %v4882, 8
      %v5237 = vpop.permute.xlu0 %5236
      %5238 = vrot.lane.b32.xlu0 %v4883, 8
      %v5239 = vpop.permute.xlu0 %5238
      %5240 = vrot.lane.b32.xlu0 %v4884, 8
      %v5241 = vpop.permute.xlu0 %5240
      %5242 = vrot.lane.b32.xlu0 %v4886, 8
      %v5243 = vpop.permute.xlu0 %5242
      %5244 = vrot.lane.b32.xlu0 %v4887, 8
      %v5245 = vpop.permute.xlu0 %5244
      %5246 = vrot.lane.b32.xlu0 %v4888, 8
      %v5247 = vpop.permute.xlu0 %5246
      %5248 = vrot.lane.b32.xlu0 %v4889, 8
      %v5249 = vpop.permute.xlu0 %5248
      %5250 = vrot.lane.b32.xlu0 %v4890, 8
      %v5251 = vpop.permute.xlu0 %5250
      %5252 = vrot.lane.b32.xlu0 %v4891, 8
      %v5253 = vpop.permute.xlu0 %5252
      %5254 = vrot.lane.b32.xlu0 %v4892, 8
      %v5255 = vpop.permute.xlu0 %5254
      %5256 = vrot.lane.b32.xlu0 %v4894, 8
      %v5257 = vpop.permute.xlu0 %5256
      %5258 = vrot.lane.b32.xlu0 %v4895, 8
      %v5259 = vpop.permute.xlu0 %5258
      %5260 = vrot.lane.b32.xlu0 %v4896, 8
      %v5261 = vpop.permute.xlu0 %5260
      %5262 = vrot.lane.b32.xlu0 %v4897, 8
      %v5263 = vpop.permute.xlu0 %5262
      %5264 = vrot.lane.b32.xlu0 %v4898, 8
      %v5265 = vpop.permute.xlu0 %5264
      %5266 = vrot.lane.b32.xlu0 %v4899, 8
      %v5267 = vpop.permute.xlu0 %5266
      %5268 = vrot.lane.b32.xlu0 %v4900, 8
      %v5269 = vpop.permute.xlu0 %5268
      %5270 = vrot.lane.b32.xlu0 %v4902, 8
      %v5271 = vpop.permute.xlu0 %5270
      %5272 = vrot.lane.b32.xlu0 %v4903, 8
      %v5273 = vpop.permute.xlu0 %5272
      %5274 = vrot.lane.b32.xlu0 %v4904, 8
      %v5275 = vpop.permute.xlu0 %5274
      %5276 = vrot.lane.b32.xlu0 %v4905, 8
      %v5277 = vpop.permute.xlu0 %5276
      %5278 = vrot.lane.b32.xlu0 %v4906, 8
      %v5279 = vpop.permute.xlu0 %5278
      %5280 = vrot.lane.b32.xlu0 %v4907, 8
      %v5281 = vpop.permute.xlu0 %5280
      %5282 = vrot.lane.b32.xlu0 %v4908, 8
      %v5283 = vpop.permute.xlu0 %5282
      %5284 = vrot.lane.b32.xlu0 %v4910, 8
      %v5285 = vpop.permute.xlu0 %5284
      %5286 = vrot.lane.b32.xlu0 %v4911, 8
      %v5287 = vpop.permute.xlu0 %5286
      %5288 = vrot.lane.b32.xlu0 %v4912, 8
      %v5289 = vpop.permute.xlu0 %5288
      %5290 = vrot.lane.b32.xlu0 %v4913, 8
      %v5291 = vpop.permute.xlu0 %5290
      %5292 = vrot.lane.b32.xlu0 %v4914, 8
      %v5293 = vpop.permute.xlu0 %5292
      %5294 = vrot.lane.b32.xlu0 %v4915, 8
      %v5295 = vpop.permute.xlu0 %5294
      %5296 = vrot.lane.b32.xlu0 %v4916, 8
      %v5297 = vpop.permute.xlu0 %5296
      %5298 = vrot.lane.b32.xlu0 %v4918, 8
      %v5299 = vpop.permute.xlu0 %5298
      %5300 = vrot.lane.b32.xlu0 %v4919, 8
      %v5301 = vpop.permute.xlu0 %5300
      %5302 = vrot.lane.b32.xlu0 %v4920, 8
      %v5303 = vpop.permute.xlu0 %5302
      %5304 = vrot.lane.b32.xlu0 %v4921, 8
      %v5305 = vpop.permute.xlu0 %5304
      %5306 = vrot.lane.b32.xlu0 %v4922, 8
      %v5307 = vpop.permute.xlu0 %5306
      %5308 = vrot.lane.b32.xlu0 %v4923, 8
      %v5309 = vpop.permute.xlu0 %5308
      %5310 = vrot.lane.b32.xlu0 %v4924, 8
      %v5311 = vpop.permute.xlu0 %5310
      %5312 = vrot.lane.b32.xlu0 %v4926, 8
      %v5313 = vpop.permute.xlu0 %5312
      %5314 = vrot.lane.b32.xlu0 %v4927, 8
      %v5315 = vpop.permute.xlu0 %5314
      %5316 = vrot.lane.b32.xlu0 %v4928, 8
      %v5317 = vpop.permute.xlu0 %5316
      %5318 = vrot.lane.b32.xlu0 %v4929, 8
      %v5319 = vpop.permute.xlu0 %5318
      %5320 = vrot.lane.b32.xlu0 %v4930, 8
      %v5321 = vpop.permute.xlu0 %5320
      %5322 = vrot.lane.b32.xlu0 %v4931, 8
      %v5323 = vpop.permute.xlu0 %5322
      %5324 = vrot.lane.b32.xlu0 %v4932, 8
      %v5325 = vpop.permute.xlu0 %5324
      %5326 = vrot.lane.b32.xlu0 %v4934, 8
      %v5327 = vpop.permute.xlu0 %5326
      %5328 = vrot.lane.b32.xlu0 %v4935, 8
      %v5329 = vpop.permute.xlu0 %5328
      %5330 = vrot.lane.b32.xlu0 %v4936, 8
      %v5331 = vpop.permute.xlu0 %5330
      %5332 = vrot.lane.b32.xlu0 %v4937, 8
      %v5333 = vpop.permute.xlu0 %5332
      %5334 = vrot.lane.b32.xlu0 %v4938, 8
      %v5335 = vpop.permute.xlu0 %5334
      %5336 = vrot.lane.b32.xlu0 %v4939, 8
      %v5337 = vpop.permute.xlu0 %5336
      %5338 = vrot.lane.b32.xlu0 %v4940, 8
      %v5339 = vpop.permute.xlu0 %5338
      %5347 = vrot.lane.b32.xlu0 0, 12
      %v5348 = vpop.permute.xlu0 %5347
      %5349 = vrot.lane.b32.xlu0 %v4869, 12
      %v5350 = vpop.permute.xlu0 %5349
      %5351 = vrot.lane.b32.xlu0 %v4870, 12
      %v5352 = vpop.permute.xlu0 %5351
      %5353 = vrot.lane.b32.xlu0 %v4871, 12
      %v5354 = vpop.permute.xlu0 %5353
      %5355 = vrot.lane.b32.xlu0 %v4872, 12
      %v5356 = vpop.permute.xlu0 %5355
      %5357 = vrot.lane.b32.xlu0 %v4873, 12
      %v5358 = vpop.permute.xlu0 %5357
      %5359 = vrot.lane.b32.xlu0 %v4874, 12
      %v5360 = vpop.permute.xlu0 %5359
      %5361 = vrot.lane.b32.xlu0 %v4875, 12
      %v5362 = vpop.permute.xlu0 %5361
      %5363 = vrot.lane.b32.xlu0 %v4877, 12
      %v5364 = vpop.permute.xlu0 %5363
      %5365 = vrot.lane.b32.xlu0 %v4878, 12
      %v5366 = vpop.permute.xlu0 %5365
      %5367 = vrot.lane.b32.xlu0 %v4879, 12
      %v5368 = vpop.permute.xlu0 %5367
      %5369 = vrot.lane.b32.xlu0 %v4880, 12
      %v5370 = vpop.permute.xlu0 %5369
      %5371 = vrot.lane.b32.xlu0 %v4881, 12
      %v5372 = vpop.permute.xlu0 %5371
      %5373 = vrot.lane.b32.xlu0 %v4882, 12
      %v5374 = vpop.permute.xlu0 %5373
      %5375 = vrot.lane.b32.xlu0 %v4883, 12
      %v5376 = vpop.permute.xlu0 %5375
      %5377 = vrot.lane.b32.xlu0 %v4885, 12
      %v5378 = vpop.permute.xlu0 %5377
      %5379 = vrot.lane.b32.xlu0 %v4886, 12
      %v5380 = vpop.permute.xlu0 %5379
      %5381 = vrot.lane.b32.xlu0 %v4887, 12
      %v5382 = vpop.permute.xlu0 %5381
      %5383 = vrot.lane.b32.xlu0 %v4888, 12
      %v5384 = vpop.permute.xlu0 %5383
      %5385 = vrot.lane.b32.xlu0 %v4889, 12
      %v5386 = vpop.permute.xlu0 %5385
      %5387 = vrot.lane.b32.xlu0 %v4890, 12
      %v5388 = vpop.permute.xlu0 %5387
      %5389 = vrot.lane.b32.xlu0 %v4891, 12
      %v5390 = vpop.permute.xlu0 %5389
      %5391 = vrot.lane.b32.xlu0 %v4893, 12
      %v5392 = vpop.permute.xlu0 %5391
      %5393 = vrot.lane.b32.xlu0 %v4894, 12
      %v5394 = vpop.permute.xlu0 %5393
      %5395 = vrot.lane.b32.xlu0 %v4895, 12
      %v5396 = vpop.permute.xlu0 %5395
      %5397 = vrot.lane.b32.xlu0 %v4896, 12
      %v5398 = vpop.permute.xlu0 %5397
      %5399 = vrot.lane.b32.xlu0 %v4897, 12
      %v5400 = vpop.permute.xlu0 %5399
      %5401 = vrot.lane.b32.xlu0 %v4898, 12
      %v5402 = vpop.permute.xlu0 %5401
      %5403 = vrot.lane.b32.xlu0 %v4899, 12
      %v5404 = vpop.permute.xlu0 %5403
      %5405 = vrot.lane.b32.xlu0 %v4901, 12
      %v5406 = vpop.permute.xlu0 %5405
      %5407 = vrot.lane.b32.xlu0 %v4902, 12
      %v5408 = vpop.permute.xlu0 %5407
      %5409 = vrot.lane.b32.xlu0 %v4903, 12
      %v5410 = vpop.permute.xlu0 %5409
      %5411 = vrot.lane.b32.xlu0 %v4904, 12
      %v5412 = vpop.permute.xlu0 %5411
      %5413 = vrot.lane.b32.xlu0 %v4905, 12
      %v5414 = vpop.permute.xlu0 %5413
      %5415 = vrot.lane.b32.xlu0 %v4906, 12
      %v5416 = vpop.permute.xlu0 %5415
      %5417 = vrot.lane.b32.xlu0 %v4907, 12
      %v5418 = vpop.permute.xlu0 %5417
      %5419 = vrot.lane.b32.xlu0 %v4909, 12
      %v5420 = vpop.permute.xlu0 %5419
      %5421 = vrot.lane.b32.xlu0 %v4910, 12
      %v5422 = vpop.permute.xlu0 %5421
      %5423 = vrot.lane.b32.xlu0 %v4911, 12
      %v5424 = vpop.permute.xlu0 %5423
      %5425 = vrot.lane.b32.xlu0 %v4912, 12
      %v5426 = vpop.permute.xlu0 %5425
      %5427 = vrot.lane.b32.xlu0 %v4913, 12
      %v5428 = vpop.permute.xlu0 %5427
      %5429 = vrot.lane.b32.xlu0 %v4914, 12
      %v5430 = vpop.permute.xlu0 %5429
      %5431 = vrot.lane.b32.xlu0 %v4915, 12
      %v5432 = vpop.permute.xlu0 %5431
      %5433 = vrot.lane.b32.xlu0 %v4917, 12
      %v5434 = vpop.permute.xlu0 %5433
      %5435 = vrot.lane.b32.xlu0 %v4918, 12
      %v5436 = vpop.permute.xlu0 %5435
      %5437 = vrot.lane.b32.xlu0 %v4919, 12
      %v5438 = vpop.permute.xlu0 %5437
      %5439 = vrot.lane.b32.xlu0 %v4920, 12
      %v5440 = vpop.permute.xlu0 %5439
      %5441 = vrot.lane.b32.xlu0 %v4921, 12
      %v5442 = vpop.permute.xlu0 %5441
      %5443 = vrot.lane.b32.xlu0 %v4922, 12
      %v5444 = vpop.permute.xlu0 %5443
      %5445 = vrot.lane.b32.xlu0 %v4923, 12
      %v5446 = vpop.permute.xlu0 %5445
      %5447 = vrot.lane.b32.xlu0 %v4925, 12
      %v5448 = vpop.permute.xlu0 %5447
      %5449 = vrot.lane.b32.xlu0 %v4926, 12
      %v5450 = vpop.permute.xlu0 %5449
      %5451 = vrot.lane.b32.xlu0 %v4927, 12
      %v5452 = vpop.permute.xlu0 %5451
      %5453 = vrot.lane.b32.xlu0 %v4928, 12
      %v5454 = vpop.permute.xlu0 %5453
      %5455 = vrot.lane.b32.xlu0 %v4929, 12
      %v5456 = vpop.permute.xlu0 %5455
      %5457 = vrot.lane.b32.xlu0 %v4930, 12
      %v5458 = vpop.permute.xlu0 %5457
      %5459 = vrot.lane.b32.xlu0 %v4931, 12
      %v5460 = vpop.permute.xlu0 %5459
      %5461 = vrot.lane.b32.xlu0 %v4933, 12
      %v5462 = vpop.permute.xlu0 %5461
      %5463 = vrot.lane.b32.xlu0 %v4934, 12
      %v5464 = vpop.permute.xlu0 %5463
      %5465 = vrot.lane.b32.xlu0 %v4935, 12
      %v5466 = vpop.permute.xlu0 %5465
      %5467 = vrot.lane.b32.xlu0 %v4936, 12
      %v5468 = vpop.permute.xlu0 %5467
      %5469 = vrot.lane.b32.xlu0 %v4937, 12
      %v5470 = vpop.permute.xlu0 %5469
      %5471 = vrot.lane.b32.xlu0 %v4938, 12
      %v5472 = vpop.permute.xlu0 %5471
      %5473 = vrot.lane.b32.xlu0 %v4939, 12
      %v5474 = vpop.permute.xlu0 %5473
      %5475 = vrot.lane.b32.xlu0 %v4941, 12
      %v5476 = vpop.permute.xlu0 %5475
      %5477 = vrot.lane.b32.xlu0 %v4942, 12
      %v5478 = vpop.permute.xlu0 %5477
      %5479 = vrot.lane.b32.xlu0 %v4943, 12
      %v5480 = vpop.permute.xlu0 %5479
      %5481 = vrot.lane.b32.xlu0 %v4944, 12
      %v5482 = vpop.permute.xlu0 %5481
      %5483 = vrot.lane.b32.xlu0 %v4945, 12
      %v5484 = vpop.permute.xlu0 %5483
      %5485 = vrot.lane.b32.xlu0 %v4946, 12
      %v5486 = vpop.permute.xlu0 %5485
      %5487 = vrot.lane.b32.xlu0 %v4947, 12
      %v5488 = vpop.permute.xlu0 %5487
      %5490 = vrot.lane.b32.xlu0 %v4869, 16
      %v5491 = vpop.permute.xlu0 %5490
      %5492 = vrot.lane.b32.xlu0 %v4870, 16
      %v5493 = vpop.permute.xlu0 %5492
      %5494 = vrot.lane.b32.xlu0 %v4871, 16
      %v5495 = vpop.permute.xlu0 %5494
      %5496 = vrot.lane.b32.xlu0 %v4872, 16
      %v5497 = vpop.permute.xlu0 %5496
      %5498 = vrot.lane.b32.xlu0 %v4873, 16
      %v5499 = vpop.permute.xlu0 %5498
      %5500 = vrot.lane.b32.xlu0 %v4874, 16
      %v5501 = vpop.permute.xlu0 %5500
      %5502 = vrot.lane.b32.xlu0 %v4875, 16
      %v5503 = vpop.permute.xlu0 %5502
      %5504 = vrot.lane.b32.xlu0 %v4876, 16
      %v5505 = vpop.permute.xlu0 %5504
      %5506 = vrot.lane.b32.xlu0 %v4877, 16
      %v5507 = vpop.permute.xlu0 %5506
      %5508 = vrot.lane.b32.xlu0 %v4878, 16
      %v5509 = vpop.permute.xlu0 %5508
      %5510 = vrot.lane.b32.xlu0 %v4879, 16
      %v5511 = vpop.permute.xlu0 %5510
      %5512 = vrot.lane.b32.xlu0 %v4880, 16
      %v5513 = vpop.permute.xlu0 %5512
      %5514 = vrot.lane.b32.xlu0 %v4881, 16
      %v5515 = vpop.permute.xlu0 %5514
      %5516 = vrot.lane.b32.xlu0 %v4882, 16
      %v5517 = vpop.permute.xlu0 %5516
      %5518 = vrot.lane.b32.xlu0 %v4883, 16
      %v5519 = vpop.permute.xlu0 %5518
      %5520 = vrot.lane.b32.xlu0 %v4884, 16
      %v5521 = vpop.permute.xlu0 %5520
      %5522 = vrot.lane.b32.xlu0 %v4885, 16
      %v5523 = vpop.permute.xlu0 %5522
      %5524 = vrot.lane.b32.xlu0 %v4886, 16
      %v5525 = vpop.permute.xlu0 %5524
      %5526 = vrot.lane.b32.xlu0 %v4887, 16
      %v5527 = vpop.permute.xlu0 %5526
      %5528 = vrot.lane.b32.xlu0 %v4888, 16
      %v5529 = vpop.permute.xlu0 %5528
      %5530 = vrot.lane.b32.xlu0 %v4889, 16
      %v5531 = vpop.permute.xlu0 %5530
      %5532 = vrot.lane.b32.xlu0 %v4890, 16
      %v5533 = vpop.permute.xlu0 %5532
      %5534 = vrot.lane.b32.xlu0 %v4891, 16
      %v5535 = vpop.permute.xlu0 %5534
      %5536 = vrot.lane.b32.xlu0 %v4892, 16
      %v5537 = vpop.permute.xlu0 %5536
      %5538 = vrot.lane.b32.xlu0 %v4893, 16
      %v5539 = vpop.permute.xlu0 %5538
      %5540 = vrot.lane.b32.xlu0 %v4894, 16
      %v5541 = vpop.permute.xlu0 %5540
      %5542 = vrot.lane.b32.xlu0 %v4895, 16
      %v5543 = vpop.permute.xlu0 %5542
      %5544 = vrot.lane.b32.xlu0 %v4896, 16
      %v5545 = vpop.permute.xlu0 %5544
      %5546 = vrot.lane.b32.xlu0 %v4897, 16
      %v5547 = vpop.permute.xlu0 %5546
      %5548 = vrot.lane.b32.xlu0 %v4898, 16
      %v5549 = vpop.permute.xlu0 %5548
      %5550 = vrot.lane.b32.xlu0 %v4899, 16
      %v5551 = vpop.permute.xlu0 %5550
      %5552 = vrot.lane.b32.xlu0 %v4900, 16
      %v5553 = vpop.permute.xlu0 %5552
      %5554 = vrot.lane.b32.xlu0 %v4901, 16
      %v5555 = vpop.permute.xlu0 %5554
      %5556 = vrot.lane.b32.xlu0 %v4902, 16
      %v5557 = vpop.permute.xlu0 %5556
      %5558 = vrot.lane.b32.xlu0 %v4903, 16
      %v5559 = vpop.permute.xlu0 %5558
      %5560 = vrot.lane.b32.xlu0 %v4904, 16
      %v5561 = vpop.permute.xlu0 %5560
      %5562 = vrot.lane.b32.xlu0 %v4905, 16
      %v5563 = vpop.permute.xlu0 %5562
      %5564 = vrot.lane.b32.xlu0 %v4906, 16
      %v5565 = vpop.permute.xlu0 %5564
      %5566 = vrot.lane.b32.xlu0 %v4907, 16
      %v5567 = vpop.permute.xlu0 %5566
      %5568 = vrot.lane.b32.xlu0 %v4908, 16
      %v5569 = vpop.permute.xlu0 %5568
      %5570 = vrot.lane.b32.xlu0 %v4909, 16
      %v5571 = vpop.permute.xlu0 %5570
      %5572 = vrot.lane.b32.xlu0 %v4910, 16
      %v5573 = vpop.permute.xlu0 %5572
      %5574 = vrot.lane.b32.xlu0 %v4911, 16
      %v5575 = vpop.permute.xlu0 %5574
      %5576 = vrot.lane.b32.xlu0 %v4912, 16
      %v5577 = vpop.permute.xlu0 %5576
      %5578 = vrot.lane.b32.xlu0 %v4913, 16
      %v5579 = vpop.permute.xlu0 %5578
      %5580 = vrot.lane.b32.xlu0 %v4914, 16
      %v5581 = vpop.permute.xlu0 %5580
      %5582 = vrot.lane.b32.xlu0 %v4915, 16
      %v5583 = vpop.permute.xlu0 %5582
      %5584 = vrot.lane.b32.xlu0 %v4916, 16
      %v5585 = vpop.permute.xlu0 %5584
      %5586 = vrot.lane.b32.xlu0 %v4917, 16
      %v5587 = vpop.permute.xlu0 %5586
      %5588 = vrot.lane.b32.xlu0 %v4918, 16
      %v5589 = vpop.permute.xlu0 %5588
      %5590 = vrot.lane.b32.xlu0 %v4919, 16
      %v5591 = vpop.permute.xlu0 %5590
      %5592 = vrot.lane.b32.xlu0 %v4920, 16
      %v5593 = vpop.permute.xlu0 %5592
      %5594 = vrot.lane.b32.xlu0 %v4921, 16
      %v5595 = vpop.permute.xlu0 %5594
      %5596 = vrot.lane.b32.xlu0 %v4922, 16
      %v5597 = vpop.permute.xlu0 %5596
      %5598 = vrot.lane.b32.xlu0 %v4923, 16
      %v5599 = vpop.permute.xlu0 %5598
      %5600 = vrot.lane.b32.xlu0 %v4924, 16
      %v5601 = vpop.permute.xlu0 %5600
      %5602 = vrot.lane.b32.xlu0 %v4925, 16
      %v5603 = vpop.permute.xlu0 %5602
      %5604 = vrot.lane.b32.xlu0 %v4926, 16
      %v5605 = vpop.permute.xlu0 %5604
      %5606 = vrot.lane.b32.xlu0 %v4927, 16
      %v5607 = vpop.permute.xlu0 %5606
      %5608 = vrot.lane.b32.xlu0 %v4928, 16
      %v5609 = vpop.permute.xlu0 %5608
      %5610 = vrot.lane.b32.xlu0 %v4929, 16
      %v5611 = vpop.permute.xlu0 %5610
      %5612 = vrot.lane.b32.xlu0 %v4930, 16
      %v5613 = vpop.permute.xlu0 %5612
      %5614 = vrot.lane.b32.xlu0 %v4931, 16
      %v5615 = vpop.permute.xlu0 %5614
      %5616 = vrot.lane.b32.xlu0 %v4932, 16
      %v5617 = vpop.permute.xlu0 %5616
      %5618 = vrot.lane.b32.xlu0 %v4933, 16
      %v5619 = vpop.permute.xlu0 %5618
      %5620 = vrot.lane.b32.xlu0 %v4934, 16
      %v5621 = vpop.permute.xlu0 %5620
      %5622 = vrot.lane.b32.xlu0 %v4935, 16
      %v5623 = vpop.permute.xlu0 %5622
      %5624 = vrot.lane.b32.xlu0 %v4936, 16
      %v5625 = vpop.permute.xlu0 %5624
      %5626 = vrot.lane.b32.xlu0 %v4937, 16
      %v5627 = vpop.permute.xlu0 %5626
      %5628 = vrot.lane.b32.xlu0 %v4938, 16
      %v5629 = vpop.permute.xlu0 %5628
      %5630 = vrot.lane.b32.xlu0 %v4939, 16
      %v5631 = vpop.permute.xlu0 %5630
      %5632 = vrot.lane.b32.xlu0 %v4940, 16
      %v5633 = vpop.permute.xlu0 %5632
      %5634 = vrot.lane.b32.xlu0 %v4941, 16
      %v5635 = vpop.permute.xlu0 %5634
      %5636 = vrot.lane.b32.xlu0 %v4942, 16
      %v5637 = vpop.permute.xlu0 %5636
      %5638 = vrot.lane.b32.xlu0 %v4943, 16
      %v5639 = vpop.permute.xlu0 %5638
      %5640 = vrot.lane.b32.xlu0 %v4944, 16
      %v5641 = vpop.permute.xlu0 %5640
      %5642 = vrot.lane.b32.xlu0 %v4945, 16
      %v5643 = vpop.permute.xlu0 %5642
      %5644 = vrot.lane.b32.xlu0 %v4946, 16
      %v5645 = vpop.permute.xlu0 %5644
      %5646 = vrot.lane.b32.xlu0 %v4947, 16
      %v5647 = vpop.permute.xlu0 %5646
      %5648 = vrot.lane.b32.xlu0 %v4948, 16
      %v5649 = vpop.permute.xlu0 %5648
      %5650 = vrot.lane.b32.xlu0 %v4870, 20
      %v5651 = vpop.permute.xlu0 %5650
      %5652 = vrot.lane.b32.xlu0 %v4871, 20
      %v5653 = vpop.permute.xlu0 %5652
      %5654 = vrot.lane.b32.xlu0 %v4872, 20
      %v5655 = vpop.permute.xlu0 %5654
      %5656 = vrot.lane.b32.xlu0 %v4873, 20
      %v5657 = vpop.permute.xlu0 %5656
      %5658 = vrot.lane.b32.xlu0 %v4874, 20
      %v5659 = vpop.permute.xlu0 %5658
      %5660 = vrot.lane.b32.xlu0 %v4875, 20
      %v5661 = vpop.permute.xlu0 %5660
      %5662 = vrot.lane.b32.xlu0 %v4876, 20
      %v5663 = vpop.permute.xlu0 %5662
      %5664 = vrot.lane.b32.xlu0 0, 20
      %v5665 = vpop.permute.xlu0 %5664
      %5666 = vrot.lane.b32.xlu0 %v4878, 20
      %v5667 = vpop.permute.xlu0 %5666
      %5668 = vrot.lane.b32.xlu0 %v4879, 20
      %v5669 = vpop.permute.xlu0 %5668
      %5670 = vrot.lane.b32.xlu0 %v4880, 20
      %v5671 = vpop.permute.xlu0 %5670
      %5672 = vrot.lane.b32.xlu0 %v4881, 20
      %v5673 = vpop.permute.xlu0 %5672
      %5674 = vrot.lane.b32.xlu0 %v4882, 20
      %v5675 = vpop.permute.xlu0 %5674
      %5676 = vrot.lane.b32.xlu0 %v4883, 20
      %v5677 = vpop.permute.xlu0 %5676
      %5678 = vrot.lane.b32.xlu0 %v4884, 20
      %v5679 = vpop.permute.xlu0 %5678
      %5680 = vrot.lane.b32.xlu0 %v4886, 20
      %v5681 = vpop.permute.xlu0 %5680
      %5682 = vrot.lane.b32.xlu0 %v4887, 20
      %v5683 = vpop.permute.xlu0 %5682
      %5684 = vrot.lane.b32.xlu0 %v4888, 20
      %v5685 = vpop.permute.xlu0 %5684
      %5686 = vrot.lane.b32.xlu0 %v4889, 20
      %v5687 = vpop.permute.xlu0 %5686
      %5688 = vrot.lane.b32.xlu0 %v4890, 20
      %v5689 = vpop.permute.xlu0 %5688
      %5690 = vrot.lane.b32.xlu0 %v4891, 20
      %v5691 = vpop.permute.xlu0 %5690
      %5692 = vrot.lane.b32.xlu0 %v4892, 20
      %v5693 = vpop.permute.xlu0 %5692
      %5694 = vrot.lane.b32.xlu0 %v4894, 20
      %v5695 = vpop.permute.xlu0 %5694
      %5696 = vrot.lane.b32.xlu0 %v4895, 20
      %v5697 = vpop.permute.xlu0 %5696
      %5698 = vrot.lane.b32.xlu0 %v4896, 20
      %v5699 = vpop.permute.xlu0 %5698
      %5700 = vrot.lane.b32.xlu0 %v4897, 20
      %v5701 = vpop.permute.xlu0 %5700
      %5702 = vrot.lane.b32.xlu0 %v4898, 20
      %v5703 = vpop.permute.xlu0 %5702
      %5704 = vrot.lane.b32.xlu0 %v4899, 20
      %v5705 = vpop.permute.xlu0 %5704
      %5706 = vrot.lane.b32.xlu0 %v4900, 20
      %v5707 = vpop.permute.xlu0 %5706
      %5708 = vrot.lane.b32.xlu0 %v4902, 20
      %v5709 = vpop.permute.xlu0 %5708
      %5710 = vrot.lane.b32.xlu0 %v4903, 20
      %v5711 = vpop.permute.xlu0 %5710
      %5712 = vrot.lane.b32.xlu0 %v4904, 20
      %v5713 = vpop.permute.xlu0 %5712
      %5714 = vrot.lane.b32.xlu0 %v4905, 20
      %v5715 = vpop.permute.xlu0 %5714
      %5716 = vrot.lane.b32.xlu0 %v4906, 20
      %v5717 = vpop.permute.xlu0 %5716
      %5718 = vrot.lane.b32.xlu0 %v4907, 20
      %v5719 = vpop.permute.xlu0 %5718
      %5720 = vrot.lane.b32.xlu0 %v4908, 20
      %v5721 = vpop.permute.xlu0 %5720
      %5722 = vrot.lane.b32.xlu0 %v4910, 20
      %v5723 = vpop.permute.xlu0 %5722
      %5724 = vrot.lane.b32.xlu0 %v4911, 20
      %v5725 = vpop.permute.xlu0 %5724
      %5726 = vrot.lane.b32.xlu0 %v4912, 20
      %v5727 = vpop.permute.xlu0 %5726
      %5728 = vrot.lane.b32.xlu0 %v4913, 20
      %v5729 = vpop.permute.xlu0 %5728
      %5730 = vrot.lane.b32.xlu0 %v4914, 20
      %v5731 = vpop.permute.xlu0 %5730
      %5732 = vrot.lane.b32.xlu0 %v4915, 20
      %v5733 = vpop.permute.xlu0 %5732
      %5734 = vrot.lane.b32.xlu0 %v4916, 20
      %v5735 = vpop.permute.xlu0 %5734
      %5736 = vrot.lane.b32.xlu0 %v4918, 20
      %v5737 = vpop.permute.xlu0 %5736
      %5738 = vrot.lane.b32.xlu0 %v4919, 20
      %v5739 = vpop.permute.xlu0 %5738
      %5740 = vrot.lane.b32.xlu0 %v4920, 20
      %v5741 = vpop.permute.xlu0 %5740
      %5742 = vrot.lane.b32.xlu0 %v4921, 20
      %v5743 = vpop.permute.xlu0 %5742
      %5744 = vrot.lane.b32.xlu0 %v4922, 20
      %v5745 = vpop.permute.xlu0 %5744
      %5746 = vrot.lane.b32.xlu0 %v4923, 20
      %v5747 = vpop.permute.xlu0 %5746
      %5748 = vrot.lane.b32.xlu0 %v4924, 20
      %v5749 = vpop.permute.xlu0 %5748
      %5750 = vrot.lane.b32.xlu0 %v4926, 20
      %v5751 = vpop.permute.xlu0 %5750
      %5752 = vrot.lane.b32.xlu0 %v4927, 20
      %v5753 = vpop.permute.xlu0 %5752
      %5754 = vrot.lane.b32.xlu0 %v4928, 20
      %v5755 = vpop.permute.xlu0 %5754
      %5756 = vrot.lane.b32.xlu0 %v4929, 20
      %v5757 = vpop.permute.xlu0 %5756
      %5758 = vrot.lane.b32.xlu0 %v4930, 20
      %v5759 = vpop.permute.xlu0 %5758
      %5760 = vrot.lane.b32.xlu0 %v4931, 20
      %v5761 = vpop.permute.xlu0 %5760
      %5762 = vrot.lane.b32.xlu0 %v4932, 20
      %v5763 = vpop.permute.xlu0 %5762
      %5764 = vrot.lane.b32.xlu0 %v4934, 20
      %v5765 = vpop.permute.xlu0 %5764
      %5766 = vrot.lane.b32.xlu0 %v4935, 20
      %v5767 = vpop.permute.xlu0 %5766
      %5768 = vrot.lane.b32.xlu0 %v4936, 20
      %v5769 = vpop.permute.xlu0 %5768
      %5770 = vrot.lane.b32.xlu0 %v4937, 20
      %v5771 = vpop.permute.xlu0 %5770
      %5772 = vrot.lane.b32.xlu0 %v4938, 20
      %v5773 = vpop.permute.xlu0 %5772
      %5774 = vrot.lane.b32.xlu0 %v4939, 20
      %v5775 = vpop.permute.xlu0 %5774
      %5776 = vrot.lane.b32.xlu0 %v4940, 20
      %v5777 = vpop.permute.xlu0 %5776
      %5778 = vrot.lane.b32.xlu0 %v4942, 20
      %v5779 = vpop.permute.xlu0 %5778
      %5780 = vrot.lane.b32.xlu0 %v4943, 20
      %v5781 = vpop.permute.xlu0 %5780
      %5782 = vrot.lane.b32.xlu0 %v4944, 20
      %v5783 = vpop.permute.xlu0 %5782
      %5784 = vrot.lane.b32.xlu0 %v4945, 20
      %v5785 = vpop.permute.xlu0 %5784
      %5786 = vrot.lane.b32.xlu0 %v4946, 20
      %v5787 = vpop.permute.xlu0 %5786
      %5788 = vrot.lane.b32.xlu0 %v4947, 20
      %v5789 = vpop.permute.xlu0 %5788
      %5790 = vrot.lane.b32.xlu0 %v4948, 20
      %v5791 = vpop.permute.xlu0 %5790
      %5799 = vrot.lane.b32.xlu0 0, 24
      %v5800 = vpop.permute.xlu0 %5799
      %5801 = vrot.lane.b32.xlu0 %v4877, 24
      %v5802 = vpop.permute.xlu0 %5801
      %5803 = vrot.lane.b32.xlu0 %v4878, 24
      %v5804 = vpop.permute.xlu0 %5803
      %5805 = vrot.lane.b32.xlu0 %v4879, 24
      %v5806 = vpop.permute.xlu0 %5805
      %5807 = vrot.lane.b32.xlu0 %v4880, 24
      %v5808 = vpop.permute.xlu0 %5807
      %5809 = vrot.lane.b32.xlu0 %v4881, 24
      %v5810 = vpop.permute.xlu0 %5809
      %5811 = vrot.lane.b32.xlu0 %v4882, 24
      %v5812 = vpop.permute.xlu0 %5811
      %5813 = vrot.lane.b32.xlu0 %v4883, 24
      %v5814 = vpop.permute.xlu0 %5813
      %5815 = vrot.lane.b32.xlu0 %v4885, 24
      %v5816 = vpop.permute.xlu0 %5815
      %5817 = vrot.lane.b32.xlu0 %v4886, 24
      %v5818 = vpop.permute.xlu0 %5817
      %5819 = vrot.lane.b32.xlu0 %v4887, 24
      %v5820 = vpop.permute.xlu0 %5819
      %5821 = vrot.lane.b32.xlu0 %v4888, 24
      %v5822 = vpop.permute.xlu0 %5821
      %5823 = vrot.lane.b32.xlu0 %v4889, 24
      %v5824 = vpop.permute.xlu0 %5823
      %5825 = vrot.lane.b32.xlu0 %v4890, 24
      %v5826 = vpop.permute.xlu0 %5825
      %5827 = vrot.lane.b32.xlu0 %v4891, 24
      %v5828 = vpop.permute.xlu0 %5827
      %5829 = vrot.lane.b32.xlu0 %v4893, 24
      %v5830 = vpop.permute.xlu0 %5829
      %5831 = vrot.lane.b32.xlu0 %v4894, 24
      %v5832 = vpop.permute.xlu0 %5831
      %5833 = vrot.lane.b32.xlu0 %v4895, 24
      %v5834 = vpop.permute.xlu0 %5833
      %5835 = vrot.lane.b32.xlu0 %v4896, 24
      %v5836 = vpop.permute.xlu0 %5835
      %5837 = vrot.lane.b32.xlu0 %v4897, 24
      %v5838 = vpop.permute.xlu0 %5837
      %5839 = vrot.lane.b32.xlu0 %v4898, 24
      %v5840 = vpop.permute.xlu0 %5839
      %5841 = vrot.lane.b32.xlu0 %v4899, 24
      %v5842 = vpop.permute.xlu0 %5841
      %5843 = vrot.lane.b32.xlu0 %v4901, 24
      %v5844 = vpop.permute.xlu0 %5843
      %5845 = vrot.lane.b32.xlu0 %v4902, 24
      %v5846 = vpop.permute.xlu0 %5845
      %5847 = vrot.lane.b32.xlu0 %v4903, 24
      %v5848 = vpop.permute.xlu0 %5847
      %5849 = vrot.lane.b32.xlu0 %v4904, 24
      %v5850 = vpop.permute.xlu0 %5849
      %5851 = vrot.lane.b32.xlu0 %v4905, 24
      %v5852 = vpop.permute.xlu0 %5851
      %5853 = vrot.lane.b32.xlu0 %v4906, 24
      %v5854 = vpop.permute.xlu0 %5853
      %5855 = vrot.lane.b32.xlu0 %v4907, 24
      %v5856 = vpop.permute.xlu0 %5855
      %5857 = vrot.lane.b32.xlu0 %v4909, 24
      %v5858 = vpop.permute.xlu0 %5857
      %5859 = vrot.lane.b32.xlu0 %v4910, 24
      %v5860 = vpop.permute.xlu0 %5859
      %5861 = vrot.lane.b32.xlu0 %v4911, 24
      %v5862 = vpop.permute.xlu0 %5861
      %5863 = vrot.lane.b32.xlu0 %v4912, 24
      %v5864 = vpop.permute.xlu0 %5863
      %5865 = vrot.lane.b32.xlu0 %v4913, 24
      %v5866 = vpop.permute.xlu0 %5865
      %5867 = vrot.lane.b32.xlu0 %v4914, 24
      %v5868 = vpop.permute.xlu0 %5867
      %5869 = vrot.lane.b32.xlu0 %v4915, 24
      %v5870 = vpop.permute.xlu0 %5869
      %5871 = vrot.lane.b32.xlu0 %v4917, 24
      %v5872 = vpop.permute.xlu0 %5871
      %5873 = vrot.lane.b32.xlu0 %v4918, 24
      %v5874 = vpop.permute.xlu0 %5873
      %5875 = vrot.lane.b32.xlu0 %v4919, 24
      %v5876 = vpop.permute.xlu0 %5875
      %5877 = vrot.lane.b32.xlu0 %v4920, 24
      %v5878 = vpop.permute.xlu0 %5877
      %5879 = vrot.lane.b32.xlu0 %v4921, 24
      %v5880 = vpop.permute.xlu0 %5879
      %5881 = vrot.lane.b32.xlu0 %v4922, 24
      %v5882 = vpop.permute.xlu0 %5881
      %5883 = vrot.lane.b32.xlu0 %v4923, 24
      %v5884 = vpop.permute.xlu0 %5883
      %5885 = vrot.lane.b32.xlu0 %v4925, 24
      %v5886 = vpop.permute.xlu0 %5885
      %5887 = vrot.lane.b32.xlu0 %v4926, 24
      %v5888 = vpop.permute.xlu0 %5887
      %5889 = vrot.lane.b32.xlu0 %v4927, 24
      %v5890 = vpop.permute.xlu0 %5889
      %5891 = vrot.lane.b32.xlu0 %v4928, 24
      %v5892 = vpop.permute.xlu0 %5891
      %5893 = vrot.lane.b32.xlu0 %v4929, 24
      %v5894 = vpop.permute.xlu0 %5893
      %5895 = vrot.lane.b32.xlu0 %v4930, 24
      %v5896 = vpop.permute.xlu0 %5895
      %5897 = vrot.lane.b32.xlu0 %v4931, 24
      %v5898 = vpop.permute.xlu0 %5897
      %5899 = vrot.lane.b32.xlu0 %v4933, 24
      %v5900 = vpop.permute.xlu0 %5899
      %5901 = vrot.lane.b32.xlu0 %v4934, 24
      %v5902 = vpop.permute.xlu0 %5901
      %5903 = vrot.lane.b32.xlu0 %v4935, 24
      %v5904 = vpop.permute.xlu0 %5903
      %5905 = vrot.lane.b32.xlu0 %v4936, 24
      %v5906 = vpop.permute.xlu0 %5905
      %5907 = vrot.lane.b32.xlu0 %v4937, 24
      %v5908 = vpop.permute.xlu0 %5907
      %5909 = vrot.lane.b32.xlu0 %v4938, 24
      %v5910 = vpop.permute.xlu0 %5909
      %5911 = vrot.lane.b32.xlu0 %v4939, 24
      %v5912 = vpop.permute.xlu0 %5911
      %5913 = vrot.lane.b32.xlu0 %v4941, 24
      %v5914 = vpop.permute.xlu0 %5913
      %5915 = vrot.lane.b32.xlu0 %v4942, 24
      %v5916 = vpop.permute.xlu0 %5915
      %5917 = vrot.lane.b32.xlu0 %v4943, 24
      %v5918 = vpop.permute.xlu0 %5917
      %5919 = vrot.lane.b32.xlu0 %v4944, 24
      %v5920 = vpop.permute.xlu0 %5919
      %5921 = vrot.lane.b32.xlu0 %v4945, 24
      %v5922 = vpop.permute.xlu0 %5921
      %5923 = vrot.lane.b32.xlu0 %v4946, 24
      %v5924 = vpop.permute.xlu0 %5923
      %5925 = vrot.lane.b32.xlu0 %v4947, 24
      %v5926 = vpop.permute.xlu0 %5925
      %5927 = vrot.lane.b32.xlu0 %v4949, 24
      %v5928 = vpop.permute.xlu0 %5927
      %5929 = vrot.lane.b32.xlu0 %v4950, 24
      %v5930 = vpop.permute.xlu0 %5929
      %5931 = vrot.lane.b32.xlu0 %v4951, 24
      %v5932 = vpop.permute.xlu0 %5931
      %5933 = vrot.lane.b32.xlu0 %v4952, 24
      %v5934 = vpop.permute.xlu0 %5933
      %5935 = vrot.lane.b32.xlu0 %v4953, 24
      %v5936 = vpop.permute.xlu0 %5935
      %5937 = vrot.lane.b32.xlu0 %v4954, 24
      %v5938 = vpop.permute.xlu0 %5937
      %5939 = vrot.lane.b32.xlu0 %v4955, 24
      %v5940 = vpop.permute.xlu0 %5939
      %5942 = vrot.lane.b32.xlu0 %v4877, 28
      %v5943 = vpop.permute.xlu0 %5942
      %5944 = vrot.lane.b32.xlu0 %v4878, 28
      %v5945 = vpop.permute.xlu0 %5944
      %5946 = vrot.lane.b32.xlu0 %v4879, 28
      %v5947 = vpop.permute.xlu0 %5946
      %5948 = vrot.lane.b32.xlu0 %v4880, 28
      %v5949 = vpop.permute.xlu0 %5948
      %5950 = vrot.lane.b32.xlu0 %v4881, 28
      %v5951 = vpop.permute.xlu0 %5950
      %5952 = vrot.lane.b32.xlu0 %v4882, 28
      %v5953 = vpop.permute.xlu0 %5952
      %5954 = vrot.lane.b32.xlu0 %v4883, 28
      %v5955 = vpop.permute.xlu0 %5954
      %5956 = vrot.lane.b32.xlu0 %v4884, 28
      %v5957 = vpop.permute.xlu0 %5956
      %5958 = vrot.lane.b32.xlu0 %v4885, 28
      %v5959 = vpop.permute.xlu0 %5958
      %5960 = vrot.lane.b32.xlu0 %v4886, 28
      %v5961 = vpop.permute.xlu0 %5960
      %5962 = vrot.lane.b32.xlu0 %v4887, 28
      %v5963 = vpop.permute.xlu0 %5962
      %5964 = vrot.lane.b32.xlu0 %v4888, 28
      %v5965 = vpop.permute.xlu0 %5964
      %5966 = vrot.lane.b32.xlu0 %v4889, 28
      %v5967 = vpop.permute.xlu0 %5966
      %5968 = vrot.lane.b32.xlu0 %v4890, 28
      %v5969 = vpop.permute.xlu0 %5968
      %5970 = vrot.lane.b32.xlu0 %v4891, 28
      %v5971 = vpop.permute.xlu0 %5970
      %5972 = vrot.lane.b32.xlu0 %v4892, 28
      %v5973 = vpop.permute.xlu0 %5972
      %5974 = vrot.lane.b32.xlu0 %v4893, 28
      %v5975 = vpop.permute.xlu0 %5974
      %5976 = vrot.lane.b32.xlu0 %v4894, 28
      %v5977 = vpop.permute.xlu0 %5976
      %5978 = vrot.lane.b32.xlu0 %v4895, 28
      %v5979 = vpop.permute.xlu0 %5978
      %5980 = vrot.lane.b32.xlu0 %v4896, 28
      %v5981 = vpop.permute.xlu0 %5980
      %5982 = vrot.lane.b32.xlu0 %v4897, 28
      %v5983 = vpop.permute.xlu0 %5982
      %5984 = vrot.lane.b32.xlu0 %v4898, 28
      %v5985 = vpop.permute.xlu0 %5984
      %5986 = vrot.lane.b32.xlu0 %v4899, 28
      %v5987 = vpop.permute.xlu0 %5986
      %5988 = vrot.lane.b32.xlu0 %v4900, 28
      %v5989 = vpop.permute.xlu0 %5988
      %5990 = vrot.lane.b32.xlu0 %v4901, 28
      %v5991 = vpop.permute.xlu0 %5990
      %5992 = vrot.lane.b32.xlu0 %v4902, 28
      %v5993 = vpop.permute.xlu0 %5992
      %5994 = vrot.lane.b32.xlu0 %v4903, 28
      %v5995 = vpop.permute.xlu0 %5994
      %5996 = vrot.lane.b32.xlu0 %v4904, 28
      %v5997 = vpop.permute.xlu0 %5996
      %5998 = vrot.lane.b32.xlu0 %v4905, 28
      %v5999 = vpop.permute.xlu0 %5998
      %6000 = vrot.lane.b32.xlu0 %v4906, 28
      %v6001 = vpop.permute.xlu0 %6000
      %6002 = vrot.lane.b32.xlu0 %v4907, 28
      %v6003 = vpop.permute.xlu0 %6002
      %6004 = vrot.lane.b32.xlu0 %v4908, 28
      %v6005 = vpop.permute.xlu0 %6004
      %6006 = vrot.lane.b32.xlu0 %v4909, 28
      %v6007 = vpop.permute.xlu0 %6006
      %6008 = vrot.lane.b32.xlu0 %v4910, 28
      %v6009 = vpop.permute.xlu0 %6008
      %6010 = vrot.lane.b32.xlu0 %v4911, 28
      %v6011 = vpop.permute.xlu0 %6010
      %6012 = vrot.lane.b32.xlu0 %v4912, 28
      %v6013 = vpop.permute.xlu0 %6012
      %6014 = vrot.lane.b32.xlu0 %v4913, 28
      %v6015 = vpop.permute.xlu0 %6014
      %6016 = vrot.lane.b32.xlu0 %v4914, 28
      %v6017 = vpop.permute.xlu0 %6016
      %6018 = vrot.lane.b32.xlu0 %v4915, 28
      %v6019 = vpop.permute.xlu0 %6018
      %6020 = vrot.lane.b32.xlu0 %v4916, 28
      %v6021 = vpop.permute.xlu0 %6020
      %6022 = vrot.lane.b32.xlu0 %v4917, 28
      %v6023 = vpop.permute.xlu0 %6022
      %6024 = vrot.lane.b32.xlu0 %v4918, 28
      %v6025 = vpop.permute.xlu0 %6024
      %6026 = vrot.lane.b32.xlu0 %v4919, 28
      %v6027 = vpop.permute.xlu0 %6026
      %6028 = vrot.lane.b32.xlu0 %v4920, 28
      %v6029 = vpop.permute.xlu0 %6028
      %6030 = vrot.lane.b32.xlu0 %v4921, 28
      %v6031 = vpop.permute.xlu0 %6030
      %6032 = vrot.lane.b32.xlu0 %v4922, 28
      %v6033 = vpop.permute.xlu0 %6032
      %6034 = vrot.lane.b32.xlu0 %v4923, 28
      %v6035 = vpop.permute.xlu0 %6034
      %6036 = vrot.lane.b32.xlu0 %v4924, 28
      %v6037 = vpop.permute.xlu0 %6036
      %6038 = vrot.lane.b32.xlu0 %v4925, 28
      %v6039 = vpop.permute.xlu0 %6038
      %6040 = vrot.lane.b32.xlu0 %v4926, 28
      %v6041 = vpop.permute.xlu0 %6040
      %6042 = vrot.lane.b32.xlu0 %v4927, 28
      %v6043 = vpop.permute.xlu0 %6042
      %6044 = vrot.lane.b32.xlu0 %v4928, 28
      %v6045 = vpop.permute.xlu0 %6044
      %6046 = vrot.lane.b32.xlu0 %v4929, 28
      %v6047 = vpop.permute.xlu0 %6046
      %6048 = vrot.lane.b32.xlu0 %v4930, 28
      %v6049 = vpop.permute.xlu0 %6048
      %6050 = vrot.lane.b32.xlu0 %v4931, 28
      %v6051 = vpop.permute.xlu0 %6050
      %6052 = vrot.lane.b32.xlu0 %v4932, 28
      %v6053 = vpop.permute.xlu0 %6052
      %6054 = vrot.lane.b32.xlu0 %v4933, 28
      %v6055 = vpop.permute.xlu0 %6054
      %6056 = vrot.lane.b32.xlu0 %v4934, 28
      %v6057 = vpop.permute.xlu0 %6056
      %6058 = vrot.lane.b32.xlu0 %v4935, 28
      %v6059 = vpop.permute.xlu0 %6058
      %6060 = vrot.lane.b32.xlu0 %v4936, 28
      %v6061 = vpop.permute.xlu0 %6060
      %6062 = vrot.lane.b32.xlu0 %v4937, 28
      %v6063 = vpop.permute.xlu0 %6062
      %6064 = vrot.lane.b32.xlu0 %v4938, 28
      %v6065 = vpop.permute.xlu0 %6064
      %6066 = vrot.lane.b32.xlu0 %v4939, 28
      %v6067 = vpop.permute.xlu0 %6066
      %6068 = vrot.lane.b32.xlu0 %v4940, 28
      %v6069 = vpop.permute.xlu0 %6068
      %6070 = vrot.lane.b32.xlu0 %v4941, 28
      %v6071 = vpop.permute.xlu0 %6070
      %6072 = vrot.lane.b32.xlu0 %v4942, 28
      %v6073 = vpop.permute.xlu0 %6072
      %6074 = vrot.lane.b32.xlu0 %v4943, 28
      %v6075 = vpop.permute.xlu0 %6074
      %6076 = vrot.lane.b32.xlu0 %v4944, 28
      %v6077 = vpop.permute.xlu0 %6076
      %6078 = vrot.lane.b32.xlu0 %v4945, 28
      %v6079 = vpop.permute.xlu0 %6078
      %6080 = vrot.lane.b32.xlu0 %v4946, 28
      %v6081 = vpop.permute.xlu0 %6080
      %6082 = vrot.lane.b32.xlu0 %v4947, 28
      %v6083 = vpop.permute.xlu0 %6082
      %6084 = vrot.lane.b32.xlu0 %v4948, 28
      %v6085 = vpop.permute.xlu0 %6084
      %6086 = vrot.lane.b32.xlu0 %v4949, 28
      %v6087 = vpop.permute.xlu0 %6086
      %6088 = vrot.lane.b32.xlu0 %v4950, 28
      %v6089 = vpop.permute.xlu0 %6088
      %6090 = vrot.lane.b32.xlu0 %v4951, 28
      %v6091 = vpop.permute.xlu0 %6090
      %6092 = vrot.lane.b32.xlu0 %v4952, 28
      %v6093 = vpop.permute.xlu0 %6092
      %6094 = vrot.lane.b32.xlu0 %v4953, 28
      %v6095 = vpop.permute.xlu0 %6094
      %6096 = vrot.lane.b32.xlu0 %v4954, 28
      %v6097 = vpop.permute.xlu0 %6096
      %6098 = vrot.lane.b32.xlu0 %v4955, 28
      %v6099 = vpop.permute.xlu0 %6098
      %6100 = vrot.lane.b32.xlu0 %v4956, 28
      %v6101 = vpop.permute.xlu0 %6100
      %6102 = vrot.lane.b32.xlu0 %v4878, 32
      %v6103 = vpop.permute.xlu0 %6102
      %6104 = vrot.lane.b32.xlu0 %v4879, 32
      %v6105 = vpop.permute.xlu0 %6104
      %6106 = vrot.lane.b32.xlu0 %v4880, 32
      %v6107 = vpop.permute.xlu0 %6106
      %6108 = vrot.lane.b32.xlu0 %v4881, 32
      %v6109 = vpop.permute.xlu0 %6108
      %6110 = vrot.lane.b32.xlu0 %v4882, 32
      %v6111 = vpop.permute.xlu0 %6110
      %6112 = vrot.lane.b32.xlu0 %v4883, 32
      %v6113 = vpop.permute.xlu0 %6112
      %6114 = vrot.lane.b32.xlu0 %v4884, 32
      %v6115 = vpop.permute.xlu0 %6114
      %6116 = vrot.lane.b32.xlu0 0, 32
      %v6117 = vpop.permute.xlu0 %6116
      %6118 = vrot.lane.b32.xlu0 %v4886, 32
      %v6119 = vpop.permute.xlu0 %6118
      %6120 = vrot.lane.b32.xlu0 %v4887, 32
      %v6121 = vpop.permute.xlu0 %6120
      %6122 = vrot.lane.b32.xlu0 %v4888, 32
      %v6123 = vpop.permute.xlu0 %6122
      %6124 = vrot.lane.b32.xlu0 %v4889, 32
      %v6125 = vpop.permute.xlu0 %6124
      %6126 = vrot.lane.b32.xlu0 %v4890, 32
      %v6127 = vpop.permute.xlu0 %6126
      %6128 = vrot.lane.b32.xlu0 %v4891, 32
      %v6129 = vpop.permute.xlu0 %6128
      %6130 = vrot.lane.b32.xlu0 %v4892, 32
      %v6131 = vpop.permute.xlu0 %6130
      %6132 = vrot.lane.b32.xlu0 %v4894, 32
      %v6133 = vpop.permute.xlu0 %6132
      %6134 = vrot.lane.b32.xlu0 %v4895, 32
      %v6135 = vpop.permute.xlu0 %6134
      %6136 = vrot.lane.b32.xlu0 %v4896, 32
      %v6137 = vpop.permute.xlu0 %6136
      %6138 = vrot.lane.b32.xlu0 %v4897, 32
      %v6139 = vpop.permute.xlu0 %6138
      %6140 = vrot.lane.b32.xlu0 %v4898, 32
      %v6141 = vpop.permute.xlu0 %6140
      %6142 = vrot.lane.b32.xlu0 %v4899, 32
      %v6143 = vpop.permute.xlu0 %6142
      %6144 = vrot.lane.b32.xlu0 %v4900, 32
      %v6145 = vpop.permute.xlu0 %6144
      %6146 = vrot.lane.b32.xlu0 %v4902, 32
      %v6147 = vpop.permute.xlu0 %6146
      %6148 = vrot.lane.b32.xlu0 %v4903, 32
      %v6149 = vpop.permute.xlu0 %6148
      %6150 = vrot.lane.b32.xlu0 %v4904, 32
      %v6151 = vpop.permute.xlu0 %6150
      %6152 = vrot.lane.b32.xlu0 %v4905, 32
      %v6153 = vpop.permute.xlu0 %6152
      %6154 = vrot.lane.b32.xlu0 %v4906, 32
      %v6155 = vpop.permute.xlu0 %6154
      %6156 = vrot.lane.b32.xlu0 %v4907, 32
      %v6157 = vpop.permute.xlu0 %6156
      %6158 = vrot.lane.b32.xlu0 %v4908, 32
      %v6159 = vpop.permute.xlu0 %6158
      %6160 = vrot.lane.b32.xlu0 %v4910, 32
      %v6161 = vpop.permute.xlu0 %6160
      %6162 = vrot.lane.b32.xlu0 %v4911, 32
      %v6163 = vpop.permute.xlu0 %6162
      %6164 = vrot.lane.b32.xlu0 %v4912, 32
      %v6165 = vpop.permute.xlu0 %6164
      %6166 = vrot.lane.b32.xlu0 %v4913, 32
      %v6167 = vpop.permute.xlu0 %6166
      %6168 = vrot.lane.b32.xlu0 %v4914, 32
      %v6169 = vpop.permute.xlu0 %6168
      %6170 = vrot.lane.b32.xlu0 %v4915, 32
      %v6171 = vpop.permute.xlu0 %6170
      %6172 = vrot.lane.b32.xlu0 %v4916, 32
      %v6173 = vpop.permute.xlu0 %6172
      %6174 = vrot.lane.b32.xlu0 %v4918, 32
      %v6175 = vpop.permute.xlu0 %6174
      %6176 = vrot.lane.b32.xlu0 %v4919, 32
      %v6177 = vpop.permute.xlu0 %6176
      %6178 = vrot.lane.b32.xlu0 %v4920, 32
      %v6179 = vpop.permute.xlu0 %6178
      %6180 = vrot.lane.b32.xlu0 %v4921, 32
      %v6181 = vpop.permute.xlu0 %6180
      %6182 = vrot.lane.b32.xlu0 %v4922, 32
      %v6183 = vpop.permute.xlu0 %6182
      %6184 = vrot.lane.b32.xlu0 %v4923, 32
      %v6185 = vpop.permute.xlu0 %6184
      %6186 = vrot.lane.b32.xlu0 %v4924, 32
      %v6187 = vpop.permute.xlu0 %6186
      %6188 = vrot.lane.b32.xlu0 %v4926, 32
      %v6189 = vpop.permute.xlu0 %6188
      %6190 = vrot.lane.b32.xlu0 %v4927, 32
      %v6191 = vpop.permute.xlu0 %6190
      %6192 = vrot.lane.b32.xlu0 %v4928, 32
      %v6193 = vpop.permute.xlu0 %6192
      %6194 = vrot.lane.b32.xlu0 %v4929, 32
      %v6195 = vpop.permute.xlu0 %6194
      %6196 = vrot.lane.b32.xlu0 %v4930, 32
      %v6197 = vpop.permute.xlu0 %6196
      %6198 = vrot.lane.b32.xlu0 %v4931, 32
      %v6199 = vpop.permute.xlu0 %6198
      %6200 = vrot.lane.b32.xlu0 %v4932, 32
      %v6201 = vpop.permute.xlu0 %6200
      %6202 = vrot.lane.b32.xlu0 %v4934, 32
      %v6203 = vpop.permute.xlu0 %6202
      %6204 = vrot.lane.b32.xlu0 %v4935, 32
      %v6205 = vpop.permute.xlu0 %6204
      %6206 = vrot.lane.b32.xlu0 %v4936, 32
      %v6207 = vpop.permute.xlu0 %6206
      %6208 = vrot.lane.b32.xlu0 %v4937, 32
      %v6209 = vpop.permute.xlu0 %6208
      %6210 = vrot.lane.b32.xlu0 %v4938, 32
      %v6211 = vpop.permute.xlu0 %6210
      %6212 = vrot.lane.b32.xlu0 %v4939, 32
      %v6213 = vpop.permute.xlu0 %6212
      %6214 = vrot.lane.b32.xlu0 %v4940, 32
      %v6215 = vpop.permute.xlu0 %6214
      %6216 = vrot.lane.b32.xlu0 %v4942, 32
      %v6217 = vpop.permute.xlu0 %6216
      %6218 = vrot.lane.b32.xlu0 %v4943, 32
      %v6219 = vpop.permute.xlu0 %6218
      %6220 = vrot.lane.b32.xlu0 %v4944, 32
      %v6221 = vpop.permute.xlu0 %6220
      %6222 = vrot.lane.b32.xlu0 %v4945, 32
      %v6223 = vpop.permute.xlu0 %6222
      %6224 = vrot.lane.b32.xlu0 %v4946, 32
      %v6225 = vpop.permute.xlu0 %6224
      %6226 = vrot.lane.b32.xlu0 %v4947, 32
      %v6227 = vpop.permute.xlu0 %6226
      %6228 = vrot.lane.b32.xlu0 %v4948, 32
      %v6229 = vpop.permute.xlu0 %6228
      %6230 = vrot.lane.b32.xlu0 %v4950, 32
      %v6231 = vpop.permute.xlu0 %6230
      %6232 = vrot.lane.b32.xlu0 %v4951, 32
      %v6233 = vpop.permute.xlu0 %6232
      %6234 = vrot.lane.b32.xlu0 %v4952, 32
      %v6235 = vpop.permute.xlu0 %6234
      %6236 = vrot.lane.b32.xlu0 %v4953, 32
      %v6237 = vpop.permute.xlu0 %6236
      %6238 = vrot.lane.b32.xlu0 %v4954, 32
      %v6239 = vpop.permute.xlu0 %6238
      %6240 = vrot.lane.b32.xlu0 %v4955, 32
      %v6241 = vpop.permute.xlu0 %6240
      %6242 = vrot.lane.b32.xlu0 %v4956, 32
      %v6243 = vpop.permute.xlu0 %6242
      %vm6244 = vcmask 31744
      %v6247 = vsel %vm6244, 0, %v5038
      %v6250 = vsel %vm6244, %v4861, %v5040
      %v6253 = vsel %vm6244, %v4862, %v5042
      %v6256 = vsel %vm6244, %v4863, %v5044
      %v6259 = vsel %vm6244, %v4864, %v5046
      %v6262 = vsel %vm6244, %v4865, %v5048
      %v6265 = vsel %vm6244, %v4866, %v5050
      %v6268 = vsel %vm6244, %v4867, %v5052
      %v6270 = vsel %vm6244, 0, %v5054
      %v6273 = vsel %vm6244, %v4869, %v5056
      %v6276 = vsel %vm6244, %v4870, %v5058
      %v6279 = vsel %vm6244, %v4871, %v5060
      %v6282 = vsel %vm6244, %v4872, %v5062
      %v6285 = vsel %vm6244, %v4873, %v5064
      %v6288 = vsel %vm6244, %v4874, %v5066
      %v6291 = vsel %vm6244, %v4875, %v5068
      %v6293 = vsel %vm6244, 0, %v5070
      %v6296 = vsel %vm6244, %v4877, %v5072
      %v6299 = vsel %vm6244, %v4878, %v5074
      %v6302 = vsel %vm6244, %v4879, %v5076
      %v6305 = vsel %vm6244, %v4880, %v5078
      %v6308 = vsel %vm6244, %v4881, %v5080
      %v6311 = vsel %vm6244, %v4882, %v5082
      %v6314 = vsel %vm6244, %v4883, %v5084
      %v6316 = vsel %vm6244, 0, %v5086
      %v6319 = vsel %vm6244, %v4885, %v5088
      %v6322 = vsel %vm6244, %v4886, %v5090
      %v6325 = vsel %vm6244, %v4887, %v5092
      %v6328 = vsel %vm6244, %v4888, %v5094
      %v6331 = vsel %vm6244, %v4889, %v5096
      %v6334 = vsel %vm6244, %v4890, %v5098
      %v6337 = vsel %vm6244, %v4891, %v5100
      %v6339 = vsel %vm6244, 0, %v5102
      %v6342 = vsel %vm6244, %v4893, %v5104
      %v6345 = vsel %vm6244, %v4894, %v5106
      %v6348 = vsel %vm6244, %v4895, %v5108
      %v6351 = vsel %vm6244, %v4896, %v5110
      %v6354 = vsel %vm6244, %v4897, %v5112
      %v6357 = vsel %vm6244, %v4898, %v5114
      %v6360 = vsel %vm6244, %v4899, %v5116
      %v6362 = vsel %vm6244, 0, %v5118
      %v6365 = vsel %vm6244, %v4901, %v5120
      %v6368 = vsel %vm6244, %v4902, %v5122
      %v6371 = vsel %vm6244, %v4903, %v5124
      %v6374 = vsel %vm6244, %v4904, %v5126
      %v6377 = vsel %vm6244, %v4905, %v5128
      %v6380 = vsel %vm6244, %v4906, %v5130
      %v6383 = vsel %vm6244, %v4907, %v5132
      %v6385 = vsel %vm6244, 0, %v5134
      %v6388 = vsel %vm6244, %v4909, %v5136
      %v6391 = vsel %vm6244, %v4910, %v5138
      %v6394 = vsel %vm6244, %v4911, %v5140
      %v6397 = vsel %vm6244, %v4912, %v5142
      %v6400 = vsel %vm6244, %v4913, %v5144
      %v6403 = vsel %vm6244, %v4914, %v5146
      %v6406 = vsel %vm6244, %v4915, %v5148
      %v6408 = vsel %vm6244, 0, %v5150
      %v6411 = vsel %vm6244, %v4917, %v5152
      %v6414 = vsel %vm6244, %v4918, %v5154
      %v6417 = vsel %vm6244, %v4919, %v5156
      %v6420 = vsel %vm6244, %v4920, %v5158
      %v6423 = vsel %vm6244, %v4921, %v5160
      %v6426 = vsel %vm6244, %v4922, %v5162
      %v6429 = vsel %vm6244, %v4923, %v5164
      %v6431 = vsel %vm6244, 0, %v5166
      %v6434 = vsel %vm6244, %v4925, %v5168
      %v6437 = vsel %vm6244, %v4926, %v5170
      %v6440 = vsel %vm6244, %v4927, %v5172
      %v6443 = vsel %vm6244, %v4928, %v5174
      %v6446 = vsel %vm6244, %v4929, %v5176
      %v6449 = vsel %vm6244, %v4930, %v5178
      %v6452 = vsel %vm6244, %v4931, %v5180
      %v6454 = vsel %vm6244, 0, %v5182
      %v6457 = vsel %vm6244, %v4933, %v5184
      %v6460 = vsel %vm6244, %v4934, %v5186
      %v6463 = vsel %vm6244, %v4935, %v5188
      %v6466 = vsel %vm6244, %v4936, %v5190
      %v6469 = vsel %vm6244, %v4937, %v5192
      %v6472 = vsel %vm6244, %v4938, %v5194
      %v6475 = vsel %vm6244, %v4939, %v5196
      %v6477 = vsel %vm522, %v6247, %v5199
      %v6479 = vsel %vm522, %v6250, %v5201
      %v6481 = vsel %vm522, %v6253, %v5203
      %v6483 = vsel %vm522, %v6256, %v5205
      %v6485 = vsel %vm522, %v6259, %v5207
      %v6487 = vsel %vm522, %v6262, %v5209
      %v6489 = vsel %vm522, %v6265, %v5211
      %v6491 = vsel %vm522, %v6268, %v5213
      %v6493 = vsel %vm522, %v6270, %v5215
      %v6495 = vsel %vm522, %v6273, %v5217
      %v6497 = vsel %vm522, %v6276, %v5219
      %v6499 = vsel %vm522, %v6279, %v5221
      %v6501 = vsel %vm522, %v6282, %v5223
      %v6503 = vsel %vm522, %v6285, %v5225
      %v6505 = vsel %vm522, %v6288, %v5227
      %v6506 = vsel %vm522, %v6291, %v5213
      %v6508 = vsel %vm522, %v6293, %v5229
      %v6510 = vsel %vm522, %v6296, %v5231
      %v6512 = vsel %vm522, %v6299, %v5233
      %v6514 = vsel %vm522, %v6302, %v5235
      %v6516 = vsel %vm522, %v6305, %v5237
      %v6518 = vsel %vm522, %v6308, %v5239
      %v6520 = vsel %vm522, %v6311, %v5241
      %v6521 = vsel %vm522, %v6314, %v5213
      %v6523 = vsel %vm522, %v6316, %v5243
      %v6525 = vsel %vm522, %v6319, %v5245
      %v6527 = vsel %vm522, %v6322, %v5247
      %v6529 = vsel %vm522, %v6325, %v5249
      %v6531 = vsel %vm522, %v6328, %v5251
      %v6533 = vsel %vm522, %v6331, %v5253
      %v6535 = vsel %vm522, %v6334, %v5255
      %v6536 = vsel %vm522, %v6337, %v5213
      %v6538 = vsel %vm522, %v6339, %v5257
      %v6540 = vsel %vm522, %v6342, %v5259
      %v6542 = vsel %vm522, %v6345, %v5261
      %v6544 = vsel %vm522, %v6348, %v5263
      %v6546 = vsel %vm522, %v6351, %v5265
      %v6548 = vsel %vm522, %v6354, %v5267
      %v6550 = vsel %vm522, %v6357, %v5269
      %v6551 = vsel %vm522, %v6360, %v5213
      %v6553 = vsel %vm522, %v6362, %v5271
      %v6555 = vsel %vm522, %v6365, %v5273
      %v6557 = vsel %vm522, %v6368, %v5275
      %v6559 = vsel %vm522, %v6371, %v5277
      %v6561 = vsel %vm522, %v6374, %v5279
      %v6563 = vsel %vm522, %v6377, %v5281
      %v6565 = vsel %vm522, %v6380, %v5283
      %v6566 = vsel %vm522, %v6383, %v5213
      %v6568 = vsel %vm522, %v6385, %v5285
      %v6570 = vsel %vm522, %v6388, %v5287
      %v6572 = vsel %vm522, %v6391, %v5289
      %v6574 = vsel %vm522, %v6394, %v5291
      %v6576 = vsel %vm522, %v6397, %v5293
      %v6578 = vsel %vm522, %v6400, %v5295
      %v6580 = vsel %vm522, %v6403, %v5297
      %v6581 = vsel %vm522, %v6406, %v5213
      %v6583 = vsel %vm522, %v6408, %v5299
      %v6585 = vsel %vm522, %v6411, %v5301
      %v6587 = vsel %vm522, %v6414, %v5303
      %v6589 = vsel %vm522, %v6417, %v5305
      %v6591 = vsel %vm522, %v6420, %v5307
      %v6593 = vsel %vm522, %v6423, %v5309
      %v6595 = vsel %vm522, %v6426, %v5311
      %v6596 = vsel %vm522, %v6429, %v5213
      %v6598 = vsel %vm522, %v6431, %v5313
      %v6600 = vsel %vm522, %v6434, %v5315
      %v6602 = vsel %vm522, %v6437, %v5317
      %v6604 = vsel %vm522, %v6440, %v5319
      %v6606 = vsel %vm522, %v6443, %v5321
      %v6608 = vsel %vm522, %v6446, %v5323
      %v6610 = vsel %vm522, %v6449, %v5325
      %v6611 = vsel %vm522, %v6452, %v5213
      %v6613 = vsel %vm522, %v6454, %v5327
      %v6615 = vsel %vm522, %v6457, %v5329
      %v6617 = vsel %vm522, %v6460, %v5331
      %v6619 = vsel %vm522, %v6463, %v5333
      %v6621 = vsel %vm522, %v6466, %v5335
      %v6623 = vsel %vm522, %v6469, %v5337
      %v6625 = vsel %vm522, %v6472, %v5339
      %v6626 = vsel %vm522, %v6475, %v5213
      %vm6627 = vcmask 97280
      %v6629 = vsel %vm6627, %v6477, %v5348
      %v6631 = vsel %vm6627, %v6479, %v5350
      %v6633 = vsel %vm6627, %v6481, %v5352
      %v6635 = vsel %vm6627, %v6483, %v5354
      %v6637 = vsel %vm6627, %v6485, %v5356
      %v6639 = vsel %vm6627, %v6487, %v5358
      %v6641 = vsel %vm6627, %v6489, %v5360
      %v6643 = vsel %vm6627, %v6491, %v5362
      %v6644 = vsel %vm6627, %v6493, %v5348
      %v6646 = vsel %vm6627, %v6495, %v5364
      %v6648 = vsel %vm6627, %v6497, %v5366
      %v6650 = vsel %vm6627, %v6499, %v5368
      %v6652 = vsel %vm6627, %v6501, %v5370
      %v6654 = vsel %vm6627, %v6503, %v5372
      %v6656 = vsel %vm6627, %v6505, %v5374
      %v6658 = vsel %vm6627, %v6506, %v5376
      %v6659 = vsel %vm6627, %v6508, %v5348
      %v6661 = vsel %vm6627, %v6510, %v5378
      %v6663 = vsel %vm6627, %v6512, %v5380
      %v6665 = vsel %vm6627, %v6514, %v5382
      %v6667 = vsel %vm6627, %v6516, %v5384
      %v6669 = vsel %vm6627, %v6518, %v5386
      %v6671 = vsel %vm6627, %v6520, %v5388
      %v6673 = vsel %vm6627, %v6521, %v5390
      %v6674 = vsel %vm6627, %v6523, %v5348
      %v6676 = vsel %vm6627, %v6525, %v5392
      %v6678 = vsel %vm6627, %v6527, %v5394
      %v6680 = vsel %vm6627, %v6529, %v5396
      %v6682 = vsel %vm6627, %v6531, %v5398
      %v6684 = vsel %vm6627, %v6533, %v5400
      %v6686 = vsel %vm6627, %v6535, %v5402
      %v6688 = vsel %vm6627, %v6536, %v5404
      %v6689 = vsel %vm6627, %v6538, %v5348
      %v6691 = vsel %vm6627, %v6540, %v5406
      %v6693 = vsel %vm6627, %v6542, %v5408
      %v6695 = vsel %vm6627, %v6544, %v5410
      %v6697 = vsel %vm6627, %v6546, %v5412
      %v6699 = vsel %vm6627, %v6548, %v5414
      %v6701 = vsel %vm6627, %v6550, %v5416
      %v6703 = vsel %vm6627, %v6551, %v5418
      %v6704 = vsel %vm6627, %v6553, %v5348
      %v6706 = vsel %vm6627, %v6555, %v5420
      %v6708 = vsel %vm6627, %v6557, %v5422
      %v6710 = vsel %vm6627, %v6559, %v5424
      %v6712 = vsel %vm6627, %v6561, %v5426
      %v6714 = vsel %vm6627, %v6563, %v5428
      %v6716 = vsel %vm6627, %v6565, %v5430
      %v6718 = vsel %vm6627, %v6566, %v5432
      %v6719 = vsel %vm6627, %v6568, %v5348
      %v6721 = vsel %vm6627, %v6570, %v5434
      %v6723 = vsel %vm6627, %v6572, %v5436
      %v6725 = vsel %vm6627, %v6574, %v5438
      %v6727 = vsel %vm6627, %v6576, %v5440
      %v6729 = vsel %vm6627, %v6578, %v5442
      %v6731 = vsel %vm6627, %v6580, %v5444
      %v6733 = vsel %vm6627, %v6581, %v5446
      %v6734 = vsel %vm6627, %v6583, %v5348
      %v6736 = vsel %vm6627, %v6585, %v5448
      %v6738 = vsel %vm6627, %v6587, %v5450
      %v6740 = vsel %vm6627, %v6589, %v5452
      %v6742 = vsel %vm6627, %v6591, %v5454
      %v6744 = vsel %vm6627, %v6593, %v5456
      %v6746 = vsel %vm6627, %v6595, %v5458
      %v6748 = vsel %vm6627, %v6596, %v5460
      %v6749 = vsel %vm6627, %v6598, %v5348
      %v6751 = vsel %vm6627, %v6600, %v5462
      %v6753 = vsel %vm6627, %v6602, %v5464
      %v6755 = vsel %vm6627, %v6604, %v5466
      %v6757 = vsel %vm6627, %v6606, %v5468
      %v6759 = vsel %vm6627, %v6608, %v5470
      %v6761 = vsel %vm6627, %v6610, %v5472
      %v6763 = vsel %vm6627, %v6611, %v5474
      %v6764 = vsel %vm6627, %v6613, %v5348
      %v6766 = vsel %vm6627, %v6615, %v5476
      %v6768 = vsel %vm6627, %v6617, %v5478
      %v6770 = vsel %vm6627, %v6619, %v5480
      %v6772 = vsel %vm6627, %v6621, %v5482
      %v6774 = vsel %vm6627, %v6623, %v5484
      %v6776 = vsel %vm6627, %v6625, %v5486
      %v6778 = vsel %vm6627, %v6626, %v5488
      %vm6779 = vcmask 130048
      %v6781 = vsel %vm6779, %v6629, %v5491
      %v6783 = vsel %vm6779, %v6631, %v5493
      %v6785 = vsel %vm6779, %v6633, %v5495
      %v6787 = vsel %vm6779, %v6635, %v5497
      %v6789 = vsel %vm6779, %v6637, %v5499
      %v6791 = vsel %vm6779, %v6639, %v5501
      %v6793 = vsel %vm6779, %v6641, %v5503
      %v6795 = vsel %vm6779, %v6643, %v5505
      %v6797 = vsel %vm6779, %v6644, %v5507
      %v6799 = vsel %vm6779, %v6646, %v5509
      %v6801 = vsel %vm6779, %v6648, %v5511
      %v6803 = vsel %vm6779, %v6650, %v5513
      %v6805 = vsel %vm6779, %v6652, %v5515
      %v6807 = vsel %vm6779, %v6654, %v5517
      %v6809 = vsel %vm6779, %v6656, %v5519
      %v6811 = vsel %vm6779, %v6658, %v5521
      %v6813 = vsel %vm6779, %v6659, %v5523
      %v6815 = vsel %vm6779, %v6661, %v5525
      %v6817 = vsel %vm6779, %v6663, %v5527
      %v6819 = vsel %vm6779, %v6665, %v5529
      %v6821 = vsel %vm6779, %v6667, %v5531
      %v6823 = vsel %vm6779, %v6669, %v5533
      %v6825 = vsel %vm6779, %v6671, %v5535
      %v6827 = vsel %vm6779, %v6673, %v5537
      %v6829 = vsel %vm6779, %v6674, %v5539
      %v6831 = vsel %vm6779, %v6676, %v5541
      %v6833 = vsel %vm6779, %v6678, %v5543
      %v6835 = vsel %vm6779, %v6680, %v5545
      %v6837 = vsel %vm6779, %v6682, %v5547
      %v6839 = vsel %vm6779, %v6684, %v5549
      %v6841 = vsel %vm6779, %v6686, %v5551
      %v6843 = vsel %vm6779, %v6688, %v5553
      %v6845 = vsel %vm6779, %v6689, %v5555
      %v6847 = vsel %vm6779, %v6691, %v5557
      %v6849 = vsel %vm6779, %v6693, %v5559
      %v6851 = vsel %vm6779, %v6695, %v5561
      %v6853 = vsel %vm6779, %v6697, %v5563
      %v6855 = vsel %vm6779, %v6699, %v5565
      %v6857 = vsel %vm6779, %v6701, %v5567
      %v6859 = vsel %vm6779, %v6703, %v5569
      %v6861 = vsel %vm6779, %v6704, %v5571
      %v6863 = vsel %vm6779, %v6706, %v5573
      %v6865 = vsel %vm6779, %v6708, %v5575
      %v6867 = vsel %vm6779, %v6710, %v5577
      %v6869 = vsel %vm6779, %v6712, %v5579
      %v6871 = vsel %vm6779, %v6714, %v5581
      %v6873 = vsel %vm6779, %v6716, %v5583
      %v6875 = vsel %vm6779, %v6718, %v5585
      %v6877 = vsel %vm6779, %v6719, %v5587
      %v6879 = vsel %vm6779, %v6721, %v5589
      %v6881 = vsel %vm6779, %v6723, %v5591
      %v6883 = vsel %vm6779, %v6725, %v5593
      %v6885 = vsel %vm6779, %v6727, %v5595
      %v6887 = vsel %vm6779, %v6729, %v5597
      %v6889 = vsel %vm6779, %v6731, %v5599
      %v6891 = vsel %vm6779, %v6733, %v5601
      %v6893 = vsel %vm6779, %v6734, %v5603
      %v6895 = vsel %vm6779, %v6736, %v5605
      %v6897 = vsel %vm6779, %v6738, %v5607
      %v6899 = vsel %vm6779, %v6740, %v5609
      %v6901 = vsel %vm6779, %v6742, %v5611
      %v6903 = vsel %vm6779, %v6744, %v5613
      %v6905 = vsel %vm6779, %v6746, %v5615
      %v6907 = vsel %vm6779, %v6748, %v5617
      %v6909 = vsel %vm6779, %v6749, %v5619
      %v6911 = vsel %vm6779, %v6751, %v5621
      %v6913 = vsel %vm6779, %v6753, %v5623
      %v6915 = vsel %vm6779, %v6755, %v5625
      %v6917 = vsel %vm6779, %v6757, %v5627
      %v6919 = vsel %vm6779, %v6759, %v5629
      %v6921 = vsel %vm6779, %v6761, %v5631
      %v6923 = vsel %vm6779, %v6763, %v5633
      %v6925 = vsel %vm6779, %v6764, %v5635
      %v6927 = vsel %vm6779, %v6766, %v5637
      %v6929 = vsel %vm6779, %v6768, %v5639
      %v6931 = vsel %vm6779, %v6770, %v5641
      %v6933 = vsel %vm6779, %v6772, %v5643
      %v6935 = vsel %vm6779, %v6774, %v5645
      %v6937 = vsel %vm6779, %v6776, %v5647
      %v6939 = vsel %vm6779, %v6778, %v5649
      %vm6940 = vcmask 162816
      %v6942 = vsel %vm6940, %v6781, %v5651
      %v6944 = vsel %vm6940, %v6783, %v5653
      %v6946 = vsel %vm6940, %v6785, %v5655
      %v6948 = vsel %vm6940, %v6787, %v5657
      %v6950 = vsel %vm6940, %v6789, %v5659
      %v6952 = vsel %vm6940, %v6791, %v5661
      %v6954 = vsel %vm6940, %v6793, %v5663
      %v6956 = vsel %vm6940, %v6795, %v5665
      %v6958 = vsel %vm6940, %v6797, %v5667
      %v6960 = vsel %vm6940, %v6799, %v5669
      %v6962 = vsel %vm6940, %v6801, %v5671
      %v6964 = vsel %vm6940, %v6803, %v5673
      %v6966 = vsel %vm6940, %v6805, %v5675
      %v6968 = vsel %vm6940, %v6807, %v5677
      %v6970 = vsel %vm6940, %v6809, %v5679
      %v6971 = vsel %vm6940, %v6811, %v5665
      %v6973 = vsel %vm6940, %v6813, %v5681
      %v6975 = vsel %vm6940, %v6815, %v5683
      %v6977 = vsel %vm6940, %v6817, %v5685
      %v6979 = vsel %vm6940, %v6819, %v5687
      %v6981 = vsel %vm6940, %v6821, %v5689
      %v6983 = vsel %vm6940, %v6823, %v5691
      %v6985 = vsel %vm6940, %v6825, %v5693
      %v6986 = vsel %vm6940, %v6827, %v5665
      %v6988 = vsel %vm6940, %v6829, %v5695
      %v6990 = vsel %vm6940, %v6831, %v5697
      %v6992 = vsel %vm6940, %v6833, %v5699
      %v6994 = vsel %vm6940, %v6835, %v5701
      %v6996 = vsel %vm6940, %v6837, %v5703
      %v6998 = vsel %vm6940, %v6839, %v5705
      %v7000 = vsel %vm6940, %v6841, %v5707
      %v7001 = vsel %vm6940, %v6843, %v5665
      %v7003 = vsel %vm6940, %v6845, %v5709
      %v7005 = vsel %vm6940, %v6847, %v5711
      %v7007 = vsel %vm6940, %v6849, %v5713
      %v7009 = vsel %vm6940, %v6851, %v5715
      %v7011 = vsel %vm6940, %v6853, %v5717
      %v7013 = vsel %vm6940, %v6855, %v5719
      %v7015 = vsel %vm6940, %v6857, %v5721
      %v7016 = vsel %vm6940, %v6859, %v5665
      %v7018 = vsel %vm6940, %v6861, %v5723
      %v7020 = vsel %vm6940, %v6863, %v5725
      %v7022 = vsel %vm6940, %v6865, %v5727
      %v7024 = vsel %vm6940, %v6867, %v5729
      %v7026 = vsel %vm6940, %v6869, %v5731
      %v7028 = vsel %vm6940, %v6871, %v5733
      %v7030 = vsel %vm6940, %v6873, %v5735
      %v7031 = vsel %vm6940, %v6875, %v5665
      %v7033 = vsel %vm6940, %v6877, %v5737
      %v7035 = vsel %vm6940, %v6879, %v5739
      %v7037 = vsel %vm6940, %v6881, %v5741
      %v7039 = vsel %vm6940, %v6883, %v5743
      %v7041 = vsel %vm6940, %v6885, %v5745
      %v7043 = vsel %vm6940, %v6887, %v5747
      %v7045 = vsel %vm6940, %v6889, %v5749
      %v7046 = vsel %vm6940, %v6891, %v5665
      %v7048 = vsel %vm6940, %v6893, %v5751
      %v7050 = vsel %vm6940, %v6895, %v5753
      %v7052 = vsel %vm6940, %v6897, %v5755
      %v7054 = vsel %vm6940, %v6899, %v5757
      %v7056 = vsel %vm6940, %v6901, %v5759
      %v7058 = vsel %vm6940, %v6903, %v5761
      %v7060 = vsel %vm6940, %v6905, %v5763
      %v7061 = vsel %vm6940, %v6907, %v5665
      %v7063 = vsel %vm6940, %v6909, %v5765
      %v7065 = vsel %vm6940, %v6911, %v5767
      %v7067 = vsel %vm6940, %v6913, %v5769
      %v7069 = vsel %vm6940, %v6915, %v5771
      %v7071 = vsel %vm6940, %v6917, %v5773
      %v7073 = vsel %vm6940, %v6919, %v5775
      %v7075 = vsel %vm6940, %v6921, %v5777
      %v7076 = vsel %vm6940, %v6923, %v5665
      %v7078 = vsel %vm6940, %v6925, %v5779
      %v7080 = vsel %vm6940, %v6927, %v5781
      %v7082 = vsel %vm6940, %v6929, %v5783
      %v7084 = vsel %vm6940, %v6931, %v5785
      %v7086 = vsel %vm6940, %v6933, %v5787
      %v7088 = vsel %vm6940, %v6935, %v5789
      %v7090 = vsel %vm6940, %v6937, %v5791
      %v7091 = vsel %vm6940, %v6939, %v5665
      %vm7092 = vcmask 195584
      %v7094 = vsel %vm7092, %v6942, %v5800
      %v7096 = vsel %vm7092, %v6944, %v5802
      %v7098 = vsel %vm7092, %v6946, %v5804
      %v7100 = vsel %vm7092, %v6948, %v5806
      %v7102 = vsel %vm7092, %v6950, %v5808
      %v7104 = vsel %vm7092, %v6952, %v5810
      %v7106 = vsel %vm7092, %v6954, %v5812
      %v7108 = vsel %vm7092, %v6956, %v5814
      %v7109 = vsel %vm7092, %v6958, %v5800
      %v7111 = vsel %vm7092, %v6960, %v5816
      %v7113 = vsel %vm7092, %v6962, %v5818
      %v7115 = vsel %vm7092, %v6964, %v5820
      %v7117 = vsel %vm7092, %v6966, %v5822
      %v7119 = vsel %vm7092, %v6968, %v5824
      %v7121 = vsel %vm7092, %v6970, %v5826
      %v7123 = vsel %vm7092, %v6971, %v5828
      %v7124 = vsel %vm7092, %v6973, %v5800
      %v7126 = vsel %vm7092, %v6975, %v5830
      %v7128 = vsel %vm7092, %v6977, %v5832
      %v7130 = vsel %vm7092, %v6979, %v5834
      %v7132 = vsel %vm7092, %v6981, %v5836
      %v7134 = vsel %vm7092, %v6983, %v5838
      %v7136 = vsel %vm7092, %v6985, %v5840
      %v7138 = vsel %vm7092, %v6986, %v5842
      %v7139 = vsel %vm7092, %v6988, %v5800
      %v7141 = vsel %vm7092, %v6990, %v5844
      %v7143 = vsel %vm7092, %v6992, %v5846
      %v7145 = vsel %vm7092, %v6994, %v5848
      %v7147 = vsel %vm7092, %v6996, %v5850
      %v7149 = vsel %vm7092, %v6998, %v5852
      %v7151 = vsel %vm7092, %v7000, %v5854
      %v7153 = vsel %vm7092, %v7001, %v5856
      %v7154 = vsel %vm7092, %v7003, %v5800
      %v7156 = vsel %vm7092, %v7005, %v5858
      %v7158 = vsel %vm7092, %v7007, %v5860
      %v7160 = vsel %vm7092, %v7009, %v5862
      %v7162 = vsel %vm7092, %v7011, %v5864
      %v7164 = vsel %vm7092, %v7013, %v5866
      %v7166 = vsel %vm7092, %v7015, %v5868
      %v7168 = vsel %vm7092, %v7016, %v5870
      %v7169 = vsel %vm7092, %v7018, %v5800
      %v7171 = vsel %vm7092, %v7020, %v5872
      %v7173 = vsel %vm7092, %v7022, %v5874
      %v7175 = vsel %vm7092, %v7024, %v5876
      %v7177 = vsel %vm7092, %v7026, %v5878
      %v7179 = vsel %vm7092, %v7028, %v5880
      %v7181 = vsel %vm7092, %v7030, %v5882
      %v7183 = vsel %vm7092, %v7031, %v5884
      %v7184 = vsel %vm7092, %v7033, %v5800
      %v7186 = vsel %vm7092, %v7035, %v5886
      %v7188 = vsel %vm7092, %v7037, %v5888
      %v7190 = vsel %vm7092, %v7039, %v5890
      %v7192 = vsel %vm7092, %v7041, %v5892
      %v7194 = vsel %vm7092, %v7043, %v5894
      %v7196 = vsel %vm7092, %v7045, %v5896
      %v7198 = vsel %vm7092, %v7046, %v5898
      %v7199 = vsel %vm7092, %v7048, %v5800
      %v7201 = vsel %vm7092, %v7050, %v5900
      %v7203 = vsel %vm7092, %v7052, %v5902
      %v7205 = vsel %vm7092, %v7054, %v5904
      %v7207 = vsel %vm7092, %v7056, %v5906
      %v7209 = vsel %vm7092, %v7058, %v5908
      %v7211 = vsel %vm7092, %v7060, %v5910
      %v7213 = vsel %vm7092, %v7061, %v5912
      %v7214 = vsel %vm7092, %v7063, %v5800
      %v7216 = vsel %vm7092, %v7065, %v5914
      %v7218 = vsel %vm7092, %v7067, %v5916
      %v7220 = vsel %vm7092, %v7069, %v5918
      %v7222 = vsel %vm7092, %v7071, %v5920
      %v7224 = vsel %vm7092, %v7073, %v5922
      %v7226 = vsel %vm7092, %v7075, %v5924
      %v7228 = vsel %vm7092, %v7076, %v5926
      %v7229 = vsel %vm7092, %v7078, %v5800
      %v7231 = vsel %vm7092, %v7080, %v5928
      %v7233 = vsel %vm7092, %v7082, %v5930
      %v7235 = vsel %vm7092, %v7084, %v5932
      %v7237 = vsel %vm7092, %v7086, %v5934
      %v7239 = vsel %vm7092, %v7088, %v5936
      %v7241 = vsel %vm7092, %v7090, %v5938
      %v7243 = vsel %vm7092, %v7091, %v5940
      %vm7244 = vcmask 228352
      %v7246 = vsel %vm7244, %v7094, %v5943
      %v7248 = vsel %vm7244, %v7096, %v5945
      %v7250 = vsel %vm7244, %v7098, %v5947
      %v7252 = vsel %vm7244, %v7100, %v5949
      %v7254 = vsel %vm7244, %v7102, %v5951
      %v7256 = vsel %vm7244, %v7104, %v5953
      %v7258 = vsel %vm7244, %v7106, %v5955
      %v7260 = vsel %vm7244, %v7108, %v5957
      %v7262 = vsel %vm7244, %v7109, %v5959
      %v7264 = vsel %vm7244, %v7111, %v5961
      %v7266 = vsel %vm7244, %v7113, %v5963
      %v7268 = vsel %vm7244, %v7115, %v5965
      %v7270 = vsel %vm7244, %v7117, %v5967
      %v7272 = vsel %vm7244, %v7119, %v5969
      %v7274 = vsel %vm7244, %v7121, %v5971
      %v7276 = vsel %vm7244, %v7123, %v5973
      %v7278 = vsel %vm7244, %v7124, %v5975
      %v7280 = vsel %vm7244, %v7126, %v5977
      %v7282 = vsel %vm7244, %v7128, %v5979
      %v7284 = vsel %vm7244, %v7130, %v5981
      %v7286 = vsel %vm7244, %v7132, %v5983
      %v7288 = vsel %vm7244, %v7134, %v5985
      %v7290 = vsel %vm7244, %v7136, %v5987
      %v7292 = vsel %vm7244, %v7138, %v5989
      %v7294 = vsel %vm7244, %v7139, %v5991
      %v7296 = vsel %vm7244, %v7141, %v5993
      %v7298 = vsel %vm7244, %v7143, %v5995
      %v7300 = vsel %vm7244, %v7145, %v5997
      %v7302 = vsel %vm7244, %v7147, %v5999
      %v7304 = vsel %vm7244, %v7149, %v6001
      %v7306 = vsel %vm7244, %v7151, %v6003
      %v7308 = vsel %vm7244, %v7153, %v6005
      %v7310 = vsel %vm7244, %v7154, %v6007
      %v7312 = vsel %vm7244, %v7156, %v6009
      %v7314 = vsel %vm7244, %v7158, %v6011
      %v7316 = vsel %vm7244, %v7160, %v6013
      %v7318 = vsel %vm7244, %v7162, %v6015
      %v7320 = vsel %vm7244, %v7164, %v6017
      %v7322 = vsel %vm7244, %v7166, %v6019
      %v7324 = vsel %vm7244, %v7168, %v6021
      %v7326 = vsel %vm7244, %v7169, %v6023
      %v7328 = vsel %vm7244, %v7171, %v6025
      %v7330 = vsel %vm7244, %v7173, %v6027
      %v7332 = vsel %vm7244, %v7175, %v6029
      %v7334 = vsel %vm7244, %v7177, %v6031
      %v7336 = vsel %vm7244, %v7179, %v6033
      %v7338 = vsel %vm7244, %v7181, %v6035
      %v7340 = vsel %vm7244, %v7183, %v6037
      %v7342 = vsel %vm7244, %v7184, %v6039
      %v7344 = vsel %vm7244, %v7186, %v6041
      %v7346 = vsel %vm7244, %v7188, %v6043
      %v7348 = vsel %vm7244, %v7190, %v6045
      %v7350 = vsel %vm7244, %v7192, %v6047
      %v7352 = vsel %vm7244, %v7194, %v6049
      %v7354 = vsel %vm7244, %v7196, %v6051
      %v7356 = vsel %vm7244, %v7198, %v6053
      %v7358 = vsel %vm7244, %v7199, %v6055
      %v7360 = vsel %vm7244, %v7201, %v6057
      %v7362 = vsel %vm7244, %v7203, %v6059
      %v7364 = vsel %vm7244, %v7205, %v6061
      %v7366 = vsel %vm7244, %v7207, %v6063
      %v7368 = vsel %vm7244, %v7209, %v6065
      %v7370 = vsel %vm7244, %v7211, %v6067
      %v7372 = vsel %vm7244, %v7213, %v6069
      %v7374 = vsel %vm7244, %v7214, %v6071
      %v7376 = vsel %vm7244, %v7216, %v6073
      %v7378 = vsel %vm7244, %v7218, %v6075
      %v7380 = vsel %vm7244, %v7220, %v6077
      %v7382 = vsel %vm7244, %v7222, %v6079
      %v7384 = vsel %vm7244, %v7224, %v6081
      %v7386 = vsel %vm7244, %v7226, %v6083
      %v7388 = vsel %vm7244, %v7228, %v6085
      %v7390 = vsel %vm7244, %v7229, %v6087
      %v7392 = vsel %vm7244, %v7231, %v6089
      %v7394 = vsel %vm7244, %v7233, %v6091
      %v7396 = vsel %vm7244, %v7235, %v6093
      %v7398 = vsel %vm7244, %v7237, %v6095
      %v7400 = vsel %vm7244, %v7239, %v6097
      %v7402 = vsel %vm7244, %v7241, %v6099
      %v7404 = vsel %vm7244, %v7243, %v6101
      %vm7405 = vcmask 261120
      %v7407 = vsel %vm7405, %v7246, %v6103
      %v7409 = vsel %vm7405, %v7248, %v6105
      %v7411 = vsel %vm7405, %v7250, %v6107
      %v7413 = vsel %vm7405, %v7252, %v6109
      %v7415 = vsel %vm7405, %v7254, %v6111
      %v7417 = vsel %vm7405, %v7256, %v6113
      %v7419 = vsel %vm7405, %v7258, %v6115
      %v7421 = vsel %vm7405, %v7260, %v6117
      %v7423 = vsel %vm7405, %v7262, %v6119
      %v7425 = vsel %vm7405, %v7264, %v6121
      %v7427 = vsel %vm7405, %v7266, %v6123
      %v7429 = vsel %vm7405, %v7268, %v6125
      %v7431 = vsel %vm7405, %v7270, %v6127
      %v7433 = vsel %vm7405, %v7272, %v6129
      %v7435 = vsel %vm7405, %v7274, %v6131
      %v7436 = vsel %vm7405, %v7276, %v6117
      %v7438 = vsel %vm7405, %v7278, %v6133
      %v7440 = vsel %vm7405, %v7280, %v6135
      %v7442 = vsel %vm7405, %v7282, %v6137
      %v7444 = vsel %vm7405, %v7284, %v6139
      %v7446 = vsel %vm7405, %v7286, %v6141
      %v7448 = vsel %vm7405, %v7288, %v6143
      %v7450 = vsel %vm7405, %v7290, %v6145
      %v7451 = vsel %vm7405, %v7292, %v6117
      %v7453 = vsel %vm7405, %v7294, %v6147
      %v7455 = vsel %vm7405, %v7296, %v6149
      %v7457 = vsel %vm7405, %v7298, %v6151
      %v7459 = vsel %vm7405, %v7300, %v6153
      %v7461 = vsel %vm7405, %v7302, %v6155
      %v7463 = vsel %vm7405, %v7304, %v6157
      %v7465 = vsel %vm7405, %v7306, %v6159
      %v7466 = vsel %vm7405, %v7308, %v6117
      %v7468 = vsel %vm7405, %v7310, %v6161
      %v7470 = vsel %vm7405, %v7312, %v6163
      %v7472 = vsel %vm7405, %v7314, %v6165
      %v7474 = vsel %vm7405, %v7316, %v6167
      %v7476 = vsel %vm7405, %v7318, %v6169
      %v7478 = vsel %vm7405, %v7320, %v6171
      %v7480 = vsel %vm7405, %v7322, %v6173
      %v7481 = vsel %vm7405, %v7324, %v6117
      %v7483 = vsel %vm7405, %v7326, %v6175
      %v7485 = vsel %vm7405, %v7328, %v6177
      %v7487 = vsel %vm7405, %v7330, %v6179
      %v7489 = vsel %vm7405, %v7332, %v6181
      %v7491 = vsel %vm7405, %v7334, %v6183
      %v7493 = vsel %vm7405, %v7336, %v6185
      %v7495 = vsel %vm7405, %v7338, %v6187
      %v7496 = vsel %vm7405, %v7340, %v6117
      %v7498 = vsel %vm7405, %v7342, %v6189
      %v7500 = vsel %vm7405, %v7344, %v6191
      %v7502 = vsel %vm7405, %v7346, %v6193
      %v7504 = vsel %vm7405, %v7348, %v6195
      %v7506 = vsel %vm7405, %v7350, %v6197
      %v7508 = vsel %vm7405, %v7352, %v6199
      %v7510 = vsel %vm7405, %v7354, %v6201
      %v7511 = vsel %vm7405, %v7356, %v6117
      %v7513 = vsel %vm7405, %v7358, %v6203
      %v7515 = vsel %vm7405, %v7360, %v6205
      %v7517 = vsel %vm7405, %v7362, %v6207
      %v7519 = vsel %vm7405, %v7364, %v6209
      %v7521 = vsel %vm7405, %v7366, %v6211
      %v7523 = vsel %vm7405, %v7368, %v6213
      %v7525 = vsel %vm7405, %v7370, %v6215
      %v7526 = vsel %vm7405, %v7372, %v6117
      %v7528 = vsel %vm7405, %v7374, %v6217
      %v7530 = vsel %vm7405, %v7376, %v6219
      %v7532 = vsel %vm7405, %v7378, %v6221
      %v7534 = vsel %vm7405, %v7380, %v6223
      %v7536 = vsel %vm7405, %v7382, %v6225
      %v7538 = vsel %vm7405, %v7384, %v6227
      %v7540 = vsel %vm7405, %v7386, %v6229
      %v7541 = vsel %vm7405, %v7388, %v6117
      %v7543 = vsel %vm7405, %v7390, %v6231
      %v7545 = vsel %vm7405, %v7392, %v6233
      %v7547 = vsel %vm7405, %v7394, %v6235
      %v7549 = vsel %vm7405, %v7396, %v6237
      %v7551 = vsel %vm7405, %v7398, %v6239
      %v7553 = vsel %vm7405, %v7400, %v6241
      %v7555 = vsel %vm7405, %v7402, %v6243
      %v7556 = vsel %vm7405, %v7404, %v6117
      %v7557 = vld [vmem:[%s3] sm:$0xf]
      %v7558 = vld [vmem:[%s3 + $0x4] sm:$0xf]
      %v7559 = vld [vmem:[%s3 + $0x8] sm:$0xf]
      %v7560 = vld [vmem:[%s3 + $0xc] sm:$0xf]
      %v7561 = vld [vmem:[%s3 + $0x10] sm:$0x3]
      %v7562 = vld [vmem:[%s4] sm:$0x1]
      %v7564 = vlaneseq
      %v7565 = vshrl.u32 %v7564, 7
      %v7566 = vsub.s32 0, %v7565
      %v7567 = vrot.slane %v7562, %v7566
      %v7649 = vunpack.c.l.b16 %v7407
      %v7650 = vunpack.c.l.b16 %v7409
      %v7651 = vunpack.c.l.b16 %v7411
      %v7652 = vunpack.c.l.b16 %v7413
      %v7653 = vunpack.c.l.b16 %v7415
      %v7654 = vunpack.c.l.b16 %v7417
      %v7655 = vunpack.c.l.b16 %v7419
      %v7656 = vunpack.c.l.b16 %v7421
      %v7657 = vunpack.c.l.b16 %v7423
      %v7658 = vunpack.c.l.b16 %v7425
      %v7659 = vunpack.c.l.b16 %v7427
      %v7660 = vunpack.c.l.b16 %v7429
      %v7661 = vunpack.c.l.b16 %v7431
      %v7662 = vunpack.c.l.b16 %v7433
      %v7663 = vunpack.c.l.b16 %v7435
      %v7664 = vunpack.c.l.b16 %v7436
      %v7665 = vunpack.c.l.b16 %v7438
      %v7666 = vunpack.c.l.b16 %v7440
      %v7667 = vunpack.c.l.b16 %v7442
      %v7668 = vunpack.c.l.b16 %v7444
      %v7669 = vunpack.c.l.b16 %v7446
      %v7670 = vunpack.c.l.b16 %v7448
      %v7671 = vunpack.c.l.b16 %v7450
      %v7672 = vunpack.c.l.b16 %v7451
      %v7673 = vunpack.c.l.b16 %v7453
      %v7674 = vunpack.c.l.b16 %v7455
      %v7675 = vunpack.c.l.b16 %v7457
      %v7676 = vunpack.c.l.b16 %v7459
      %v7677 = vunpack.c.l.b16 %v7461
      %v7678 = vunpack.c.l.b16 %v7463
      %v7679 = vunpack.c.l.b16 %v7465
      %v7680 = vunpack.c.l.b16 %v7466
      %v7681 = vunpack.c.l.b16 %v7468
      %v7682 = vunpack.c.l.b16 %v7470
      %v7683 = vunpack.c.l.b16 %v7472
      %v7684 = vunpack.c.l.b16 %v7474
      %v7685 = vunpack.c.l.b16 %v7476
      %v7686 = vunpack.c.l.b16 %v7478
      %v7687 = vunpack.c.l.b16 %v7480
      %v7688 = vunpack.c.l.b16 %v7481
      %v7689 = vunpack.c.l.b16 %v7483
      %v7690 = vunpack.c.l.b16 %v7485
      %v7691 = vunpack.c.l.b16 %v7487
      %v7692 = vunpack.c.l.b16 %v7489
      %v7693 = vunpack.c.l.b16 %v7491
      %v7694 = vunpack.c.l.b16 %v7493
      %v7695 = vunpack.c.l.b16 %v7495
      %v7696 = vunpack.c.l.b16 %v7496
      %v7697 = vunpack.c.l.b16 %v7498
      %v7698 = vunpack.c.l.b16 %v7500
      %v7699 = vunpack.c.l.b16 %v7502
      %v7700 = vunpack.c.l.b16 %v7504
      %v7701 = vunpack.c.l.b16 %v7506
      %v7702 = vunpack.c.l.b16 %v7508
      %v7703 = vunpack.c.l.b16 %v7510
      %v7704 = vunpack.c.l.b16 %v7511
      %v7705 = vunpack.c.l.b16 %v7513
      %v7706 = vunpack.c.l.b16 %v7515
      %v7707 = vunpack.c.l.b16 %v7517
      %v7708 = vunpack.c.l.b16 %v7519
      %v7709 = vunpack.c.l.b16 %v7521
      %v7710 = vunpack.c.l.b16 %v7523
      %v7711 = vunpack.c.l.b16 %v7525
      %v7712 = vunpack.c.l.b16 %v7526
      %v7713 = vunpack.c.l.b16 %v7528
      %v7714 = vunpack.c.l.b16 %v7530
      %v7715 = vunpack.c.l.b16 %v7532
      %v7716 = vunpack.c.l.b16 %v7534
      %v7717 = vunpack.c.l.b16 %v7536
      %v7718 = vunpack.c.l.b16 %v7538
      %v7719 = vunpack.c.l.b16 %v7540
      %v7720 = vunpack.c.l.b16 %v7541
      %v7721 = vunpack.c.l.b16 %v7543
      %v7722 = vunpack.c.l.b16 %v7545
      %v7723 = vunpack.c.l.b16 %v7547
      %v7724 = vunpack.c.l.b16 %v7549
      %v7725 = vunpack.c.l.b16 %v7551
      %v7726 = vunpack.c.l.b16 %v7553
      %v7727 = vunpack.c.l.b16 %v7555
      %v7728 = vunpack.c.l.b16 %v7556
      %v7729 = vpack.c.b16 %v7650, %v7649
      %v7730 = vpack.c.b16 %v7652, %v7651
      %v7731 = vpack.c.b16 %v7654, %v7653
      %v7732 = vpack.c.b16 %v7656, %v7655
      %v7733 = vpack.c.b16 %v7658, %v7657
      %v7734 = vpack.c.b16 %v7660, %v7659
      %v7735 = vpack.c.b16 %v7662, %v7661
      %v7736 = vpack.c.b16 %v7664, %v7663
      %v7737 = vpack.c.b16 %v7666, %v7665
      %v7738 = vpack.c.b16 %v7668, %v7667
      %v7739 = vpack.c.b16 %v7670, %v7669
      %v7740 = vpack.c.b16 %v7672, %v7671
      %v7741 = vpack.c.b16 %v7674, %v7673
      %v7742 = vpack.c.b16 %v7676, %v7675
      %v7743 = vpack.c.b16 %v7678, %v7677
      %v7744 = vpack.c.b16 %v7680, %v7679
      %v7745 = vpack.c.b16 %v7682, %v7681
      %v7746 = vpack.c.b16 %v7684, %v7683
      %v7747 = vpack.c.b16 %v7686, %v7685
      %v7748 = vpack.c.b16 %v7688, %v7687
      %v7749 = vpack.c.b16 %v7690, %v7689
      %v7750 = vpack.c.b16 %v7692, %v7691
      %v7751 = vpack.c.b16 %v7694, %v7693
      %v7752 = vpack.c.b16 %v7696, %v7695
      %v7753 = vpack.c.b16 %v7698, %v7697
      %v7754 = vpack.c.b16 %v7700, %v7699
      %v7755 = vpack.c.b16 %v7702, %v7701
      %v7756 = vpack.c.b16 %v7704, %v7703
      %v7757 = vpack.c.b16 %v7706, %v7705
      %v7758 = vpack.c.b16 %v7708, %v7707
      %v7759 = vpack.c.b16 %v7710, %v7709
      %v7760 = vpack.c.b16 %v7712, %v7711
      %v7761 = vpack.c.b16 %v7714, %v7713
      %v7762 = vpack.c.b16 %v7716, %v7715
      %v7763 = vpack.c.b16 %v7718, %v7717
      %v7764 = vpack.c.b16 %v7720, %v7719
      %v7765 = vpack.c.b16 %v7722, %v7721
      %v7766 = vpack.c.b16 %v7724, %v7723
      %v7767 = vpack.c.b16 %v7726, %v7725
      %v7768 = vpack.c.b16 %v7728, %v7727
      %v7774 = vunpack.c.l.b16 %v7557
      %v7775 = vunpack.c.l.b16 %v7558
      %v7776 = vunpack.c.l.b16 %v7559
      %v7777 = vunpack.c.l.b16 %v7560
      %v7778 = vunpack.c.l.b16 %v7561
      %v7779 = vpack.c.b16 %v7775, %v7774
      %v7780 = vpack.c.b16 %v7777, %v7776
      %v7781 = vpack.c.b16 %v7778, %v7778
      %vm7784 = vcmask 293888
      %v7786 = vsel %vm7784, %v7729, 0
      %v7789 = vsel %vm7784, %v7730, 0
      %v7792 = vsel %vm7784, %v7731, 0
      %v7795 = vsel %vm7784, %v7732, 0
      %v7798 = vsel %vm7784, %v7733, 0
      %v7801 = vsel %vm7784, %v7734, 0
      %v7804 = vsel %vm7784, %v7735, 0
      %v7807 = vsel %vm7784, %v7736, 0
      %v7810 = vsel %vm7784, %v7737, 0
      %v7813 = vsel %vm7784, %v7738, 0
      %v7816 = vsel %vm7784, %v7739, 0
      %v7819 = vsel %vm7784, %v7740, 0
      %v7822 = vsel %vm7784, %v7741, 0
      %v7825 = vsel %vm7784, %v7742, 0
      %v7828 = vsel %vm7784, %v7743, 0
      %v7831 = vsel %vm7784, %v7744, 0
      %v7834 = vsel %vm7784, %v7745, 0
      %v7837 = vsel %vm7784, %v7746, 0
      %v7840 = vsel %vm7784, %v7747, 0
      %v7843 = vsel %vm7784, %v7748, 0
      %v7846 = vsel %vm7784, %v7749, 0
      %v7849 = vsel %vm7784, %v7750, 0
      %v7852 = vsel %vm7784, %v7751, 0
      %v7855 = vsel %vm7784, %v7752, 0
      %v7858 = vsel %vm7784, %v7753, 0
      %v7861 = vsel %vm7784, %v7754, 0
      %v7864 = vsel %vm7784, %v7755, 0
      %v7867 = vsel %vm7784, %v7756, 0
      %v7870 = vsel %vm7784, %v7757, 0
      %v7873 = vsel %vm7784, %v7758, 0
      %v7876 = vsel %vm7784, %v7759, 0
      %v7879 = vsel %vm7784, %v7760, 0
      %v7882 = vsel %vm7784, %v7761, 0
      %v7885 = vsel %vm7784, %v7762, 0
      %v7888 = vsel %vm7784, %v7763, 0
      %v7891 = vsel %vm7784, %v7764, 0
      %v7894 = vsel %vm7784, %v7765, 0
      %v7897 = vsel %vm7784, %v7766, 0
      %v7900 = vsel %vm7784, %v7767, 0
      %v7903 = vsel %vm7784, %v7768, 0
      %vm7905 = vcmask 1041408
      %v7907 = vsel %vm7905, %v7781, 0
      %7909 = vmatprep.subr.bf16.mxu0 0
      %7910 = vmatpush1.bf16.msra.mxu0 %v7779
      %7911 = vmatprep.subr.bf16.mxu0 0
      %7912 = vmatpush1.bf16.msra.mxu0 %v7780
      %7913 = vmatprep.subr.bf16.mxu0 0
      %7914 = vmatpush1.bf16.msra.mxu0 %v7907
      %7915 = vmatprep.subr.bf16.mxu0 0
      %7916 = vmatpush1.bf16.msra.mxu0 0
      %7917 = vmatprep.subr.bf16.mxu0 0
      %7918 = vmatpush1.bf16.msra.mxu0 0
      %7919 = vmatprep.subr.bf16.mxu0 0
      %7920 = vmatpush1.bf16.msra.mxu0 0
      %7921 = vmatprep.subr.bf16.mxu0 0
      %7922 = vmatpush1.bf16.msra.mxu0 0
      %7923 = vmatprep.subr.bf16.mxu0 0
      %7924 = vmatpush1.bf16.msra.mxu0 0
      %7925 = vmatprep.subr.bf16.mxu0 0
      %7926 = vmatpush1.bf16.msra.mxu0 0
      %7927 = vmatprep.subr.bf16.mxu0 0
      %7928 = vmatpush1.bf16.msra.mxu0 0
      %7929 = vmatprep.subr.bf16.mxu0 0
      %7930 = vmatpush1.bf16.msra.mxu0 0
      %7931 = vmatprep.subr.bf16.mxu0 0
      %7932 = vmatpush1.bf16.msra.mxu0 0
      %7933 = vmatprep.subr.bf16.mxu0 0
      %7934 = vmatpush1.bf16.msra.mxu0 0
      %7935 = vmatprep.subr.bf16.mxu0 0
      %7936 = vmatpush1.bf16.msra.mxu0 0
      %7937 = vmatprep.subr.bf16.mxu0 0
      %7938 = vmatpush1.bf16.msra.mxu0 0
      %7939 = vmatprep.subr.bf16.mxu0 0
      %7940 = vmatpush1.bf16.msra.mxu0 0
      %7941 = vmatprep.mubr.bf16.mxu0 0
      %7942 = vmatmul.mubr.bf16.gmra.mrb[0].mxu0 %v7786
      %v7943 = vpop.f32.mrb[0].mxu0
      %v7944 = vadd.f32 %v7567, %v7943
      %v7945 = vpop.f32.mrb[0].mxu0
      %v7946 = vpop.f32.mrb[0].mxu0
      %v7947 = vadd.f32 %v7567, %v7946
      %v7948 = vpop.f32.mrb[0].mxu0
      %7949 = vmatprep.mubr.bf16.mxu0 0
      %7950 = vmatmul.mubr.bf16.gmra.mrb[0].mxu0 %v7789
      %v7951 = vpop.f32.mrb[0].mxu0
      %v7952 = vadd.f32 %v7567, %v7951
      %v7953 = vpop.f32.mrb[0].mxu0
      %v7954 = vpop.f32.mrb[0].mxu0
      %v7955 = vadd.f32 %v7567, %v7954
      %v7956 = vpop.f32.mrb[0].mxu0
      %7957 = vmatprep.mubr.bf16.mxu0 0
      %7958 = vmatmul.mubr.bf16.gmra.mrb[0].mxu0 %v7792
      %v7959 = vpop.f32.mrb[0].mxu0
      %v7960 = vadd.f32 %v7567, %v7959
      %v7961 = vpop.f32.mrb[0].mxu0
      %v7962 = vpop.f32.mrb[0].mxu0
      %v7963 = vadd.f32 %v7567, %v7962
      %v7964 = vpop.f32.mrb[0].mxu0
      %7965 = vmatprep.mubr.bf16.mxu0 0
      %7966 = vmatmul.mubr.bf16.gmra.mrb[0].mxu0 %v7795
      %v7967 = vpop.f32.mrb[0].mxu0
      %v7968 = vadd.f32 %v7567, %v7967
      %v7969 = vpop.f32.mrb[0].mxu0
      %v7970 = vpop.f32.mrb[0].mxu0
      %v7971 = vadd.f32 %v7567, %v7970
      %v7972 = vpop.f32.mrb[0].mxu0
      %7973 = vmatprep.mubr.bf16.mxu0 0
      %7974 = vmatmul.mubr.bf16.gmra.mrb[0].mxu0 %v7798
      %v7975 = vpop.f32.mrb[0].mxu0
      %v7976 = vadd.f32 %v7567, %v7975
      %v7977 = vpop.f32.mrb[0].mxu0
      %v7978 = vpop.f32.mrb[0].mxu0
      %v7979 = vadd.f32 %v7567, %v7978
      %v7980 = vpop.f32.mrb[0].mxu0
      %7981 = vmatprep.mubr.bf16.mxu0 0
      %7982 = vmatmul.mubr.bf16.gmra.mrb[0].mxu0 %v7801
      %v7983 = vpop.f32.mrb[0].mxu0
      %v7984 = vadd.f32 %v7567, %v7983
      %v7985 = vpop.f32.mrb[0].mxu0
      %v7986 = vpop.f32.mrb[0].mxu0
      %v7987 = vadd.f32 %v7567, %v7986
      %v7988 = vpop.f32.mrb[0].mxu0
      %7989 = vmatprep.mubr.bf16.mxu0 0
      %7990 = vmatmul.mubr.bf16.gmra.mrb[0].mxu0 %v7804
      %v7991 = vpop.f32.mrb[0].mxu0
      %v7992 = vadd.f32 %v7567, %v7991
      %v7993 = vpop.f32.mrb[0].mxu0
      %v7994 = vpop.f32.mrb[0].mxu0
      %v7995 = vadd.f32 %v7567, %v7994
      %v7996 = vpop.f32.mrb[0].mxu0
      %7997 = vmatprep.mubr.bf16.mxu0 0
      %7998 = vmatmul.mubr.bf16.gmra.mrb[0].mxu0 %v7807
      %v7999 = vpop.f32.mrb[0].mxu0
      %v8000 = vadd.f32 %v7567, %v7999
      %v8001 = vpop.f32.mrb[0].mxu0
      %v8002 = vpop.f32.mrb[0].mxu0
      %v8003 = vadd.f32 %v7567, %v8002
      %v8004 = vpop.f32.mrb[0].mxu0
      %8005 = vmatprep.mubr.bf16.mxu0 0
      %8006 = vmatmul.mubr.bf16.gmra.mrb[0].mxu0 %v7810
      %v8007 = vpop.f32.mrb[0].mxu0
      %v8008 = vadd.f32 %v7567, %v8007
      %v8009 = vpop.f32.mrb[0].mxu0
      %v8010 = vpop.f32.mrb[0].mxu0
      %v8011 = vadd.f32 %v7567, %v8010
      %v8012 = vpop.f32.mrb[0].mxu0
      %8013 = vmatprep.mubr.bf16.mxu0 0
      %8014 = vmatmul.mubr.bf16.gmra.mrb[0].mxu0 %v7813
      %v8015 = vpop.f32.mrb[0].mxu0
      %v8016 = vadd.f32 %v7567, %v8015
      %v8017 = vpop.f32.mrb[0].mxu0
      %v8018 = vpop.f32.mrb[0].mxu0
      %v8019 = vadd.f32 %v7567, %v8018
      %v8020 = vpop.f32.mrb[0].mxu0
      %8021 = vmatprep.mubr.bf16.mxu0 0
      %8022 = vmatmul.mubr.bf16.gmra.mrb[0].mxu0 %v7816
      %v8023 = vpop.f32.mrb[0].mxu0
      %v8024 = vadd.f32 %v7567, %v8023
      %v8025 = vpop.f32.mrb[0].mxu0
      %v8026 = vpop.f32.mrb[0].mxu0
      %v8027 = vadd.f32 %v7567, %v8026
      %v8028 = vpop.f32.mrb[0].mxu0
      %8029 = vmatprep.mubr.bf16.mxu0 0
      %8030 = vmatmul.mubr.bf16.gmra.mrb[0].mxu0 %v7819
      %v8031 = vpop.f32.mrb[0].mxu0
      %v8032 = vadd.f32 %v7567, %v8031
      %v8033 = vpop.f32.mrb[0].mxu0
      %v8034 = vpop.f32.mrb[0].mxu0
      %v8035 = vadd.f32 %v7567, %v8034
      %v8036 = vpop.f32.mrb[0].mxu0
      %8037 = vmatprep.mubr.bf16.mxu0 0
      %8038 = vmatmul.mubr.bf16.gmra.mrb[0].mxu0 %v7822
      %v8039 = vpop.f32.mrb[0].mxu0
      %v8040 = vadd.f32 %v7567, %v8039
      %v8041 = vpop.f32.mrb[0].mxu0
      %v8042 = vpop.f32.mrb[0].mxu0
      %v8043 = vadd.f32 %v7567, %v8042
      %v8044 = vpop.f32.mrb[0].mxu0
      %8045 = vmatprep.mubr.bf16.mxu0 0
      %8046 = vmatmul.mubr.bf16.gmra.mrb[0].mxu0 %v7825
      %v8047 = vpop.f32.mrb[0].mxu0
      %v8048 = vadd.f32 %v7567, %v8047
      %v8049 = vpop.f32.mrb[0].mxu0
      %v8050 = vpop.f32.mrb[0].mxu0
      %v8051 = vadd.f32 %v7567, %v8050
      %v8052 = vpop.f32.mrb[0].mxu0
      %8053 = vmatprep.mubr.bf16.mxu0 0
      %8054 = vmatmul.mubr.bf16.gmra.mrb[0].mxu0 %v7828
      %v8055 = vpop.f32.mrb[0].mxu0
      %v8056 = vadd.f32 %v7567, %v8055
      %v8057 = vpop.f32.mrb[0].mxu0
      %v8058 = vpop.f32.mrb[0].mxu0
      %v8059 = vadd.f32 %v7567, %v8058
      %v8060 = vpop.f32.mrb[0].mxu0
      %8061 = vmatprep.mubr.bf16.mxu0 0
      %8062 = vmatmul.mubr.bf16.gmra.mrb[0].mxu0 %v7831
      %v8063 = vpop.f32.mrb[0].mxu0
      %v8064 = vadd.f32 %v7567, %v8063
      %v8065 = vpop.f32.mrb[0].mxu0
      %v8066 = vpop.f32.mrb[0].mxu0
      %v8067 = vadd.f32 %v7567, %v8066
      %v8068 = vpop.f32.mrb[0].mxu0
      %8069 = vmatprep.mubr.bf16.mxu0 0
      %8070 = vmatmul.mubr.bf16.gmra.mrb[0].mxu0 %v7834
      %v8071 = vpop.f32.mrb[0].mxu0
      %v8072 = vadd.f32 %v7567, %v8071
      %v8073 = vpop.f32.mrb[0].mxu0
      %v8074 = vpop.f32.mrb[0].mxu0
      %v8075 = vadd.f32 %v7567, %v8074
      %v8076 = vpop.f32.mrb[0].mxu0
      %8077 = vmatprep.mubr.bf16.mxu0 0
      %8078 = vmatmul.mubr.bf16.gmra.mrb[0].mxu0 %v7837
      %v8079 = vpop.f32.mrb[0].mxu0
      %v8080 = vadd.f32 %v7567, %v8079
      %v8081 = vpop.f32.mrb[0].mxu0
      %v8082 = vpop.f32.mrb[0].mxu0
      %v8083 = vadd.f32 %v7567, %v8082
      %v8084 = vpop.f32.mrb[0].mxu0
      %8085 = vmatprep.mubr.bf16.mxu0 0
      %8086 = vmatmul.mubr.bf16.gmra.mrb[0].mxu0 %v7840
      %v8087 = vpop.f32.mrb[0].mxu0
      %v8088 = vadd.f32 %v7567, %v8087
      %v8089 = vpop.f32.mrb[0].mxu0
      %v8090 = vpop.f32.mrb[0].mxu0
      %v8091 = vadd.f32 %v7567, %v8090
      %v8092 = vpop.f32.mrb[0].mxu0
      %8093 = vmatprep.mubr.bf16.mxu0 0
      %8094 = vmatmul.mubr.bf16.gmra.mrb[0].mxu0 %v7843
      %v8095 = vpop.f32.mrb[0].mxu0
      %v8096 = vadd.f32 %v7567, %v8095
      %v8097 = vpop.f32.mrb[0].mxu0
      %v8098 = vpop.f32.mrb[0].mxu0
      %v8099 = vadd.f32 %v7567, %v8098
      %v8100 = vpop.f32.mrb[0].mxu0
      %8101 = vmatprep.mubr.bf16.mxu0 0
      %8102 = vmatmul.mubr.bf16.gmra.mrb[0].mxu0 %v7846
      %v8103 = vpop.f32.mrb[0].mxu0
      %v8104 = vadd.f32 %v7567, %v8103
      %v8105 = vpop.f32.mrb[0].mxu0
      %v8106 = vpop.f32.mrb[0].mxu0
      %v8107 = vadd.f32 %v7567, %v8106
      %v8108 = vpop.f32.mrb[0].mxu0
      %8109 = vmatprep.mubr.bf16.mxu0 0
      %8110 = vmatmul.mubr.bf16.gmra.mrb[0].mxu0 %v7849
      %v8111 = vpop.f32.mrb[0].mxu0
      %v8112 = vadd.f32 %v7567, %v8111
      %v8113 = vpop.f32.mrb[0].mxu0
      %v8114 = vpop.f32.mrb[0].mxu0
      %v8115 = vadd.f32 %v7567, %v8114
      %v8116 = vpop.f32.mrb[0].mxu0
      %8117 = vmatprep.mubr.bf16.mxu0 0
      %8118 = vmatmul.mubr.bf16.gmra.mrb[0].mxu0 %v7852
      %v8119 = vpop.f32.mrb[0].mxu0
      %v8120 = vadd.f32 %v7567, %v8119
      %v8121 = vpop.f32.mrb[0].mxu0
      %v8122 = vpop.f32.mrb[0].mxu0
      %v8123 = vadd.f32 %v7567, %v8122
      %v8124 = vpop.f32.mrb[0].mxu0
      %8125 = vmatprep.mubr.bf16.mxu0 0
      %8126 = vmatmul.mubr.bf16.gmra.mrb[0].mxu0 %v7855
      %v8127 = vpop.f32.mrb[0].mxu0
      %v8128 = vadd.f32 %v7567, %v8127
      %v8129 = vpop.f32.mrb[0].mxu0
      %v8130 = vpop.f32.mrb[0].mxu0
      %v8131 = vadd.f32 %v7567, %v8130
      %v8132 = vpop.f32.mrb[0].mxu0
      %8133 = vmatprep.mubr.bf16.mxu0 0
      %8134 = vmatmul.mubr.bf16.gmra.mrb[0].mxu0 %v7858
      %v8135 = vpop.f32.mrb[0].mxu0
      %v8136 = vadd.f32 %v7567, %v8135
      %v8137 = vpop.f32.mrb[0].mxu0
      %v8138 = vpop.f32.mrb[0].mxu0
      %v8139 = vadd.f32 %v7567, %v8138
      %v8140 = vpop.f32.mrb[0].mxu0
      %8141 = vmatprep.mubr.bf16.mxu0 0
      %8142 = vmatmul.mubr.bf16.gmra.mrb[0].mxu0 %v7861
      %v8143 = vpop.f32.mrb[0].mxu0
      %v8144 = vadd.f32 %v7567, %v8143
      %v8145 = vpop.f32.mrb[0].mxu0
      %v8146 = vpop.f32.mrb[0].mxu0
      %v8147 = vadd.f32 %v7567, %v8146
      %v8148 = vpop.f32.mrb[0].mxu0
      %8149 = vmatprep.mubr.bf16.mxu0 0
      %8150 = vmatmul.mubr.bf16.gmra.mrb[0].mxu0 %v7864
      %v8151 = vpop.f32.mrb[0].mxu0
      %v8152 = vadd.f32 %v7567, %v8151
      %v8153 = vpop.f32.mrb[0].mxu0
      %v8154 = vpop.f32.mrb[0].mxu0
      %v8155 = vadd.f32 %v7567, %v8154
      %v8156 = vpop.f32.mrb[0].mxu0
      %8157 = vmatprep.mubr.bf16.mxu0 0
      %8158 = vmatmul.mubr.bf16.gmra.mrb[0].mxu0 %v7867
      %v8159 = vpop.f32.mrb[0].mxu0
      %v8160 = vadd.f32 %v7567, %v8159
      %v8161 = vpop.f32.mrb[0].mxu0
      %v8162 = vpop.f32.mrb[0].mxu0
      %v8163 = vadd.f32 %v7567, %v8162
      %v8164 = vpop.f32.mrb[0].mxu0
      %8165 = vmatprep.mubr.bf16.mxu0 0
      %8166 = vmatmul.mubr.bf16.gmra.mrb[0].mxu0 %v7870
      %v8167 = vpop.f32.mrb[0].mxu0
      %v8168 = vadd.f32 %v7567, %v8167
      %v8169 = vpop.f32.mrb[0].mxu0
      %v8170 = vpop.f32.mrb[0].mxu0
      %v8171 = vadd.f32 %v7567, %v8170
      %v8172 = vpop.f32.mrb[0].mxu0
      %8173 = vmatprep.mubr.bf16.mxu0 0
      %8174 = vmatmul.mubr.bf16.gmra.mrb[0].mxu0 %v7873
      %v8175 = vpop.f32.mrb[0].mxu0
      %v8176 = vadd.f32 %v7567, %v8175
      %v8177 = vpop.f32.mrb[0].mxu0
      %v8178 = vpop.f32.mrb[0].mxu0
      %v8179 = vadd.f32 %v7567, %v8178
      %v8180 = vpop.f32.mrb[0].mxu0
      %8181 = vmatprep.mubr.bf16.mxu0 0
      %8182 = vmatmul.mubr.bf16.gmra.mrb[0].mxu0 %v7876
      %v8183 = vpop.f32.mrb[0].mxu0
      %v8184 = vadd.f32 %v7567, %v8183
      %v8185 = vpop.f32.mrb[0].mxu0
      %v8186 = vpop.f32.mrb[0].mxu0
      %v8187 = vadd.f32 %v7567, %v8186
      %v8188 = vpop.f32.mrb[0].mxu0
      %8189 = vmatprep.mubr.bf16.mxu0 0
      %8190 = vmatmul.mubr.bf16.gmra.mrb[0].mxu0 %v7879
      %v8191 = vpop.f32.mrb[0].mxu0
      %v8192 = vadd.f32 %v7567, %v8191
      %v8193 = vpop.f32.mrb[0].mxu0
      %v8194 = vpop.f32.mrb[0].mxu0
      %v8195 = vadd.f32 %v7567, %v8194
      %v8196 = vpop.f32.mrb[0].mxu0
      %8197 = vmatprep.mubr.bf16.mxu0 0
      %8198 = vmatmul.mubr.bf16.gmra.mrb[0].mxu0 %v7882
      %v8199 = vpop.f32.mrb[0].mxu0
      %v8200 = vadd.f32 %v7567, %v8199
      %v8201 = vpop.f32.mrb[0].mxu0
      %v8202 = vpop.f32.mrb[0].mxu0
      %v8203 = vadd.f32 %v7567, %v8202
      %v8204 = vpop.f32.mrb[0].mxu0
      %8205 = vmatprep.mubr.bf16.mxu0 0
      %8206 = vmatmul.mubr.bf16.gmra.mrb[0].mxu0 %v7885
      %v8207 = vpop.f32.mrb[0].mxu0
      %v8208 = vadd.f32 %v7567, %v8207
      %v8209 = vpop.f32.mrb[0].mxu0
      %v8210 = vpop.f32.mrb[0].mxu0
      %v8211 = vadd.f32 %v7567, %v8210
      %v8212 = vpop.f32.mrb[0].mxu0
      %8213 = vmatprep.mubr.bf16.mxu0 0
      %8214 = vmatmul.mubr.bf16.gmra.mrb[0].mxu0 %v7888
      %v8215 = vpop.f32.mrb[0].mxu0
      %v8216 = vadd.f32 %v7567, %v8215
      %v8217 = vpop.f32.mrb[0].mxu0
      %v8218 = vpop.f32.mrb[0].mxu0
      %v8219 = vadd.f32 %v7567, %v8218
      %v8220 = vpop.f32.mrb[0].mxu0
      %8221 = vmatprep.mubr.bf16.mxu0 0
      %8222 = vmatmul.mubr.bf16.gmra.mrb[0].mxu0 %v7891
      %v8223 = vpop.f32.mrb[0].mxu0
      %v8224 = vadd.f32 %v7567, %v8223
      %v8225 = vpop.f32.mrb[0].mxu0
      %v8226 = vpop.f32.mrb[0].mxu0
      %v8227 = vadd.f32 %v7567, %v8226
      %v8228 = vpop.f32.mrb[0].mxu0
      %8229 = vmatprep.mubr.bf16.mxu0 0
      %8230 = vmatmul.mubr.bf16.gmra.mrb[0].mxu0 %v7894
      %v8231 = vpop.f32.mrb[0].mxu0
      %v8232 = vadd.f32 %v7567, %v8231
      %v8233 = vpop.f32.mrb[0].mxu0
      %v8234 = vpop.f32.mrb[0].mxu0
      %v8235 = vadd.f32 %v7567, %v8234
      %v8236 = vpop.f32.mrb[0].mxu0
      %8237 = vmatprep.mubr.bf16.mxu0 0
      %8238 = vmatmul.mubr.bf16.gmra.mrb[0].mxu0 %v7897
      %v8239 = vpop.f32.mrb[0].mxu0
      %v8240 = vadd.f32 %v7567, %v8239
      %v8241 = vpop.f32.mrb[0].mxu0
      %v8242 = vpop.f32.mrb[0].mxu0
      %v8243 = vadd.f32 %v7567, %v8242
      %v8244 = vpop.f32.mrb[0].mxu0
      %8245 = vmatprep.mubr.bf16.mxu0 0
      %8246 = vmatmul.mubr.bf16.gmra.mrb[0].mxu0 %v7900
      %v8247 = vpop.f32.mrb[0].mxu0
      %v8248 = vadd.f32 %v7567, %v8247
      %v8249 = vpop.f32.mrb[0].mxu0
      %v8250 = vpop.f32.mrb[0].mxu0
      %v8251 = vadd.f32 %v7567, %v8250
      %v8252 = vpop.f32.mrb[0].mxu0
      %8253 = vmatprep.mubr.bf16.mxu0 0
      %8254 = vmatmul.mubr.bf16.gmra.mrb[0].mxu0 %v7903
      %v8255 = vpop.f32.mrb[0].mxu0
      %v8256 = vadd.f32 %v7567, %v8255
      %v8257 = vpop.f32.mrb[0].mxu0
      %v8258 = vpop.f32.mrb[0].mxu0
      %v8259 = vadd.f32 %v7567, %v8258
      %v8260 = vpop.f32.mrb[0].mxu0
      %8261 = vdwg.mxu0
      %v8262 = vmax.f32 %v7944, 0.0
      %v8263 = vmax.f32 %v7947, 0.0
      %v8264 = vmax.f32 %v7952, 0.0
      %v8265 = vmax.f32 %v7955, 0.0
      %v8266 = vmax.f32 %v7960, 0.0
      %v8267 = vmax.f32 %v7963, 0.0
      %v8268 = vmax.f32 %v7968, 0.0
      %v8269 = vmax.f32 %v7971, 0.0
      %v8270 = vmax.f32 %v7976, 0.0
      %v8271 = vmax.f32 %v7979, 0.0
      %v8272 = vmax.f32 %v7984, 0.0
      %v8273 = vmax.f32 %v7987, 0.0
      %v8274 = vmax.f32 %v7992, 0.0
      %v8275 = vmax.f32 %v7995, 0.0
      %v8276 = vmax.f32 %v8000, 0.0
      %v8277 = vmax.f32 %v8003, 0.0
      %v8278 = vmax.f32 %v8008, 0.0
      %v8279 = vmax.f32 %v8011, 0.0
      %v8280 = vmax.f32 %v8016, 0.0
      %v8281 = vmax.f32 %v8019, 0.0
      %v8282 = vmax.f32 %v8024, 0.0
      %v8283 = vmax.f32 %v8027, 0.0
      %v8284 = vmax.f32 %v8032, 0.0
      %v8285 = vmax.f32 %v8035, 0.0
      %v8286 = vmax.f32 %v8040, 0.0
      %v8287 = vmax.f32 %v8043, 0.0
      %v8288 = vmax.f32 %v8048, 0.0
      %v8289 = vmax.f32 %v8051, 0.0
      %v8290 = vmax.f32 %v8056, 0.0
      %v8291 = vmax.f32 %v8059, 0.0
      %v8292 = vmax.f32 %v8064, 0.0
      %v8293 = vmax.f32 %v8067, 0.0
      %v8294 = vmax.f32 %v8072, 0.0
      %v8295 = vmax.f32 %v8075, 0.0
      %v8296 = vmax.f32 %v8080, 0.0
      %v8297 = vmax.f32 %v8083, 0.0
      %v8298 = vmax.f32 %v8088, 0.0
      %v8299 = vmax.f32 %v8091, 0.0
      %v8300 = vmax.f32 %v8096, 0.0
      %v8301 = vmax.f32 %v8099, 0.0
      %v8302 = vmax.f32 %v8104, 0.0
      %v8303 = vmax.f32 %v8107, 0.0
      %v8304 = vmax.f32 %v8112, 0.0
      %v8305 = vmax.f32 %v8115, 0.0
      %v8306 = vmax.f32 %v8120, 0.0
      %v8307 = vmax.f32 %v8123, 0.0
      %v8308 = vmax.f32 %v8128, 0.0
      %v8309 = vmax.f32 %v8131, 0.0
      %v8310 = vmax.f32 %v8136, 0.0
      %v8311 = vmax.f32 %v8139, 0.0
      %v8312 = vmax.f32 %v8144, 0.0
      %v8313 = vmax.f32 %v8147, 0.0
      %v8314 = vmax.f32 %v8152, 0.0
      %v8315 = vmax.f32 %v8155, 0.0
      %v8316 = vmax.f32 %v8160, 0.0
      %v8317 = vmax.f32 %v8163, 0.0
      %v8318 = vmax.f32 %v8168, 0.0
      %v8319 = vmax.f32 %v8171, 0.0
      %v8320 = vmax.f32 %v8176, 0.0
      %v8321 = vmax.f32 %v8179, 0.0
      %v8322 = vmax.f32 %v8184, 0.0
      %v8323 = vmax.f32 %v8187, 0.0
      %v8324 = vmax.f32 %v8192, 0.0
      %v8325 = vmax.f32 %v8195, 0.0
      %v8326 = vmax.f32 %v8200, 0.0
      %v8327 = vmax.f32 %v8203, 0.0
      %v8328 = vmax.f32 %v8208, 0.0
      %v8329 = vmax.f32 %v8211, 0.0
      %v8330 = vmax.f32 %v8216, 0.0
      %v8331 = vmax.f32 %v8219, 0.0
      %v8332 = vmax.f32 %v8224, 0.0
      %v8333 = vmax.f32 %v8227, 0.0
      %v8334 = vmax.f32 %v8232, 0.0
      %v8335 = vmax.f32 %v8235, 0.0
      %v8336 = vmax.f32 %v8240, 0.0
      %v8337 = vmax.f32 %v8243, 0.0
      %v8338 = vmax.f32 %v8248, 0.0
      %v8339 = vmax.f32 %v8251, 0.0
      %v8340 = vmax.f32 %v8256, 0.0
      %v8341 = vmax.f32 %v8259, 0.0
      %s8342 = ssub.s32 %s359, 1
      %v8343 = vstv %s8342
      %vm8344 = vcmp.ge.s32.totalorder %v8343, 0
      %v8345 = vsel %vm8344, 1, 0
      %vm8346 = vcmp.eq.s32.totalorder %v8345, 1
      %v8347 = vsel %vm8346, %v8262, 0.0
      %v8348 = vsel %vm8346, %v8263, 0.0
      %v8349 = vsel %vm8346, %v8264, 0.0
      %v8350 = vsel %vm8346, %v8265, 0.0
      %v8351 = vsel %vm8346, %v8266, 0.0
      %v8352 = vsel %vm8346, %v8267, 0.0
      %v8353 = vsel %vm8346, %v8268, 0.0
      %v8354 = vsel %vm8346, %v8269, 0.0
      %v8355 = vsel %vm2939, %v8334, 0.0
      %v8356 = vsel %vm2939, %v8335, 0.0
      %v8357 = vsel %vm2939, %v8336, 0.0
      %v8358 = vsel %vm2939, %v8337, 0.0
      %v8359 = vsel %vm2939, %v8338, 0.0
      %v8360 = vsel %vm2939, %v8339, 0.0
      %v8361 = vsel %vm2939, %v8340, 0.0
      %v8362 = vsel %vm2939, %v8341, 0.0
      %v8363 = vpack.c.bf16 %v8347, %v8347
      %v8364 = vpack.c.bf16 %v8348, %v8348
      %v8365 = vpack.c.bf16 %v8349, %v8349
      %v8366 = vpack.c.bf16 %v8350, %v8350
      %v8367 = vpack.c.bf16 %v8351, %v8351
      %v8368 = vpack.c.bf16 %v8352, %v8352
      %v8369 = vpack.c.bf16 %v8353, %v8353
      %v8370 = vpack.c.bf16 %v8354, %v8354
      %v8371 = vpack.c.bf16 %v8270, %v8270
      %v8372 = vpack.c.bf16 %v8271, %v8271
      %v8373 = vpack.c.bf16 %v8272, %v8272
      %v8374 = vpack.c.bf16 %v8273, %v8273
      %v8375 = vpack.c.bf16 %v8274, %v8274
      %v8376 = vpack.c.bf16 %v8275, %v8275
      %v8377 = vpack.c.bf16 %v8276, %v8276
      %v8378 = vpack.c.bf16 %v8277, %v8277
      %v8379 = vpack.c.bf16 %v8278, %v8278
      %v8380 = vpack.c.bf16 %v8279, %v8279
      %v8381 = vpack.c.bf16 %v8280, %v8280
      %v8382 = vpack.c.bf16 %v8281, %v8281
      %v8383 = vpack.c.bf16 %v8282, %v8282
      %v8384 = vpack.c.bf16 %v8283, %v8283
      %v8385 = vpack.c.bf16 %v8284, %v8284
      %v8386 = vpack.c.bf16 %v8285, %v8285
      %v8387 = vpack.c.bf16 %v8286, %v8286
      %v8388 = vpack.c.bf16 %v8287, %v8287
      %v8389 = vpack.c.bf16 %v8288, %v8288
      %v8390 = vpack.c.bf16 %v8289, %v8289
      %v8391 = vpack.c.bf16 %v8290, %v8290
      %v8392 = vpack.c.bf16 %v8291, %v8291
      %v8393 = vpack.c.bf16 %v8292, %v8292
      %v8394 = vpack.c.bf16 %v8293, %v8293
      %v8395 = vpack.c.bf16 %v8294, %v8294
      %v8396 = vpack.c.bf16 %v8295, %v8295
      %v8397 = vpack.c.bf16 %v8296, %v8296
      %v8398 = vpack.c.bf16 %v8297, %v8297
      %v8399 = vpack.c.bf16 %v8298, %v8298
      %v8400 = vpack.c.bf16 %v8299, %v8299
      %v8401 = vpack.c.bf16 %v8300, %v8300
      %v8402 = vpack.c.bf16 %v8301, %v8301
      %v8403 = vpack.c.bf16 %v8302, %v8302
      %v8404 = vpack.c.bf16 %v8303, %v8303
      %v8405 = vpack.c.bf16 %v8304, %v8304
      %v8406 = vpack.c.bf16 %v8305, %v8305
      %v8407 = vpack.c.bf16 %v8306, %v8306
      %v8408 = vpack.c.bf16 %v8307, %v8307
      %v8409 = vpack.c.bf16 %v8308, %v8308
      %v8410 = vpack.c.bf16 %v8309, %v8309
      %v8411 = vpack.c.bf16 %v8310, %v8310
      %v8412 = vpack.c.bf16 %v8311, %v8311
      %v8413 = vpack.c.bf16 %v8312, %v8312
      %v8414 = vpack.c.bf16 %v8313, %v8313
      %v8415 = vpack.c.bf16 %v8314, %v8314
      %v8416 = vpack.c.bf16 %v8315, %v8315
      %v8417 = vpack.c.bf16 %v8316, %v8316
      %v8418 = vpack.c.bf16 %v8317, %v8317
      %v8419 = vpack.c.bf16 %v8318, %v8318
      %v8420 = vpack.c.bf16 %v8319, %v8319
      %v8421 = vpack.c.bf16 %v8320, %v8320
      %v8422 = vpack.c.bf16 %v8321, %v8321
      %v8423 = vpack.c.bf16 %v8322, %v8322
      %v8424 = vpack.c.bf16 %v8323, %v8323
      %v8425 = vpack.c.bf16 %v8324, %v8324
      %v8426 = vpack.c.bf16 %v8325, %v8325
      %v8427 = vpack.c.bf16 %v8326, %v8326
      %v8428 = vpack.c.bf16 %v8327, %v8327
      %v8429 = vpack.c.bf16 %v8328, %v8328
      %v8430 = vpack.c.bf16 %v8329, %v8329
      %v8431 = vpack.c.bf16 %v8330, %v8330
      %v8432 = vpack.c.bf16 %v8331, %v8331
      %v8433 = vpack.c.bf16 %v8332, %v8332
      %v8434 = vpack.c.bf16 %v8333, %v8333
      %v8435 = vpack.c.bf16 %v8355, %v8355
      %v8436 = vpack.c.bf16 %v8356, %v8356
      %v8437 = vpack.c.bf16 %v8357, %v8357
      %v8438 = vpack.c.bf16 %v8358, %v8358
      %v8439 = vpack.c.bf16 %v8359, %v8359
      %v8440 = vpack.c.bf16 %v8360, %v8360
      %v8441 = vpack.c.bf16 %v8361, %v8361
      %v8442 = vpack.c.bf16 %v8362, %v8362
      %8507 = vrot.lane.b32.xlu0 %v8363, 4
      %v8508 = vpop.permute.xlu0 %8507
      %8509 = vrot.lane.b32.xlu0 %v8364, 4
      %v8510 = vpop.permute.xlu0 %8509
      %8511 = vrot.lane.b32.xlu0 %v8365, 4
      %v8512 = vpop.permute.xlu0 %8511
      %8513 = vrot.lane.b32.xlu0 %v8366, 4
      %v8514 = vpop.permute.xlu0 %8513
      %8515 = vrot.lane.b32.xlu0 %v8367, 4
      %v8516 = vpop.permute.xlu0 %8515
      %8517 = vrot.lane.b32.xlu0 %v8368, 4
      %v8518 = vpop.permute.xlu0 %8517
      %8519 = vrot.lane.b32.xlu0 %v8369, 4
      %v8520 = vpop.permute.xlu0 %8519
      %8521 = vrot.lane.b32.xlu0 %v8370, 4
      %v8522 = vpop.permute.xlu0 %8521
      %8523 = vrot.lane.b32.xlu0 %v8371, 4
      %v8524 = vpop.permute.xlu0 %8523
      %8525 = vrot.lane.b32.xlu0 %v8372, 4
      %v8526 = vpop.permute.xlu0 %8525
      %8527 = vrot.lane.b32.xlu0 %v8373, 4
      %v8528 = vpop.permute.xlu0 %8527
      %8529 = vrot.lane.b32.xlu0 %v8374, 4
      %v8530 = vpop.permute.xlu0 %8529
      %8531 = vrot.lane.b32.xlu0 %v8375, 4
      %v8532 = vpop.permute.xlu0 %8531
      %8533 = vrot.lane.b32.xlu0 %v8376, 4
      %v8534 = vpop.permute.xlu0 %8533
      %8535 = vrot.lane.b32.xlu0 %v8377, 4
      %v8536 = vpop.permute.xlu0 %8535
      %8537 = vrot.lane.b32.xlu0 %v8378, 4
      %v8538 = vpop.permute.xlu0 %8537
      %8539 = vrot.lane.b32.xlu0 %v8379, 4
      %v8540 = vpop.permute.xlu0 %8539
      %8541 = vrot.lane.b32.xlu0 %v8380, 4
      %v8542 = vpop.permute.xlu0 %8541
      %8543 = vrot.lane.b32.xlu0 %v8381, 4
      %v8544 = vpop.permute.xlu0 %8543
      %8545 = vrot.lane.b32.xlu0 %v8382, 4
      %v8546 = vpop.permute.xlu0 %8545
      %8547 = vrot.lane.b32.xlu0 %v8383, 4
      %v8548 = vpop.permute.xlu0 %8547
      %8549 = vrot.lane.b32.xlu0 %v8384, 4
      %v8550 = vpop.permute.xlu0 %8549
      %8551 = vrot.lane.b32.xlu0 %v8385, 4
      %v8552 = vpop.permute.xlu0 %8551
      %8553 = vrot.lane.b32.xlu0 %v8386, 4
      %v8554 = vpop.permute.xlu0 %8553
      %8555 = vrot.lane.b32.xlu0 %v8387, 4
      %v8556 = vpop.permute.xlu0 %8555
      %8557 = vrot.lane.b32.xlu0 %v8388, 4
      %v8558 = vpop.permute.xlu0 %8557
      %8559 = vrot.lane.b32.xlu0 %v8389, 4
      %v8560 = vpop.permute.xlu0 %8559
      %8561 = vrot.lane.b32.xlu0 %v8390, 4
      %v8562 = vpop.permute.xlu0 %8561
      %8563 = vrot.lane.b32.xlu0 %v8391, 4
      %v8564 = vpop.permute.xlu0 %8563
      %8565 = vrot.lane.b32.xlu0 %v8392, 4
      %v8566 = vpop.permute.xlu0 %8565
      %8567 = vrot.lane.b32.xlu0 %v8393, 4
      %v8568 = vpop.permute.xlu0 %8567
      %8569 = vrot.lane.b32.xlu0 %v8394, 4
      %v8570 = vpop.permute.xlu0 %8569
      %8571 = vrot.lane.b32.xlu0 %v8395, 4
      %v8572 = vpop.permute.xlu0 %8571
      %8573 = vrot.lane.b32.xlu0 %v8396, 4
      %v8574 = vpop.permute.xlu0 %8573
      %8575 = vrot.lane.b32.xlu0 %v8397, 4
      %v8576 = vpop.permute.xlu0 %8575
      %8577 = vrot.lane.b32.xlu0 %v8398, 4
      %v8578 = vpop.permute.xlu0 %8577
      %8579 = vrot.lane.b32.xlu0 %v8399, 4
      %v8580 = vpop.permute.xlu0 %8579
      %8581 = vrot.lane.b32.xlu0 %v8400, 4
      %v8582 = vpop.permute.xlu0 %8581
      %8583 = vrot.lane.b32.xlu0 %v8401, 4
      %v8584 = vpop.permute.xlu0 %8583
      %8585 = vrot.lane.b32.xlu0 %v8402, 4
      %v8586 = vpop.permute.xlu0 %8585
      %8587 = vrot.lane.b32.xlu0 %v8403, 4
      %v8588 = vpop.permute.xlu0 %8587
      %8589 = vrot.lane.b32.xlu0 %v8404, 4
      %v8590 = vpop.permute.xlu0 %8589
      %8591 = vrot.lane.b32.xlu0 %v8405, 4
      %v8592 = vpop.permute.xlu0 %8591
      %8593 = vrot.lane.b32.xlu0 %v8406, 4
      %v8594 = vpop.permute.xlu0 %8593
      %8595 = vrot.lane.b32.xlu0 %v8407, 4
      %v8596 = vpop.permute.xlu0 %8595
      %8597 = vrot.lane.b32.xlu0 %v8408, 4
      %v8598 = vpop.permute.xlu0 %8597
      %8599 = vrot.lane.b32.xlu0 %v8409, 4
      %v8600 = vpop.permute.xlu0 %8599
      %8601 = vrot.lane.b32.xlu0 %v8410, 4
      %v8602 = vpop.permute.xlu0 %8601
      %8603 = vrot.lane.b32.xlu0 %v8411, 4
      %v8604 = vpop.permute.xlu0 %8603
      %8605 = vrot.lane.b32.xlu0 %v8412, 4
      %v8606 = vpop.permute.xlu0 %8605
      %8607 = vrot.lane.b32.xlu0 %v8413, 4
      %v8608 = vpop.permute.xlu0 %8607
      %8609 = vrot.lane.b32.xlu0 %v8414, 4
      %v8610 = vpop.permute.xlu0 %8609
      %8611 = vrot.lane.b32.xlu0 %v8415, 4
      %v8612 = vpop.permute.xlu0 %8611
      %8613 = vrot.lane.b32.xlu0 %v8416, 4
      %v8614 = vpop.permute.xlu0 %8613
      %8615 = vrot.lane.b32.xlu0 %v8417, 4
      %v8616 = vpop.permute.xlu0 %8615
      %8617 = vrot.lane.b32.xlu0 %v8418, 4
      %v8618 = vpop.permute.xlu0 %8617
      %8619 = vrot.lane.b32.xlu0 %v8419, 4
      %v8620 = vpop.permute.xlu0 %8619
      %8621 = vrot.lane.b32.xlu0 %v8420, 4
      %v8622 = vpop.permute.xlu0 %8621
      %8623 = vrot.lane.b32.xlu0 %v8421, 4
      %v8624 = vpop.permute.xlu0 %8623
      %8625 = vrot.lane.b32.xlu0 %v8422, 4
      %v8626 = vpop.permute.xlu0 %8625
      %8627 = vrot.lane.b32.xlu0 %v8423, 4
      %v8628 = vpop.permute.xlu0 %8627
      %8629 = vrot.lane.b32.xlu0 %v8424, 4
      %v8630 = vpop.permute.xlu0 %8629
      %8631 = vrot.lane.b32.xlu0 %v8425, 4
      %v8632 = vpop.permute.xlu0 %8631
      %8633 = vrot.lane.b32.xlu0 %v8426, 4
      %v8634 = vpop.permute.xlu0 %8633
      %8635 = vrot.lane.b32.xlu0 %v8364, 8
      %v8636 = vpop.permute.xlu0 %8635
      %8637 = vrot.lane.b32.xlu0 %v8365, 8
      %v8638 = vpop.permute.xlu0 %8637
      %8639 = vrot.lane.b32.xlu0 %v8366, 8
      %v8640 = vpop.permute.xlu0 %8639
      %8641 = vrot.lane.b32.xlu0 %v8367, 8
      %v8642 = vpop.permute.xlu0 %8641
      %8643 = vrot.lane.b32.xlu0 %v8368, 8
      %v8644 = vpop.permute.xlu0 %8643
      %8645 = vrot.lane.b32.xlu0 %v8369, 8
      %v8646 = vpop.permute.xlu0 %8645
      %8647 = vrot.lane.b32.xlu0 %v8370, 8
      %v8648 = vpop.permute.xlu0 %8647
      %8649 = vrot.lane.b32.xlu0 %v8372, 8
      %v8650 = vpop.permute.xlu0 %8649
      %8651 = vrot.lane.b32.xlu0 %v8373, 8
      %v8652 = vpop.permute.xlu0 %8651
      %8653 = vrot.lane.b32.xlu0 %v8374, 8
      %v8654 = vpop.permute.xlu0 %8653
      %8655 = vrot.lane.b32.xlu0 %v8375, 8
      %v8656 = vpop.permute.xlu0 %8655
      %8657 = vrot.lane.b32.xlu0 %v8376, 8
      %v8658 = vpop.permute.xlu0 %8657
      %8659 = vrot.lane.b32.xlu0 %v8377, 8
      %v8660 = vpop.permute.xlu0 %8659
      %8661 = vrot.lane.b32.xlu0 %v8378, 8
      %v8662 = vpop.permute.xlu0 %8661
      %8663 = vrot.lane.b32.xlu0 %v8380, 8
      %v8664 = vpop.permute.xlu0 %8663
      %8665 = vrot.lane.b32.xlu0 %v8381, 8
      %v8666 = vpop.permute.xlu0 %8665
      %8667 = vrot.lane.b32.xlu0 %v8382, 8
      %v8668 = vpop.permute.xlu0 %8667
      %8669 = vrot.lane.b32.xlu0 %v8383, 8
      %v8670 = vpop.permute.xlu0 %8669
      %8671 = vrot.lane.b32.xlu0 %v8384, 8
      %v8672 = vpop.permute.xlu0 %8671
      %8673 = vrot.lane.b32.xlu0 %v8385, 8
      %v8674 = vpop.permute.xlu0 %8673
      %8675 = vrot.lane.b32.xlu0 %v8386, 8
      %v8676 = vpop.permute.xlu0 %8675
      %8677 = vrot.lane.b32.xlu0 %v8388, 8
      %v8678 = vpop.permute.xlu0 %8677
      %8679 = vrot.lane.b32.xlu0 %v8389, 8
      %v8680 = vpop.permute.xlu0 %8679
      %8681 = vrot.lane.b32.xlu0 %v8390, 8
      %v8682 = vpop.permute.xlu0 %8681
      %8683 = vrot.lane.b32.xlu0 %v8391, 8
      %v8684 = vpop.permute.xlu0 %8683
      %8685 = vrot.lane.b32.xlu0 %v8392, 8
      %v8686 = vpop.permute.xlu0 %8685
      %8687 = vrot.lane.b32.xlu0 %v8393, 8
      %v8688 = vpop.permute.xlu0 %8687
      %8689 = vrot.lane.b32.xlu0 %v8394, 8
      %v8690 = vpop.permute.xlu0 %8689
      %8691 = vrot.lane.b32.xlu0 %v8396, 8
      %v8692 = vpop.permute.xlu0 %8691
      %8693 = vrot.lane.b32.xlu0 %v8397, 8
      %v8694 = vpop.permute.xlu0 %8693
      %8695 = vrot.lane.b32.xlu0 %v8398, 8
      %v8696 = vpop.permute.xlu0 %8695
      %8697 = vrot.lane.b32.xlu0 %v8399, 8
      %v8698 = vpop.permute.xlu0 %8697
      %8699 = vrot.lane.b32.xlu0 %v8400, 8
      %v8700 = vpop.permute.xlu0 %8699
      %8701 = vrot.lane.b32.xlu0 %v8401, 8
      %v8702 = vpop.permute.xlu0 %8701
      %8703 = vrot.lane.b32.xlu0 %v8402, 8
      %v8704 = vpop.permute.xlu0 %8703
      %8705 = vrot.lane.b32.xlu0 %v8404, 8
      %v8706 = vpop.permute.xlu0 %8705
      %8707 = vrot.lane.b32.xlu0 %v8405, 8
      %v8708 = vpop.permute.xlu0 %8707
      %8709 = vrot.lane.b32.xlu0 %v8406, 8
      %v8710 = vpop.permute.xlu0 %8709
      %8711 = vrot.lane.b32.xlu0 %v8407, 8
      %v8712 = vpop.permute.xlu0 %8711
      %8713 = vrot.lane.b32.xlu0 %v8408, 8
      %v8714 = vpop.permute.xlu0 %8713
      %8715 = vrot.lane.b32.xlu0 %v8409, 8
      %v8716 = vpop.permute.xlu0 %8715
      %8717 = vrot.lane.b32.xlu0 %v8410, 8
      %v8718 = vpop.permute.xlu0 %8717
      %8719 = vrot.lane.b32.xlu0 %v8412, 8
      %v8720 = vpop.permute.xlu0 %8719
      %8721 = vrot.lane.b32.xlu0 %v8413, 8
      %v8722 = vpop.permute.xlu0 %8721
      %8723 = vrot.lane.b32.xlu0 %v8414, 8
      %v8724 = vpop.permute.xlu0 %8723
      %8725 = vrot.lane.b32.xlu0 %v8415, 8
      %v8726 = vpop.permute.xlu0 %8725
      %8727 = vrot.lane.b32.xlu0 %v8416, 8
      %v8728 = vpop.permute.xlu0 %8727
      %8729 = vrot.lane.b32.xlu0 %v8417, 8
      %v8730 = vpop.permute.xlu0 %8729
      %8731 = vrot.lane.b32.xlu0 %v8418, 8
      %v8732 = vpop.permute.xlu0 %8731
      %8733 = vrot.lane.b32.xlu0 %v8420, 8
      %v8734 = vpop.permute.xlu0 %8733
      %8735 = vrot.lane.b32.xlu0 %v8421, 8
      %v8736 = vpop.permute.xlu0 %8735
      %8737 = vrot.lane.b32.xlu0 %v8422, 8
      %v8738 = vpop.permute.xlu0 %8737
      %8739 = vrot.lane.b32.xlu0 %v8423, 8
      %v8740 = vpop.permute.xlu0 %8739
      %8741 = vrot.lane.b32.xlu0 %v8424, 8
      %v8742 = vpop.permute.xlu0 %8741
      %8743 = vrot.lane.b32.xlu0 %v8425, 8
      %v8744 = vpop.permute.xlu0 %8743
      %8745 = vrot.lane.b32.xlu0 %v8426, 8
      %v8746 = vpop.permute.xlu0 %8745
      %8754 = vrot.lane.b32.xlu0 %v8371, 12
      %v8755 = vpop.permute.xlu0 %8754
      %8756 = vrot.lane.b32.xlu0 %v8372, 12
      %v8757 = vpop.permute.xlu0 %8756
      %8758 = vrot.lane.b32.xlu0 %v8373, 12
      %v8759 = vpop.permute.xlu0 %8758
      %8760 = vrot.lane.b32.xlu0 %v8374, 12
      %v8761 = vpop.permute.xlu0 %8760
      %8762 = vrot.lane.b32.xlu0 %v8375, 12
      %v8763 = vpop.permute.xlu0 %8762
      %8764 = vrot.lane.b32.xlu0 %v8376, 12
      %v8765 = vpop.permute.xlu0 %8764
      %8766 = vrot.lane.b32.xlu0 %v8377, 12
      %v8767 = vpop.permute.xlu0 %8766
      %8768 = vrot.lane.b32.xlu0 %v8379, 12
      %v8769 = vpop.permute.xlu0 %8768
      %8770 = vrot.lane.b32.xlu0 %v8380, 12
      %v8771 = vpop.permute.xlu0 %8770
      %8772 = vrot.lane.b32.xlu0 %v8381, 12
      %v8773 = vpop.permute.xlu0 %8772
      %8774 = vrot.lane.b32.xlu0 %v8382, 12
      %v8775 = vpop.permute.xlu0 %8774
      %8776 = vrot.lane.b32.xlu0 %v8383, 12
      %v8777 = vpop.permute.xlu0 %8776
      %8778 = vrot.lane.b32.xlu0 %v8384, 12
      %v8779 = vpop.permute.xlu0 %8778
      %8780 = vrot.lane.b32.xlu0 %v8385, 12
      %v8781 = vpop.permute.xlu0 %8780
      %8782 = vrot.lane.b32.xlu0 %v8387, 12
      %v8783 = vpop.permute.xlu0 %8782
      %8784 = vrot.lane.b32.xlu0 %v8388, 12
      %v8785 = vpop.permute.xlu0 %8784
      %8786 = vrot.lane.b32.xlu0 %v8389, 12
      %v8787 = vpop.permute.xlu0 %8786
      %8788 = vrot.lane.b32.xlu0 %v8390, 12
      %v8789 = vpop.permute.xlu0 %8788
      %8790 = vrot.lane.b32.xlu0 %v8391, 12
      %v8791 = vpop.permute.xlu0 %8790
      %8792 = vrot.lane.b32.xlu0 %v8392, 12
      %v8793 = vpop.permute.xlu0 %8792
      %8794 = vrot.lane.b32.xlu0 %v8393, 12
      %v8795 = vpop.permute.xlu0 %8794
      %8796 = vrot.lane.b32.xlu0 %v8395, 12
      %v8797 = vpop.permute.xlu0 %8796
      %8798 = vrot.lane.b32.xlu0 %v8396, 12
      %v8799 = vpop.permute.xlu0 %8798
      %8800 = vrot.lane.b32.xlu0 %v8397, 12
      %v8801 = vpop.permute.xlu0 %8800
      %8802 = vrot.lane.b32.xlu0 %v8398, 12
      %v8803 = vpop.permute.xlu0 %8802
      %8804 = vrot.lane.b32.xlu0 %v8399, 12
      %v8805 = vpop.permute.xlu0 %8804
      %8806 = vrot.lane.b32.xlu0 %v8400, 12
      %v8807 = vpop.permute.xlu0 %8806
      %8808 = vrot.lane.b32.xlu0 %v8401, 12
      %v8809 = vpop.permute.xlu0 %8808
      %8810 = vrot.lane.b32.xlu0 %v8403, 12
      %v8811 = vpop.permute.xlu0 %8810
      %8812 = vrot.lane.b32.xlu0 %v8404, 12
      %v8813 = vpop.permute.xlu0 %8812
      %8814 = vrot.lane.b32.xlu0 %v8405, 12
      %v8815 = vpop.permute.xlu0 %8814
      %8816 = vrot.lane.b32.xlu0 %v8406, 12
      %v8817 = vpop.permute.xlu0 %8816
      %8818 = vrot.lane.b32.xlu0 %v8407, 12
      %v8819 = vpop.permute.xlu0 %8818
      %8820 = vrot.lane.b32.xlu0 %v8408, 12
      %v8821 = vpop.permute.xlu0 %8820
      %8822 = vrot.lane.b32.xlu0 %v8409, 12
      %v8823 = vpop.permute.xlu0 %8822
      %8824 = vrot.lane.b32.xlu0 %v8411, 12
      %v8825 = vpop.permute.xlu0 %8824
      %8826 = vrot.lane.b32.xlu0 %v8412, 12
      %v8827 = vpop.permute.xlu0 %8826
      %8828 = vrot.lane.b32.xlu0 %v8413, 12
      %v8829 = vpop.permute.xlu0 %8828
      %8830 = vrot.lane.b32.xlu0 %v8414, 12
      %v8831 = vpop.permute.xlu0 %8830
      %8832 = vrot.lane.b32.xlu0 %v8415, 12
      %v8833 = vpop.permute.xlu0 %8832
      %8834 = vrot.lane.b32.xlu0 %v8416, 12
      %v8835 = vpop.permute.xlu0 %8834
      %8836 = vrot.lane.b32.xlu0 %v8417, 12
      %v8837 = vpop.permute.xlu0 %8836
      %8838 = vrot.lane.b32.xlu0 %v8419, 12
      %v8839 = vpop.permute.xlu0 %8838
      %8840 = vrot.lane.b32.xlu0 %v8420, 12
      %v8841 = vpop.permute.xlu0 %8840
      %8842 = vrot.lane.b32.xlu0 %v8421, 12
      %v8843 = vpop.permute.xlu0 %8842
      %8844 = vrot.lane.b32.xlu0 %v8422, 12
      %v8845 = vpop.permute.xlu0 %8844
      %8846 = vrot.lane.b32.xlu0 %v8423, 12
      %v8847 = vpop.permute.xlu0 %8846
      %8848 = vrot.lane.b32.xlu0 %v8424, 12
      %v8849 = vpop.permute.xlu0 %8848
      %8850 = vrot.lane.b32.xlu0 %v8425, 12
      %v8851 = vpop.permute.xlu0 %8850
      %8852 = vrot.lane.b32.xlu0 %v8427, 12
      %v8853 = vpop.permute.xlu0 %8852
      %8854 = vrot.lane.b32.xlu0 %v8428, 12
      %v8855 = vpop.permute.xlu0 %8854
      %8856 = vrot.lane.b32.xlu0 %v8429, 12
      %v8857 = vpop.permute.xlu0 %8856
      %8858 = vrot.lane.b32.xlu0 %v8430, 12
      %v8859 = vpop.permute.xlu0 %8858
      %8860 = vrot.lane.b32.xlu0 %v8431, 12
      %v8861 = vpop.permute.xlu0 %8860
      %8862 = vrot.lane.b32.xlu0 %v8432, 12
      %v8863 = vpop.permute.xlu0 %8862
      %8864 = vrot.lane.b32.xlu0 %v8433, 12
      %v8865 = vpop.permute.xlu0 %8864
      %8867 = vrot.lane.b32.xlu0 %v8371, 16
      %v8868 = vpop.permute.xlu0 %8867
      %8869 = vrot.lane.b32.xlu0 %v8372, 16
      %v8870 = vpop.permute.xlu0 %8869
      %8871 = vrot.lane.b32.xlu0 %v8373, 16
      %v8872 = vpop.permute.xlu0 %8871
      %8873 = vrot.lane.b32.xlu0 %v8374, 16
      %v8874 = vpop.permute.xlu0 %8873
      %8875 = vrot.lane.b32.xlu0 %v8375, 16
      %v8876 = vpop.permute.xlu0 %8875
      %8877 = vrot.lane.b32.xlu0 %v8376, 16
      %v8878 = vpop.permute.xlu0 %8877
      %8879 = vrot.lane.b32.xlu0 %v8377, 16
      %v8880 = vpop.permute.xlu0 %8879
      %8881 = vrot.lane.b32.xlu0 %v8378, 16
      %v8882 = vpop.permute.xlu0 %8881
      %8883 = vrot.lane.b32.xlu0 %v8379, 16
      %v8884 = vpop.permute.xlu0 %8883
      %8885 = vrot.lane.b32.xlu0 %v8380, 16
      %v8886 = vpop.permute.xlu0 %8885
      %8887 = vrot.lane.b32.xlu0 %v8381, 16
      %v8888 = vpop.permute.xlu0 %8887
      %8889 = vrot.lane.b32.xlu0 %v8382, 16
      %v8890 = vpop.permute.xlu0 %8889
      %8891 = vrot.lane.b32.xlu0 %v8383, 16
      %v8892 = vpop.permute.xlu0 %8891
      %8893 = vrot.lane.b32.xlu0 %v8384, 16
      %v8894 = vpop.permute.xlu0 %8893
      %8895 = vrot.lane.b32.xlu0 %v8385, 16
      %v8896 = vpop.permute.xlu0 %8895
      %8897 = vrot.lane.b32.xlu0 %v8386, 16
      %v8898 = vpop.permute.xlu0 %8897
      %8899 = vrot.lane.b32.xlu0 %v8387, 16
      %v8900 = vpop.permute.xlu0 %8899
      %8901 = vrot.lane.b32.xlu0 %v8388, 16
      %v8902 = vpop.permute.xlu0 %8901
      %8903 = vrot.lane.b32.xlu0 %v8389, 16
      %v8904 = vpop.permute.xlu0 %8903
      %8905 = vrot.lane.b32.xlu0 %v8390, 16
      %v8906 = vpop.permute.xlu0 %8905
      %8907 = vrot.lane.b32.xlu0 %v8391, 16
      %v8908 = vpop.permute.xlu0 %8907
      %8909 = vrot.lane.b32.xlu0 %v8392, 16
      %v8910 = vpop.permute.xlu0 %8909
      %8911 = vrot.lane.b32.xlu0 %v8393, 16
      %v8912 = vpop.permute.xlu0 %8911
      %8913 = vrot.lane.b32.xlu0 %v8394, 16
      %v8914 = vpop.permute.xlu0 %8913
      %8915 = vrot.lane.b32.xlu0 %v8395, 16
      %v8916 = vpop.permute.xlu0 %8915
      %8917 = vrot.lane.b32.xlu0 %v8396, 16
      %v8918 = vpop.permute.xlu0 %8917
      %8919 = vrot.lane.b32.xlu0 %v8397, 16
      %v8920 = vpop.permute.xlu0 %8919
      %8921 = vrot.lane.b32.xlu0 %v8398, 16
      %v8922 = vpop.permute.xlu0 %8921
      %8923 = vrot.lane.b32.xlu0 %v8399, 16
      %v8924 = vpop.permute.xlu0 %8923
      %8925 = vrot.lane.b32.xlu0 %v8400, 16
      %v8926 = vpop.permute.xlu0 %8925
      %8927 = vrot.lane.b32.xlu0 %v8401, 16
      %v8928 = vpop.permute.xlu0 %8927
      %8929 = vrot.lane.b32.xlu0 %v8402, 16
      %v8930 = vpop.permute.xlu0 %8929
      %8931 = vrot.lane.b32.xlu0 %v8403, 16
      %v8932 = vpop.permute.xlu0 %8931
      %8933 = vrot.lane.b32.xlu0 %v8404, 16
      %v8934 = vpop.permute.xlu0 %8933
      %8935 = vrot.lane.b32.xlu0 %v8405, 16
      %v8936 = vpop.permute.xlu0 %8935
      %8937 = vrot.lane.b32.xlu0 %v8406, 16
      %v8938 = vpop.permute.xlu0 %8937
      %8939 = vrot.lane.b32.xlu0 %v8407, 16
      %v8940 = vpop.permute.xlu0 %8939
      %8941 = vrot.lane.b32.xlu0 %v8408, 16
      %v8942 = vpop.permute.xlu0 %8941
      %8943 = vrot.lane.b32.xlu0 %v8409, 16
      %v8944 = vpop.permute.xlu0 %8943
      %8945 = vrot.lane.b32.xlu0 %v8410, 16
      %v8946 = vpop.permute.xlu0 %8945
      %8947 = vrot.lane.b32.xlu0 %v8411, 16
      %v8948 = vpop.permute.xlu0 %8947
      %8949 = vrot.lane.b32.xlu0 %v8412, 16
      %v8950 = vpop.permute.xlu0 %8949
      %8951 = vrot.lane.b32.xlu0 %v8413, 16
      %v8952 = vpop.permute.xlu0 %8951
      %8953 = vrot.lane.b32.xlu0 %v8414, 16
      %v8954 = vpop.permute.xlu0 %8953
      %8955 = vrot.lane.b32.xlu0 %v8415, 16
      %v8956 = vpop.permute.xlu0 %8955
      %8957 = vrot.lane.b32.xlu0 %v8416, 16
      %v8958 = vpop.permute.xlu0 %8957
      %8959 = vrot.lane.b32.xlu0 %v8417, 16
      %v8960 = vpop.permute.xlu0 %8959
      %8961 = vrot.lane.b32.xlu0 %v8418, 16
      %v8962 = vpop.permute.xlu0 %8961
      %8963 = vrot.lane.b32.xlu0 %v8419, 16
      %v8964 = vpop.permute.xlu0 %8963
      %8965 = vrot.lane.b32.xlu0 %v8420, 16
      %v8966 = vpop.permute.xlu0 %8965
      %8967 = vrot.lane.b32.xlu0 %v8421, 16
      %v8968 = vpop.permute.xlu0 %8967
      %8969 = vrot.lane.b32.xlu0 %v8422, 16
      %v8970 = vpop.permute.xlu0 %8969
      %8971 = vrot.lane.b32.xlu0 %v8423, 16
      %v8972 = vpop.permute.xlu0 %8971
      %8973 = vrot.lane.b32.xlu0 %v8424, 16
      %v8974 = vpop.permute.xlu0 %8973
      %8975 = vrot.lane.b32.xlu0 %v8425, 16
      %v8976 = vpop.permute.xlu0 %8975
      %8977 = vrot.lane.b32.xlu0 %v8426, 16
      %v8978 = vpop.permute.xlu0 %8977
      %8979 = vrot.lane.b32.xlu0 %v8427, 16
      %v8980 = vpop.permute.xlu0 %8979
      %8981 = vrot.lane.b32.xlu0 %v8428, 16
      %v8982 = vpop.permute.xlu0 %8981
      %8983 = vrot.lane.b32.xlu0 %v8429, 16
      %v8984 = vpop.permute.xlu0 %8983
      %8985 = vrot.lane.b32.xlu0 %v8430, 16
      %v8986 = vpop.permute.xlu0 %8985
      %8987 = vrot.lane.b32.xlu0 %v8431, 16
      %v8988 = vpop.permute.xlu0 %8987
      %8989 = vrot.lane.b32.xlu0 %v8432, 16
      %v8990 = vpop.permute.xlu0 %8989
      %8991 = vrot.lane.b32.xlu0 %v8433, 16
      %v8992 = vpop.permute.xlu0 %8991
      %8993 = vrot.lane.b32.xlu0 %v8434, 16
      %v8994 = vpop.permute.xlu0 %8993
      %8995 = vrot.lane.b32.xlu0 %v8372, 20
      %v8996 = vpop.permute.xlu0 %8995
      %8997 = vrot.lane.b32.xlu0 %v8373, 20
      %v8998 = vpop.permute.xlu0 %8997
      %8999 = vrot.lane.b32.xlu0 %v8374, 20
      %v9000 = vpop.permute.xlu0 %8999
      %9001 = vrot.lane.b32.xlu0 %v8375, 20
      %v9002 = vpop.permute.xlu0 %9001
      %9003 = vrot.lane.b32.xlu0 %v8376, 20
      %v9004 = vpop.permute.xlu0 %9003
      %9005 = vrot.lane.b32.xlu0 %v8377, 20
      %v9006 = vpop.permute.xlu0 %9005
      %9007 = vrot.lane.b32.xlu0 %v8378, 20
      %v9008 = vpop.permute.xlu0 %9007
      %9009 = vrot.lane.b32.xlu0 %v8380, 20
      %v9010 = vpop.permute.xlu0 %9009
      %9011 = vrot.lane.b32.xlu0 %v8381, 20
      %v9012 = vpop.permute.xlu0 %9011
      %9013 = vrot.lane.b32.xlu0 %v8382, 20
      %v9014 = vpop.permute.xlu0 %9013
      %9015 = vrot.lane.b32.xlu0 %v8383, 20
      %v9016 = vpop.permute.xlu0 %9015
      %9017 = vrot.lane.b32.xlu0 %v8384, 20
      %v9018 = vpop.permute.xlu0 %9017
      %9019 = vrot.lane.b32.xlu0 %v8385, 20
      %v9020 = vpop.permute.xlu0 %9019
      %9021 = vrot.lane.b32.xlu0 %v8386, 20
      %v9022 = vpop.permute.xlu0 %9021
      %9023 = vrot.lane.b32.xlu0 %v8388, 20
      %v9024 = vpop.permute.xlu0 %9023
      %9025 = vrot.lane.b32.xlu0 %v8389, 20
      %v9026 = vpop.permute.xlu0 %9025
      %9027 = vrot.lane.b32.xlu0 %v8390, 20
      %v9028 = vpop.permute.xlu0 %9027
      %9029 = vrot.lane.b32.xlu0 %v8391, 20
      %v9030 = vpop.permute.xlu0 %9029
      %9031 = vrot.lane.b32.xlu0 %v8392, 20
      %v9032 = vpop.permute.xlu0 %9031
      %9033 = vrot.lane.b32.xlu0 %v8393, 20
      %v9034 = vpop.permute.xlu0 %9033
      %9035 = vrot.lane.b32.xlu0 %v8394, 20
      %v9036 = vpop.permute.xlu0 %9035
      %9037 = vrot.lane.b32.xlu0 %v8396, 20
      %v9038 = vpop.permute.xlu0 %9037
      %9039 = vrot.lane.b32.xlu0 %v8397, 20
      %v9040 = vpop.permute.xlu0 %9039
      %9041 = vrot.lane.b32.xlu0 %v8398, 20
      %v9042 = vpop.permute.xlu0 %9041
      %9043 = vrot.lane.b32.xlu0 %v8399, 20
      %v9044 = vpop.permute.xlu0 %9043
      %9045 = vrot.lane.b32.xlu0 %v8400, 20
      %v9046 = vpop.permute.xlu0 %9045
      %9047 = vrot.lane.b32.xlu0 %v8401, 20
      %v9048 = vpop.permute.xlu0 %9047
      %9049 = vrot.lane.b32.xlu0 %v8402, 20
      %v9050 = vpop.permute.xlu0 %9049
      %9051 = vrot.lane.b32.xlu0 %v8404, 20
      %v9052 = vpop.permute.xlu0 %9051
      %9053 = vrot.lane.b32.xlu0 %v8405, 20
      %v9054 = vpop.permute.xlu0 %9053
      %9055 = vrot.lane.b32.xlu0 %v8406, 20
      %v9056 = vpop.permute.xlu0 %9055
      %9057 = vrot.lane.b32.xlu0 %v8407, 20
      %v9058 = vpop.permute.xlu0 %9057
      %9059 = vrot.lane.b32.xlu0 %v8408, 20
      %v9060 = vpop.permute.xlu0 %9059
      %9061 = vrot.lane.b32.xlu0 %v8409, 20
      %v9062 = vpop.permute.xlu0 %9061
      %9063 = vrot.lane.b32.xlu0 %v8410, 20
      %v9064 = vpop.permute.xlu0 %9063
      %9065 = vrot.lane.b32.xlu0 %v8412, 20
      %v9066 = vpop.permute.xlu0 %9065
      %9067 = vrot.lane.b32.xlu0 %v8413, 20
      %v9068 = vpop.permute.xlu0 %9067
      %9069 = vrot.lane.b32.xlu0 %v8414, 20
      %v9070 = vpop.permute.xlu0 %9069
      %9071 = vrot.lane.b32.xlu0 %v8415, 20
      %v9072 = vpop.permute.xlu0 %9071
      %9073 = vrot.lane.b32.xlu0 %v8416, 20
      %v9074 = vpop.permute.xlu0 %9073
      %9075 = vrot.lane.b32.xlu0 %v8417, 20
      %v9076 = vpop.permute.xlu0 %9075
      %9077 = vrot.lane.b32.xlu0 %v8418, 20
      %v9078 = vpop.permute.xlu0 %9077
      %9079 = vrot.lane.b32.xlu0 %v8420, 20
      %v9080 = vpop.permute.xlu0 %9079
      %9081 = vrot.lane.b32.xlu0 %v8421, 20
      %v9082 = vpop.permute.xlu0 %9081
      %9083 = vrot.lane.b32.xlu0 %v8422, 20
      %v9084 = vpop.permute.xlu0 %9083
      %9085 = vrot.lane.b32.xlu0 %v8423, 20
      %v9086 = vpop.permute.xlu0 %9085
      %9087 = vrot.lane.b32.xlu0 %v8424, 20
      %v9088 = vpop.permute.xlu0 %9087
      %9089 = vrot.lane.b32.xlu0 %v8425, 20
      %v9090 = vpop.permute.xlu0 %9089
      %9091 = vrot.lane.b32.xlu0 %v8426, 20
      %v9092 = vpop.permute.xlu0 %9091
      %9093 = vrot.lane.b32.xlu0 %v8428, 20
      %v9094 = vpop.permute.xlu0 %9093
      %9095 = vrot.lane.b32.xlu0 %v8429, 20
      %v9096 = vpop.permute.xlu0 %9095
      %9097 = vrot.lane.b32.xlu0 %v8430, 20
      %v9098 = vpop.permute.xlu0 %9097
      %9099 = vrot.lane.b32.xlu0 %v8431, 20
      %v9100 = vpop.permute.xlu0 %9099
      %9101 = vrot.lane.b32.xlu0 %v8432, 20
      %v9102 = vpop.permute.xlu0 %9101
      %9103 = vrot.lane.b32.xlu0 %v8433, 20
      %v9104 = vpop.permute.xlu0 %9103
      %9105 = vrot.lane.b32.xlu0 %v8434, 20
      %v9106 = vpop.permute.xlu0 %9105
      %9114 = vrot.lane.b32.xlu0 %v8379, 24
      %v9115 = vpop.permute.xlu0 %9114
      %9116 = vrot.lane.b32.xlu0 %v8380, 24
      %v9117 = vpop.permute.xlu0 %9116
      %9118 = vrot.lane.b32.xlu0 %v8381, 24
      %v9119 = vpop.permute.xlu0 %9118
      %9120 = vrot.lane.b32.xlu0 %v8382, 24
      %v9121 = vpop.permute.xlu0 %9120
      %9122 = vrot.lane.b32.xlu0 %v8383, 24
      %v9123 = vpop.permute.xlu0 %9122
      %9124 = vrot.lane.b32.xlu0 %v8384, 24
      %v9125 = vpop.permute.xlu0 %9124
      %9126 = vrot.lane.b32.xlu0 %v8385, 24
      %v9127 = vpop.permute.xlu0 %9126
      %9128 = vrot.lane.b32.xlu0 %v8387, 24
      %v9129 = vpop.permute.xlu0 %9128
      %9130 = vrot.lane.b32.xlu0 %v8388, 24
      %v9131 = vpop.permute.xlu0 %9130
      %9132 = vrot.lane.b32.xlu0 %v8389, 24
      %v9133 = vpop.permute.xlu0 %9132
      %9134 = vrot.lane.b32.xlu0 %v8390, 24
      %v9135 = vpop.permute.xlu0 %9134
      %9136 = vrot.lane.b32.xlu0 %v8391, 24
      %v9137 = vpop.permute.xlu0 %9136
      %9138 = vrot.lane.b32.xlu0 %v8392, 24
      %v9139 = vpop.permute.xlu0 %9138
      %9140 = vrot.lane.b32.xlu0 %v8393, 24
      %v9141 = vpop.permute.xlu0 %9140
      %9142 = vrot.lane.b32.xlu0 %v8395, 24
      %v9143 = vpop.permute.xlu0 %9142
      %9144 = vrot.lane.b32.xlu0 %v8396, 24
      %v9145 = vpop.permute.xlu0 %9144
      %9146 = vrot.lane.b32.xlu0 %v8397, 24
      %v9147 = vpop.permute.xlu0 %9146
      %9148 = vrot.lane.b32.xlu0 %v8398, 24
      %v9149 = vpop.permute.xlu0 %9148
      %9150 = vrot.lane.b32.xlu0 %v8399, 24
      %v9151 = vpop.permute.xlu0 %9150
      %9152 = vrot.lane.b32.xlu0 %v8400, 24
      %v9153 = vpop.permute.xlu0 %9152
      %9154 = vrot.lane.b32.xlu0 %v8401, 24
      %v9155 = vpop.permute.xlu0 %9154
      %9156 = vrot.lane.b32.xlu0 %v8403, 24
      %v9157 = vpop.permute.xlu0 %9156
      %9158 = vrot.lane.b32.xlu0 %v8404, 24
      %v9159 = vpop.permute.xlu0 %9158
      %9160 = vrot.lane.b32.xlu0 %v8405, 24
      %v9161 = vpop.permute.xlu0 %9160
      %9162 = vrot.lane.b32.xlu0 %v8406, 24
      %v9163 = vpop.permute.xlu0 %9162
      %9164 = vrot.lane.b32.xlu0 %v8407, 24
      %v9165 = vpop.permute.xlu0 %9164
      %9166 = vrot.lane.b32.xlu0 %v8408, 24
      %v9167 = vpop.permute.xlu0 %9166
      %9168 = vrot.lane.b32.xlu0 %v8409, 24
      %v9169 = vpop.permute.xlu0 %9168
      %9170 = vrot.lane.b32.xlu0 %v8411, 24
      %v9171 = vpop.permute.xlu0 %9170
      %9172 = vrot.lane.b32.xlu0 %v8412, 24
      %v9173 = vpop.permute.xlu0 %9172
      %9174 = vrot.lane.b32.xlu0 %v8413, 24
      %v9175 = vpop.permute.xlu0 %9174
      %9176 = vrot.lane.b32.xlu0 %v8414, 24
      %v9177 = vpop.permute.xlu0 %9176
      %9178 = vrot.lane.b32.xlu0 %v8415, 24
      %v9179 = vpop.permute.xlu0 %9178
      %9180 = vrot.lane.b32.xlu0 %v8416, 24
      %v9181 = vpop.permute.xlu0 %9180
      %9182 = vrot.lane.b32.xlu0 %v8417, 24
      %v9183 = vpop.permute.xlu0 %9182
      %9184 = vrot.lane.b32.xlu0 %v8419, 24
      %v9185 = vpop.permute.xlu0 %9184
      %9186 = vrot.lane.b32.xlu0 %v8420, 24
      %v9187 = vpop.permute.xlu0 %9186
      %9188 = vrot.lane.b32.xlu0 %v8421, 24
      %v9189 = vpop.permute.xlu0 %9188
      %9190 = vrot.lane.b32.xlu0 %v8422, 24
      %v9191 = vpop.permute.xlu0 %9190
      %9192 = vrot.lane.b32.xlu0 %v8423, 24
      %v9193 = vpop.permute.xlu0 %9192
      %9194 = vrot.lane.b32.xlu0 %v8424, 24
      %v9195 = vpop.permute.xlu0 %9194
      %9196 = vrot.lane.b32.xlu0 %v8425, 24
      %v9197 = vpop.permute.xlu0 %9196
      %9198 = vrot.lane.b32.xlu0 %v8427, 24
      %v9199 = vpop.permute.xlu0 %9198
      %9200 = vrot.lane.b32.xlu0 %v8428, 24
      %v9201 = vpop.permute.xlu0 %9200
      %9202 = vrot.lane.b32.xlu0 %v8429, 24
      %v9203 = vpop.permute.xlu0 %9202
      %9204 = vrot.lane.b32.xlu0 %v8430, 24
      %v9205 = vpop.permute.xlu0 %9204
      %9206 = vrot.lane.b32.xlu0 %v8431, 24
      %v9207 = vpop.permute.xlu0 %9206
      %9208 = vrot.lane.b32.xlu0 %v8432, 24
      %v9209 = vpop.permute.xlu0 %9208
      %9210 = vrot.lane.b32.xlu0 %v8433, 24
      %v9211 = vpop.permute.xlu0 %9210
      %9212 = vrot.lane.b32.xlu0 %v8435, 24
      %v9213 = vpop.permute.xlu0 %9212
      %9214 = vrot.lane.b32.xlu0 %v8436, 24
      %v9215 = vpop.permute.xlu0 %9214
      %9216 = vrot.lane.b32.xlu0 %v8437, 24
      %v9217 = vpop.permute.xlu0 %9216
      %9218 = vrot.lane.b32.xlu0 %v8438, 24
      %v9219 = vpop.permute.xlu0 %9218
      %9220 = vrot.lane.b32.xlu0 %v8439, 24
      %v9221 = vpop.permute.xlu0 %9220
      %9222 = vrot.lane.b32.xlu0 %v8440, 24
      %v9223 = vpop.permute.xlu0 %9222
      %9224 = vrot.lane.b32.xlu0 %v8441, 24
      %v9225 = vpop.permute.xlu0 %9224
      %9227 = vrot.lane.b32.xlu0 %v8379, 28
      %v9228 = vpop.permute.xlu0 %9227
      %9229 = vrot.lane.b32.xlu0 %v8380, 28
      %v9230 = vpop.permute.xlu0 %9229
      %9231 = vrot.lane.b32.xlu0 %v8381, 28
      %v9232 = vpop.permute.xlu0 %9231
      %9233 = vrot.lane.b32.xlu0 %v8382, 28
      %v9234 = vpop.permute.xlu0 %9233
      %9235 = vrot.lane.b32.xlu0 %v8383, 28
      %v9236 = vpop.permute.xlu0 %9235
      %9237 = vrot.lane.b32.xlu0 %v8384, 28
      %v9238 = vpop.permute.xlu0 %9237
      %9239 = vrot.lane.b32.xlu0 %v8385, 28
      %v9240 = vpop.permute.xlu0 %9239
      %9241 = vrot.lane.b32.xlu0 %v8386, 28
      %v9242 = vpop.permute.xlu0 %9241
      %9243 = vrot.lane.b32.xlu0 %v8387, 28
      %v9244 = vpop.permute.xlu0 %9243
      %9245 = vrot.lane.b32.xlu0 %v8388, 28
      %v9246 = vpop.permute.xlu0 %9245
      %9247 = vrot.lane.b32.xlu0 %v8389, 28
      %v9248 = vpop.permute.xlu0 %9247
      %9249 = vrot.lane.b32.xlu0 %v8390, 28
      %v9250 = vpop.permute.xlu0 %9249
      %9251 = vrot.lane.b32.xlu0 %v8391, 28
      %v9252 = vpop.permute.xlu0 %9251
      %9253 = vrot.lane.b32.xlu0 %v8392, 28
      %v9254 = vpop.permute.xlu0 %9253
      %9255 = vrot.lane.b32.xlu0 %v8393, 28
      %v9256 = vpop.permute.xlu0 %9255
      %9257 = vrot.lane.b32.xlu0 %v8394, 28
      %v9258 = vpop.permute.xlu0 %9257
      %9259 = vrot.lane.b32.xlu0 %v8395, 28
      %v9260 = vpop.permute.xlu0 %9259
      %9261 = vrot.lane.b32.xlu0 %v8396, 28
      %v9262 = vpop.permute.xlu0 %9261
      %9263 = vrot.lane.b32.xlu0 %v8397, 28
      %v9264 = vpop.permute.xlu0 %9263
      %9265 = vrot.lane.b32.xlu0 %v8398, 28
      %v9266 = vpop.permute.xlu0 %9265
      %9267 = vrot.lane.b32.xlu0 %v8399, 28
      %v9268 = vpop.permute.xlu0 %9267
      %9269 = vrot.lane.b32.xlu0 %v8400, 28
      %v9270 = vpop.permute.xlu0 %9269
      %9271 = vrot.lane.b32.xlu0 %v8401, 28
      %v9272 = vpop.permute.xlu0 %9271
      %9273 = vrot.lane.b32.xlu0 %v8402, 28
      %v9274 = vpop.permute.xlu0 %9273
      %9275 = vrot.lane.b32.xlu0 %v8403, 28
      %v9276 = vpop.permute.xlu0 %9275
      %9277 = vrot.lane.b32.xlu0 %v8404, 28
      %v9278 = vpop.permute.xlu0 %9277
      %9279 = vrot.lane.b32.xlu0 %v8405, 28
      %v9280 = vpop.permute.xlu0 %9279
      %9281 = vrot.lane.b32.xlu0 %v8406, 28
      %v9282 = vpop.permute.xlu0 %9281
      %9283 = vrot.lane.b32.xlu0 %v8407, 28
      %v9284 = vpop.permute.xlu0 %9283
      %9285 = vrot.lane.b32.xlu0 %v8408, 28
      %v9286 = vpop.permute.xlu0 %9285
      %9287 = vrot.lane.b32.xlu0 %v8409, 28
      %v9288 = vpop.permute.xlu0 %9287
      %9289 = vrot.lane.b32.xlu0 %v8410, 28
      %v9290 = vpop.permute.xlu0 %9289
      %9291 = vrot.lane.b32.xlu0 %v8411, 28
      %v9292 = vpop.permute.xlu0 %9291
      %9293 = vrot.lane.b32.xlu0 %v8412, 28
      %v9294 = vpop.permute.xlu0 %9293
      %9295 = vrot.lane.b32.xlu0 %v8413, 28
      %v9296 = vpop.permute.xlu0 %9295
      %9297 = vrot.lane.b32.xlu0 %v8414, 28
      %v9298 = vpop.permute.xlu0 %9297
      %9299 = vrot.lane.b32.xlu0 %v8415, 28
      %v9300 = vpop.permute.xlu0 %9299
      %9301 = vrot.lane.b32.xlu0 %v8416, 28
      %v9302 = vpop.permute.xlu0 %9301
      %9303 = vrot.lane.b32.xlu0 %v8417, 28
      %v9304 = vpop.permute.xlu0 %9303
      %9305 = vrot.lane.b32.xlu0 %v8418, 28
      %v9306 = vpop.permute.xlu0 %9305
      %9307 = vrot.lane.b32.xlu0 %v8419, 28
      %v9308 = vpop.permute.xlu0 %9307
      %9309 = vrot.lane.b32.xlu0 %v8420, 28
      %v9310 = vpop.permute.xlu0 %9309
      %9311 = vrot.lane.b32.xlu0 %v8421, 28
      %v9312 = vpop.permute.xlu0 %9311
      %9313 = vrot.lane.b32.xlu0 %v8422, 28
      %v9314 = vpop.permute.xlu0 %9313
      %9315 = vrot.lane.b32.xlu0 %v8423, 28
      %v9316 = vpop.permute.xlu0 %9315
      %9317 = vrot.lane.b32.xlu0 %v8424, 28
      %v9318 = vpop.permute.xlu0 %9317
      %9319 = vrot.lane.b32.xlu0 %v8425, 28
      %v9320 = vpop.permute.xlu0 %9319
      %9321 = vrot.lane.b32.xlu0 %v8426, 28
      %v9322 = vpop.permute.xlu0 %9321
      %9323 = vrot.lane.b32.xlu0 %v8427, 28
      %v9324 = vpop.permute.xlu0 %9323
      %9325 = vrot.lane.b32.xlu0 %v8428, 28
      %v9326 = vpop.permute.xlu0 %9325
      %9327 = vrot.lane.b32.xlu0 %v8429, 28
      %v9328 = vpop.permute.xlu0 %9327
      %9329 = vrot.lane.b32.xlu0 %v8430, 28
      %v9330 = vpop.permute.xlu0 %9329
      %9331 = vrot.lane.b32.xlu0 %v8431, 28
      %v9332 = vpop.permute.xlu0 %9331
      %9333 = vrot.lane.b32.xlu0 %v8432, 28
      %v9334 = vpop.permute.xlu0 %9333
      %9335 = vrot.lane.b32.xlu0 %v8433, 28
      %v9336 = vpop.permute.xlu0 %9335
      %9337 = vrot.lane.b32.xlu0 %v8434, 28
      %v9338 = vpop.permute.xlu0 %9337
      %9339 = vrot.lane.b32.xlu0 %v8435, 28
      %v9340 = vpop.permute.xlu0 %9339
      %9341 = vrot.lane.b32.xlu0 %v8436, 28
      %v9342 = vpop.permute.xlu0 %9341
      %9343 = vrot.lane.b32.xlu0 %v8437, 28
      %v9344 = vpop.permute.xlu0 %9343
      %9345 = vrot.lane.b32.xlu0 %v8438, 28
      %v9346 = vpop.permute.xlu0 %9345
      %9347 = vrot.lane.b32.xlu0 %v8439, 28
      %v9348 = vpop.permute.xlu0 %9347
      %9349 = vrot.lane.b32.xlu0 %v8440, 28
      %v9350 = vpop.permute.xlu0 %9349
      %9351 = vrot.lane.b32.xlu0 %v8441, 28
      %v9352 = vpop.permute.xlu0 %9351
      %9353 = vrot.lane.b32.xlu0 %v8442, 28
      %v9354 = vpop.permute.xlu0 %9353
      %9355 = vrot.lane.b32.xlu0 %v8380, 32
      %v9356 = vpop.permute.xlu0 %9355
      %9357 = vrot.lane.b32.xlu0 %v8381, 32
      %v9358 = vpop.permute.xlu0 %9357
      %9359 = vrot.lane.b32.xlu0 %v8382, 32
      %v9360 = vpop.permute.xlu0 %9359
      %9361 = vrot.lane.b32.xlu0 %v8383, 32
      %v9362 = vpop.permute.xlu0 %9361
      %9363 = vrot.lane.b32.xlu0 %v8384, 32
      %v9364 = vpop.permute.xlu0 %9363
      %9365 = vrot.lane.b32.xlu0 %v8385, 32
      %v9366 = vpop.permute.xlu0 %9365
      %9367 = vrot.lane.b32.xlu0 %v8386, 32
      %v9368 = vpop.permute.xlu0 %9367
      %9369 = vrot.lane.b32.xlu0 %v8388, 32
      %v9370 = vpop.permute.xlu0 %9369
      %9371 = vrot.lane.b32.xlu0 %v8389, 32
      %v9372 = vpop.permute.xlu0 %9371
      %9373 = vrot.lane.b32.xlu0 %v8390, 32
      %v9374 = vpop.permute.xlu0 %9373
      %9375 = vrot.lane.b32.xlu0 %v8391, 32
      %v9376 = vpop.permute.xlu0 %9375
      %9377 = vrot.lane.b32.xlu0 %v8392, 32
      %v9378 = vpop.permute.xlu0 %9377
      %9379 = vrot.lane.b32.xlu0 %v8393, 32
      %v9380 = vpop.permute.xlu0 %9379
      %9381 = vrot.lane.b32.xlu0 %v8394, 32
      %v9382 = vpop.permute.xlu0 %9381
      %9383 = vrot.lane.b32.xlu0 %v8396, 32
      %v9384 = vpop.permute.xlu0 %9383
      %9385 = vrot.lane.b32.xlu0 %v8397, 32
      %v9386 = vpop.permute.xlu0 %9385
      %9387 = vrot.lane.b32.xlu0 %v8398, 32
      %v9388 = vpop.permute.xlu0 %9387
      %9389 = vrot.lane.b32.xlu0 %v8399, 32
      %v9390 = vpop.permute.xlu0 %9389
      %9391 = vrot.lane.b32.xlu0 %v8400, 32
      %v9392 = vpop.permute.xlu0 %9391
      %9393 = vrot.lane.b32.xlu0 %v8401, 32
      %v9394 = vpop.permute.xlu0 %9393
      %9395 = vrot.lane.b32.xlu0 %v8402, 32
      %v9396 = vpop.permute.xlu0 %9395
      %9397 = vrot.lane.b32.xlu0 %v8404, 32
      %v9398 = vpop.permute.xlu0 %9397
      %9399 = vrot.lane.b32.xlu0 %v8405, 32
      %v9400 = vpop.permute.xlu0 %9399
      %9401 = vrot.lane.b32.xlu0 %v8406, 32
      %v9402 = vpop.permute.xlu0 %9401
      %9403 = vrot.lane.b32.xlu0 %v8407, 32
      %v9404 = vpop.permute.xlu0 %9403
      %9405 = vrot.lane.b32.xlu0 %v8408, 32
      %v9406 = vpop.permute.xlu0 %9405
      %9407 = vrot.lane.b32.xlu0 %v8409, 32
      %v9408 = vpop.permute.xlu0 %9407
      %9409 = vrot.lane.b32.xlu0 %v8410, 32
      %v9410 = vpop.permute.xlu0 %9409
      %9411 = vrot.lane.b32.xlu0 %v8412, 32
      %v9412 = vpop.permute.xlu0 %9411
      %9413 = vrot.lane.b32.xlu0 %v8413, 32
      %v9414 = vpop.permute.xlu0 %9413
      %9415 = vrot.lane.b32.xlu0 %v8414, 32
      %v9416 = vpop.permute.xlu0 %9415
      %9417 = vrot.lane.b32.xlu0 %v8415, 32
      %v9418 = vpop.permute.xlu0 %9417
      %9419 = vrot.lane.b32.xlu0 %v8416, 32
      %v9420 = vpop.permute.xlu0 %9419
      %9421 = vrot.lane.b32.xlu0 %v8417, 32
      %v9422 = vpop.permute.xlu0 %9421
      %9423 = vrot.lane.b32.xlu0 %v8418, 32
      %v9424 = vpop.permute.xlu0 %9423
      %9425 = vrot.lane.b32.xlu0 %v8420, 32
      %v9426 = vpop.permute.xlu0 %9425
      %9427 = vrot.lane.b32.xlu0 %v8421, 32
      %v9428 = vpop.permute.xlu0 %9427
      %9429 = vrot.lane.b32.xlu0 %v8422, 32
      %v9430 = vpop.permute.xlu0 %9429
      %9431 = vrot.lane.b32.xlu0 %v8423, 32
      %v9432 = vpop.permute.xlu0 %9431
      %9433 = vrot.lane.b32.xlu0 %v8424, 32
      %v9434 = vpop.permute.xlu0 %9433
      %9435 = vrot.lane.b32.xlu0 %v8425, 32
      %v9436 = vpop.permute.xlu0 %9435
      %9437 = vrot.lane.b32.xlu0 %v8426, 32
      %v9438 = vpop.permute.xlu0 %9437
      %9439 = vrot.lane.b32.xlu0 %v8428, 32
      %v9440 = vpop.permute.xlu0 %9439
      %9441 = vrot.lane.b32.xlu0 %v8429, 32
      %v9442 = vpop.permute.xlu0 %9441
      %9443 = vrot.lane.b32.xlu0 %v8430, 32
      %v9444 = vpop.permute.xlu0 %9443
      %9445 = vrot.lane.b32.xlu0 %v8431, 32
      %v9446 = vpop.permute.xlu0 %9445
      %9447 = vrot.lane.b32.xlu0 %v8432, 32
      %v9448 = vpop.permute.xlu0 %9447
      %9449 = vrot.lane.b32.xlu0 %v8433, 32
      %v9450 = vpop.permute.xlu0 %9449
      %9451 = vrot.lane.b32.xlu0 %v8434, 32
      %v9452 = vpop.permute.xlu0 %9451
      %9453 = vrot.lane.b32.xlu0 %v8436, 32
      %v9454 = vpop.permute.xlu0 %9453
      %9455 = vrot.lane.b32.xlu0 %v8437, 32
      %v9456 = vpop.permute.xlu0 %9455
      %9457 = vrot.lane.b32.xlu0 %v8438, 32
      %v9458 = vpop.permute.xlu0 %9457
      %9459 = vrot.lane.b32.xlu0 %v8439, 32
      %v9460 = vpop.permute.xlu0 %9459
      %9461 = vrot.lane.b32.xlu0 %v8440, 32
      %v9462 = vpop.permute.xlu0 %9461
      %9463 = vrot.lane.b32.xlu0 %v8441, 32
      %v9464 = vpop.permute.xlu0 %9463
      %9465 = vrot.lane.b32.xlu0 %v8442, 32
      %v9466 = vpop.permute.xlu0 %9465
      %v9468 = vsel %vm6244, 0, %v8508
      %v9471 = vsel %vm6244, %v8363, %v8510
      %v9474 = vsel %vm6244, %v8364, %v8512
      %v9477 = vsel %vm6244, %v8365, %v8514
      %v9480 = vsel %vm6244, %v8366, %v8516
      %v9483 = vsel %vm6244, %v8367, %v8518
      %v9486 = vsel %vm6244, %v8368, %v8520
      %v9489 = vsel %vm6244, %v8369, %v8522
      %v9491 = vsel %vm6244, 0, %v8524
      %v9494 = vsel %vm6244, %v8371, %v8526
      %v9497 = vsel %vm6244, %v8372, %v8528
      %v9500 = vsel %vm6244, %v8373, %v8530
      %v9503 = vsel %vm6244, %v8374, %v8532
      %v9506 = vsel %vm6244, %v8375, %v8534
      %v9509 = vsel %vm6244, %v8376, %v8536
      %v9512 = vsel %vm6244, %v8377, %v8538
      %v9514 = vsel %vm6244, 0, %v8540
      %v9517 = vsel %vm6244, %v8379, %v8542
      %v9520 = vsel %vm6244, %v8380, %v8544
      %v9523 = vsel %vm6244, %v8381, %v8546
      %v9526 = vsel %vm6244, %v8382, %v8548
      %v9529 = vsel %vm6244, %v8383, %v8550
      %v9532 = vsel %vm6244, %v8384, %v8552
      %v9535 = vsel %vm6244, %v8385, %v8554
      %v9537 = vsel %vm6244, 0, %v8556
      %v9540 = vsel %vm6244, %v8387, %v8558
      %v9543 = vsel %vm6244, %v8388, %v8560
      %v9546 = vsel %vm6244, %v8389, %v8562
      %v9549 = vsel %vm6244, %v8390, %v8564
      %v9552 = vsel %vm6244, %v8391, %v8566
      %v9555 = vsel %vm6244, %v8392, %v8568
      %v9558 = vsel %vm6244, %v8393, %v8570
      %v9560 = vsel %vm6244, 0, %v8572
      %v9563 = vsel %vm6244, %v8395, %v8574
      %v9566 = vsel %vm6244, %v8396, %v8576
      %v9569 = vsel %vm6244, %v8397, %v8578
      %v9572 = vsel %vm6244, %v8398, %v8580
      %v9575 = vsel %vm6244, %v8399, %v8582
      %v9578 = vsel %vm6244, %v8400, %v8584
      %v9581 = vsel %vm6244, %v8401, %v8586
      %v9583 = vsel %vm6244, 0, %v8588
      %v9586 = vsel %vm6244, %v8403, %v8590
      %v9589 = vsel %vm6244, %v8404, %v8592
      %v9592 = vsel %vm6244, %v8405, %v8594
      %v9595 = vsel %vm6244, %v8406, %v8596
      %v9598 = vsel %vm6244, %v8407, %v8598
      %v9601 = vsel %vm6244, %v8408, %v8600
      %v9604 = vsel %vm6244, %v8409, %v8602
      %v9606 = vsel %vm6244, 0, %v8604
      %v9609 = vsel %vm6244, %v8411, %v8606
      %v9612 = vsel %vm6244, %v8412, %v8608
      %v9615 = vsel %vm6244, %v8413, %v8610
      %v9618 = vsel %vm6244, %v8414, %v8612
      %v9621 = vsel %vm6244, %v8415, %v8614
      %v9624 = vsel %vm6244, %v8416, %v8616
      %v9627 = vsel %vm6244, %v8417, %v8618
      %v9629 = vsel %vm6244, 0, %v8620
      %v9632 = vsel %vm6244, %v8419, %v8622
      %v9635 = vsel %vm6244, %v8420, %v8624
      %v9638 = vsel %vm6244, %v8421, %v8626
      %v9641 = vsel %vm6244, %v8422, %v8628
      %v9644 = vsel %vm6244, %v8423, %v8630
      %v9647 = vsel %vm6244, %v8424, %v8632
      %v9650 = vsel %vm6244, %v8425, %v8634
      %v9652 = vsel %vm522, %v9468, %v8636
      %v9654 = vsel %vm522, %v9471, %v8638
      %v9656 = vsel %vm522, %v9474, %v8640
      %v9658 = vsel %vm522, %v9477, %v8642
      %v9660 = vsel %vm522, %v9480, %v8644
      %v9662 = vsel %vm522, %v9483, %v8646
      %v9664 = vsel %vm522, %v9486, %v8648
      %v9665 = vsel %vm522, %v9489, %v5213
      %v9667 = vsel %vm522, %v9491, %v8650
      %v9669 = vsel %vm522, %v9494, %v8652
      %v9671 = vsel %vm522, %v9497, %v8654
      %v9673 = vsel %vm522, %v9500, %v8656
      %v9675 = vsel %vm522, %v9503, %v8658
      %v9677 = vsel %vm522, %v9506, %v8660
      %v9679 = vsel %vm522, %v9509, %v8662
      %v9680 = vsel %vm522, %v9512, %v5213
      %v9682 = vsel %vm522, %v9514, %v8664
      %v9684 = vsel %vm522, %v9517, %v8666
      %v9686 = vsel %vm522, %v9520, %v8668
      %v9688 = vsel %vm522, %v9523, %v8670
      %v9690 = vsel %vm522, %v9526, %v8672
      %v9692 = vsel %vm522, %v9529, %v8674
      %v9694 = vsel %vm522, %v9532, %v8676
      %v9695 = vsel %vm522, %v9535, %v5213
      %v9697 = vsel %vm522, %v9537, %v8678
      %v9699 = vsel %vm522, %v9540, %v8680
      %v9701 = vsel %vm522, %v9543, %v8682
      %v9703 = vsel %vm522, %v9546, %v8684
      %v9705 = vsel %vm522, %v9549, %v8686
      %v9707 = vsel %vm522, %v9552, %v8688
      %v9709 = vsel %vm522, %v9555, %v8690
      %v9710 = vsel %vm522, %v9558, %v5213
      %v9712 = vsel %vm522, %v9560, %v8692
      %v9714 = vsel %vm522, %v9563, %v8694
      %v9716 = vsel %vm522, %v9566, %v8696
      %v9718 = vsel %vm522, %v9569, %v8698
      %v9720 = vsel %vm522, %v9572, %v8700
      %v9722 = vsel %vm522, %v9575, %v8702
      %v9724 = vsel %vm522, %v9578, %v8704
      %v9725 = vsel %vm522, %v9581, %v5213
      %v9727 = vsel %vm522, %v9583, %v8706
      %v9729 = vsel %vm522, %v9586, %v8708
      %v9731 = vsel %vm522, %v9589, %v8710
      %v9733 = vsel %vm522, %v9592, %v8712
      %v9735 = vsel %vm522, %v9595, %v8714
      %v9737 = vsel %vm522, %v9598, %v8716
      %v9739 = vsel %vm522, %v9601, %v8718
      %v9740 = vsel %vm522, %v9604, %v5213
      %v9742 = vsel %vm522, %v9606, %v8720
      %v9744 = vsel %vm522, %v9609, %v8722
      %v9746 = vsel %vm522, %v9612, %v8724
      %v9748 = vsel %vm522, %v9615, %v8726
      %v9750 = vsel %vm522, %v9618, %v8728
      %v9752 = vsel %vm522, %v9621, %v8730
      %v9754 = vsel %vm522, %v9624, %v8732
      %v9755 = vsel %vm522, %v9627, %v5213
      %v9757 = vsel %vm522, %v9629, %v8734
      %v9759 = vsel %vm522, %v9632, %v8736
      %v9761 = vsel %vm522, %v9635, %v8738
      %v9763 = vsel %vm522, %v9638, %v8740
      %v9765 = vsel %vm522, %v9641, %v8742
      %v9767 = vsel %vm522, %v9644, %v8744
      %v9769 = vsel %vm522, %v9647, %v8746
      %v9770 = vsel %vm522, %v9650, %v5213
      %v9771 = vsel %vm6627, %v9652, %v5348
      %v9773 = vsel %vm6627, %v9654, %v8755
      %v9775 = vsel %vm6627, %v9656, %v8757
      %v9777 = vsel %vm6627, %v9658, %v8759
      %v9779 = vsel %vm6627, %v9660, %v8761
      %v9781 = vsel %vm6627, %v9662, %v8763
      %v9783 = vsel %vm6627, %v9664, %v8765
      %v9785 = vsel %vm6627, %v9665, %v8767
      %v9786 = vsel %vm6627, %v9667, %v5348
      %v9788 = vsel %vm6627, %v9669, %v8769
      %v9790 = vsel %vm6627, %v9671, %v8771
      %v9792 = vsel %vm6627, %v9673, %v8773
      %v9794 = vsel %vm6627, %v9675, %v8775
      %v9796 = vsel %vm6627, %v9677, %v8777
      %v9798 = vsel %vm6627, %v9679, %v8779
      %v9800 = vsel %vm6627, %v9680, %v8781
      %v9801 = vsel %vm6627, %v9682, %v5348
      %v9803 = vsel %vm6627, %v9684, %v8783
      %v9805 = vsel %vm6627, %v9686, %v8785
      %v9807 = vsel %vm6627, %v9688, %v8787
      %v9809 = vsel %vm6627, %v9690, %v8789
      %v9811 = vsel %vm6627, %v9692, %v8791
      %v9813 = vsel %vm6627, %v9694, %v8793
      %v9815 = vsel %vm6627, %v9695, %v8795
      %v9816 = vsel %vm6627, %v9697, %v5348
      %v9818 = vsel %vm6627, %v9699, %v8797
      %v9820 = vsel %vm6627, %v9701, %v8799
      %v9822 = vsel %vm6627, %v9703, %v8801
      %v9824 = vsel %vm6627, %v9705, %v8803
      %v9826 = vsel %vm6627, %v9707, %v8805
      %v9828 = vsel %vm6627, %v9709, %v8807
      %v9830 = vsel %vm6627, %v9710, %v8809
      %v9831 = vsel %vm6627, %v9712, %v5348
      %v9833 = vsel %vm6627, %v9714, %v8811
      %v9835 = vsel %vm6627, %v9716, %v8813
      %v9837 = vsel %vm6627, %v9718, %v8815
      %v9839 = vsel %vm6627, %v9720, %v8817
      %v9841 = vsel %vm6627, %v9722, %v8819
      %v9843 = vsel %vm6627, %v9724, %v8821
      %v9845 = vsel %vm6627, %v9725, %v8823
      %v9846 = vsel %vm6627, %v9727, %v5348
      %v9848 = vsel %vm6627, %v9729, %v8825
      %v9850 = vsel %vm6627, %v9731, %v8827
      %v9852 = vsel %vm6627, %v9733, %v8829
      %v9854 = vsel %vm6627, %v9735, %v8831
      %v9856 = vsel %vm6627, %v9737, %v8833
      %v9858 = vsel %vm6627, %v9739, %v8835
      %v9860 = vsel %vm6627, %v9740, %v8837
      %v9861 = vsel %vm6627, %v9742, %v5348
      %v9863 = vsel %vm6627, %v9744, %v8839
      %v9865 = vsel %vm6627, %v9746, %v8841
      %v9867 = vsel %vm6627, %v9748, %v8843
      %v9869 = vsel %vm6627, %v9750, %v8845
      %v9871 = vsel %vm6627, %v9752, %v8847
      %v9873 = vsel %vm6627, %v9754, %v8849
      %v9875 = vsel %vm6627, %v9755, %v8851
      %v9876 = vsel %vm6627, %v9757, %v5348
      %v9878 = vsel %vm6627, %v9759, %v8853
      %v9880 = vsel %vm6627, %v9761, %v8855
      %v9882 = vsel %vm6627, %v9763, %v8857
      %v9884 = vsel %vm6627, %v9765, %v8859
      %v9886 = vsel %vm6627, %v9767, %v8861
      %v9888 = vsel %vm6627, %v9769, %v8863
      %v9890 = vsel %vm6627, %v9770, %v8865
      %v9892 = vsel %vm6779, %v9771, %v8868
      %v9894 = vsel %vm6779, %v9773, %v8870
      %v9896 = vsel %vm6779, %v9775, %v8872
      %v9898 = vsel %vm6779, %v9777, %v8874
      %v9900 = vsel %vm6779, %v9779, %v8876
      %v9902 = vsel %vm6779, %v9781, %v8878
      %v9904 = vsel %vm6779, %v9783, %v8880
      %v9906 = vsel %vm6779, %v9785, %v8882
      %v9908 = vsel %vm6779, %v9786, %v8884
      %v9910 = vsel %vm6779, %v9788, %v8886
      %v9912 = vsel %vm6779, %v9790, %v8888
      %v9914 = vsel %vm6779, %v9792, %v8890
      %v9916 = vsel %vm6779, %v9794, %v8892
      %v9918 = vsel %vm6779, %v9796, %v8894
      %v9920 = vsel %vm6779, %v9798, %v8896
      %v9922 = vsel %vm6779, %v9800, %v8898
      %v9924 = vsel %vm6779, %v9801, %v8900
      %v9926 = vsel %vm6779, %v9803, %v8902
      %v9928 = vsel %vm6779, %v9805, %v8904
      %v9930 = vsel %vm6779, %v9807, %v8906
      %v9932 = vsel %vm6779, %v9809, %v8908
      %v9934 = vsel %vm6779, %v9811, %v8910
      %v9936 = vsel %vm6779, %v9813, %v8912
      %v9938 = vsel %vm6779, %v9815, %v8914
      %v9940 = vsel %vm6779, %v9816, %v8916
      %v9942 = vsel %vm6779, %v9818, %v8918
      %v9944 = vsel %vm6779, %v9820, %v8920
      %v9946 = vsel %vm6779, %v9822, %v8922
      %v9948 = vsel %vm6779, %v9824, %v8924
      %v9950 = vsel %vm6779, %v9826, %v8926
      %v9952 = vsel %vm6779, %v9828, %v8928
      %v9954 = vsel %vm6779, %v9830, %v8930
      %v9956 = vsel %vm6779, %v9831, %v8932
      %v9958 = vsel %vm6779, %v9833, %v8934
      %v9960 = vsel %vm6779, %v9835, %v8936
      %v9962 = vsel %vm6779, %v9837, %v8938
      %v9964 = vsel %vm6779, %v9839, %v8940
      %v9966 = vsel %vm6779, %v9841, %v8942
      %v9968 = vsel %vm6779, %v9843, %v8944
      %v9970 = vsel %vm6779, %v9845, %v8946
      %v9972 = vsel %vm6779, %v9846, %v8948
      %v9974 = vsel %vm6779, %v9848, %v8950
      %v9976 = vsel %vm6779, %v9850, %v8952
      %v9978 = vsel %vm6779, %v9852, %v8954
      %v9980 = vsel %vm6779, %v9854, %v8956
      %v9982 = vsel %vm6779, %v9856, %v8958
      %v9984 = vsel %vm6779, %v9858, %v8960
      %v9986 = vsel %vm6779, %v9860, %v8962
      %v9988 = vsel %vm6779, %v9861, %v8964
      %v9990 = vsel %vm6779, %v9863, %v8966
      %v9992 = vsel %vm6779, %v9865, %v8968
      %v9994 = vsel %vm6779, %v9867, %v8970
      %v9996 = vsel %vm6779, %v9869, %v8972
      %v9998 = vsel %vm6779, %v9871, %v8974
      %v10000 = vsel %vm6779, %v9873, %v8976
      %v10002 = vsel %vm6779, %v9875, %v8978
      %v10004 = vsel %vm6779, %v9876, %v8980
      %v10006 = vsel %vm6779, %v9878, %v8982
      %v10008 = vsel %vm6779, %v9880, %v8984
      %v10010 = vsel %vm6779, %v9882, %v8986
      %v10012 = vsel %vm6779, %v9884, %v8988
      %v10014 = vsel %vm6779, %v9886, %v8990
      %v10016 = vsel %vm6779, %v9888, %v8992
      %v10018 = vsel %vm6779, %v9890, %v8994
      %v10020 = vsel %vm6940, %v9892, %v8996
      %v10022 = vsel %vm6940, %v9894, %v8998
      %v10024 = vsel %vm6940, %v9896, %v9000
      %v10026 = vsel %vm6940, %v9898, %v9002
      %v10028 = vsel %vm6940, %v9900, %v9004
      %v10030 = vsel %vm6940, %v9902, %v9006
      %v10032 = vsel %vm6940, %v9904, %v9008
      %v10033 = vsel %vm6940, %v9906, %v5665
      %v10035 = vsel %vm6940, %v9908, %v9010
      %v10037 = vsel %vm6940, %v9910, %v9012
      %v10039 = vsel %vm6940, %v9912, %v9014
      %v10041 = vsel %vm6940, %v9914, %v9016
      %v10043 = vsel %vm6940, %v9916, %v9018
      %v10045 = vsel %vm6940, %v9918, %v9020
      %v10047 = vsel %vm6940, %v9920, %v9022
      %v10048 = vsel %vm6940, %v9922, %v5665
      %v10050 = vsel %vm6940, %v9924, %v9024
      %v10052 = vsel %vm6940, %v9926, %v9026
      %v10054 = vsel %vm6940, %v9928, %v9028
      %v10056 = vsel %vm6940, %v9930, %v9030
      %v10058 = vsel %vm6940, %v9932, %v9032
      %v10060 = vsel %vm6940, %v9934, %v9034
      %v10062 = vsel %vm6940, %v9936, %v9036
      %v10063 = vsel %vm6940, %v9938, %v5665
      %v10065 = vsel %vm6940, %v9940, %v9038
      %v10067 = vsel %vm6940, %v9942, %v9040
      %v10069 = vsel %vm6940, %v9944, %v9042
      %v10071 = vsel %vm6940, %v9946, %v9044
      %v10073 = vsel %vm6940, %v9948, %v9046
      %v10075 = vsel %vm6940, %v9950, %v9048
      %v10077 = vsel %vm6940, %v9952, %v9050
      %v10078 = vsel %vm6940, %v9954, %v5665
      %v10080 = vsel %vm6940, %v9956, %v9052
      %v10082 = vsel %vm6940, %v9958, %v9054
      %v10084 = vsel %vm6940, %v9960, %v9056
      %v10086 = vsel %vm6940, %v9962, %v9058
      %v10088 = vsel %vm6940, %v9964, %v9060
      %v10090 = vsel %vm6940, %v9966, %v9062
      %v10092 = vsel %vm6940, %v9968, %v9064
      %v10093 = vsel %vm6940, %v9970, %v5665
      %v10095 = vsel %vm6940, %v9972, %v9066
      %v10097 = vsel %vm6940, %v9974, %v9068
      %v10099 = vsel %vm6940, %v9976, %v9070
      %v10101 = vsel %vm6940, %v9978, %v9072
      %v10103 = vsel %vm6940, %v9980, %v9074
      %v10105 = vsel %vm6940, %v9982, %v9076
      %v10107 = vsel %vm6940, %v9984, %v9078
      %v10108 = vsel %vm6940, %v9986, %v5665
      %v10110 = vsel %vm6940, %v9988, %v9080
      %v10112 = vsel %vm6940, %v9990, %v9082
      %v10114 = vsel %vm6940, %v9992, %v9084
      %v10116 = vsel %vm6940, %v9994, %v9086
      %v10118 = vsel %vm6940, %v9996, %v9088
      %v10120 = vsel %vm6940, %v9998, %v9090
      %v10122 = vsel %vm6940, %v10000, %v9092
      %v10123 = vsel %vm6940, %v10002, %v5665
      %v10125 = vsel %vm6940, %v10004, %v9094
      %v10127 = vsel %vm6940, %v10006, %v9096
      %v10129 = vsel %vm6940, %v10008, %v9098
      %v10131 = vsel %vm6940, %v10010, %v9100
      %v10133 = vsel %vm6940, %v10012, %v9102
      %v10135 = vsel %vm6940, %v10014, %v9104
      %v10137 = vsel %vm6940, %v10016, %v9106
      %v10138 = vsel %vm6940, %v10018, %v5665
      %v10139 = vsel %vm7092, %v10020, %v5800
      %v10141 = vsel %vm7092, %v10022, %v9115
      %v10143 = vsel %vm7092, %v10024, %v9117
      %v10145 = vsel %vm7092, %v10026, %v9119
      %v10147 = vsel %vm7092, %v10028, %v9121
      %v10149 = vsel %vm7092, %v10030, %v9123
      %v10151 = vsel %vm7092, %v10032, %v9125
      %v10153 = vsel %vm7092, %v10033, %v9127
      %v10154 = vsel %vm7092, %v10035, %v5800
      %v10156 = vsel %vm7092, %v10037, %v9129
      %v10158 = vsel %vm7092, %v10039, %v9131
      %v10160 = vsel %vm7092, %v10041, %v9133
      %v10162 = vsel %vm7092, %v10043, %v9135
      %v10164 = vsel %vm7092, %v10045, %v9137
      %v10166 = vsel %vm7092, %v10047, %v9139
      %v10168 = vsel %vm7092, %v10048, %v9141
      %v10169 = vsel %vm7092, %v10050, %v5800
      %v10171 = vsel %vm7092, %v10052, %v9143
      %v10173 = vsel %vm7092, %v10054, %v9145
      %v10175 = vsel %vm7092, %v10056, %v9147
      %v10177 = vsel %vm7092, %v10058, %v9149
      %v10179 = vsel %vm7092, %v10060, %v9151
      %v10181 = vsel %vm7092, %v10062, %v9153
      %v10183 = vsel %vm7092, %v10063, %v9155
      %v10184 = vsel %vm7092, %v10065, %v5800
      %v10186 = vsel %vm7092, %v10067, %v9157
      %v10188 = vsel %vm7092, %v10069, %v9159
      %v10190 = vsel %vm7092, %v10071, %v9161
      %v10192 = vsel %vm7092, %v10073, %v9163
      %v10194 = vsel %vm7092, %v10075, %v9165
      %v10196 = vsel %vm7092, %v10077, %v9167
      %v10198 = vsel %vm7092, %v10078, %v9169
      %v10199 = vsel %vm7092, %v10080, %v5800
      %v10201 = vsel %vm7092, %v10082, %v9171
      %v10203 = vsel %vm7092, %v10084, %v9173
      %v10205 = vsel %vm7092, %v10086, %v9175
      %v10207 = vsel %vm7092, %v10088, %v9177
      %v10209 = vsel %vm7092, %v10090, %v9179
      %v10211 = vsel %vm7092, %v10092, %v9181
      %v10213 = vsel %vm7092, %v10093, %v9183
      %v10214 = vsel %vm7092, %v10095, %v5800
      %v10216 = vsel %vm7092, %v10097, %v9185
      %v10218 = vsel %vm7092, %v10099, %v9187
      %v10220 = vsel %vm7092, %v10101, %v9189
      %v10222 = vsel %vm7092, %v10103, %v9191
      %v10224 = vsel %vm7092, %v10105, %v9193
      %v10226 = vsel %vm7092, %v10107, %v9195
      %v10228 = vsel %vm7092, %v10108, %v9197
      %v10229 = vsel %vm7092, %v10110, %v5800
      %v10231 = vsel %vm7092, %v10112, %v9199
      %v10233 = vsel %vm7092, %v10114, %v9201
      %v10235 = vsel %vm7092, %v10116, %v9203
      %v10237 = vsel %vm7092, %v10118, %v9205
      %v10239 = vsel %vm7092, %v10120, %v9207
      %v10241 = vsel %vm7092, %v10122, %v9209
      %v10243 = vsel %vm7092, %v10123, %v9211
      %v10244 = vsel %vm7092, %v10125, %v5800
      %v10246 = vsel %vm7092, %v10127, %v9213
      %v10248 = vsel %vm7092, %v10129, %v9215
      %v10250 = vsel %vm7092, %v10131, %v9217
      %v10252 = vsel %vm7092, %v10133, %v9219
      %v10254 = vsel %vm7092, %v10135, %v9221
      %v10256 = vsel %vm7092, %v10137, %v9223
      %v10258 = vsel %vm7092, %v10138, %v9225
      %v10260 = vsel %vm7244, %v10139, %v9228
      %v10262 = vsel %vm7244, %v10141, %v9230
      %v10264 = vsel %vm7244, %v10143, %v9232
      %v10266 = vsel %vm7244, %v10145, %v9234
      %v10268 = vsel %vm7244, %v10147, %v9236
      %v10270 = vsel %vm7244, %v10149, %v9238
      %v10272 = vsel %vm7244, %v10151, %v9240
      %v10274 = vsel %vm7244, %v10153, %v9242
      %v10276 = vsel %vm7244, %v10154, %v9244
      %v10278 = vsel %vm7244, %v10156, %v9246
      %v10280 = vsel %vm7244, %v10158, %v9248
      %v10282 = vsel %vm7244, %v10160, %v9250
      %v10284 = vsel %vm7244, %v10162, %v9252
      %v10286 = vsel %vm7244, %v10164, %v9254
      %v10288 = vsel %vm7244, %v10166, %v9256
      %v10290 = vsel %vm7244, %v10168, %v9258
      %v10292 = vsel %vm7244, %v10169, %v9260
      %v10294 = vsel %vm7244, %v10171, %v9262
      %v10296 = vsel %vm7244, %v10173, %v9264
      %v10298 = vsel %vm7244, %v10175, %v9266
      %v10300 = vsel %vm7244, %v10177, %v9268
      %v10302 = vsel %vm7244, %v10179, %v9270
      %v10304 = vsel %vm7244, %v10181, %v9272
      %v10306 = vsel %vm7244, %v10183, %v9274
      %v10308 = vsel %vm7244, %v10184, %v9276
      %v10310 = vsel %vm7244, %v10186, %v9278
      %v10312 = vsel %vm7244, %v10188, %v9280
      %v10314 = vsel %vm7244, %v10190, %v9282
      %v10316 = vsel %vm7244, %v10192, %v9284
      %v10318 = vsel %vm7244, %v10194, %v9286
      %v10320 = vsel %vm7244, %v10196, %v9288
      %v10322 = vsel %vm7244, %v10198, %v9290
      %v10324 = vsel %vm7244, %v10199, %v9292
      %v10326 = vsel %vm7244, %v10201, %v9294
      %v10328 = vsel %vm7244, %v10203, %v9296
      %v10330 = vsel %vm7244, %v10205, %v9298
      %v10332 = vsel %vm7244, %v10207, %v9300
      %v10334 = vsel %vm7244, %v10209, %v9302
      %v10336 = vsel %vm7244, %v10211, %v9304
      %v10338 = vsel %vm7244, %v10213, %v9306
      %v10340 = vsel %vm7244, %v10214, %v9308
      %v10342 = vsel %vm7244, %v10216, %v9310
      %v10344 = vsel %vm7244, %v10218, %v9312
      %v10346 = vsel %vm7244, %v10220, %v9314
      %v10348 = vsel %vm7244, %v10222, %v9316
      %v10350 = vsel %vm7244, %v10224, %v9318
      %v10352 = vsel %vm7244, %v10226, %v9320
      %v10354 = vsel %vm7244, %v10228, %v9322
      %v10356 = vsel %vm7244, %v10229, %v9324
      %v10358 = vsel %vm7244, %v10231, %v9326
      %v10360 = vsel %vm7244, %v10233, %v9328
      %v10362 = vsel %vm7244, %v10235, %v9330
      %v10364 = vsel %vm7244, %v10237, %v9332
      %v10366 = vsel %vm7244, %v10239, %v9334
      %v10368 = vsel %vm7244, %v10241, %v9336
      %v10370 = vsel %vm7244, %v10243, %v9338
      %v10372 = vsel %vm7244, %v10244, %v9340
      %v10374 = vsel %vm7244, %v10246, %v9342
      %v10376 = vsel %vm7244, %v10248, %v9344
      %v10378 = vsel %vm7244, %v10250, %v9346
      %v10380 = vsel %vm7244, %v10252, %v9348
      %v10382 = vsel %vm7244, %v10254, %v9350
      %v10384 = vsel %vm7244, %v10256, %v9352
      %v10386 = vsel %vm7244, %v10258, %v9354
      %v10388 = vsel %vm7405, %v10260, %v9356
      %v10390 = vsel %vm7405, %v10262, %v9358
      %v10392 = vsel %vm7405, %v10264, %v9360
      %v10394 = vsel %vm7405, %v10266, %v9362
      %v10396 = vsel %vm7405, %v10268, %v9364
      %v10398 = vsel %vm7405, %v10270, %v9366
      %v10400 = vsel %vm7405, %v10272, %v9368
      %v10401 = vsel %vm7405, %v10274, %v6117
      %v10403 = vsel %vm7405, %v10276, %v9370
      %v10405 = vsel %vm7405, %v10278, %v9372
      %v10407 = vsel %vm7405, %v10280, %v9374
      %v10409 = vsel %vm7405, %v10282, %v9376
      %v10411 = vsel %vm7405, %v10284, %v9378
      %v10413 = vsel %vm7405, %v10286, %v9380
      %v10415 = vsel %vm7405, %v10288, %v9382
      %v10416 = vsel %vm7405, %v10290, %v6117
      %v10418 = vsel %vm7405, %v10292, %v9384
      %v10420 = vsel %vm7405, %v10294, %v9386
      %v10422 = vsel %vm7405, %v10296, %v9388
      %v10424 = vsel %vm7405, %v10298, %v9390
      %v10426 = vsel %vm7405, %v10300, %v9392
      %v10428 = vsel %vm7405, %v10302, %v9394
      %v10430 = vsel %vm7405, %v10304, %v9396
      %v10431 = vsel %vm7405, %v10306, %v6117
      %v10433 = vsel %vm7405, %v10308, %v9398
      %v10435 = vsel %vm7405, %v10310, %v9400
      %v10437 = vsel %vm7405, %v10312, %v9402
      %v10439 = vsel %vm7405, %v10314, %v9404
      %v10441 = vsel %vm7405, %v10316, %v9406
      %v10443 = vsel %vm7405, %v10318, %v9408
      %v10445 = vsel %vm7405, %v10320, %v9410
      %v10446 = vsel %vm7405, %v10322, %v6117
      %v10448 = vsel %vm7405, %v10324, %v9412
      %v10450 = vsel %vm7405, %v10326, %v9414
      %v10452 = vsel %vm7405, %v10328, %v9416
      %v10454 = vsel %vm7405, %v10330, %v9418
      %v10456 = vsel %vm7405, %v10332, %v9420
      %v10458 = vsel %vm7405, %v10334, %v9422
      %v10460 = vsel %vm7405, %v10336, %v9424
      %v10461 = vsel %vm7405, %v10338, %v6117
      %v10463 = vsel %vm7405, %v10340, %v9426
      %v10465 = vsel %vm7405, %v10342, %v9428
      %v10467 = vsel %vm7405, %v10344, %v9430
      %v10469 = vsel %vm7405, %v10346, %v9432
      %v10471 = vsel %vm7405, %v10348, %v9434
      %v10473 = vsel %vm7405, %v10350, %v9436
      %v10475 = vsel %vm7405, %v10352, %v9438
      %v10476 = vsel %vm7405, %v10354, %v6117
      %v10478 = vsel %vm7405, %v10356, %v9440
      %v10480 = vsel %vm7405, %v10358, %v9442
      %v10482 = vsel %vm7405, %v10360, %v9444
      %v10484 = vsel %vm7405, %v10362, %v9446
      %v10486 = vsel %vm7405, %v10364, %v9448
      %v10488 = vsel %vm7405, %v10366, %v9450
      %v10490 = vsel %vm7405, %v10368, %v9452
      %v10491 = vsel %vm7405, %v10370, %v6117
      %v10493 = vsel %vm7405, %v10372, %v9454
      %v10495 = vsel %vm7405, %v10374, %v9456
      %v10497 = vsel %vm7405, %v10376, %v9458
      %v10499 = vsel %vm7405, %v10378, %v9460
      %v10501 = vsel %vm7405, %v10380, %v9462
      %v10503 = vsel %vm7405, %v10382, %v9464
      %v10505 = vsel %vm7405, %v10384, %v9466
      %v10506 = vsel %vm7405, %v10386, %v6117
      %v10507 = vld [vmem:[%s5] sm:$0xf]
      %v10508 = vld [vmem:[%s5 + $0x4] sm:$0xf]
      %v10509 = vld [vmem:[%s5 + $0x8] sm:$0xf]
      %v10510 = vld [vmem:[%s5 + $0xc] sm:$0xf]
      %v10511 = vld [vmem:[%s5 + $0x10] sm:$0x3]
      %v10512 = vld [vmem:[%s6] sm:$0x1]
      %v10514 = vlaneseq
      %v10515 = vshrl.u32 %v10514, 7
      %v10516 = vsub.s32 0, %v10515
      %v10517 = vrot.slane %v10512, %v10516
      %v10583 = vunpack.c.l.b16 %v10388
      %v10584 = vunpack.c.l.b16 %v10390
      %v10585 = vunpack.c.l.b16 %v10392
      %v10586 = vunpack.c.l.b16 %v10394
      %v10587 = vunpack.c.l.b16 %v10396
      %v10588 = vunpack.c.l.b16 %v10398
      %v10589 = vunpack.c.l.b16 %v10400
      %v10590 = vunpack.c.l.b16 %v10401
      %v10591 = vunpack.c.l.b16 %v10403
      %v10592 = vunpack.c.l.b16 %v10405
      %v10593 = vunpack.c.l.b16 %v10407
      %v10594 = vunpack.c.l.b16 %v10409
      %v10595 = vunpack.c.l.b16 %v10411
      %v10596 = vunpack.c.l.b16 %v10413
      %v10597 = vunpack.c.l.b16 %v10415
      %v10598 = vunpack.c.l.b16 %v10416
      %v10599 = vunpack.c.l.b16 %v10418
      %v10600 = vunpack.c.l.b16 %v10420
      %v10601 = vunpack.c.l.b16 %v10422
      %v10602 = vunpack.c.l.b16 %v10424
      %v10603 = vunpack.c.l.b16 %v10426
      %v10604 = vunpack.c.l.b16 %v10428
      %v10605 = vunpack.c.l.b16 %v10430
      %v10606 = vunpack.c.l.b16 %v10431
      %v10607 = vunpack.c.l.b16 %v10433
      %v10608 = vunpack.c.l.b16 %v10435
      %v10609 = vunpack.c.l.b16 %v10437
      %v10610 = vunpack.c.l.b16 %v10439
      %v10611 = vunpack.c.l.b16 %v10441
      %v10612 = vunpack.c.l.b16 %v10443
      %v10613 = vunpack.c.l.b16 %v10445
      %v10614 = vunpack.c.l.b16 %v10446
      %v10615 = vunpack.c.l.b16 %v10448
      %v10616 = vunpack.c.l.b16 %v10450
      %v10617 = vunpack.c.l.b16 %v10452
      %v10618 = vunpack.c.l.b16 %v10454
      %v10619 = vunpack.c.l.b16 %v10456
      %v10620 = vunpack.c.l.b16 %v10458
      %v10621 = vunpack.c.l.b16 %v10460
      %v10622 = vunpack.c.l.b16 %v10461
      %v10623 = vunpack.c.l.b16 %v10463
      %v10624 = vunpack.c.l.b16 %v10465
      %v10625 = vunpack.c.l.b16 %v10467
      %v10626 = vunpack.c.l.b16 %v10469
      %v10627 = vunpack.c.l.b16 %v10471
      %v10628 = vunpack.c.l.b16 %v10473
      %v10629 = vunpack.c.l.b16 %v10475
      %v10630 = vunpack.c.l.b16 %v10476
      %v10631 = vunpack.c.l.b16 %v10478
      %v10632 = vunpack.c.l.b16 %v10480
      %v10633 = vunpack.c.l.b16 %v10482
      %v10634 = vunpack.c.l.b16 %v10484
      %v10635 = vunpack.c.l.b16 %v10486
      %v10636 = vunpack.c.l.b16 %v10488
      %v10637 = vunpack.c.l.b16 %v10490
      %v10638 = vunpack.c.l.b16 %v10491
      %v10639 = vunpack.c.l.b16 %v10493
      %v10640 = vunpack.c.l.b16 %v10495
      %v10641 = vunpack.c.l.b16 %v10497
      %v10642 = vunpack.c.l.b16 %v10499
      %v10643 = vunpack.c.l.b16 %v10501
      %v10644 = vunpack.c.l.b16 %v10503
      %v10645 = vunpack.c.l.b16 %v10505
      %v10646 = vunpack.c.l.b16 %v10506
      %v10647 = vpack.c.b16 %v10584, %v10583
      %v10648 = vpack.c.b16 %v10586, %v10585
      %v10649 = vpack.c.b16 %v10588, %v10587
      %v10650 = vpack.c.b16 %v10590, %v10589
      %v10651 = vpack.c.b16 %v10592, %v10591
      %v10652 = vpack.c.b16 %v10594, %v10593
      %v10653 = vpack.c.b16 %v10596, %v10595
      %v10654 = vpack.c.b16 %v10598, %v10597
      %v10655 = vpack.c.b16 %v10600, %v10599
      %v10656 = vpack.c.b16 %v10602, %v10601
      %v10657 = vpack.c.b16 %v10604, %v10603
      %v10658 = vpack.c.b16 %v10606, %v10605
      %v10659 = vpack.c.b16 %v10608, %v10607
      %v10660 = vpack.c.b16 %v10610, %v10609
      %v10661 = vpack.c.b16 %v10612, %v10611
      %v10662 = vpack.c.b16 %v10614, %v10613
      %v10663 = vpack.c.b16 %v10616, %v10615
      %v10664 = vpack.c.b16 %v10618, %v10617
      %v10665 = vpack.c.b16 %v10620, %v10619
      %v10666 = vpack.c.b16 %v10622, %v10621
      %v10667 = vpack.c.b16 %v10624, %v10623
      %v10668 = vpack.c.b16 %v10626, %v10625
      %v10669 = vpack.c.b16 %v10628, %v10627
      %v10670 = vpack.c.b16 %v10630, %v10629
      %v10671 = vpack.c.b16 %v10632, %v10631
      %v10672 = vpack.c.b16 %v10634, %v10633
      %v10673 = vpack.c.b16 %v10636, %v10635
      %v10674 = vpack.c.b16 %v10638, %v10637
      %v10675 = vpack.c.b16 %v10640, %v10639
      %v10676 = vpack.c.b16 %v10642, %v10641
      %v10677 = vpack.c.b16 %v10644, %v10643
      %v10678 = vpack.c.b16 %v10646, %v10645
      %v10684 = vunpack.c.l.b16 %v10507
      %v10685 = vunpack.c.l.b16 %v10508
      %v10686 = vunpack.c.l.b16 %v10509
      %v10687 = vunpack.c.l.b16 %v10510
      %v10688 = vunpack.c.l.b16 %v10511
      %v10689 = vpack.c.b16 %v10685, %v10684
      %v10690 = vpack.c.b16 %v10687, %v10686
      %v10691 = vpack.c.b16 %v10688, %v10688
      %v10695 = vsel %vm7784, %v10647, 0
      %v10698 = vsel %vm7784, %v10648, 0
      %v10701 = vsel %vm7784, %v10649, 0
      %v10704 = vsel %vm7784, %v10650, 0
      %v10707 = vsel %vm7784, %v10651, 0
      %v10710 = vsel %vm7784, %v10652, 0
      %v10713 = vsel %vm7784, %v10653, 0
      %v10716 = vsel %vm7784, %v10654, 0
      %v10719 = vsel %vm7784, %v10655, 0
      %v10722 = vsel %vm7784, %v10656, 0
      %v10725 = vsel %vm7784, %v10657, 0
      %v10728 = vsel %vm7784, %v10658, 0
      %v10731 = vsel %vm7784, %v10659, 0
      %v10734 = vsel %vm7784, %v10660, 0
      %v10737 = vsel %vm7784, %v10661, 0
      %v10740 = vsel %vm7784, %v10662, 0
      %v10743 = vsel %vm7784, %v10663, 0
      %v10746 = vsel %vm7784, %v10664, 0
      %v10749 = vsel %vm7784, %v10665, 0
      %v10752 = vsel %vm7784, %v10666, 0
      %v10755 = vsel %vm7784, %v10667, 0
      %v10758 = vsel %vm7784, %v10668, 0
      %v10761 = vsel %vm7784, %v10669, 0
      %v10764 = vsel %vm7784, %v10670, 0
      %v10767 = vsel %vm7784, %v10671, 0
      %v10770 = vsel %vm7784, %v10672, 0
      %v10773 = vsel %vm7784, %v10673, 0
      %v10776 = vsel %vm7784, %v10674, 0
      %v10779 = vsel %vm7784, %v10675, 0
      %v10782 = vsel %vm7784, %v10676, 0
      %v10785 = vsel %vm7784, %v10677, 0
      %v10788 = vsel %vm7784, %v10678, 0
      %v10791 = vsel %vm7905, %v10691, 0
      %10793 = vmatprep.subr.bf16.mxu0 0
      %10794 = vmatpush1.bf16.msra.mxu0 %v10689
      %10795 = vmatprep.subr.bf16.mxu0 0
      %10796 = vmatpush1.bf16.msra.mxu0 %v10690
      %10797 = vmatprep.subr.bf16.mxu0 0
      %10798 = vmatpush1.bf16.msra.mxu0 %v10791
      %10799 = vmatprep.subr.bf16.mxu0 0
      %10800 = vmatpush1.bf16.msra.mxu0 0
      %10801 = vmatprep.subr.bf16.mxu0 0
      %10802 = vmatpush1.bf16.msra.mxu0 0
      %10803 = vmatprep.subr.bf16.mxu0 0
      %10804 = vmatpush1.bf16.msra.mxu0 0
      %10805 = vmatprep.subr.bf16.mxu0 0
      %10806 = vmatpush1.bf16.msra.mxu0 0
      %10807 = vmatprep.subr.bf16.mxu0 0
      %10808 = vmatpush1.bf16.msra.mxu0 0
      %10809 = vmatprep.subr.bf16.mxu0 0
      %10810 = vmatpush1.bf16.msra.mxu0 0
      %10811 = vmatprep.subr.bf16.mxu0 0
      %10812 = vmatpush1.bf16.msra.mxu0 0
      %10813 = vmatprep.subr.bf16.mxu0 0
      %10814 = vmatpush1.bf16.msra.mxu0 0
      %10815 = vmatprep.subr.bf16.mxu0 0
      %10816 = vmatpush1.bf16.msra.mxu0 0
      %10817 = vmatprep.subr.bf16.mxu0 0
      %10818 = vmatpush1.bf16.msra.mxu0 0
      %10819 = vmatprep.subr.bf16.mxu0 0
      %10820 = vmatpush1.bf16.msra.mxu0 0
      %10821 = vmatprep.subr.bf16.mxu0 0
      %10822 = vmatpush1.bf16.msra.mxu0 0
      %10823 = vmatprep.subr.bf16.mxu0 0
      %10824 = vmatpush1.bf16.msra.mxu0 0
      %10825 = vmatprep.mubr.bf16.mxu0 0
      %10826 = vmatmul.mubr.bf16.gmra.mrb[0].mxu0 %v10695
      %v10827 = vpop.f32.mrb[0].mxu0
      %v10828 = vadd.f32 %v10517, %v10827
      %v10829 = vpop.f32.mrb[0].mxu0
      %v10830 = vpop.f32.mrb[0].mxu0
      %v10831 = vadd.f32 %v10517, %v10830
      %v10832 = vpop.f32.mrb[0].mxu0
      %10833 = vmatprep.mubr.bf16.mxu0 0
      %10834 = vmatmul.mubr.bf16.gmra.mrb[0].mxu0 %v10698
      %v10835 = vpop.f32.mrb[0].mxu0
      %v10836 = vadd.f32 %v10517, %v10835
      %v10837 = vpop.f32.mrb[0].mxu0
      %v10838 = vpop.f32.mrb[0].mxu0
      %v10839 = vadd.f32 %v10517, %v10838
      %v10840 = vpop.f32.mrb[0].mxu0
      %10841 = vmatprep.mubr.bf16.mxu0 0
      %10842 = vmatmul.mubr.bf16.gmra.mrb[0].mxu0 %v10701
      %v10843 = vpop.f32.mrb[0].mxu0
      %v10844 = vadd.f32 %v10517, %v10843
      %v10845 = vpop.f32.mrb[0].mxu0
      %v10846 = vpop.f32.mrb[0].mxu0
      %v10847 = vadd.f32 %v10517, %v10846
      %v10848 = vpop.f32.mrb[0].mxu0
      %10849 = vmatprep.mubr.bf16.mxu0 0
      %10850 = vmatmul.mubr.bf16.gmra.mrb[0].mxu0 %v10704
      %v10851 = vpop.f32.mrb[0].mxu0
      %v10852 = vadd.f32 %v10517, %v10851
      %v10853 = vpop.f32.mrb[0].mxu0
      %v10854 = vpop.f32.mrb[0].mxu0
      %v10855 = vadd.f32 %v10517, %v10854
      %v10856 = vpop.f32.mrb[0].mxu0
      %10857 = vmatprep.mubr.bf16.mxu0 0
      %10858 = vmatmul.mubr.bf16.gmra.mrb[0].mxu0 %v10707
      %v10859 = vpop.f32.mrb[0].mxu0
      %v10860 = vadd.f32 %v10517, %v10859
      %v10861 = vpop.f32.mrb[0].mxu0
      %v10862 = vpop.f32.mrb[0].mxu0
      %v10863 = vadd.f32 %v10517, %v10862
      %v10864 = vpop.f32.mrb[0].mxu0
      %10865 = vmatprep.mubr.bf16.mxu0 0
      %10866 = vmatmul.mubr.bf16.gmra.mrb[0].mxu0 %v10710
      %v10867 = vpop.f32.mrb[0].mxu0
      %v10868 = vadd.f32 %v10517, %v10867
      %v10869 = vpop.f32.mrb[0].mxu0
      %v10870 = vpop.f32.mrb[0].mxu0
      %v10871 = vadd.f32 %v10517, %v10870
      %v10872 = vpop.f32.mrb[0].mxu0
      %10873 = vmatprep.mubr.bf16.mxu0 0
      %10874 = vmatmul.mubr.bf16.gmra.mrb[0].mxu0 %v10713
      %v10875 = vpop.f32.mrb[0].mxu0
      %v10876 = vadd.f32 %v10517, %v10875
      %v10877 = vpop.f32.mrb[0].mxu0
      %v10878 = vpop.f32.mrb[0].mxu0
      %v10879 = vadd.f32 %v10517, %v10878
      %v10880 = vpop.f32.mrb[0].mxu0
      %10881 = vmatprep.mubr.bf16.mxu0 0
      %10882 = vmatmul.mubr.bf16.gmra.mrb[0].mxu0 %v10716
      %v10883 = vpop.f32.mrb[0].mxu0
      %v10884 = vadd.f32 %v10517, %v10883
      %v10885 = vpop.f32.mrb[0].mxu0
      %v10886 = vpop.f32.mrb[0].mxu0
      %v10887 = vadd.f32 %v10517, %v10886
      %v10888 = vpop.f32.mrb[0].mxu0
      %10889 = vmatprep.mubr.bf16.mxu0 0
      %10890 = vmatmul.mubr.bf16.gmra.mrb[0].mxu0 %v10719
      %v10891 = vpop.f32.mrb[0].mxu0
      %v10892 = vadd.f32 %v10517, %v10891
      %v10893 = vpop.f32.mrb[0].mxu0
      %v10894 = vpop.f32.mrb[0].mxu0
      %v10895 = vadd.f32 %v10517, %v10894
      %v10896 = vpop.f32.mrb[0].mxu0
      %10897 = vmatprep.mubr.bf16.mxu0 0
      %10898 = vmatmul.mubr.bf16.gmra.mrb[0].mxu0 %v10722
      %v10899 = vpop.f32.mrb[0].mxu0
      %v10900 = vadd.f32 %v10517, %v10899
      %v10901 = vpop.f32.mrb[0].mxu0
      %v10902 = vpop.f32.mrb[0].mxu0
      %v10903 = vadd.f32 %v10517, %v10902
      %v10904 = vpop.f32.mrb[0].mxu0
      %10905 = vmatprep.mubr.bf16.mxu0 0
      %10906 = vmatmul.mubr.bf16.gmra.mrb[0].mxu0 %v10725
      %v10907 = vpop.f32.mrb[0].mxu0
      %v10908 = vadd.f32 %v10517, %v10907
      %v10909 = vpop.f32.mrb[0].mxu0
      %v10910 = vpop.f32.mrb[0].mxu0
      %v10911 = vadd.f32 %v10517, %v10910
      %v10912 = vpop.f32.mrb[0].mxu0
      %10913 = vmatprep.mubr.bf16.mxu0 0
      %10914 = vmatmul.mubr.bf16.gmra.mrb[0].mxu0 %v10728
      %v10915 = vpop.f32.mrb[0].mxu0
      %v10916 = vadd.f32 %v10517, %v10915
      %v10917 = vpop.f32.mrb[0].mxu0
      %v10918 = vpop.f32.mrb[0].mxu0
      %v10919 = vadd.f32 %v10517, %v10918
      %v10920 = vpop.f32.mrb[0].mxu0
      %10921 = vmatprep.mubr.bf16.mxu0 0
      %10922 = vmatmul.mubr.bf16.gmra.mrb[0].mxu0 %v10731
      %v10923 = vpop.f32.mrb[0].mxu0
      %v10924 = vadd.f32 %v10517, %v10923
      %v10925 = vpop.f32.mrb[0].mxu0
      %v10926 = vpop.f32.mrb[0].mxu0
      %v10927 = vadd.f32 %v10517, %v10926
      %v10928 = vpop.f32.mrb[0].mxu0
      %10929 = vmatprep.mubr.bf16.mxu0 0
      %10930 = vmatmul.mubr.bf16.gmra.mrb[0].mxu0 %v10734
      %v10931 = vpop.f32.mrb[0].mxu0
      %v10932 = vadd.f32 %v10517, %v10931
      %v10933 = vpop.f32.mrb[0].mxu0
      %v10934 = vpop.f32.mrb[0].mxu0
      %v10935 = vadd.f32 %v10517, %v10934
      %v10936 = vpop.f32.mrb[0].mxu0
      %10937 = vmatprep.mubr.bf16.mxu0 0
      %10938 = vmatmul.mubr.bf16.gmra.mrb[0].mxu0 %v10737
      %v10939 = vpop.f32.mrb[0].mxu0
      %v10940 = vadd.f32 %v10517, %v10939
      %v10941 = vpop.f32.mrb[0].mxu0
      %v10942 = vpop.f32.mrb[0].mxu0
      %v10943 = vadd.f32 %v10517, %v10942
      %v10944 = vpop.f32.mrb[0].mxu0
      %10945 = vmatprep.mubr.bf16.mxu0 0
      %10946 = vmatmul.mubr.bf16.gmra.mrb[0].mxu0 %v10740
      %v10947 = vpop.f32.mrb[0].mxu0
      %v10948 = vadd.f32 %v10517, %v10947
      %v10949 = vpop.f32.mrb[0].mxu0
      %v10950 = vpop.f32.mrb[0].mxu0
      %v10951 = vadd.f32 %v10517, %v10950
      %v10952 = vpop.f32.mrb[0].mxu0
      %10953 = vmatprep.mubr.bf16.mxu0 0
      %10954 = vmatmul.mubr.bf16.gmra.mrb[0].mxu0 %v10743
      %v10955 = vpop.f32.mrb[0].mxu0
      %v10956 = vadd.f32 %v10517, %v10955
      %v10957 = vpop.f32.mrb[0].mxu0
      %v10958 = vpop.f32.mrb[0].mxu0
      %v10959 = vadd.f32 %v10517, %v10958
      %v10960 = vpop.f32.mrb[0].mxu0
      %10961 = vmatprep.mubr.bf16.mxu0 0
      %10962 = vmatmul.mubr.bf16.gmra.mrb[0].mxu0 %v10746
      %v10963 = vpop.f32.mrb[0].mxu0
      %v10964 = vadd.f32 %v10517, %v10963
      %v10965 = vpop.f32.mrb[0].mxu0
      %v10966 = vpop.f32.mrb[0].mxu0
      %v10967 = vadd.f32 %v10517, %v10966
      %v10968 = vpop.f32.mrb[0].mxu0
      %10969 = vmatprep.mubr.bf16.mxu0 0
      %10970 = vmatmul.mubr.bf16.gmra.mrb[0].mxu0 %v10749
      %v10971 = vpop.f32.mrb[0].mxu0
      %v10972 = vadd.f32 %v10517, %v10971
      %v10973 = vpop.f32.mrb[0].mxu0
      %v10974 = vpop.f32.mrb[0].mxu0
      %v10975 = vadd.f32 %v10517, %v10974
      %v10976 = vpop.f32.mrb[0].mxu0
      %10977 = vmatprep.mubr.bf16.mxu0 0
      %10978 = vmatmul.mubr.bf16.gmra.mrb[0].mxu0 %v10752
      %v10979 = vpop.f32.mrb[0].mxu0
      %v10980 = vadd.f32 %v10517, %v10979
      %v10981 = vpop.f32.mrb[0].mxu0
      %v10982 = vpop.f32.mrb[0].mxu0
      %v10983 = vadd.f32 %v10517, %v10982
      %v10984 = vpop.f32.mrb[0].mxu0
      %10985 = vmatprep.mubr.bf16.mxu0 0
      %10986 = vmatmul.mubr.bf16.gmra.mrb[0].mxu0 %v10755
      %v10987 = vpop.f32.mrb[0].mxu0
      %v10988 = vadd.f32 %v10517, %v10987
      %v10989 = vpop.f32.mrb[0].mxu0
      %v10990 = vpop.f32.mrb[0].mxu0
      %v10991 = vadd.f32 %v10517, %v10990
      %v10992 = vpop.f32.mrb[0].mxu0
      %10993 = vmatprep.mubr.bf16.mxu0 0
      %10994 = vmatmul.mubr.bf16.gmra.mrb[0].mxu0 %v10758
      %v10995 = vpop.f32.mrb[0].mxu0
      %v10996 = vadd.f32 %v10517, %v10995
      %v10997 = vpop.f32.mrb[0].mxu0
      %v10998 = vpop.f32.mrb[0].mxu0
      %v10999 = vadd.f32 %v10517, %v10998
      %v11000 = vpop.f32.mrb[0].mxu0
      %11001 = vmatprep.mubr.bf16.mxu0 0
      %11002 = vmatmul.mubr.bf16.gmra.mrb[0].mxu0 %v10761
      %v11003 = vpop.f32.mrb[0].mxu0
      %v11004 = vadd.f32 %v10517, %v11003
      %v11005 = vpop.f32.mrb[0].mxu0
      %v11006 = vpop.f32.mrb[0].mxu0
      %v11007 = vadd.f32 %v10517, %v11006
      %v11008 = vpop.f32.mrb[0].mxu0
      %11009 = vmatprep.mubr.bf16.mxu0 0
      %11010 = vmatmul.mubr.bf16.gmra.mrb[0].mxu0 %v10764
      %v11011 = vpop.f32.mrb[0].mxu0
      %v11012 = vadd.f32 %v10517, %v11011
      %v11013 = vpop.f32.mrb[0].mxu0
      %v11014 = vpop.f32.mrb[0].mxu0
      %v11015 = vadd.f32 %v10517, %v11014
      %v11016 = vpop.f32.mrb[0].mxu0
      %11017 = vmatprep.mubr.bf16.mxu0 0
      %11018 = vmatmul.mubr.bf16.gmra.mrb[0].mxu0 %v10767
      %v11019 = vpop.f32.mrb[0].mxu0
      %v11020 = vadd.f32 %v10517, %v11019
      %v11021 = vpop.f32.mrb[0].mxu0
      %v11022 = vpop.f32.mrb[0].mxu0
      %v11023 = vadd.f32 %v10517, %v11022
      %v11024 = vpop.f32.mrb[0].mxu0
      %11025 = vmatprep.mubr.bf16.mxu0 0
      %11026 = vmatmul.mubr.bf16.gmra.mrb[0].mxu0 %v10770
      %v11027 = vpop.f32.mrb[0].mxu0
      %v11028 = vadd.f32 %v10517, %v11027
      %v11029 = vpop.f32.mrb[0].mxu0
      %v11030 = vpop.f32.mrb[0].mxu0
      %v11031 = vadd.f32 %v10517, %v11030
      %v11032 = vpop.f32.mrb[0].mxu0
      %11033 = vmatprep.mubr.bf16.mxu0 0
      %11034 = vmatmul.mubr.bf16.gmra.mrb[0].mxu0 %v10773
      %v11035 = vpop.f32.mrb[0].mxu0
      %v11036 = vadd.f32 %v10517, %v11035
      %v11037 = vpop.f32.mrb[0].mxu0
      %v11038 = vpop.f32.mrb[0].mxu0
      %v11039 = vadd.f32 %v10517, %v11038
      %v11040 = vpop.f32.mrb[0].mxu0
      %11041 = vmatprep.mubr.bf16.mxu0 0
      %11042 = vmatmul.mubr.bf16.gmra.mrb[0].mxu0 %v10776
      %v11043 = vpop.f32.mrb[0].mxu0
      %v11044 = vadd.f32 %v10517, %v11043
      %v11045 = vpop.f32.mrb[0].mxu0
      %v11046 = vpop.f32.mrb[0].mxu0
      %v11047 = vadd.f32 %v10517, %v11046
      %v11048 = vpop.f32.mrb[0].mxu0
      %11049 = vmatprep.mubr.bf16.mxu0 0
      %11050 = vmatmul.mubr.bf16.gmra.mrb[0].mxu0 %v10779
      %v11051 = vpop.f32.mrb[0].mxu0
      %v11052 = vadd.f32 %v10517, %v11051
      %v11053 = vpop.f32.mrb[0].mxu0
      %v11054 = vpop.f32.mrb[0].mxu0
      %v11055 = vadd.f32 %v10517, %v11054
      %v11056 = vpop.f32.mrb[0].mxu0
      %11057 = vmatprep.mubr.bf16.mxu0 0
      %11058 = vmatmul.mubr.bf16.gmra.mrb[0].mxu0 %v10782
      %v11059 = vpop.f32.mrb[0].mxu0
      %v11060 = vadd.f32 %v10517, %v11059
      %v11061 = vpop.f32.mrb[0].mxu0
      %v11062 = vpop.f32.mrb[0].mxu0
      %v11063 = vadd.f32 %v10517, %v11062
      %v11064 = vpop.f32.mrb[0].mxu0
      %11065 = vmatprep.mubr.bf16.mxu0 0
      %11066 = vmatmul.mubr.bf16.gmra.mrb[0].mxu0 %v10785
      %v11067 = vpop.f32.mrb[0].mxu0
      %v11068 = vadd.f32 %v10517, %v11067
      %v11069 = vpop.f32.mrb[0].mxu0
      %v11070 = vpop.f32.mrb[0].mxu0
      %v11071 = vadd.f32 %v10517, %v11070
      %v11072 = vpop.f32.mrb[0].mxu0
      %11073 = vmatprep.mubr.bf16.mxu0 0
      %11074 = vmatmul.mubr.bf16.gmra.mrb[0].mxu0 %v10788
      %v11075 = vpop.f32.mrb[0].mxu0
      %v11076 = vadd.f32 %v10517, %v11075
      %v11077 = vpop.f32.mrb[0].mxu0
      %v11078 = vpop.f32.mrb[0].mxu0
      %v11079 = vadd.f32 %v10517, %v11078
      %v11080 = vpop.f32.mrb[0].mxu0
      %11081 = vdwg.mxu0
      %v11082 = vmax.f32 %v10828, 0.0
      %v11083 = vmax.f32 %v10831, 0.0
      %v11084 = vmax.f32 %v10836, 0.0
      %v11085 = vmax.f32 %v10839, 0.0
      %v11086 = vmax.f32 %v10844, 0.0
      %v11087 = vmax.f32 %v10847, 0.0
      %v11088 = vmax.f32 %v10852, 0.0
      %v11089 = vmax.f32 %v10855, 0.0
      %v11090 = vmax.f32 %v10860, 0.0
      %v11091 = vmax.f32 %v10863, 0.0
      %v11092 = vmax.f32 %v10868, 0.0
      %v11093 = vmax.f32 %v10871, 0.0
      %v11094 = vmax.f32 %v10876, 0.0
      %v11095 = vmax.f32 %v10879, 0.0
      %v11096 = vmax.f32 %v10884, 0.0
      %v11097 = vmax.f32 %v10887, 0.0
      %v11098 = vmax.f32 %v10892, 0.0
      %v11099 = vmax.f32 %v10895, 0.0
      %v11100 = vmax.f32 %v10900, 0.0
      %v11101 = vmax.f32 %v10903, 0.0
      %v11102 = vmax.f32 %v10908, 0.0
      %v11103 = vmax.f32 %v10911, 0.0
      %v11104 = vmax.f32 %v10916, 0.0
      %v11105 = vmax.f32 %v10919, 0.0
      %v11106 = vmax.f32 %v10924, 0.0
      %v11107 = vmax.f32 %v10927, 0.0
      %v11108 = vmax.f32 %v10932, 0.0
      %v11109 = vmax.f32 %v10935, 0.0
      %v11110 = vmax.f32 %v10940, 0.0
      %v11111 = vmax.f32 %v10943, 0.0
      %v11112 = vmax.f32 %v10948, 0.0
      %v11113 = vmax.f32 %v10951, 0.0
      %v11114 = vmax.f32 %v10956, 0.0
      %v11115 = vmax.f32 %v10959, 0.0
      %v11116 = vmax.f32 %v10964, 0.0
      %v11117 = vmax.f32 %v10967, 0.0
      %v11118 = vmax.f32 %v10972, 0.0
      %v11119 = vmax.f32 %v10975, 0.0
      %v11120 = vmax.f32 %v10980, 0.0
      %v11121 = vmax.f32 %v10983, 0.0
      %v11122 = vmax.f32 %v10988, 0.0
      %v11123 = vmax.f32 %v10991, 0.0
      %v11124 = vmax.f32 %v10996, 0.0
      %v11125 = vmax.f32 %v10999, 0.0
      %v11126 = vmax.f32 %v11004, 0.0
      %v11127 = vmax.f32 %v11007, 0.0
      %v11128 = vmax.f32 %v11012, 0.0
      %v11129 = vmax.f32 %v11015, 0.0
      %v11130 = vmax.f32 %v11020, 0.0
      %v11131 = vmax.f32 %v11023, 0.0
      %v11132 = vmax.f32 %v11028, 0.0
      %v11133 = vmax.f32 %v11031, 0.0
      %v11134 = vmax.f32 %v11036, 0.0
      %v11135 = vmax.f32 %v11039, 0.0
      %v11136 = vmax.f32 %v11044, 0.0
      %v11137 = vmax.f32 %v11047, 0.0
      %v11138 = vmax.f32 %v11052, 0.0
      %v11139 = vmax.f32 %v11055, 0.0
      %v11140 = vmax.f32 %v11060, 0.0
      %v11141 = vmax.f32 %v11063, 0.0
      %v11142 = vmax.f32 %v11068, 0.0
      %v11143 = vmax.f32 %v11071, 0.0
      %v11144 = vmax.f32 %v11076, 0.0
      %v11145 = vmax.f32 %v11079, 0.0
      %v11146 = vpack.c.bf16 %v11082, %v11082
      %v11147 = vpack.c.bf16 %v11083, %v11083
      %v11148 = vpack.c.bf16 %v11084, %v11084
      %v11149 = vpack.c.bf16 %v11085, %v11085
      %v11150 = vpack.c.bf16 %v11086, %v11086
      %v11151 = vpack.c.bf16 %v11087, %v11087
      %v11152 = vpack.c.bf16 %v11088, %v11088
      %v11153 = vpack.c.bf16 %v11089, %v11089
      %v11154 = vpack.c.bf16 %v11090, %v11090
      %v11155 = vpack.c.bf16 %v11091, %v11091
      %v11156 = vpack.c.bf16 %v11092, %v11092
      %v11157 = vpack.c.bf16 %v11093, %v11093
      %v11158 = vpack.c.bf16 %v11094, %v11094
      %v11159 = vpack.c.bf16 %v11095, %v11095
      %v11160 = vpack.c.bf16 %v11096, %v11096
      %v11161 = vpack.c.bf16 %v11097, %v11097
      %v11162 = vpack.c.bf16 %v11098, %v11098
      %v11163 = vpack.c.bf16 %v11099, %v11099
      %v11164 = vpack.c.bf16 %v11100, %v11100
      %v11165 = vpack.c.bf16 %v11101, %v11101
      %v11166 = vpack.c.bf16 %v11102, %v11102
      %v11167 = vpack.c.bf16 %v11103, %v11103
      %v11168 = vpack.c.bf16 %v11104, %v11104
      %v11169 = vpack.c.bf16 %v11105, %v11105
      %v11170 = vpack.c.bf16 %v11106, %v11106
      %v11171 = vpack.c.bf16 %v11107, %v11107
      %v11172 = vpack.c.bf16 %v11108, %v11108
      %v11173 = vpack.c.bf16 %v11109, %v11109
      %v11174 = vpack.c.bf16 %v11110, %v11110
      %v11175 = vpack.c.bf16 %v11111, %v11111
      %v11176 = vpack.c.bf16 %v11112, %v11112
      %v11177 = vpack.c.bf16 %v11113, %v11113
      %v11178 = vpack.c.bf16 %v11114, %v11114
      %v11179 = vpack.c.bf16 %v11115, %v11115
      %v11180 = vpack.c.bf16 %v11116, %v11116
      %v11181 = vpack.c.bf16 %v11117, %v11117
      %v11182 = vpack.c.bf16 %v11118, %v11118
      %v11183 = vpack.c.bf16 %v11119, %v11119
      %v11184 = vpack.c.bf16 %v11120, %v11120
      %v11185 = vpack.c.bf16 %v11121, %v11121
      %v11186 = vpack.c.bf16 %v11122, %v11122
      %v11187 = vpack.c.bf16 %v11123, %v11123
      %v11188 = vpack.c.bf16 %v11124, %v11124
      %v11189 = vpack.c.bf16 %v11125, %v11125
      %v11190 = vpack.c.bf16 %v11126, %v11126
      %v11191 = vpack.c.bf16 %v11127, %v11127
      %v11192 = vpack.c.bf16 %v11128, %v11128
      %v11193 = vpack.c.bf16 %v11129, %v11129
      %v11194 = vpack.c.bf16 %v11130, %v11130
      %v11195 = vpack.c.bf16 %v11131, %v11131
      %v11196 = vpack.c.bf16 %v11132, %v11132
      %v11197 = vpack.c.bf16 %v11133, %v11133
      %v11198 = vpack.c.bf16 %v11134, %v11134
      %v11199 = vpack.c.bf16 %v11135, %v11135
      %v11200 = vpack.c.bf16 %v11136, %v11136
      %v11201 = vpack.c.bf16 %v11137, %v11137
      %v11202 = vpack.c.bf16 %v11138, %v11138
      %v11203 = vpack.c.bf16 %v11139, %v11139
      %v11204 = vpack.c.bf16 %v11140, %v11140
      %v11205 = vpack.c.bf16 %v11141, %v11141
      %v11206 = vpack.c.bf16 %v11142, %v11142
      %v11207 = vpack.c.bf16 %v11143, %v11143
      %v11208 = vpack.c.bf16 %v11144, %v11144
      %v11209 = vpack.c.bf16 %v11145, %v11145
      %v11211 = vshrl.u32 %v11146, 16
      %v11213 = vrot.slane %v11211, 7
      %v11214 = vshll.u32 %v11146, 16
      %v11216 = vor.u32 %v11213, %v11214
      %v11218 = vshrl.u32 %v11147, 16
      %v11220 = vrot.slane %v11218, 7
      %v11221 = vshll.u32 %v11147, 16
      %v11223 = vor.u32 %v11220, %v11221
      %v11225 = vshrl.u32 %v11148, 16
      %v11227 = vrot.slane %v11225, 7
      %v11228 = vshll.u32 %v11148, 16
      %v11230 = vor.u32 %v11227, %v11228
      %v11232 = vshrl.u32 %v11149, 16
      %v11234 = vrot.slane %v11232, 7
      %v11235 = vshll.u32 %v11149, 16
      %v11237 = vor.u32 %v11234, %v11235
      %v11239 = vshrl.u32 %v11150, 16
      %v11241 = vrot.slane %v11239, 7
      %v11242 = vshll.u32 %v11150, 16
      %v11244 = vor.u32 %v11241, %v11242
      %v11246 = vshrl.u32 %v11151, 16
      %v11248 = vrot.slane %v11246, 7
      %v11249 = vshll.u32 %v11151, 16
      %v11251 = vor.u32 %v11248, %v11249
      %v11253 = vshrl.u32 %v11152, 16
      %v11255 = vrot.slane %v11253, 7
      %v11256 = vshll.u32 %v11152, 16
      %v11258 = vor.u32 %v11255, %v11256
      %v11260 = vshrl.u32 %v11153, 16
      %v11262 = vrot.slane %v11260, 7
      %v11263 = vshll.u32 %v11153, 16
      %v11265 = vor.u32 %v11262, %v11263
      %v11267 = vshrl.u32 %v11154, 16
      %v11269 = vrot.slane %v11267, 7
      %v11270 = vshll.u32 %v11154, 16
      %v11272 = vor.u32 %v11269, %v11270
      %v11274 = vshrl.u32 %v11155, 16
      %v11276 = vrot.slane %v11274, 7
      %v11277 = vshll.u32 %v11155, 16
      %v11279 = vor.u32 %v11276, %v11277
      %v11281 = vshrl.u32 %v11156, 16
      %v11283 = vrot.slane %v11281, 7
      %v11284 = vshll.u32 %v11156, 16
      %v11286 = vor.u32 %v11283, %v11284
      %v11288 = vshrl.u32 %v11157, 16
      %v11290 = vrot.slane %v11288, 7
      %v11291 = vshll.u32 %v11157, 16
      %v11293 = vor.u32 %v11290, %v11291
      %v11295 = vshrl.u32 %v11158, 16
      %v11297 = vrot.slane %v11295, 7
      %v11298 = vshll.u32 %v11158, 16
      %v11300 = vor.u32 %v11297, %v11298
      %v11302 = vshrl.u32 %v11159, 16
      %v11304 = vrot.slane %v11302, 7
      %v11305 = vshll.u32 %v11159, 16
      %v11307 = vor.u32 %v11304, %v11305
      %v11309 = vshrl.u32 %v11160, 16
      %v11311 = vrot.slane %v11309, 7
      %v11312 = vshll.u32 %v11160, 16
      %v11314 = vor.u32 %v11311, %v11312
      %v11316 = vshrl.u32 %v11161, 16
      %v11318 = vrot.slane %v11316, 7
      %v11319 = vshll.u32 %v11161, 16
      %v11321 = vor.u32 %v11318, %v11319
      %v11323 = vshrl.u32 %v11162, 16
      %v11325 = vrot.slane %v11323, 7
      %v11326 = vshll.u32 %v11162, 16
      %v11328 = vor.u32 %v11325, %v11326
      %v11330 = vshrl.u32 %v11163, 16
      %v11332 = vrot.slane %v11330, 7
      %v11333 = vshll.u32 %v11163, 16
      %v11335 = vor.u32 %v11332, %v11333
      %v11337 = vshrl.u32 %v11164, 16
      %v11339 = vrot.slane %v11337, 7
      %v11340 = vshll.u32 %v11164, 16
      %v11342 = vor.u32 %v11339, %v11340
      %v11344 = vshrl.u32 %v11165, 16
      %v11346 = vrot.slane %v11344, 7
      %v11347 = vshll.u32 %v11165, 16
      %v11349 = vor.u32 %v11346, %v11347
      %v11351 = vshrl.u32 %v11166, 16
      %v11353 = vrot.slane %v11351, 7
      %v11354 = vshll.u32 %v11166, 16
      %v11356 = vor.u32 %v11353, %v11354
      %v11358 = vshrl.u32 %v11167, 16
      %v11360 = vrot.slane %v11358, 7
      %v11361 = vshll.u32 %v11167, 16
      %v11363 = vor.u32 %v11360, %v11361
      %v11365 = vshrl.u32 %v11168, 16
      %v11367 = vrot.slane %v11365, 7
      %v11368 = vshll.u32 %v11168, 16
      %v11370 = vor.u32 %v11367, %v11368
      %v11372 = vshrl.u32 %v11169, 16
      %v11374 = vrot.slane %v11372, 7
      %v11375 = vshll.u32 %v11169, 16
      %v11377 = vor.u32 %v11374, %v11375
      %v11379 = vshrl.u32 %v11170, 16
      %v11381 = vrot.slane %v11379, 7
      %v11382 = vshll.u32 %v11170, 16
      %v11384 = vor.u32 %v11381, %v11382
      %v11386 = vshrl.u32 %v11171, 16
      %v11388 = vrot.slane %v11386, 7
      %v11389 = vshll.u32 %v11171, 16
      %v11391 = vor.u32 %v11388, %v11389
      %v11393 = vshrl.u32 %v11172, 16
      %v11395 = vrot.slane %v11393, 7
      %v11396 = vshll.u32 %v11172, 16
      %v11398 = vor.u32 %v11395, %v11396
      %v11400 = vshrl.u32 %v11173, 16
      %v11402 = vrot.slane %v11400, 7
      %v11403 = vshll.u32 %v11173, 16
      %v11405 = vor.u32 %v11402, %v11403
      %v11407 = vshrl.u32 %v11174, 16
      %v11409 = vrot.slane %v11407, 7
      %v11410 = vshll.u32 %v11174, 16
      %v11412 = vor.u32 %v11409, %v11410
      %v11414 = vshrl.u32 %v11175, 16
      %v11416 = vrot.slane %v11414, 7
      %v11417 = vshll.u32 %v11175, 16
      %v11419 = vor.u32 %v11416, %v11417
      %v11421 = vshrl.u32 %v11176, 16
      %v11423 = vrot.slane %v11421, 7
      %v11424 = vshll.u32 %v11176, 16
      %v11426 = vor.u32 %v11423, %v11424
      %v11428 = vshrl.u32 %v11177, 16
      %v11430 = vrot.slane %v11428, 7
      %v11431 = vshll.u32 %v11177, 16
      %v11433 = vor.u32 %v11430, %v11431
      %v11435 = vshrl.u32 %v11178, 16
      %v11437 = vrot.slane %v11435, 7
      %v11438 = vshll.u32 %v11178, 16
      %v11440 = vor.u32 %v11437, %v11438
      %v11442 = vshrl.u32 %v11179, 16
      %v11444 = vrot.slane %v11442, 7
      %v11445 = vshll.u32 %v11179, 16
      %v11447 = vor.u32 %v11444, %v11445
      %v11449 = vshrl.u32 %v11180, 16
      %v11451 = vrot.slane %v11449, 7
      %v11452 = vshll.u32 %v11180, 16
      %v11454 = vor.u32 %v11451, %v11452
      %v11456 = vshrl.u32 %v11181, 16
      %v11458 = vrot.slane %v11456, 7
      %v11459 = vshll.u32 %v11181, 16
      %v11461 = vor.u32 %v11458, %v11459
      %v11463 = vshrl.u32 %v11182, 16
      %v11465 = vrot.slane %v11463, 7
      %v11466 = vshll.u32 %v11182, 16
      %v11468 = vor.u32 %v11465, %v11466
      %v11470 = vshrl.u32 %v11183, 16
      %v11472 = vrot.slane %v11470, 7
      %v11473 = vshll.u32 %v11183, 16
      %v11475 = vor.u32 %v11472, %v11473
      %v11477 = vshrl.u32 %v11184, 16
      %v11479 = vrot.slane %v11477, 7
      %v11480 = vshll.u32 %v11184, 16
      %v11482 = vor.u32 %v11479, %v11480
      %v11484 = vshrl.u32 %v11185, 16
      %v11486 = vrot.slane %v11484, 7
      %v11487 = vshll.u32 %v11185, 16
      %v11489 = vor.u32 %v11486, %v11487
      %v11491 = vshrl.u32 %v11186, 16
      %v11493 = vrot.slane %v11491, 7
      %v11494 = vshll.u32 %v11186, 16
      %v11496 = vor.u32 %v11493, %v11494
      %v11498 = vshrl.u32 %v11187, 16
      %v11500 = vrot.slane %v11498, 7
      %v11501 = vshll.u32 %v11187, 16
      %v11503 = vor.u32 %v11500, %v11501
      %v11505 = vshrl.u32 %v11188, 16
      %v11507 = vrot.slane %v11505, 7
      %v11508 = vshll.u32 %v11188, 16
      %v11510 = vor.u32 %v11507, %v11508
      %v11512 = vshrl.u32 %v11189, 16
      %v11514 = vrot.slane %v11512, 7
      %v11515 = vshll.u32 %v11189, 16
      %v11517 = vor.u32 %v11514, %v11515
      %v11519 = vshrl.u32 %v11190, 16
      %v11521 = vrot.slane %v11519, 7
      %v11522 = vshll.u32 %v11190, 16
      %v11524 = vor.u32 %v11521, %v11522
      %v11526 = vshrl.u32 %v11191, 16
      %v11528 = vrot.slane %v11526, 7
      %v11529 = vshll.u32 %v11191, 16
      %v11531 = vor.u32 %v11528, %v11529
      %v11533 = vshrl.u32 %v11192, 16
      %v11535 = vrot.slane %v11533, 7
      %v11536 = vshll.u32 %v11192, 16
      %v11538 = vor.u32 %v11535, %v11536
      %v11540 = vshrl.u32 %v11193, 16
      %v11542 = vrot.slane %v11540, 7
      %v11543 = vshll.u32 %v11193, 16
      %v11545 = vor.u32 %v11542, %v11543
      %v11547 = vshrl.u32 %v11194, 16
      %v11549 = vrot.slane %v11547, 7
      %v11550 = vshll.u32 %v11194, 16
      %v11552 = vor.u32 %v11549, %v11550
      %v11554 = vshrl.u32 %v11195, 16
      %v11556 = vrot.slane %v11554, 7
      %v11557 = vshll.u32 %v11195, 16
      %v11559 = vor.u32 %v11556, %v11557
      %v11561 = vshrl.u32 %v11196, 16
      %v11563 = vrot.slane %v11561, 7
      %v11564 = vshll.u32 %v11196, 16
      %v11566 = vor.u32 %v11563, %v11564
      %v11568 = vshrl.u32 %v11197, 16
      %v11570 = vrot.slane %v11568, 7
      %v11571 = vshll.u32 %v11197, 16
      %v11573 = vor.u32 %v11570, %v11571
      %v11575 = vshrl.u32 %v11198, 16
      %v11577 = vrot.slane %v11575, 7
      %v11578 = vshll.u32 %v11198, 16
      %v11580 = vor.u32 %v11577, %v11578
      %v11582 = vshrl.u32 %v11199, 16
      %v11584 = vrot.slane %v11582, 7
      %v11585 = vshll.u32 %v11199, 16
      %v11587 = vor.u32 %v11584, %v11585
      %v11589 = vshrl.u32 %v11200, 16
      %v11591 = vrot.slane %v11589, 7
      %v11592 = vshll.u32 %v11200, 16
      %v11594 = vor.u32 %v11591, %v11592
      %v11596 = vshrl.u32 %v11201, 16
      %v11598 = vrot.slane %v11596, 7
      %v11599 = vshll.u32 %v11201, 16
      %v11601 = vor.u32 %v11598, %v11599
      %v11603 = vshrl.u32 %v11202, 16
      %v11605 = vrot.slane %v11603, 7
      %v11606 = vshll.u32 %v11202, 16
      %v11608 = vor.u32 %v11605, %v11606
      %v11610 = vshrl.u32 %v11203, 16
      %v11612 = vrot.slane %v11610, 7
      %v11613 = vshll.u32 %v11203, 16
      %v11615 = vor.u32 %v11612, %v11613
      %v11617 = vshrl.u32 %v11204, 16
      %v11619 = vrot.slane %v11617, 7
      %v11620 = vshll.u32 %v11204, 16
      %v11622 = vor.u32 %v11619, %v11620
      %v11624 = vshrl.u32 %v11205, 16
      %v11626 = vrot.slane %v11624, 7
      %v11627 = vshll.u32 %v11205, 16
      %v11629 = vor.u32 %v11626, %v11627
      %v11631 = vshrl.u32 %v11206, 16
      %v11633 = vrot.slane %v11631, 7
      %v11634 = vshll.u32 %v11206, 16
      %v11636 = vor.u32 %v11633, %v11634
      %v11638 = vshrl.u32 %v11207, 16
      %v11640 = vrot.slane %v11638, 7
      %v11641 = vshll.u32 %v11207, 16
      %v11643 = vor.u32 %v11640, %v11641
      %v11645 = vshrl.u32 %v11208, 16
      %v11647 = vrot.slane %v11645, 7
      %v11648 = vshll.u32 %v11208, 16
      %v11650 = vor.u32 %v11647, %v11648
      %v11652 = vshrl.u32 %v11209, 16
      %v11654 = vrot.slane %v11652, 7
      %v11655 = vshll.u32 %v11209, 16
      %v11657 = vor.u32 %v11654, %v11655
      %vm11722 = vcmask 1040384
      %vm11723 = vsmask.f32 256
      %vm11724 = vmand %vm11722, %vm11723
      %v11725 = vsel %vm11724, 0, %v11216
      %v11726 = vsel %vm11724, 0, %v11223
      %v11727 = vsel %vm11724, 0, %v11230
      %v11728 = vsel %vm11724, 0, %v11237
      %v11729 = vsel %vm11724, 0, %v11244
      %v11730 = vsel %vm11724, 0, %v11251
      %v11731 = vsel %vm11724, 0, %v11258
      %v11732 = vsel %vm11724, 0, %v11265
      %v11733 = vsel %vm11724, 0, %v11272
      %v11734 = vsel %vm11724, 0, %v11279
      %v11735 = vsel %vm11724, 0, %v11286
      %v11736 = vsel %vm11724, 0, %v11293
      %v11737 = vsel %vm11724, 0, %v11300
      %v11738 = vsel %vm11724, 0, %v11307
      %v11739 = vsel %vm11724, 0, %v11314
      %v11740 = vsel %vm11724, 0, %v11321
      %v11741 = vsel %vm11724, 0, %v11328
      %v11742 = vsel %vm11724, 0, %v11335
      %v11743 = vsel %vm11724, 0, %v11342
      %v11744 = vsel %vm11724, 0, %v11349
      %v11745 = vsel %vm11724, 0, %v11356
      %v11746 = vsel %vm11724, 0, %v11363
      %v11747 = vsel %vm11724, 0, %v11370
      %v11748 = vsel %vm11724, 0, %v11377
      %v11749 = vsel %vm11724, 0, %v11384
      %v11750 = vsel %vm11724, 0, %v11391
      %v11751 = vsel %vm11724, 0, %v11398
      %v11752 = vsel %vm11724, 0, %v11405
      %v11753 = vsel %vm11724, 0, %v11412
      %v11754 = vsel %vm11724, 0, %v11419
      %v11755 = vsel %vm11724, 0, %v11426
      %v11756 = vsel %vm11724, 0, %v11433
      %v11757 = vsel %vm11724, 0, %v11440
      %v11758 = vsel %vm11724, 0, %v11447
      %v11759 = vsel %vm11724, 0, %v11454
      %v11760 = vsel %vm11724, 0, %v11461
      %v11761 = vsel %vm11724, 0, %v11468
      %v11762 = vsel %vm11724, 0, %v11475
      %v11763 = vsel %vm11724, 0, %v11482
      %v11764 = vsel %vm11724, 0, %v11489
      %v11765 = vsel %vm11724, 0, %v11496
      %v11766 = vsel %vm11724, 0, %v11503
      %v11767 = vsel %vm11724, 0, %v11510
      %v11768 = vsel %vm11724, 0, %v11517
      %v11769 = vsel %vm11724, 0, %v11524
      %v11770 = vsel %vm11724, 0, %v11531
      %v11771 = vsel %vm11724, 0, %v11538
      %v11772 = vsel %vm11724, 0, %v11545
      %v11773 = vsel %vm11724, 0, %v11552
      %v11774 = vsel %vm11724, 0, %v11559
      %v11775 = vsel %vm11724, 0, %v11566
      %v11776 = vsel %vm11724, 0, %v11573
      %v11777 = vsel %vm11724, 0, %v11580
      %v11778 = vsel %vm11724, 0, %v11587
      %v11779 = vsel %vm11724, 0, %v11594
      %v11780 = vsel %vm11724, 0, %v11601
      %v11781 = vsel %vm11724, 0, %v11608
      %v11782 = vsel %vm11724, 0, %v11615
      %v11783 = vsel %vm11724, 0, %v11622
      %v11784 = vsel %vm11724, 0, %v11629
      %v11785 = vsel %vm11724, 0, %v11636
      %v11786 = vsel %vm11724, 0, %v11643
      %v11787 = vsel %vm11724, 0, %v11650
      %v11788 = vsel %vm11724, 0, %v11657
      %v11789 = vrot.slane %v11214, 1
      %v11790 = vor.u32 %v11211, %v11789
      %v11791 = vrot.slane %v11221, 1
      %v11792 = vor.u32 %v11218, %v11791
      %v11793 = vrot.slane %v11228, 1
      %v11794 = vor.u32 %v11225, %v11793
      %v11795 = vrot.slane %v11235, 1
      %v11796 = vor.u32 %v11232, %v11795
      %v11797 = vrot.slane %v11242, 1
      %v11798 = vor.u32 %v11239, %v11797
      %v11799 = vrot.slane %v11249, 1
      %v11800 = vor.u32 %v11246, %v11799
      %v11801 = vrot.slane %v11256, 1
      %v11802 = vor.u32 %v11253, %v11801
      %v11803 = vrot.slane %v11263, 1
      %v11804 = vor.u32 %v11260, %v11803
      %v11805 = vrot.slane %v11270, 1
      %v11806 = vor.u32 %v11267, %v11805
      %v11807 = vrot.slane %v11277, 1
      %v11808 = vor.u32 %v11274, %v11807
      %v11809 = vrot.slane %v11284, 1
      %v11810 = vor.u32 %v11281, %v11809
      %v11811 = vrot.slane %v11291, 1
      %v11812 = vor.u32 %v11288, %v11811
      %v11813 = vrot.slane %v11298, 1
      %v11814 = vor.u32 %v11295, %v11813
      %v11815 = vrot.slane %v11305, 1
      %v11816 = vor.u32 %v11302, %v11815
      %v11817 = vrot.slane %v11312, 1
      %v11818 = vor.u32 %v11309, %v11817
      %v11819 = vrot.slane %v11319, 1
      %v11820 = vor.u32 %v11316, %v11819
      %v11821 = vrot.slane %v11326, 1
      %v11822 = vor.u32 %v11323, %v11821
      %v11823 = vrot.slane %v11333, 1
      %v11824 = vor.u32 %v11330, %v11823
      %v11825 = vrot.slane %v11340, 1
      %v11826 = vor.u32 %v11337, %v11825
      %v11827 = vrot.slane %v11347, 1
      %v11828 = vor.u32 %v11344, %v11827
      %v11829 = vrot.slane %v11354, 1
      %v11830 = vor.u32 %v11351, %v11829
      %v11831 = vrot.slane %v11361, 1
      %v11832 = vor.u32 %v11358, %v11831
      %v11833 = vrot.slane %v11368, 1
      %v11834 = vor.u32 %v11365, %v11833
      %v11835 = vrot.slane %v11375, 1
      %v11836 = vor.u32 %v11372, %v11835
      %v11837 = vrot.slane %v11382, 1
      %v11838 = vor.u32 %v11379, %v11837
      %v11839 = vrot.slane %v11389, 1
      %v11840 = vor.u32 %v11386, %v11839
      %v11841 = vrot.slane %v11396, 1
      %v11842 = vor.u32 %v11393, %v11841
      %v11843 = vrot.slane %v11403, 1
      %v11844 = vor.u32 %v11400, %v11843
      %v11845 = vrot.slane %v11410, 1
      %v11846 = vor.u32 %v11407, %v11845
      %v11847 = vrot.slane %v11417, 1
      %v11848 = vor.u32 %v11414, %v11847
      %v11849 = vrot.slane %v11424, 1
      %v11850 = vor.u32 %v11421, %v11849
      %v11851 = vrot.slane %v11431, 1
      %v11852 = vor.u32 %v11428, %v11851
      %v11853 = vrot.slane %v11438, 1
      %v11854 = vor.u32 %v11435, %v11853
      %v11855 = vrot.slane %v11445, 1
      %v11856 = vor.u32 %v11442, %v11855
      %v11857 = vrot.slane %v11452, 1
      %v11858 = vor.u32 %v11449, %v11857
      %v11859 = vrot.slane %v11459, 1
      %v11860 = vor.u32 %v11456, %v11859
      %v11861 = vrot.slane %v11466, 1
      %v11862 = vor.u32 %v11463, %v11861
      %v11863 = vrot.slane %v11473, 1
      %v11864 = vor.u32 %v11470, %v11863
      %v11865 = vrot.slane %v11480, 1
      %v11866 = vor.u32 %v11477, %v11865
      %v11867 = vrot.slane %v11487, 1
      %v11868 = vor.u32 %v11484, %v11867
      %v11869 = vrot.slane %v11494, 1
      %v11870 = vor.u32 %v11491, %v11869
      %v11871 = vrot.slane %v11501, 1
      %v11872 = vor.u32 %v11498, %v11871
      %v11873 = vrot.slane %v11508, 1
      %v11874 = vor.u32 %v11505, %v11873
      %v11875 = vrot.slane %v11515, 1
      %v11876 = vor.u32 %v11512, %v11875
      %v11877 = vrot.slane %v11522, 1
      %v11878 = vor.u32 %v11519, %v11877
      %v11879 = vrot.slane %v11529, 1
      %v11880 = vor.u32 %v11526, %v11879
      %v11881 = vrot.slane %v11536, 1
      %v11882 = vor.u32 %v11533, %v11881
      %v11883 = vrot.slane %v11543, 1
      %v11884 = vor.u32 %v11540, %v11883
      %v11885 = vrot.slane %v11550, 1
      %v11886 = vor.u32 %v11547, %v11885
      %v11887 = vrot.slane %v11557, 1
      %v11888 = vor.u32 %v11554, %v11887
      %v11889 = vrot.slane %v11564, 1
      %v11890 = vor.u32 %v11561, %v11889
      %v11891 = vrot.slane %v11571, 1
      %v11892 = vor.u32 %v11568, %v11891
      %v11893 = vrot.slane %v11578, 1
      %v11894 = vor.u32 %v11575, %v11893
      %v11895 = vrot.slane %v11585, 1
      %v11896 = vor.u32 %v11582, %v11895
      %v11897 = vrot.slane %v11592, 1
      %v11898 = vor.u32 %v11589, %v11897
      %v11899 = vrot.slane %v11599, 1
      %v11900 = vor.u32 %v11596, %v11899
      %v11901 = vrot.slane %v11606, 1
      %v11902 = vor.u32 %v11603, %v11901
      %v11903 = vrot.slane %v11613, 1
      %v11904 = vor.u32 %v11610, %v11903
      %v11905 = vrot.slane %v11620, 1
      %v11906 = vor.u32 %v11617, %v11905
      %v11907 = vrot.slane %v11627, 1
      %v11908 = vor.u32 %v11624, %v11907
      %v11909 = vrot.slane %v11634, 1
      %v11910 = vor.u32 %v11631, %v11909
      %v11911 = vrot.slane %v11641, 1
      %v11912 = vor.u32 %v11638, %v11911
      %v11913 = vrot.slane %v11648, 1
      %v11914 = vor.u32 %v11645, %v11913
      %v11915 = vrot.slane %v11655, 1
      %v11916 = vor.u32 %v11652, %v11915
      %vm11981 = vcmask 1043456
      %vm11982 = vsmask.f32 3328
      %vm11983 = vmand %vm11981, %vm11982
      %v11984 = vsel %vm11983, %v11790, 0
      %v11985 = vsel %vm11983, %v11792, 0
      %v11986 = vsel %vm11983, %v11794, 0
      %v11987 = vsel %vm11983, %v11796, 0
      %v11988 = vsel %vm11983, %v11798, 0
      %v11989 = vsel %vm11983, %v11800, 0
      %v11990 = vsel %vm11983, %v11802, 0
      %v11991 = vsel %vm11983, %v11804, 0
      %v11992 = vsel %vm11983, %v11806, 0
      %v11993 = vsel %vm11983, %v11808, 0
      %v11994 = vsel %vm11983, %v11810, 0
      %v11995 = vsel %vm11983, %v11812, 0
      %v11996 = vsel %vm11983, %v11814, 0
      %v11997 = vsel %vm11983, %v11816, 0
      %v11998 = vsel %vm11983, %v11818, 0
      %v11999 = vsel %vm11983, %v11820, 0
      %v12000 = vsel %vm11983, %v11822, 0
      %v12001 = vsel %vm11983, %v11824, 0
      %v12002 = vsel %vm11983, %v11826, 0
      %v12003 = vsel %vm11983, %v11828, 0
      %v12004 = vsel %vm11983, %v11830, 0
      %v12005 = vsel %vm11983, %v11832, 0
      %v12006 = vsel %vm11983, %v11834, 0
      %v12007 = vsel %vm11983, %v11836, 0
      %v12008 = vsel %vm11983, %v11838, 0
      %v12009 = vsel %vm11983, %v11840, 0
      %v12010 = vsel %vm11983, %v11842, 0
      %v12011 = vsel %vm11983, %v11844, 0
      %v12012 = vsel %vm11983, %v11846, 0
      %v12013 = vsel %vm11983, %v11848, 0
      %v12014 = vsel %vm11983, %v11850, 0
      %v12015 = vsel %vm11983, %v11852, 0
      %v12016 = vsel %vm11983, %v11854, 0
      %v12017 = vsel %vm11983, %v11856, 0
      %v12018 = vsel %vm11983, %v11858, 0
      %v12019 = vsel %vm11983, %v11860, 0
      %v12020 = vsel %vm11983, %v11862, 0
      %v12021 = vsel %vm11983, %v11864, 0
      %v12022 = vsel %vm11983, %v11866, 0
      %v12023 = vsel %vm11983, %v11868, 0
      %v12024 = vsel %vm11983, %v11870, 0
      %v12025 = vsel %vm11983, %v11872, 0
      %v12026 = vsel %vm11983, %v11874, 0
      %v12027 = vsel %vm11983, %v11876, 0
      %v12028 = vsel %vm11983, %v11878, 0
      %v12029 = vsel %vm11983, %v11880, 0
      %v12030 = vsel %vm11983, %v11882, 0
      %v12031 = vsel %vm11983, %v11884, 0
      %v12032 = vsel %vm11983, %v11886, 0
      %v12033 = vsel %vm11983, %v11888, 0
      %v12034 = vsel %vm11983, %v11890, 0
      %v12035 = vsel %vm11983, %v11892, 0
      %v12036 = vsel %vm11983, %v11894, 0
      %v12037 = vsel %vm11983, %v11896, 0
      %v12038 = vsel %vm11983, %v11898, 0
      %v12039 = vsel %vm11983, %v11900, 0
      %v12040 = vsel %vm11983, %v11902, 0
      %v12041 = vsel %vm11983, %v11904, 0
      %v12042 = vsel %vm11983, %v11906, 0
      %v12043 = vsel %vm11983, %v11908, 0
      %v12044 = vsel %vm11983, %v11910, 0
      %v12045 = vsel %vm11983, %v11912, 0
      %v12046 = vsel %vm11983, %v11914, 0
      %v12047 = vsel %vm11983, %v11916, 0
      %12112 = vrot.lane.b32.xlu0 %v11146, 4
      %v12113 = vpop.permute.xlu0 %12112
      %12114 = vrot.lane.b32.xlu0 %v11147, 4
      %v12115 = vpop.permute.xlu0 %12114
      %12116 = vrot.lane.b32.xlu0 %v11148, 4
      %v12117 = vpop.permute.xlu0 %12116
      %12118 = vrot.lane.b32.xlu0 %v11149, 4
      %v12119 = vpop.permute.xlu0 %12118
      %12120 = vrot.lane.b32.xlu0 %v11150, 4
      %v12121 = vpop.permute.xlu0 %12120
      %12122 = vrot.lane.b32.xlu0 %v11151, 4
      %v12123 = vpop.permute.xlu0 %12122
      %12124 = vrot.lane.b32.xlu0 %v11152, 4
      %v12125 = vpop.permute.xlu0 %12124
      %12126 = vrot.lane.b32.xlu0 %v11153, 4
      %v12127 = vpop.permute.xlu0 %12126
      %12128 = vrot.lane.b32.xlu0 %v11154, 4
      %v12129 = vpop.permute.xlu0 %12128
      %12130 = vrot.lane.b32.xlu0 %v11155, 4
      %v12131 = vpop.permute.xlu0 %12130
      %12132 = vrot.lane.b32.xlu0 %v11156, 4
      %v12133 = vpop.permute.xlu0 %12132
      %12134 = vrot.lane.b32.xlu0 %v11157, 4
      %v12135 = vpop.permute.xlu0 %12134
      %12136 = vrot.lane.b32.xlu0 %v11158, 4
      %v12137 = vpop.permute.xlu0 %12136
      %12138 = vrot.lane.b32.xlu0 %v11159, 4
      %v12139 = vpop.permute.xlu0 %12138
      %12140 = vrot.lane.b32.xlu0 %v11160, 4
      %v12141 = vpop.permute.xlu0 %12140
      %12142 = vrot.lane.b32.xlu0 %v11161, 4
      %v12143 = vpop.permute.xlu0 %12142
      %12144 = vrot.lane.b32.xlu0 %v11162, 4
      %v12145 = vpop.permute.xlu0 %12144
      %12146 = vrot.lane.b32.xlu0 %v11163, 4
      %v12147 = vpop.permute.xlu0 %12146
      %12148 = vrot.lane.b32.xlu0 %v11164, 4
      %v12149 = vpop.permute.xlu0 %12148
      %12150 = vrot.lane.b32.xlu0 %v11165, 4
      %v12151 = vpop.permute.xlu0 %12150
      %12152 = vrot.lane.b32.xlu0 %v11166, 4
      %v12153 = vpop.permute.xlu0 %12152
      %12154 = vrot.lane.b32.xlu0 %v11167, 4
      %v12155 = vpop.permute.xlu0 %12154
      %12156 = vrot.lane.b32.xlu0 %v11168, 4
      %v12157 = vpop.permute.xlu0 %12156
      %12158 = vrot.lane.b32.xlu0 %v11169, 4
      %v12159 = vpop.permute.xlu0 %12158
      %12160 = vrot.lane.b32.xlu0 %v11170, 4
      %v12161 = vpop.permute.xlu0 %12160
      %12162 = vrot.lane.b32.xlu0 %v11171, 4
      %v12163 = vpop.permute.xlu0 %12162
      %12164 = vrot.lane.b32.xlu0 %v11172, 4
      %v12165 = vpop.permute.xlu0 %12164
      %12166 = vrot.lane.b32.xlu0 %v11173, 4
      %v12167 = vpop.permute.xlu0 %12166
      %12168 = vrot.lane.b32.xlu0 %v11174, 4
      %v12169 = vpop.permute.xlu0 %12168
      %12170 = vrot.lane.b32.xlu0 %v11175, 4
      %v12171 = vpop.permute.xlu0 %12170
      %12172 = vrot.lane.b32.xlu0 %v11176, 4
      %v12173 = vpop.permute.xlu0 %12172
      %12174 = vrot.lane.b32.xlu0 %v11177, 4
      %v12175 = vpop.permute.xlu0 %12174
      %12176 = vrot.lane.b32.xlu0 %v11178, 4
      %v12177 = vpop.permute.xlu0 %12176
      %12178 = vrot.lane.b32.xlu0 %v11179, 4
      %v12179 = vpop.permute.xlu0 %12178
      %12180 = vrot.lane.b32.xlu0 %v11180, 4
      %v12181 = vpop.permute.xlu0 %12180
      %12182 = vrot.lane.b32.xlu0 %v11181, 4
      %v12183 = vpop.permute.xlu0 %12182
      %12184 = vrot.lane.b32.xlu0 %v11182, 4
      %v12185 = vpop.permute.xlu0 %12184
      %12186 = vrot.lane.b32.xlu0 %v11183, 4
      %v12187 = vpop.permute.xlu0 %12186
      %12188 = vrot.lane.b32.xlu0 %v11184, 4
      %v12189 = vpop.permute.xlu0 %12188
      %12190 = vrot.lane.b32.xlu0 %v11185, 4
      %v12191 = vpop.permute.xlu0 %12190
      %12192 = vrot.lane.b32.xlu0 %v11186, 4
      %v12193 = vpop.permute.xlu0 %12192
      %12194 = vrot.lane.b32.xlu0 %v11187, 4
      %v12195 = vpop.permute.xlu0 %12194
      %12196 = vrot.lane.b32.xlu0 %v11188, 4
      %v12197 = vpop.permute.xlu0 %12196
      %12198 = vrot.lane.b32.xlu0 %v11189, 4
      %v12199 = vpop.permute.xlu0 %12198
      %12200 = vrot.lane.b32.xlu0 %v11190, 4
      %v12201 = vpop.permute.xlu0 %12200
      %12202 = vrot.lane.b32.xlu0 %v11191, 4
      %v12203 = vpop.permute.xlu0 %12202
      %12204 = vrot.lane.b32.xlu0 %v11192, 4
      %v12205 = vpop.permute.xlu0 %12204
      %12206 = vrot.lane.b32.xlu0 %v11193, 4
      %v12207 = vpop.permute.xlu0 %12206
      %12208 = vrot.lane.b32.xlu0 %v11194, 4
      %v12209 = vpop.permute.xlu0 %12208
      %12210 = vrot.lane.b32.xlu0 %v11195, 4
      %v12211 = vpop.permute.xlu0 %12210
      %12212 = vrot.lane.b32.xlu0 %v11196, 4
      %v12213 = vpop.permute.xlu0 %12212
      %12214 = vrot.lane.b32.xlu0 %v11197, 4
      %v12215 = vpop.permute.xlu0 %12214
      %12216 = vrot.lane.b32.xlu0 %v11198, 4
      %v12217 = vpop.permute.xlu0 %12216
      %12218 = vrot.lane.b32.xlu0 %v11199, 4
      %v12219 = vpop.permute.xlu0 %12218
      %12220 = vrot.lane.b32.xlu0 %v11200, 4
      %v12221 = vpop.permute.xlu0 %12220
      %12222 = vrot.lane.b32.xlu0 %v11201, 4
      %v12223 = vpop.permute.xlu0 %12222
      %12224 = vrot.lane.b32.xlu0 %v11202, 4
      %v12225 = vpop.permute.xlu0 %12224
      %12226 = vrot.lane.b32.xlu0 %v11203, 4
      %v12227 = vpop.permute.xlu0 %12226
      %12228 = vrot.lane.b32.xlu0 %v11204, 4
      %v12229 = vpop.permute.xlu0 %12228
      %12230 = vrot.lane.b32.xlu0 %v11205, 4
      %v12231 = vpop.permute.xlu0 %12230
      %12232 = vrot.lane.b32.xlu0 %v11206, 4
      %v12233 = vpop.permute.xlu0 %12232
      %12234 = vrot.lane.b32.xlu0 %v11207, 4
      %v12235 = vpop.permute.xlu0 %12234
      %12236 = vrot.lane.b32.xlu0 %v11208, 4
      %v12237 = vpop.permute.xlu0 %12236
      %12238 = vrot.lane.b32.xlu0 %v11209, 4
      %v12239 = vpop.permute.xlu0 %12238
      %12304 = vrot.lane.b32.xlu0 %v11984, 8
      %v12305 = vpop.permute.xlu0 %12304
      %12306 = vrot.lane.b32.xlu0 %v11985, 8
      %v12307 = vpop.permute.xlu0 %12306
      %12308 = vrot.lane.b32.xlu0 %v11986, 8
      %v12309 = vpop.permute.xlu0 %12308
      %12310 = vrot.lane.b32.xlu0 %v11987, 8
      %v12311 = vpop.permute.xlu0 %12310
      %12312 = vrot.lane.b32.xlu0 %v11988, 8
      %v12313 = vpop.permute.xlu0 %12312
      %12314 = vrot.lane.b32.xlu0 %v11989, 8
      %v12315 = vpop.permute.xlu0 %12314
      %12316 = vrot.lane.b32.xlu0 %v11990, 8
      %v12317 = vpop.permute.xlu0 %12316
      %12318 = vrot.lane.b32.xlu0 %v11991, 8
      %v12319 = vpop.permute.xlu0 %12318
      %12320 = vrot.lane.b32.xlu0 %v11992, 8
      %v12321 = vpop.permute.xlu0 %12320
      %12322 = vrot.lane.b32.xlu0 %v11993, 8
      %v12323 = vpop.permute.xlu0 %12322
      %12324 = vrot.lane.b32.xlu0 %v11994, 8
      %v12325 = vpop.permute.xlu0 %12324
      %12326 = vrot.lane.b32.xlu0 %v11995, 8
      %v12327 = vpop.permute.xlu0 %12326
      %12328 = vrot.lane.b32.xlu0 %v11996, 8
      %v12329 = vpop.permute.xlu0 %12328
      %12330 = vrot.lane.b32.xlu0 %v11997, 8
      %v12331 = vpop.permute.xlu0 %12330
      %12332 = vrot.lane.b32.xlu0 %v11998, 8
      %v12333 = vpop.permute.xlu0 %12332
      %12334 = vrot.lane.b32.xlu0 %v11999, 8
      %v12335 = vpop.permute.xlu0 %12334
      %12336 = vrot.lane.b32.xlu0 %v12000, 8
      %v12337 = vpop.permute.xlu0 %12336
      %12338 = vrot.lane.b32.xlu0 %v12001, 8
      %v12339 = vpop.permute.xlu0 %12338
      %12340 = vrot.lane.b32.xlu0 %v12002, 8
      %v12341 = vpop.permute.xlu0 %12340
      %12342 = vrot.lane.b32.xlu0 %v12003, 8
      %v12343 = vpop.permute.xlu0 %12342
      %12344 = vrot.lane.b32.xlu0 %v12004, 8
      %v12345 = vpop.permute.xlu0 %12344
      %12346 = vrot.lane.b32.xlu0 %v12005, 8
      %v12347 = vpop.permute.xlu0 %12346
      %12348 = vrot.lane.b32.xlu0 %v12006, 8
      %v12349 = vpop.permute.xlu0 %12348
      %12350 = vrot.lane.b32.xlu0 %v12007, 8
      %v12351 = vpop.permute.xlu0 %12350
      %12352 = vrot.lane.b32.xlu0 %v12008, 8
      %v12353 = vpop.permute.xlu0 %12352
      %12354 = vrot.lane.b32.xlu0 %v12009, 8
      %v12355 = vpop.permute.xlu0 %12354
      %12356 = vrot.lane.b32.xlu0 %v12010, 8
      %v12357 = vpop.permute.xlu0 %12356
      %12358 = vrot.lane.b32.xlu0 %v12011, 8
      %v12359 = vpop.permute.xlu0 %12358
      %12360 = vrot.lane.b32.xlu0 %v12012, 8
      %v12361 = vpop.permute.xlu0 %12360
      %12362 = vrot.lane.b32.xlu0 %v12013, 8
      %v12363 = vpop.permute.xlu0 %12362
      %12364 = vrot.lane.b32.xlu0 %v12014, 8
      %v12365 = vpop.permute.xlu0 %12364
      %12366 = vrot.lane.b32.xlu0 %v12015, 8
      %v12367 = vpop.permute.xlu0 %12366
      %12368 = vrot.lane.b32.xlu0 %v12016, 8
      %v12369 = vpop.permute.xlu0 %12368
      %12370 = vrot.lane.b32.xlu0 %v12017, 8
      %v12371 = vpop.permute.xlu0 %12370
      %12372 = vrot.lane.b32.xlu0 %v12018, 8
      %v12373 = vpop.permute.xlu0 %12372
      %12374 = vrot.lane.b32.xlu0 %v12019, 8
      %v12375 = vpop.permute.xlu0 %12374
      %12376 = vrot.lane.b32.xlu0 %v12020, 8
      %v12377 = vpop.permute.xlu0 %12376
      %12378 = vrot.lane.b32.xlu0 %v12021, 8
      %v12379 = vpop.permute.xlu0 %12378
      %12380 = vrot.lane.b32.xlu0 %v12022, 8
      %v12381 = vpop.permute.xlu0 %12380
      %12382 = vrot.lane.b32.xlu0 %v12023, 8
      %v12383 = vpop.permute.xlu0 %12382
      %12384 = vrot.lane.b32.xlu0 %v12024, 8
      %v12385 = vpop.permute.xlu0 %12384
      %12386 = vrot.lane.b32.xlu0 %v12025, 8
      %v12387 = vpop.permute.xlu0 %12386
      %12388 = vrot.lane.b32.xlu0 %v12026, 8
      %v12389 = vpop.permute.xlu0 %12388
      %12390 = vrot.lane.b32.xlu0 %v12027, 8
      %v12391 = vpop.permute.xlu0 %12390
      %12392 = vrot.lane.b32.xlu0 %v12028, 8
      %v12393 = vpop.permute.xlu0 %12392
      %12394 = vrot.lane.b32.xlu0 %v12029, 8
      %v12395 = vpop.permute.xlu0 %12394
      %12396 = vrot.lane.b32.xlu0 %v12030, 8
      %v12397 = vpop.permute.xlu0 %12396
      %12398 = vrot.lane.b32.xlu0 %v12031, 8
      %v12399 = vpop.permute.xlu0 %12398
      %12400 = vrot.lane.b32.xlu0 %v12032, 8
      %v12401 = vpop.permute.xlu0 %12400
      %12402 = vrot.lane.b32.xlu0 %v12033, 8
      %v12403 = vpop.permute.xlu0 %12402
      %12404 = vrot.lane.b32.xlu0 %v12034, 8
      %v12405 = vpop.permute.xlu0 %12404
      %12406 = vrot.lane.b32.xlu0 %v12035, 8
      %v12407 = vpop.permute.xlu0 %12406
      %12408 = vrot.lane.b32.xlu0 %v12036, 8
      %v12409 = vpop.permute.xlu0 %12408
      %12410 = vrot.lane.b32.xlu0 %v12037, 8
      %v12411 = vpop.permute.xlu0 %12410
      %12412 = vrot.lane.b32.xlu0 %v12038, 8
      %v12413 = vpop.permute.xlu0 %12412
      %12414 = vrot.lane.b32.xlu0 %v12039, 8
      %v12415 = vpop.permute.xlu0 %12414
      %12416 = vrot.lane.b32.xlu0 %v12040, 8
      %v12417 = vpop.permute.xlu0 %12416
      %12418 = vrot.lane.b32.xlu0 %v12041, 8
      %v12419 = vpop.permute.xlu0 %12418
      %12420 = vrot.lane.b32.xlu0 %v12042, 8
      %v12421 = vpop.permute.xlu0 %12420
      %12422 = vrot.lane.b32.xlu0 %v12043, 8
      %v12423 = vpop.permute.xlu0 %12422
      %12424 = vrot.lane.b32.xlu0 %v12044, 8
      %v12425 = vpop.permute.xlu0 %12424
      %12426 = vrot.lane.b32.xlu0 %v12045, 8
      %v12427 = vpop.permute.xlu0 %12426
      %12428 = vrot.lane.b32.xlu0 %v12046, 8
      %v12429 = vpop.permute.xlu0 %12428
      %12430 = vrot.lane.b32.xlu0 %v12047, 8
      %v12431 = vpop.permute.xlu0 %12430
      %v12434 = vsel %vm6244, %v11725, %v12113
      %v12437 = vsel %vm6244, %v11726, %v12115
      %v12440 = vsel %vm6244, %v11727, %v12117
      %v12443 = vsel %vm6244, %v11728, %v12119
      %v12446 = vsel %vm6244, %v11729, %v12121
      %v12449 = vsel %vm6244, %v11730, %v12123
      %v12452 = vsel %vm6244, %v11731, %v12125
      %v12455 = vsel %vm6244, %v11732, %v12127
      %v12458 = vsel %vm6244, %v11733, %v12129
      %v12461 = vsel %vm6244, %v11734, %v12131
      %v12464 = vsel %vm6244, %v11735, %v12133
      %v12467 = vsel %vm6244, %v11736, %v12135
      %v12470 = vsel %vm6244, %v11737, %v12137
      %v12473 = vsel %vm6244, %v11738, %v12139
      %v12476 = vsel %vm6244, %v11739, %v12141
      %v12479 = vsel %vm6244, %v11740, %v12143
      %v12482 = vsel %vm6244, %v11741, %v12145
      %v12485 = vsel %vm6244, %v11742, %v12147
      %v12488 = vsel %vm6244, %v11743, %v12149
      %v12491 = vsel %vm6244, %v11744, %v12151
      %v12494 = vsel %vm6244, %v11745, %v12153
      %v12497 = vsel %vm6244, %v11746, %v12155
      %v12500 = vsel %vm6244, %v11747, %v12157
      %v12503 = vsel %vm6244, %v11748, %v12159
      %v12506 = vsel %vm6244, %v11749, %v12161
      %v12509 = vsel %vm6244, %v11750, %v12163
      %v12512 = vsel %vm6244, %v11751, %v12165
      %v12515 = vsel %vm6244, %v11752, %v12167
      %v12518 = vsel %vm6244, %v11753, %v12169
      %v12521 = vsel %vm6244, %v11754, %v12171
      %v12524 = vsel %vm6244, %v11755, %v12173
      %v12527 = vsel %vm6244, %v11756, %v12175
      %v12530 = vsel %vm6244, %v11757, %v12177
      %v12533 = vsel %vm6244, %v11758, %v12179
      %v12536 = vsel %vm6244, %v11759, %v12181
      %v12539 = vsel %vm6244, %v11760, %v12183
      %v12542 = vsel %vm6244, %v11761, %v12185
      %v12545 = vsel %vm6244, %v11762, %v12187
      %v12548 = vsel %vm6244, %v11763, %v12189
      %v12551 = vsel %vm6244, %v11764, %v12191
      %v12554 = vsel %vm6244, %v11765, %v12193
      %v12557 = vsel %vm6244, %v11766, %v12195
      %v12560 = vsel %vm6244, %v11767, %v12197
      %v12563 = vsel %vm6244, %v11768, %v12199
      %v12566 = vsel %vm6244, %v11769, %v12201
      %v12569 = vsel %vm6244, %v11770, %v12203
      %v12572 = vsel %vm6244, %v11771, %v12205
      %v12575 = vsel %vm6244, %v11772, %v12207
      %v12578 = vsel %vm6244, %v11773, %v12209
      %v12581 = vsel %vm6244, %v11774, %v12211
      %v12584 = vsel %vm6244, %v11775, %v12213
      %v12587 = vsel %vm6244, %v11776, %v12215
      %v12590 = vsel %vm6244, %v11777, %v12217
      %v12593 = vsel %vm6244, %v11778, %v12219
      %v12596 = vsel %vm6244, %v11779, %v12221
      %v12599 = vsel %vm6244, %v11780, %v12223
      %v12602 = vsel %vm6244, %v11781, %v12225
      %v12605 = vsel %vm6244, %v11782, %v12227
      %v12608 = vsel %vm6244, %v11783, %v12229
      %v12611 = vsel %vm6244, %v11784, %v12231
      %v12614 = vsel %vm6244, %v11785, %v12233
      %v12617 = vsel %vm6244, %v11786, %v12235
      %v12620 = vsel %vm6244, %v11787, %v12237
      %v12623 = vsel %vm6244, %v11788, %v12239
      %v12625 = vsel %vm522, %v12434, %v12305
      %v12627 = vsel %vm522, %v12437, %v12307
      %v12629 = vsel %vm522, %v12440, %v12309
      %v12631 = vsel %vm522, %v12443, %v12311
      %v12633 = vsel %vm522, %v12446, %v12313
      %v12635 = vsel %vm522, %v12449, %v12315
      %v12637 = vsel %vm522, %v12452, %v12317
      %v12639 = vsel %vm522, %v12455, %v12319
      %v12641 = vsel %vm522, %v12458, %v12321
      %v12643 = vsel %vm522, %v12461, %v12323
      %v12645 = vsel %vm522, %v12464, %v12325
      %v12647 = vsel %vm522, %v12467, %v12327
      %v12649 = vsel %vm522, %v12470, %v12329
      %v12651 = vsel %vm522, %v12473, %v12331
      %v12653 = vsel %vm522, %v12476, %v12333
      %v12655 = vsel %vm522, %v12479, %v12335
      %v12657 = vsel %vm522, %v12482, %v12337
      %v12659 = vsel %vm522, %v12485, %v12339
      %v12661 = vsel %vm522, %v12488, %v12341
      %v12663 = vsel %vm522, %v12491, %v12343
      %v12665 = vsel %vm522, %v12494, %v12345
      %v12667 = vsel %vm522, %v12497, %v12347
      %v12669 = vsel %vm522, %v12500, %v12349
      %v12671 = vsel %vm522, %v12503, %v12351
      %v12673 = vsel %vm522, %v12506, %v12353
      %v12675 = vsel %vm522, %v12509, %v12355
      %v12677 = vsel %vm522, %v12512, %v12357
      %v12679 = vsel %vm522, %v12515, %v12359
      %v12681 = vsel %vm522, %v12518, %v12361
      %v12683 = vsel %vm522, %v12521, %v12363
      %v12685 = vsel %vm522, %v12524, %v12365
      %v12687 = vsel %vm522, %v12527, %v12367
      %v12689 = vsel %vm522, %v12530, %v12369
      %v12691 = vsel %vm522, %v12533, %v12371
      %v12693 = vsel %vm522, %v12536, %v12373
      %v12695 = vsel %vm522, %v12539, %v12375
      %v12697 = vsel %vm522, %v12542, %v12377
      %v12699 = vsel %vm522, %v12545, %v12379
      %v12701 = vsel %vm522, %v12548, %v12381
      %v12703 = vsel %vm522, %v12551, %v12383
      %v12705 = vsel %vm522, %v12554, %v12385
      %v12707 = vsel %vm522, %v12557, %v12387
      %v12709 = vsel %vm522, %v12560, %v12389
      %v12711 = vsel %vm522, %v12563, %v12391
      %v12713 = vsel %vm522, %v12566, %v12393
      %v12715 = vsel %vm522, %v12569, %v12395
      %v12717 = vsel %vm522, %v12572, %v12397
      %v12719 = vsel %vm522, %v12575, %v12399
      %v12721 = vsel %vm522, %v12578, %v12401
      %v12723 = vsel %vm522, %v12581, %v12403
      %v12725 = vsel %vm522, %v12584, %v12405
      %v12727 = vsel %vm522, %v12587, %v12407
      %v12729 = vsel %vm522, %v12590, %v12409
      %v12731 = vsel %vm522, %v12593, %v12411
      %v12733 = vsel %vm522, %v12596, %v12413
      %v12735 = vsel %vm522, %v12599, %v12415
      %v12737 = vsel %vm522, %v12602, %v12417
      %v12739 = vsel %vm522, %v12605, %v12419
      %v12741 = vsel %vm522, %v12608, %v12421
      %v12743 = vsel %vm522, %v12611, %v12423
      %v12745 = vsel %vm522, %v12614, %v12425
      %v12747 = vsel %vm522, %v12617, %v12427
      %v12749 = vsel %vm522, %v12620, %v12429
      %v12751 = vsel %vm522, %v12623, %v12431
      %v12752 = vld [vmem:[%s7] sm:$0xf]
      %v12753 = vld [vmem:[%s7 + $0x4] sm:$0x3]
      %v12754 = vld [vmem:[%s8] sm:$0x1]
      %v12756 = vlaneseq
      %v12757 = vshrl.u32 %v12756, 7
      %v12758 = vsub.s32 0, %v12757
      %v12759 = vrot.slane %v12754, %v12758
      %v12825 = vunpack.c.l.b16 %v12625
      %v12826 = vunpack.c.l.b16 %v12627
      %v12827 = vunpack.c.l.b16 %v12629
      %v12828 = vunpack.c.l.b16 %v12631
      %v12829 = vunpack.c.l.b16 %v12633
      %v12830 = vunpack.c.l.b16 %v12635
      %v12831 = vunpack.c.l.b16 %v12637
      %v12832 = vunpack.c.l.b16 %v12639
      %v12833 = vunpack.c.l.b16 %v12641
      %v12834 = vunpack.c.l.b16 %v12643
      %v12835 = vunpack.c.l.b16 %v12645
      %v12836 = vunpack.c.l.b16 %v12647
      %v12837 = vunpack.c.l.b16 %v12649
      %v12838 = vunpack.c.l.b16 %v12651
      %v12839 = vunpack.c.l.b16 %v12653
      %v12840 = vunpack.c.l.b16 %v12655
      %v12841 = vunpack.c.l.b16 %v12657
      %v12842 = vunpack.c.l.b16 %v12659
      %v12843 = vunpack.c.l.b16 %v12661
      %v12844 = vunpack.c.l.b16 %v12663
      %v12845 = vunpack.c.l.b16 %v12665
      %v12846 = vunpack.c.l.b16 %v12667
      %v12847 = vunpack.c.l.b16 %v12669
      %v12848 = vunpack.c.l.b16 %v12671
      %v12849 = vunpack.c.l.b16 %v12673
      %v12850 = vunpack.c.l.b16 %v12675
      %v12851 = vunpack.c.l.b16 %v12677
      %v12852 = vunpack.c.l.b16 %v12679
      %v12853 = vunpack.c.l.b16 %v12681
      %v12854 = vunpack.c.l.b16 %v12683
      %v12855 = vunpack.c.l.b16 %v12685
      %v12856 = vunpack.c.l.b16 %v12687
      %v12857 = vunpack.c.l.b16 %v12689
      %v12858 = vunpack.c.l.b16 %v12691
      %v12859 = vunpack.c.l.b16 %v12693
      %v12860 = vunpack.c.l.b16 %v12695
      %v12861 = vunpack.c.l.b16 %v12697
      %v12862 = vunpack.c.l.b16 %v12699
      %v12863 = vunpack.c.l.b16 %v12701
      %v12864 = vunpack.c.l.b16 %v12703
      %v12865 = vunpack.c.l.b16 %v12705
      %v12866 = vunpack.c.l.b16 %v12707
      %v12867 = vunpack.c.l.b16 %v12709
      %v12868 = vunpack.c.l.b16 %v12711
      %v12869 = vunpack.c.l.b16 %v12713
      %v12870 = vunpack.c.l.b16 %v12715
      %v12871 = vunpack.c.l.b16 %v12717
      %v12872 = vunpack.c.l.b16 %v12719
      %v12873 = vunpack.c.l.b16 %v12721
      %v12874 = vunpack.c.l.b16 %v12723
      %v12875 = vunpack.c.l.b16 %v12725
      %v12876 = vunpack.c.l.b16 %v12727
      %v12877 = vunpack.c.l.b16 %v12729
      %v12878 = vunpack.c.l.b16 %v12731
      %v12879 = vunpack.c.l.b16 %v12733
      %v12880 = vunpack.c.l.b16 %v12735
      %v12881 = vunpack.c.l.b16 %v12737
      %v12882 = vunpack.c.l.b16 %v12739
      %v12883 = vunpack.c.l.b16 %v12741
      %v12884 = vunpack.c.l.b16 %v12743
      %v12885 = vunpack.c.l.b16 %v12745
      %v12886 = vunpack.c.l.b16 %v12747
      %v12887 = vunpack.c.l.b16 %v12749
      %v12888 = vunpack.c.l.b16 %v12751
      %v12889 = vpack.c.b16 %v12826, %v12825
      %v12890 = vpack.c.b16 %v12828, %v12827
      %v12891 = vpack.c.b16 %v12830, %v12829
      %v12892 = vpack.c.b16 %v12832, %v12831
      %v12893 = vpack.c.b16 %v12834, %v12833
      %v12894 = vpack.c.b16 %v12836, %v12835
      %v12895 = vpack.c.b16 %v12838, %v12837
      %v12896 = vpack.c.b16 %v12840, %v12839
      %v12897 = vpack.c.b16 %v12842, %v12841
      %v12898 = vpack.c.b16 %v12844, %v12843
      %v12899 = vpack.c.b16 %v12846, %v12845
      %v12900 = vpack.c.b16 %v12848, %v12847
      %v12901 = vpack.c.b16 %v12850, %v12849
      %v12902 = vpack.c.b16 %v12852, %v12851
      %v12903 = vpack.c.b16 %v12854, %v12853
      %v12904 = vpack.c.b16 %v12856, %v12855
      %v12905 = vpack.c.b16 %v12858, %v12857
      %v12906 = vpack.c.b16 %v12860, %v12859
      %v12907 = vpack.c.b16 %v12862, %v12861
      %v12908 = vpack.c.b16 %v12864, %v12863
      %v12909 = vpack.c.b16 %v12866, %v12865
      %v12910 = vpack.c.b16 %v12868, %v12867
      %v12911 = vpack.c.b16 %v12870, %v12869
      %v12912 = vpack.c.b16 %v12872, %v12871
      %v12913 = vpack.c.b16 %v12874, %v12873
      %v12914 = vpack.c.b16 %v12876, %v12875
      %v12915 = vpack.c.b16 %v12878, %v12877
      %v12916 = vpack.c.b16 %v12880, %v12879
      %v12917 = vpack.c.b16 %v12882, %v12881
      %v12918 = vpack.c.b16 %v12884, %v12883
      %v12919 = vpack.c.b16 %v12886, %v12885
      %v12920 = vpack.c.b16 %v12888, %v12887
      %v12923 = vunpack.c.l.b16 %v12752
      %v12924 = vunpack.c.l.b16 %v12753
      %v12925 = vpack.c.b16 %v12924, %v12923
      %v12927 = vsel %vm6627, %v12889, 0
      %v12930 = vsel %vm6627, %v12890, 0
      %v12933 = vsel %vm6627, %v12891, 0
      %v12936 = vsel %vm6627, %v12892, 0
      %v12939 = vsel %vm6627, %v12893, 0
      %v12942 = vsel %vm6627, %v12894, 0
      %v12945 = vsel %vm6627, %v12895, 0
      %v12948 = vsel %vm6627, %v12896, 0
      %v12951 = vsel %vm6627, %v12897, 0
      %v12954 = vsel %vm6627, %v12898, 0
      %v12957 = vsel %vm6627, %v12899, 0
      %v12960 = vsel %vm6627, %v12900, 0
      %v12963 = vsel %vm6627, %v12901, 0
      %v12966 = vsel %vm6627, %v12902, 0
      %v12969 = vsel %vm6627, %v12903, 0
      %v12972 = vsel %vm6627, %v12904, 0
      %v12975 = vsel %vm6627, %v12905, 0
      %v12978 = vsel %vm6627, %v12906, 0
      %v12981 = vsel %vm6627, %v12907, 0
      %v12984 = vsel %vm6627, %v12908, 0
      %v12987 = vsel %vm6627, %v12909, 0
      %v12990 = vsel %vm6627, %v12910, 0
      %v12993 = vsel %vm6627, %v12911, 0
      %v12996 = vsel %vm6627, %v12912, 0
      %v12999 = vsel %vm6627, %v12913, 0
      %v13002 = vsel %vm6627, %v12914, 0
      %v13005 = vsel %vm6627, %v12915, 0
      %v13008 = vsel %vm6627, %v12916, 0
      %v13011 = vsel %vm6627, %v12917, 0
      %v13014 = vsel %vm6627, %v12918, 0
      %v13017 = vsel %vm6627, %v12919, 0
      %v13020 = vsel %vm6627, %v12920, 0
      %vm13022 = vcmask 1045504
      %v13024 = vsel %vm13022, %v12925, 0
      %13026 = vmatprep.subr.bf16.mxu0 0
      %13027 = vmatpush1.bf16.msra.mxu0 %v13024
      %13028 = vmatprep.subr.bf16.mxu0 0
      %13029 = vmatpush1.bf16.msra.mxu0 0
      %13030 = vmatprep.subr.bf16.mxu0 0
      %13031 = vmatpush1.bf16.msra.mxu0 0
      %13032 = vmatprep.subr.bf16.mxu0 0
      %13033 = vmatpush1.bf16.msra.mxu0 0
      %13034 = vmatprep.subr.bf16.mxu0 0
      %13035 = vmatpush1.bf16.msra.mxu0 0
      %13036 = vmatprep.subr.bf16.mxu0 0
      %13037 = vmatpush1.bf16.msra.mxu0 0
      %13038 = vmatprep.subr.bf16.mxu0 0
      %13039 = vmatpush1.bf16.msra.mxu0 0
      %13040 = vmatprep.subr.bf16.mxu0 0
      %13041 = vmatpush1.bf16.msra.mxu0 0
      %13042 = vmatprep.subr.bf16.mxu0 0
      %13043 = vmatpush1.bf16.msra.mxu0 0
      %13044 = vmatprep.subr.bf16.mxu0 0
      %13045 = vmatpush1.bf16.msra.mxu0 0
      %13046 = vmatprep.subr.bf16.mxu0 0
      %13047 = vmatpush1.bf16.msra.mxu0 0
      %13048 = vmatprep.subr.bf16.mxu0 0
      %13049 = vmatpush1.bf16.msra.mxu0 0
      %13050 = vmatprep.subr.bf16.mxu0 0
      %13051 = vmatpush1.bf16.msra.mxu0 0
      %13052 = vmatprep.subr.bf16.mxu0 0
      %13053 = vmatpush1.bf16.msra.mxu0 0
      %13054 = vmatprep.subr.bf16.mxu0 0
      %13055 = vmatpush1.bf16.msra.mxu0 0
      %13056 = vmatprep.subr.bf16.mxu0 0
      %13057 = vmatpush1.bf16.msra.mxu0 0
      %13058 = vmatprep.mubr.bf16.mxu0 0
      %13059 = vmatmul.mubr.bf16.gmra.mrb[0].mxu0 %v12927
      %v13060 = vpop.f32.mrb[0].mxu0
      %v13061 = vadd.f32 %v12759, %v13060
      %v13062 = vpop.f32.mrb[0].mxu0
      %v13063 = vpop.f32.mrb[0].mxu0
      %v13064 = vadd.f32 %v12759, %v13063
      %v13065 = vpop.f32.mrb[0].mxu0
      %13066 = vmatprep.mubr.bf16.mxu0 0
      %13067 = vmatmul.mubr.bf16.gmra.mrb[0].mxu0 %v12930
      %v13068 = vpop.f32.mrb[0].mxu0
      %v13069 = vadd.f32 %v12759, %v13068
      %v13070 = vpop.f32.mrb[0].mxu0
      %v13071 = vpop.f32.mrb[0].mxu0
      %v13072 = vadd.f32 %v12759, %v13071
      %v13073 = vpop.f32.mrb[0].mxu0
      %13074 = vmatprep.mubr.bf16.mxu0 0
      %13075 = vmatmul.mubr.bf16.gmra.mrb[0].mxu0 %v12933
      %v13076 = vpop.f32.mrb[0].mxu0
      %v13077 = vadd.f32 %v12759, %v13076
      %v13078 = vpop.f32.mrb[0].mxu0
      %v13079 = vpop.f32.mrb[0].mxu0
      %v13080 = vadd.f32 %v12759, %v13079
      %v13081 = vpop.f32.mrb[0].mxu0
      %13082 = vmatprep.mubr.bf16.mxu0 0
      %13083 = vmatmul.mubr.bf16.gmra.mrb[0].mxu0 %v12936
      %v13084 = vpop.f32.mrb[0].mxu0
      %v13085 = vadd.f32 %v12759, %v13084
      %v13086 = vpop.f32.mrb[0].mxu0
      %v13087 = vpop.f32.mrb[0].mxu0
      %v13088 = vadd.f32 %v12759, %v13087
      %v13089 = vpop.f32.mrb[0].mxu0
      %13090 = vmatprep.mubr.bf16.mxu0 0
      %13091 = vmatmul.mubr.bf16.gmra.mrb[0].mxu0 %v12939
      %v13092 = vpop.f32.mrb[0].mxu0
      %v13093 = vadd.f32 %v12759, %v13092
      %v13094 = vpop.f32.mrb[0].mxu0
      %v13095 = vpop.f32.mrb[0].mxu0
      %v13096 = vadd.f32 %v12759, %v13095
      %v13097 = vpop.f32.mrb[0].mxu0
      %13098 = vmatprep.mubr.bf16.mxu0 0
      %13099 = vmatmul.mubr.bf16.gmra.mrb[0].mxu0 %v12942
      %v13100 = vpop.f32.mrb[0].mxu0
      %v13101 = vadd.f32 %v12759, %v13100
      %v13102 = vpop.f32.mrb[0].mxu0
      %v13103 = vpop.f32.mrb[0].mxu0
      %v13104 = vadd.f32 %v12759, %v13103
      %v13105 = vpop.f32.mrb[0].mxu0
      %13106 = vmatprep.mubr.bf16.mxu0 0
      %13107 = vmatmul.mubr.bf16.gmra.mrb[0].mxu0 %v12945
      %v13108 = vpop.f32.mrb[0].mxu0
      %v13109 = vadd.f32 %v12759, %v13108
      %v13110 = vpop.f32.mrb[0].mxu0
      %v13111 = vpop.f32.mrb[0].mxu0
      %v13112 = vadd.f32 %v12759, %v13111
      %v13113 = vpop.f32.mrb[0].mxu0
      %13114 = vmatprep.mubr.bf16.mxu0 0
      %13115 = vmatmul.mubr.bf16.gmra.mrb[0].mxu0 %v12948
      %v13116 = vpop.f32.mrb[0].mxu0
      %v13117 = vadd.f32 %v12759, %v13116
      %v13118 = vpop.f32.mrb[0].mxu0
      %v13119 = vpop.f32.mrb[0].mxu0
      %v13120 = vadd.f32 %v12759, %v13119
      %v13121 = vpop.f32.mrb[0].mxu0
      %13122 = vmatprep.mubr.bf16.mxu0 0
      %13123 = vmatmul.mubr.bf16.gmra.mrb[0].mxu0 %v12951
      %v13124 = vpop.f32.mrb[0].mxu0
      %v13125 = vadd.f32 %v12759, %v13124
      %v13126 = vpop.f32.mrb[0].mxu0
      %v13127 = vpop.f32.mrb[0].mxu0
      %v13128 = vadd.f32 %v12759, %v13127
      %v13129 = vpop.f32.mrb[0].mxu0
      %13130 = vmatprep.mubr.bf16.mxu0 0
      %13131 = vmatmul.mubr.bf16.gmra.mrb[0].mxu0 %v12954
      %v13132 = vpop.f32.mrb[0].mxu0
      %v13133 = vadd.f32 %v12759, %v13132
      %v13134 = vpop.f32.mrb[0].mxu0
      %v13135 = vpop.f32.mrb[0].mxu0
      %v13136 = vadd.f32 %v12759, %v13135
      %v13137 = vpop.f32.mrb[0].mxu0
      %13138 = vmatprep.mubr.bf16.mxu0 0
      %13139 = vmatmul.mubr.bf16.gmra.mrb[0].mxu0 %v12957
      %v13140 = vpop.f32.mrb[0].mxu0
      %v13141 = vadd.f32 %v12759, %v13140
      %v13142 = vpop.f32.mrb[0].mxu0
      %v13143 = vpop.f32.mrb[0].mxu0
      %v13144 = vadd.f32 %v12759, %v13143
      %v13145 = vpop.f32.mrb[0].mxu0
      %13146 = vmatprep.mubr.bf16.mxu0 0
      %13147 = vmatmul.mubr.bf16.gmra.mrb[0].mxu0 %v12960
      %v13148 = vpop.f32.mrb[0].mxu0
      %v13149 = vadd.f32 %v12759, %v13148
      %v13150 = vpop.f32.mrb[0].mxu0
      %v13151 = vpop.f32.mrb[0].mxu0
      %v13152 = vadd.f32 %v12759, %v13151
      %v13153 = vpop.f32.mrb[0].mxu0
      %13154 = vmatprep.mubr.bf16.mxu0 0
      %13155 = vmatmul.mubr.bf16.gmra.mrb[0].mxu0 %v12963
      %v13156 = vpop.f32.mrb[0].mxu0
      %v13157 = vadd.f32 %v12759, %v13156
      %v13158 = vpop.f32.mrb[0].mxu0
      %v13159 = vpop.f32.mrb[0].mxu0
      %v13160 = vadd.f32 %v12759, %v13159
      %v13161 = vpop.f32.mrb[0].mxu0
      %13162 = vmatprep.mubr.bf16.mxu0 0
      %13163 = vmatmul.mubr.bf16.gmra.mrb[0].mxu0 %v12966
      %v13164 = vpop.f32.mrb[0].mxu0
      %v13165 = vadd.f32 %v12759, %v13164
      %v13166 = vpop.f32.mrb[0].mxu0
      %v13167 = vpop.f32.mrb[0].mxu0
      %v13168 = vadd.f32 %v12759, %v13167
      %v13169 = vpop.f32.mrb[0].mxu0
      %13170 = vmatprep.mubr.bf16.mxu0 0
      %13171 = vmatmul.mubr.bf16.gmra.mrb[0].mxu0 %v12969
      %v13172 = vpop.f32.mrb[0].mxu0
      %v13173 = vadd.f32 %v12759, %v13172
      %v13174 = vpop.f32.mrb[0].mxu0
      %v13175 = vpop.f32.mrb[0].mxu0
      %v13176 = vadd.f32 %v12759, %v13175
      %v13177 = vpop.f32.mrb[0].mxu0
      %13178 = vmatprep.mubr.bf16.mxu0 0
      %13179 = vmatmul.mubr.bf16.gmra.mrb[0].mxu0 %v12972
      %v13180 = vpop.f32.mrb[0].mxu0
      %v13181 = vadd.f32 %v12759, %v13180
      %v13182 = vpop.f32.mrb[0].mxu0
      %v13183 = vpop.f32.mrb[0].mxu0
      %v13184 = vadd.f32 %v12759, %v13183
      %v13185 = vpop.f32.mrb[0].mxu0
      %13186 = vmatprep.mubr.bf16.mxu0 0
      %13187 = vmatmul.mubr.bf16.gmra.mrb[0].mxu0 %v12975
      %v13188 = vpop.f32.mrb[0].mxu0
      %v13189 = vadd.f32 %v12759, %v13188
      %v13190 = vpop.f32.mrb[0].mxu0
      %v13191 = vpop.f32.mrb[0].mxu0
      %v13192 = vadd.f32 %v12759, %v13191
      %v13193 = vpop.f32.mrb[0].mxu0
      %13194 = vmatprep.mubr.bf16.mxu0 0
      %13195 = vmatmul.mubr.bf16.gmra.mrb[0].mxu0 %v12978
      %v13196 = vpop.f32.mrb[0].mxu0
      %v13197 = vadd.f32 %v12759, %v13196
      %v13198 = vpop.f32.mrb[0].mxu0
      %v13199 = vpop.f32.mrb[0].mxu0
      %v13200 = vadd.f32 %v12759, %v13199
      %v13201 = vpop.f32.mrb[0].mxu0
      %13202 = vmatprep.mubr.bf16.mxu0 0
      %13203 = vmatmul.mubr.bf16.gmra.mrb[0].mxu0 %v12981
      %v13204 = vpop.f32.mrb[0].mxu0
      %v13205 = vadd.f32 %v12759, %v13204
      %v13206 = vpop.f32.mrb[0].mxu0
      %v13207 = vpop.f32.mrb[0].mxu0
      %v13208 = vadd.f32 %v12759, %v13207
      %v13209 = vpop.f32.mrb[0].mxu0
      %13210 = vmatprep.mubr.bf16.mxu0 0
      %13211 = vmatmul.mubr.bf16.gmra.mrb[0].mxu0 %v12984
      %v13212 = vpop.f32.mrb[0].mxu0
      %v13213 = vadd.f32 %v12759, %v13212
      %v13214 = vpop.f32.mrb[0].mxu0
      %v13215 = vpop.f32.mrb[0].mxu0
      %v13216 = vadd.f32 %v12759, %v13215
      %v13217 = vpop.f32.mrb[0].mxu0
      %13218 = vmatprep.mubr.bf16.mxu0 0
      %13219 = vmatmul.mubr.bf16.gmra.mrb[0].mxu0 %v12987
      %v13220 = vpop.f32.mrb[0].mxu0
      %v13221 = vadd.f32 %v12759, %v13220
      %v13222 = vpop.f32.mrb[0].mxu0
      %v13223 = vpop.f32.mrb[0].mxu0
      %v13224 = vadd.f32 %v12759, %v13223
      %v13225 = vpop.f32.mrb[0].mxu0
      %13226 = vmatprep.mubr.bf16.mxu0 0
      %13227 = vmatmul.mubr.bf16.gmra.mrb[0].mxu0 %v12990
      %v13228 = vpop.f32.mrb[0].mxu0
      %v13229 = vadd.f32 %v12759, %v13228
      %v13230 = vpop.f32.mrb[0].mxu0
      %v13231 = vpop.f32.mrb[0].mxu0
      %v13232 = vadd.f32 %v12759, %v13231
      %v13233 = vpop.f32.mrb[0].mxu0
      %13234 = vmatprep.mubr.bf16.mxu0 0
      %13235 = vmatmul.mubr.bf16.gmra.mrb[0].mxu0 %v12993
      %v13236 = vpop.f32.mrb[0].mxu0
      %v13237 = vadd.f32 %v12759, %v13236
      %v13238 = vpop.f32.mrb[0].mxu0
      %v13239 = vpop.f32.mrb[0].mxu0
      %v13240 = vadd.f32 %v12759, %v13239
      %v13241 = vpop.f32.mrb[0].mxu0
      %13242 = vmatprep.mubr.bf16.mxu0 0
      %13243 = vmatmul.mubr.bf16.gmra.mrb[0].mxu0 %v12996
      %v13244 = vpop.f32.mrb[0].mxu0
      %v13245 = vadd.f32 %v12759, %v13244
      %v13246 = vpop.f32.mrb[0].mxu0
      %v13247 = vpop.f32.mrb[0].mxu0
      %v13248 = vadd.f32 %v12759, %v13247
      %v13249 = vpop.f32.mrb[0].mxu0
      %13250 = vmatprep.mubr.bf16.mxu0 0
      %13251 = vmatmul.mubr.bf16.gmra.mrb[0].mxu0 %v12999
      %v13252 = vpop.f32.mrb[0].mxu0
      %v13253 = vadd.f32 %v12759, %v13252
      %v13254 = vpop.f32.mrb[0].mxu0
      %v13255 = vpop.f32.mrb[0].mxu0
      %v13256 = vadd.f32 %v12759, %v13255
      %v13257 = vpop.f32.mrb[0].mxu0
      %13258 = vmatprep.mubr.bf16.mxu0 0
      %13259 = vmatmul.mubr.bf16.gmra.mrb[0].mxu0 %v13002
      %v13260 = vpop.f32.mrb[0].mxu0
      %v13261 = vadd.f32 %v12759, %v13260
      %v13262 = vpop.f32.mrb[0].mxu0
      %v13263 = vpop.f32.mrb[0].mxu0
      %v13264 = vadd.f32 %v12759, %v13263
      %v13265 = vpop.f32.mrb[0].mxu0
      %13266 = vmatprep.mubr.bf16.mxu0 0
      %13267 = vmatmul.mubr.bf16.gmra.mrb[0].mxu0 %v13005
      %v13268 = vpop.f32.mrb[0].mxu0
      %v13269 = vadd.f32 %v12759, %v13268
      %v13270 = vpop.f32.mrb[0].mxu0
      %v13271 = vpop.f32.mrb[0].mxu0
      %v13272 = vadd.f32 %v12759, %v13271
      %v13273 = vpop.f32.mrb[0].mxu0
      %13274 = vmatprep.mubr.bf16.mxu0 0
      %13275 = vmatmul.mubr.bf16.gmra.mrb[0].mxu0 %v13008
      %v13276 = vpop.f32.mrb[0].mxu0
      %v13277 = vadd.f32 %v12759, %v13276
      %v13278 = vpop.f32.mrb[0].mxu0
      %v13279 = vpop.f32.mrb[0].mxu0
      %v13280 = vadd.f32 %v12759, %v13279
      %v13281 = vpop.f32.mrb[0].mxu0
      %13282 = vmatprep.mubr.bf16.mxu0 0
      %13283 = vmatmul.mubr.bf16.gmra.mrb[0].mxu0 %v13011
      %v13284 = vpop.f32.mrb[0].mxu0
      %v13285 = vadd.f32 %v12759, %v13284
      %v13286 = vpop.f32.mrb[0].mxu0
      %v13287 = vpop.f32.mrb[0].mxu0
      %v13288 = vadd.f32 %v12759, %v13287
      %v13289 = vpop.f32.mrb[0].mxu0
      %13290 = vmatprep.mubr.bf16.mxu0 0
      %13291 = vmatmul.mubr.bf16.gmra.mrb[0].mxu0 %v13014
      %v13292 = vpop.f32.mrb[0].mxu0
      %v13293 = vadd.f32 %v12759, %v13292
      %v13294 = vpop.f32.mrb[0].mxu0
      %v13295 = vpop.f32.mrb[0].mxu0
      %v13296 = vadd.f32 %v12759, %v13295
      %v13297 = vpop.f32.mrb[0].mxu0
      %13298 = vmatprep.mubr.bf16.mxu0 0
      %13299 = vmatmul.mubr.bf16.gmra.mrb[0].mxu0 %v13017
      %v13300 = vpop.f32.mrb[0].mxu0
      %v13301 = vadd.f32 %v12759, %v13300
      %v13302 = vpop.f32.mrb[0].mxu0
      %v13303 = vpop.f32.mrb[0].mxu0
      %v13304 = vadd.f32 %v12759, %v13303
      %v13305 = vpop.f32.mrb[0].mxu0
      %13306 = vmatprep.mubr.bf16.mxu0 0
      %13307 = vmatmul.mubr.bf16.gmra.mrb[0].mxu0 %v13020
      %v13308 = vpop.f32.mrb[0].mxu0
      %v13309 = vadd.f32 %v12759, %v13308
      %v13310 = vpop.f32.mrb[0].mxu0
      %v13311 = vpop.f32.mrb[0].mxu0
      %v13312 = vadd.f32 %v12759, %v13311
      %v13313 = vpop.f32.mrb[0].mxu0
      %13314 = vdwg.mxu0
      %v13315 = vmax.f32 %v13061, 0.0
      %v13316 = vmax.f32 %v13064, 0.0
      %v13317 = vmax.f32 %v13069, 0.0
      %v13318 = vmax.f32 %v13072, 0.0
      %v13319 = vmax.f32 %v13077, 0.0
      %v13320 = vmax.f32 %v13080, 0.0
      %v13321 = vmax.f32 %v13085, 0.0
      %v13322 = vmax.f32 %v13088, 0.0
      %v13323 = vmax.f32 %v13093, 0.0
      %v13324 = vmax.f32 %v13096, 0.0
      %v13325 = vmax.f32 %v13101, 0.0
      %v13326 = vmax.f32 %v13104, 0.0
      %v13327 = vmax.f32 %v13109, 0.0
      %v13328 = vmax.f32 %v13112, 0.0
      %v13329 = vmax.f32 %v13117, 0.0
      %v13330 = vmax.f32 %v13120, 0.0
      %v13331 = vmax.f32 %v13125, 0.0
      %v13332 = vmax.f32 %v13128, 0.0
      %v13333 = vmax.f32 %v13133, 0.0
      %v13334 = vmax.f32 %v13136, 0.0
      %v13335 = vmax.f32 %v13141, 0.0
      %v13336 = vmax.f32 %v13144, 0.0
      %v13337 = vmax.f32 %v13149, 0.0
      %v13338 = vmax.f32 %v13152, 0.0
      %v13339 = vmax.f32 %v13157, 0.0
      %v13340 = vmax.f32 %v13160, 0.0
      %v13341 = vmax.f32 %v13165, 0.0
      %v13342 = vmax.f32 %v13168, 0.0
      %v13343 = vmax.f32 %v13173, 0.0
      %v13344 = vmax.f32 %v13176, 0.0
      %v13345 = vmax.f32 %v13181, 0.0
      %v13346 = vmax.f32 %v13184, 0.0
      %v13347 = vmax.f32 %v13189, 0.0
      %v13348 = vmax.f32 %v13192, 0.0
      %v13349 = vmax.f32 %v13197, 0.0
      %v13350 = vmax.f32 %v13200, 0.0
      %v13351 = vmax.f32 %v13205, 0.0
      %v13352 = vmax.f32 %v13208, 0.0
      %v13353 = vmax.f32 %v13213, 0.0
      %v13354 = vmax.f32 %v13216, 0.0
      %v13355 = vmax.f32 %v13221, 0.0
      %v13356 = vmax.f32 %v13224, 0.0
      %v13357 = vmax.f32 %v13229, 0.0
      %v13358 = vmax.f32 %v13232, 0.0
      %v13359 = vmax.f32 %v13237, 0.0
      %v13360 = vmax.f32 %v13240, 0.0
      %v13361 = vmax.f32 %v13245, 0.0
      %v13362 = vmax.f32 %v13248, 0.0
      %v13363 = vmax.f32 %v13253, 0.0
      %v13364 = vmax.f32 %v13256, 0.0
      %v13365 = vmax.f32 %v13261, 0.0
      %v13366 = vmax.f32 %v13264, 0.0
      %v13367 = vmax.f32 %v13269, 0.0
      %v13368 = vmax.f32 %v13272, 0.0
      %v13369 = vmax.f32 %v13277, 0.0
      %v13370 = vmax.f32 %v13280, 0.0
      %v13371 = vmax.f32 %v13285, 0.0
      %v13372 = vmax.f32 %v13288, 0.0
      %v13373 = vmax.f32 %v13293, 0.0
      %v13374 = vmax.f32 %v13296, 0.0
      %v13375 = vmax.f32 %v13301, 0.0
      %v13376 = vmax.f32 %v13304, 0.0
      %v13377 = vmax.f32 %v13309, 0.0
      %v13378 = vmax.f32 %v13312, 0.0
      %13379 = vst.msk [vmem:[%s356] sm:$0xff] %vm6244, %v13315
      %13380 = vst.msk [vmem:[%s356 + $0x8] sm:$0xff] %vm6244, %v13316
      %13381 = vst.msk [vmem:[%s356 + $0x10] sm:$0xff] %vm6244, %v13317
      %13382 = vst.msk [vmem:[%s356 + $0x18] sm:$0xff] %vm6244, %v13318
      %13383 = vst.msk [vmem:[%s356 + $0x20] sm:$0xff] %vm6244, %v13319
      %13384 = vst.msk [vmem:[%s356 + $0x28] sm:$0xff] %vm6244, %v13320
      %13385 = vst.msk [vmem:[%s356 + $0x30] sm:$0xff] %vm6244, %v13321
      %13386 = vst.msk [vmem:[%s356 + $0x38] sm:$0xff] %vm6244, %v13322
      %13387 = vst.msk [vmem:[%s356 + $0x40] sm:$0xff] %vm6244, %v13323
      %13388 = vst.msk [vmem:[%s356 + $0x48] sm:$0xff] %vm6244, %v13324
      %13389 = vst.msk [vmem:[%s356 + $0x50] sm:$0xff] %vm6244, %v13325
      %13390 = vst.msk [vmem:[%s356 + $0x58] sm:$0xff] %vm6244, %v13326
      %13391 = vst.msk [vmem:[%s356 + $0x60] sm:$0xff] %vm6244, %v13327
      %13392 = vst.msk [vmem:[%s356 + $0x68] sm:$0xff] %vm6244, %v13328
      %13393 = vst.msk [vmem:[%s356 + $0x70] sm:$0xff] %vm6244, %v13329
      %13394 = vst.msk [vmem:[%s356 + $0x78] sm:$0xff] %vm6244, %v13330
      %13395 = vst.msk [vmem:[%s356 + $0x80] sm:$0xff] %vm6244, %v13331
      %13396 = vst.msk [vmem:[%s356 + $0x88] sm:$0xff] %vm6244, %v13332
      %13397 = vst.msk [vmem:[%s356 + $0x90] sm:$0xff] %vm6244, %v13333
      %13398 = vst.msk [vmem:[%s356 + $0x98] sm:$0xff] %vm6244, %v13334
      %13399 = vst.msk [vmem:[%s356 + $0xa0] sm:$0xff] %vm6244, %v13335
      %13400 = vst.msk [vmem:[%s356 + $0xa8] sm:$0xff] %vm6244, %v13336
      %13401 = vst.msk [vmem:[%s356 + $0xb0] sm:$0xff] %vm6244, %v13337
      %13402 = vst.msk [vmem:[%s356 + $0xb8] sm:$0xff] %vm6244, %v13338
      %13403 = vst.msk [vmem:[%s356 + $0xc0] sm:$0xff] %vm6244, %v13339
      %13404 = vst.msk [vmem:[%s356 + $0xc8] sm:$0xff] %vm6244, %v13340
      %13405 = vst.msk [vmem:[%s356 + $0xd0] sm:$0xff] %vm6244, %v13341
      %13406 = vst.msk [vmem:[%s356 + $0xd8] sm:$0xff] %vm6244, %v13342
      %13407 = vst.msk [vmem:[%s356 + $0xe0] sm:$0xff] %vm6244, %v13343
      %13408 = vst.msk [vmem:[%s356 + $0xe8] sm:$0xff] %vm6244, %v13344
      %13409 = vst.msk [vmem:[%s356 + $0xf0] sm:$0xff] %vm6244, %v13345
      %13410 = vst.msk [vmem:[%s356 + $0xf8] sm:$0xff] %vm6244, %v13346
      %13411 = vst.msk [vmem:[%s356 + $0x100] sm:$0xff] %vm6244, %v13347
      %13412 = vst.msk [vmem:[%s356 + $0x108] sm:$0xff] %vm6244, %v13348
      %13413 = vst.msk [vmem:[%s356 + $0x110] sm:$0xff] %vm6244, %v13349
      %13414 = vst.msk [vmem:[%s356 + $0x118] sm:$0xff] %vm6244, %v13350
      %13415 = vst.msk [vmem:[%s356 + $0x120] sm:$0xff] %vm6244, %v13351
      %13416 = vst.msk [vmem:[%s356 + $0x128] sm:$0xff] %vm6244, %v13352
      %13417 = vst.msk [vmem:[%s356 + $0x130] sm:$0xff] %vm6244, %v13353
      %13418 = vst.msk [vmem:[%s356 + $0x138] sm:$0xff] %vm6244, %v13354
      %13419 = vst.msk [vmem:[%s356 + $0x140] sm:$0xff] %vm6244, %v13355
      %13420 = vst.msk [vmem:[%s356 + $0x148] sm:$0xff] %vm6244, %v13356
      %13421 = vst.msk [vmem:[%s356 + $0x150] sm:$0xff] %vm6244, %v13357
      %13422 = vst.msk [vmem:[%s356 + $0x158] sm:$0xff] %vm6244, %v13358
      %13423 = vst.msk [vmem:[%s356 + $0x160] sm:$0xff] %vm6244, %v13359
      %13424 = vst.msk [vmem:[%s356 + $0x168] sm:$0xff] %vm6244, %v13360
      %13425 = vst.msk [vmem:[%s356 + $0x170] sm:$0xff] %vm6244, %v13361
      %13426 = vst.msk [vmem:[%s356 + $0x178] sm:$0xff] %vm6244, %v13362
      %13427 = vst.msk [vmem:[%s356 + $0x180] sm:$0xff] %vm6244, %v13363
      %13428 = vst.msk [vmem:[%s356 + $0x188] sm:$0xff] %vm6244, %v13364
      %13429 = vst.msk [vmem:[%s356 + $0x190] sm:$0xff] %vm6244, %v13365
      %13430 = vst.msk [vmem:[%s356 + $0x198] sm:$0xff] %vm6244, %v13366
      %13431 = vst.msk [vmem:[%s356 + $0x1a0] sm:$0xff] %vm6244, %v13367
      %13432 = vst.msk [vmem:[%s356 + $0x1a8] sm:$0xff] %vm6244, %v13368
      %13433 = vst.msk [vmem:[%s356 + $0x1b0] sm:$0xff] %vm6244, %v13369
      %13434 = vst.msk [vmem:[%s356 + $0x1b8] sm:$0xff] %vm6244, %v13370
      %13435 = vst.msk [vmem:[%s356 + $0x1c0] sm:$0xff] %vm6244, %v13371
      %13436 = vst.msk [vmem:[%s356 + $0x1c8] sm:$0xff] %vm6244, %v13372
      %13437 = vst.msk [vmem:[%s356 + $0x1d0] sm:$0xff] %vm6244, %v13373
      %13438 = vst.msk [vmem:[%s356 + $0x1d8] sm:$0xff] %vm6244, %v13374
      %13439 = vst.msk [vmem:[%s356 + $0x1e0] sm:$0xff] %vm6244, %v13375
      %13440 = vst.msk [vmem:[%s356 + $0x1e8] sm:$0xff] %vm6244, %v13376
      %13441 = vst.msk [vmem:[%s356 + $0x1f0] sm:$0xff] %vm6244, %v13377
      %13442 = vst.msk [vmem:[%s356 + $0x1f8] sm:$0xff] %vm6244, %v13378
      %s13443 = smul.u32 8, %s25
      %p13444 = scmp.lt.s32.totalorder %s24, 1
      %s13445 = scalar_select %p13444, %s24, 1
      %p13446 = scmp.lt.s32.totalorder %s13443, 15
      %s13447 = scalar_select %p13446, %s13443, 15
      %s13448 = smul.addr %s13447, 8
      %s13449 = smul.addr %s13445, 128
      %s13450 = sadd.s32 %s13448, %s13449
      %s13451 = smul.addr %s13450, 8
      %s13452 = scalar_lea.vmem %s9, %s13451
      // Predicated region
      $region57: #{up_block_forward.1} parent=55 // pred_check
        %p13453 = pneg %p246
      $region58: #{up_block_forward.1} parent=55 // pred_check_branch
        %13455 = sbr.rel (%p13453) target = $region60
      $region59: #{up_block_forward.1} parent=55 // pred_region
        %s13456 = smul.u32 8, %s25
      $region60: #{up_block_forward.1} parent=55 // pred_fallthru
        _
    $region56: #{up_block_forward.1} parent=5 // pred_fallthru
      _
    %p13457 = scmp.le.s32.totalorder 2, %s15
    // Predicated region
    $region61: #{up_block_forward.1} parent=5 // pred_check
      %p13458 = pneg %p13457
    $region62: #{up_block_forward.1} parent=5 // pred_check_branch
      %13460 = sbr.rel (%p13458) target = $region64
    $region63: #{up_block_forward.1} parent=5 // pred_region
      %s13461 = ssub.s32 %s15, 2
      // Predicated region
      $region65: #{up_block_forward.1} parent=63 // pred_check
        %p13462 = pneg %p252
      $region66: #{up_block_forward.1} parent=63 // pred_check_branch
        %13464 = sbr.rel (%p13462) target = $region68
      $region67: #{up_block_forward.1} parent=63 // pred_region
        %s13465 = smul.u32 8, %s27
        %p13466 = scmp.lt.s32.totalorder %s26, 1
        %s13467 = scalar_select %p13466, %s26, 1
        %p13468 = scmp.lt.s32.totalorder %s13465, 15
        %s13469 = scalar_select %p13468, %s13465, 15
        %s13470 = smul.addr %s13469, 8
        %s13471 = smul.addr %s13467, 128
        %s13472 = sadd.s32 %s13470, %s13471
        %s13473 = smul.addr %s13472, 8
        %s13474 = scalar_lea.vmem %s9, %s13473
      $region68: #{up_block_forward.1} parent=63 // pred_fallthru
        _
    $region64: #{up_block_forward.1} parent=5 // pred_fallthru
      _
  $region6: #{up_block_forward.1} parent=0 // loop_footer
    %s19 = sadd.s32 1, %s15
  $region7: #{up_block_forward.1} parent=0 // loop_footer_branch
    %14 = sbr.rel target = $region3
  $region8: #{up_block_forward.1} parent=0 // loop_exit
    _

</llo_original>
